<compile_context>
chip_gen: v5e
topology: v5e:2x2
jax: 0.10.0
libtpu: 0.0.40
codegen_flags: <defaults>
</compile_context>

<pallas_src>
import jax
import jax.numpy as jnp
from jax.experimental import pallas as pl
from jax.experimental.pallas import tpu as pltpu


# ---------------------------------------------------------------------------
# Pallas kernels
# ---------------------------------------------------------------------------
def conv1_kernel(xe_ref, xo_ref, w_ref, b_ref, o_ref):
    """conv1(3x3, pad=1, 1->25) + bias + ReLU + MaxPool2d(2) for one image.

    xe_ref/xo_ref: (448, 16) bf16 tap-packed im2col planes for even/odd output
                   columns; row = conv_row*16 + half_col, K = 9 taps (pad 16).
    w_ref:         (16, 128) bf16 tap-major weights (cout 25 padded to 128).
    b_ref:         (1, 128)  f32 bias (zero padded).
    o_ref:         (14, 16, 128) bf16 pooled output; half-cols >= 14 and
                   channels >= 25 are don't-care/zero (sliced off by wrapper).
    """
    w = w_ref[...]
    b = b_ref[...]
    # 7 chunks of 64 im2col rows (= 4 conv rows = 2 pooled rows): keeps the
    # two live f32 parity products vreg-resident (no accumulator spills).
    for t in range(7):
        r0 = t * 64
        acc_e = jnp.dot(xe_ref[r0:r0 + 64, :], w,
                        preferred_element_type=jnp.float32)
        acc_o = jnp.dot(xo_ref[r0:r0 + 64, :], w,
                        preferred_element_type=jnp.float32)
        # w-direction 2x pool + bias + ReLU (bias/relu commute with max).
        y = jnp.maximum(jnp.maximum(acc_e, acc_o) + b, 0.0)          # (64,128)
        # h-direction pool: rows are (conv_row, half_col); regroup row pairs.
        y = y.reshape(2, 2, 16, 128)
        y = jnp.maximum(y[:, 0], y[:, 1])                            # (2,16,128)
        o_ref[2 * t:2 * t + 2, :, :] = y.astype(o_ref.dtype)


def conv2_kernel(xe_ref, xo_ref, w_ref, b_ref, o_ref):
    """conv2(3x3, pad=1, 25->50) + bias + ReLU + MaxPool2d(2) for one image.

    xe_ref/xo_ref: (112, 256) bf16 tap-packed im2col planes (K = 9*25 pad 256).
    w_ref:         (256, 128) bf16 tap-major weights (cout 50 padded to 128).
    b_ref:         (1, 128)  f32 bias (zero padded).
    o_ref:         (7, 8, 128) bf16 pooled output; half-col 7 and channels
                   >= 50 are don't-care/zero (sliced off by wrapper).
    """
    w = w_ref[...]
    acc_e = jnp.dot(xe_ref[...], w, preferred_element_type=jnp.float32)
    acc_o = jnp.dot(xo_ref[...], w, preferred_element_type=jnp.float32)
    y = jnp.maximum(jnp.maximum(acc_e, acc_o) + b_ref[...], 0.0)     # (112,128)
    y = y.reshape(7, 2, 8, 128)
    y = jnp.maximum(y[:, 0], y[:, 1])                                # (7,8,128)
    o_ref[...] = y.astype(o_ref.dtype)


def mlp_head_kernel(x_ref, w1_ref, b1_ref, w2_ref, b2_ref, w3_ref, b3_ref,
                    o_ref, h2_acc):
    """linear1+ReLU -> linear2+ReLU -> linear3 -> log_softmax over dim=0.

    Grid axis j streams 256-wide column blocks of w1 (and matching 256-row
    blocks of w2); h2 is accumulated in a tiny f32 scratch so the big w1 DMA
    pipelines instead of being a single exposed whole-block fetch.
    """
    j = pl.program_id(0)

    @pl.when(j == 0)
    def _():
        h2_acc[...] = jnp.zeros_like(h2_acc)

    h1 = jnp.dot(x_ref[...], w1_ref[...], preferred_element_type=jnp.float32)
    h1 = jnp.maximum(h1 + b1_ref[...], 0.0).astype(jnp.bfloat16)      # (N,256)
    h2_acc[...] += jnp.dot(h1, w2_ref[...],
                           preferred_element_type=jnp.float32)        # (N,128)

    @pl.when(j == pl.num_programs(0) - 1)
    def _():
        h2 = jnp.maximum(h2_acc[...] + b2_ref[...], 0.0).astype(jnp.bfloat16)
        z = jnp.dot(h2, w3_ref[...], preferred_element_type=jnp.float32)
        z = z + b3_ref[...]
        z = z[:, :10]                                                 # real logits
        # torch.log_softmax(RES, dim=0): normalize over the BATCH axis.
        m = jnp.max(z, axis=0, keepdims=True)
        lse = m + jnp.log(jnp.sum(jnp.exp(z - m), axis=0, keepdims=True))
        o_ref[...] = (z - lse).astype(o_ref.dtype)


# ---------------------------------------------------------------------------
# pallas_call wrappers
# ---------------------------------------------------------------------------
def conv1_stage(xe, xo, w, b):
    n = xe.shape[0]
    return pl.pallas_call(
        conv1_kernel,
        out_shape=jax.ShapeDtypeStruct((n, 14, 16, 128), jnp.bfloat16),
        grid=(n,),
        in_specs=[
            pl.BlockSpec((None, 448, 16), lambda i: (i, 0, 0)),
            pl.BlockSpec((None, 448, 16), lambda i: (i, 0, 0)),
            pl.BlockSpec((16, 128), lambda i: (0, 0)),
            pl.BlockSpec((1, 128), lambda i: (0, 0)),
        ],
        out_specs=pl.BlockSpec((None, 14, 16, 128), lambda i: (i, 0, 0, 0)),
        compiler_params=pltpu.CompilerParams(
            dimension_semantics=("parallel",)),
    )(xe, xo, w, b)


def conv2_stage(xe, xo, w, b):
    n = xe.shape[0]
    return pl.pallas_call(
        conv2_kernel,
        out_shape=jax.ShapeDtypeStruct((n, 7, 8, 128), jnp.bfloat16),
        grid=(n,),
        in_specs=[
            pl.BlockSpec((None, 112, 256), lambda i: (i, 0, 0)),
            pl.BlockSpec((None, 112, 256), lambda i: (i, 0, 0)),
            pl.BlockSpec((256, 128), lambda i: (0, 0)),
            pl.BlockSpec((1, 128), lambda i: (0, 0)),
        ],
        out_specs=pl.BlockSpec((None, 7, 8, 128), lambda i: (i, 0, 0, 0)),
        compiler_params=pltpu.CompilerParams(
            dimension_semantics=("parallel",)),
    )(xe, xo, w, b)


def mlp_head(x, p):
    n = x.shape[0]
    nblk = 4  # 1024 padded linear1 outputs / 256 per block
    return pl.pallas_call(
        mlp_head_kernel,
        out_shape=jax.ShapeDtypeStruct((n, 10), jnp.float32),
        grid=(nblk,),
        in_specs=[
            pl.BlockSpec((n, 2450), lambda j: (0, 0)),
            pl.BlockSpec((2450, 256), lambda j: (0, j)),
            pl.BlockSpec((1, 256), lambda j: (0, j)),
            pl.BlockSpec((256, 128), lambda j: (j, 0)),
            pl.BlockSpec((1, 128), lambda j: (0, 0)),
            pl.BlockSpec((128, 128), lambda j: (0, 0)),
            pl.BlockSpec((1, 128), lambda j: (0, 0)),
        ],
        out_specs=pl.BlockSpec((n, 10), lambda j: (0, 0)),
        scratch_shapes=[pltpu.VMEM((n, 128), jnp.float32)],
        compiler_params=pltpu.CompilerParams(
            dimension_semantics=("arbitrary",)),
    )(x, p["w1"], p["b1"], p["w2"], p["b2"], p["w3"], p["b3"])


# ---------------------------------------------------------------------------
# Tiny XLA glue: tap-packed im2col construction (inputs are a few KiB/image)
# ---------------------------------------------------------------------------
def _conv1_im2col(x_nhw):
    """(N, 28, 28) bf16 -> even/odd parity planes, each (N, 448, 16)."""
    n = x_nhw.shape[0]
    xp = jnp.pad(x_nhw, ((0, 0), (1, 1), (1, 1)))                    # (N,30,30)
    planes = []
    for p in (0, 1):
        taps = [xp[:, kh:kh + 28, p + kw:p + kw + 27:2]
                for kh in range(3) for kw in range(3)]               # (N,28,14)
        t = jnp.stack(taps, axis=-1)                                 # (N,28,14,9)
        t = jnp.pad(t, ((0, 0), (0, 0), (0, 2), (0, 7)))             # (N,28,16,16)
        planes.append(t.reshape(n, 448, 16))
    return planes


def _conv2_im2col(yp):
    """(N, 16, 16, 25) bf16 spatially padded -> parity planes (N, 112, 256)."""
    n = yp.shape[0]
    planes = []
    for p in (0, 1):
        taps = [yp[:, kh:kh + 14, p + kw:p + kw + 13:2, :]
                for kh in range(3) for kw in range(3)]               # (N,14,7,25)
        t = jnp.concatenate(taps, axis=-1)                           # (N,14,7,225)
        t = jnp.pad(t, ((0, 0), (0, 0), (0, 1), (0, 31)))            # (N,14,8,256)
        planes.append(t.reshape(n, 112, 256))
    return planes


# ---------------------------------------------------------------------------
# Parameters: PyTorch layouts -> kernel layouts (done ONCE, not per forward)
# ---------------------------------------------------------------------------
def init_torch_params(key):
    """Random parameters in the PyTorch nn.Module layouts."""
    ks = jax.random.split(key, 10)
    f32 = jnp.float32
    return {
        "conv1_w": 0.05 * jax.random.normal(ks[0], (25, 1, 3, 3), f32),
        "conv1_b": 0.01 * jax.random.normal(ks[1], (25,), f32),
        "conv2_w": 0.05 * jax.random.normal(ks[2], (50, 25, 3, 3), f32),
        "conv2_b": 0.01 * jax.random.normal(ks[3], (50,), f32),
        "lin1_w": 0.02 * jax.random.normal(ks[4], (1000, 7 * 7 * 50), f32),
        "lin1_b": 0.01 * jax.random.normal(ks[5], (1000,), f32),
        "lin2_w": 0.02 * jax.random.normal(ks[6], (100, 1000), f32),
        "lin2_b": 0.01 * jax.random.normal(ks[7], (100,), f32),
        "lin3_w": 0.02 * jax.random.normal(ks[8], (10, 100), f32),
        "lin3_b": 0.01 * jax.random.normal(ks[9], (10,), f32),
    }


def prepare_params(tp):
    """Tap-major packed conv weights, (K, N) linear weights, lane padding,
    bf16 weights, f32 biases, lin1 rows permuted to the (h, w, c) order."""
    bf16, f32 = jnp.bfloat16, jnp.float32

    # conv1: (25,1,3,3) -> (kh,kw,ci,co) -> (9, 25) -> pad (16, 128).
    c1w = jnp.transpose(tp["conv1_w"], (2, 3, 1, 0)).reshape(9, 25)
    c1w = jnp.pad(c1w, ((0, 7), (0, 103))).astype(bf16)
    c1b = jnp.pad(tp["conv1_b"], (0, 103)).reshape(1, 128).astype(f32)

    # conv2: (50,25,3,3) -> (kh,kw,ci,co) -> (225, 50) -> pad (256, 128).
    c2w = jnp.transpose(tp["conv2_w"], (2, 3, 1, 0)).reshape(225, 50)
    c2w = jnp.pad(c2w, ((0, 31), (0, 78))).astype(bf16)
    c2b = jnp.pad(tp["conv2_b"], (0, 78)).reshape(1, 128).astype(f32)

    # lin1: PyTorch flatten order is (c, h, w); our activation is (h, w, c).
    w1 = tp["lin1_w"].reshape(1000, 50, 7, 7)
    w1 = jnp.transpose(w1, (0, 2, 3, 1)).reshape(1000, 2450)
    w1 = jnp.pad(w1.T, ((0, 0), (0, 24))).astype(bf16)        # (2450, 1024)
    b1 = jnp.pad(tp["lin1_b"], (0, 24)).reshape(1, 1024).astype(f32)

    w2 = jnp.pad(tp["lin2_w"].T, ((0, 24), (0, 28))).astype(bf16)   # (1024,128)
    b2 = jnp.pad(tp["lin2_b"], (0, 28)).reshape(1, 128).astype(f32)

    w3 = jnp.pad(tp["lin3_w"].T, ((0, 28), (0, 118))).astype(bf16)  # (128,128)
    b3 = jnp.pad(tp["lin3_b"], (0, 118)).reshape(1, 128).astype(f32)

    return {"c1w": c1w, "c1b": c1b, "c2w": c2w, "c2b": c2b,
            "w1": w1, "b1": b1, "w2": w2, "b2": b2, "w3": w3, "b3": b3}


# ---------------------------------------------------------------------------
# Full Net forward
# ---------------------------------------------------------------------------
def net_forward(p, x_nchw):
    n = x_nchw.shape[0]
    x = x_nchw[:, 0, :, :].astype(jnp.bfloat16)                  # (N,28,28)

    # conv1 + bias + maxpool(2) + relu: two tap-packed matmuls per image.
    x1e, x1o = _conv1_im2col(x)
    y1 = conv1_stage(x1e, x1o, p["c1w"], p["c1b"])               # (N,14,16,128)

    # conv2 + bias + maxpool(2) + relu: real cin=25 packed into K=256.
    yp = jnp.pad(y1[:, :, :14, :25], ((0, 0), (1, 1), (1, 1), (0, 0)))
    x2e, x2o = _conv2_im2col(yp)                                 # (N,112,256) x2
    y2 = conv2_stage(x2e, x2o, p["c2w"], p["c2b"])               # (N,7,8,128)

    # dropout2d / dropout1 / dropout2: eval-mode identities.
    # Flatten valid region in (h, w, c) order; lin1 rows were permuted to match.
    act = y2[:, :, :7, :50].reshape(n, 7 * 7 * 50)               # (N, 2450) bf16

    # linear1+relu -> linear2+relu -> linear3 -> log_softmax(dim=0)
    return mlp_head(act, p)


if __name__ == "__main__":
    key = jax.random.PRNGKey(0)
    pkey, xkey = jax.random.split(key)
    params = prepare_params(init_torch_params(pkey))
    # MNIST-like input: batch=2, 1 channel, 28x28 (required by the 7*7*50 view).
    x = jax.random.normal(xkey, (2, 1, 28, 28), jnp.float32)

    fwd = jax.jit(net_forward)
    out = jax.block_until_ready(fwd(params, x))
    assert out.shape == (2, 10)
    assert bool(jnp.all(jnp.isfinite(out)))
    # log_softmax over dim=0: exp(out) must sum to 1 over the batch axis.
    colsum = jnp.sum(jnp.exp(out), axis=0)
    assert bool(jnp.all(jnp.abs(colsum - 1.0) < 1e-3))
    print("KERNEL_OK")
</pallas_src>

<mosaic_0001>
module attributes {stable_mosaic.version = 11 : i64} {
  func.func @conv1_kernel(%arg0: i32, %arg1: memref<1x448x16xbf16, #tpu.memory_space<vmem>>, %arg2: memref<1x448x16xbf16, #tpu.memory_space<vmem>>, %arg3: memref<16x128xbf16, #tpu.memory_space<vmem>>, %arg4: memref<1x128xf32, #tpu.memory_space<vmem>>, %arg5: memref<1x14x16x128xbf16, #tpu.memory_space<vmem>>) attributes {dimension_semantics = [#tpu.dimension_semantics<parallel>], iteration_bounds = array<i64: 2>, scalar_prefetch = 0 : i64, scratch_operands = 0 : i64, tpu.core_type = #tpu.core_type<tc>, window_params = [{transform_indices = @transform_0, window_bounds = array<i64: 1, 448, 16>}, {transform_indices = @transform_1, window_bounds = array<i64: 1, 448, 16>}, {pipeline_mode = #tpu.pipeline_mode<synchronous>, transform_indices = @transform_2, window_bounds = array<i64: 16, 128>}, {pipeline_mode = #tpu.pipeline_mode<synchronous>, transform_indices = @transform_3, window_bounds = array<i64: 1, 128>}, {transform_indices = @transform_4, window_bounds = array<i64: 1, 14, 16, 128>}]} {
    %c0 = arith.constant 0 : index
    %c0_0 = arith.constant 0 : index
    %0 = vector.load %arg3[%c0, %c0_0] : memref<16x128xbf16, #tpu.memory_space<vmem>>, vector<16x128xbf16>
    %c0_1 = arith.constant 0 : index
    %c0_2 = arith.constant 0 : index
    %1 = vector.load %arg4[%c0_1, %c0_2] : memref<1x128xf32, #tpu.memory_space<vmem>>, vector<1x128xf32>
    %c0_3 = arith.constant 0 : index
    %c0_4 = arith.constant 0 : index
    %c0_5 = arith.constant 0 : index
    %2 = vector.load %arg1[%c0_3, %c0_4, %c0_5] : memref<1x448x16xbf16, #tpu.memory_space<vmem>>, vector<1x64x16xbf16>
    %3 = vector.shape_cast %2 : vector<1x64x16xbf16> to vector<64x16xbf16>
    %cst = arith.constant dense<0.000000e+00> : vector<64x128xf32>
    %4 = tpu.matmul %3, %0, %cst {dimension_numbers = #tpu.dot_dimension_numbers<[1], [0], [0], [1], [0, 0, 1, 1], [], []>} : vector<64x16xbf16>, vector<16x128xbf16>, vector<64x128xf32> -> vector<64x128xf32>
    %c0_6 = arith.constant 0 : index
    %c0_7 = arith.constant 0 : index
    %c0_8 = arith.constant 0 : index
    %5 = vector.load %arg2[%c0_6, %c0_7, %c0_8] : memref<1x448x16xbf16, #tpu.memory_space<vmem>>, vector<1x64x16xbf16>
    %6 = vector.shape_cast %5 : vector<1x64x16xbf16> to vector<64x16xbf16>
    %cst_9 = arith.constant dense<0.000000e+00> : vector<64x128xf32>
    %7 = tpu.matmul %6, %0, %cst_9 {dimension_numbers = #tpu.dot_dimension_numbers<[1], [0], [0], [1], [0, 0, 1, 1], [], []>} : vector<64x16xbf16>, vector<16x128xbf16>, vector<64x128xf32> -> vector<64x128xf32>
    %8 = arith.maximumf %4, %7 : vector<64x128xf32>
    %9 = vector.broadcast %1 : vector<1x128xf32> to vector<64x128xf32>
    %10 = arith.addf %8, %9 : vector<64x128xf32>
    %cst_10 = arith.constant 0.000000e+00 : f32
    %11 = vector.broadcast %cst_10 : f32 to vector<64x128xf32>
    %12 = arith.maximumf %10, %11 : vector<64x128xf32>
    %13 = vector.shape_cast %12 : vector<64x128xf32> to vector<2x2x16x128xf32>
    %14 = vector.extract_strided_slice %13 {offsets = [0, 0, 0, 0], sizes = [2, 1, 16, 128], strides = [1, 1, 1, 1]} : vector<2x2x16x128xf32> to vector<2x1x16x128xf32>
    %15 = vector.shape_cast %14 : vector<2x1x16x128xf32> to vector<2x16x128xf32>
    %16 = vector.extract_strided_slice %13 {offsets = [0, 1, 0, 0], sizes = [2, 1, 16, 128], strides = [1, 1, 1, 1]} : vector<2x2x16x128xf32> to vector<2x1x16x128xf32>
    %17 = vector.shape_cast %16 : vector<2x1x16x128xf32> to vector<2x16x128xf32>
    %18 = arith.maximumf %15, %17 : vector<2x16x128xf32>
    %19 = arith.truncf %18 : vector<2x16x128xf32> to vector<2x16x128xbf16>
    %c0_11 = arith.constant 0 : index
    %c0_12 = arith.constant 0 : index
    %c0_13 = arith.constant 0 : index
    %c0_14 = arith.constant 0 : index
    %20 = vector.load %arg5[%c0_11, %c0_12, %c0_13, %c0_14] : memref<1x14x16x128xbf16, #tpu.memory_space<vmem>>, vector<1x2x16x128xbf16>
    %21 = vector.shape_cast %20 : vector<1x2x16x128xbf16> to vector<2x16x128xbf16>
    %22 = vector.shape_cast %19 : vector<2x16x128xbf16> to vector<1x2x16x128xbf16>
    tpu.vector_store %arg5[%c0_11, %c0_12, %c0_13, %c0_14], %22 {strides = array<i32>} : memref<1x14x16x128xbf16, #tpu.memory_space<vmem>>, vector<1x2x16x128xbf16>,
    %c0_15 = arith.constant 0 : index
    %c64 = arith.constant 64 : index
    %c0_16 = arith.constant 0 : index
    %23 = vector.load %arg1[%c0_15, %c64, %c0_16] : memref<1x448x16xbf16, #tpu.memory_space<vmem>>, vector<1x64x16xbf16>
    %24 = vector.shape_cast %23 : vector<1x64x16xbf16> to vector<64x16xbf16>
    %cst_17 = arith.constant dense<0.000000e+00> : vector<64x128xf32>
    %25 = tpu.matmul %24, %0, %cst_17 {dimension_numbers = #tpu.dot_dimension_numbers<[1], [0], [0], [1], [0, 0, 1, 1], [], []>} : vector<64x16xbf16>, vector<16x128xbf16>, vector<64x128xf32> -> vector<64x128xf32>
    %c0_18 = arith.constant 0 : index
    %c64_19 = arith.constant 64 : index
    %c0_20 = arith.constant 0 : index
    %26 = vector.load %arg2[%c0_18, %c64_19, %c0_20] : memref<1x448x16xbf16, #tpu.memory_space<vmem>>, vector<1x64x16xbf16>
    %27 = vector.shape_cast %26 : vector<1x64x16xbf16> to vector<64x16xbf16>
    %cst_21 = arith.constant dense<0.000000e+00> : vector<64x128xf32>
    %28 = tpu.matmul %27, %0, %cst_21 {dimension_numbers = #tpu.dot_dimension_numbers<[1], [0], [0], [1], [0, 0, 1, 1], [], []>} : vector<64x16xbf16>, vector<16x128xbf16>, vector<64x128xf32> -> vector<64x128xf32>
    %29 = arith.maximumf %25, %28 : vector<64x128xf32>
    %30 = vector.broadcast %1 : vector<1x128xf32> to vector<64x128xf32>
    %31 = arith.addf %29, %30 : vector<64x128xf32>
    %cst_22 = arith.constant 0.000000e+00 : f32
    %32 = vector.broadcast %cst_22 : f32 to vector<64x128xf32>
    %33 = arith.maximumf %31, %32 : vector<64x128xf32>
    %34 = vector.shape_cast %33 : vector<64x128xf32> to vector<2x2x16x128xf32>
    %35 = vector.extract_strided_slice %34 {offsets = [0, 0, 0, 0], sizes = [2, 1, 16, 128], strides = [1, 1, 1, 1]} : vector<2x2x16x128xf32> to vector<2x1x16x128xf32>
    %36 = vector.shape_cast %35 : vector<2x1x16x128xf32> to vector<2x16x128xf32>
    %37 = vector.extract_strided_slice %34 {offsets = [0, 1, 0, 0], sizes = [2, 1, 16, 128], strides = [1, 1, 1, 1]} : vector<2x2x16x128xf32> to vector<2x1x16x128xf32>
    %38 = vector.shape_cast %37 : vector<2x1x16x128xf32> to vector<2x16x128xf32>
    %39 = arith.maximumf %36, %38 : vector<2x16x128xf32>
    %40 = arith.truncf %39 : vector<2x16x128xf32> to vector<2x16x128xbf16>
    %c0_23 = arith.constant 0 : index
    %c2 = arith.constant 2 : index
    %c0_24 = arith.constant 0 : index
    %c0_25 = arith.constant 0 : index
    %41 = vector.load %arg5[%c0_23, %c2, %c0_24, %c0_25] : memref<1x14x16x128xbf16, #tpu.memory_space<vmem>>, vector<1x2x16x128xbf16>
    %42 = vector.shape_cast %41 : vector<1x2x16x128xbf16> to vector<2x16x128xbf16>
    %43 = vector.shape_cast %40 : vector<2x16x128xbf16> to vector<1x2x16x128xbf16>
    tpu.vector_store %arg5[%c0_23, %c2, %c0_24, %c0_25], %43 {strides = array<i32>} : memref<1x14x16x128xbf16, #tpu.memory_space<vmem>>, vector<1x2x16x128xbf16>,
    %c0_26 = arith.constant 0 : index
    %c128 = arith.constant 128 : index
    %c0_27 = arith.constant 0 : index
    %44 = vector.load %arg1[%c0_26, %c128, %c0_27] : memref<1x448x16xbf16, #tpu.memory_space<vmem>>, vector<1x64x16xbf16>
    %45 = vector.shape_cast %44 : vector<1x64x16xbf16> to vector<64x16xbf16>
    %cst_28 = arith.constant dense<0.000000e+00> : vector<64x128xf32>
    %46 = tpu.matmul %45, %0, %cst_28 {dimension_numbers = #tpu.dot_dimension_numbers<[1], [0], [0], [1], [0, 0, 1, 1], [], []>} : vector<64x16xbf16>, vector<16x128xbf16>, vector<64x128xf32> -> vector<64x128xf32>
    %c0_29 = arith.constant 0 : index
    %c128_30 = arith.constant 128 : index
    %c0_31 = arith.constant 0 : index
    %47 = vector.load %arg2[%c0_29, %c128_30, %c0_31] : memref<1x448x16xbf16, #tpu.memory_space<vmem>>, vector<1x64x16xbf16>
    %48 = vector.shape_cast %47 : vector<1x64x16xbf16> to vector<64x16xbf16>
    %cst_32 = arith.constant dense<0.000000e+00> : vector<64x128xf32>
    %49 = tpu.matmul %48, %0, %cst_32 {dimension_numbers = #tpu.dot_dimension_numbers<[1], [0], [0], [1], [0, 0, 1, 1], [], []>} : vector<64x16xbf16>, vector<16x128xbf16>, vector<64x128xf32> -> vector<64x128xf32>
    %50 = arith.maximumf %46, %49 : vector<64x128xf32>
    %51 = vector.broadcast %1 : vector<1x128xf32> to vector<64x128xf32>
    %52 = arith.addf %50, %51 : vector<64x128xf32>
    %cst_33 = arith.constant 0.000000e+00 : f32
    %53 = vector.broadcast %cst_33 : f32 to vector<64x128xf32>
    %54 = arith.maximumf %52, %53 : vector<64x128xf32>
    %55 = vector.shape_cast %54 : vector<64x128xf32> to vector<2x2x16x128xf32>
    %56 = vector.extract_strided_slice %55 {offsets = [0, 0, 0, 0], sizes = [2, 1, 16, 128], strides = [1, 1, 1, 1]} : vector<2x2x16x128xf32> to vector<2x1x16x128xf32>
    %57 = vector.shape_cast %56 : vector<2x1x16x128xf32> to vector<2x16x128xf32>
    %58 = vector.extract_strided_slice %55 {offsets = [0, 1, 0, 0], sizes = [2, 1, 16, 128], strides = [1, 1, 1, 1]} : vector<2x2x16x128xf32> to vector<2x1x16x128xf32>
    %59 = vector.shape_cast %58 : vector<2x1x16x128xf32> to vector<2x16x128xf32>
    %60 = arith.maximumf %57, %59 : vector<2x16x128xf32>
    %61 = arith.truncf %60 : vector<2x16x128xf32> to vector<2x16x128xbf16>
    %c0_34 = arith.constant 0 : index
    %c4 = arith.constant 4 : index
    %c0_35 = arith.constant 0 : index
    %c0_36 = arith.constant 0 : index
    %62 = vector.load %arg5[%c0_34, %c4, %c0_35, %c0_36] : memref<1x14x16x128xbf16, #tpu.memory_space<vmem>>, vector<1x2x16x128xbf16>
    %63 = vector.shape_cast %62 : vector<1x2x16x128xbf16> to vector<2x16x128xbf16>
    %64 = vector.shape_cast %61 : vector<2x16x128xbf16> to vector<1x2x16x128xbf16>
    tpu.vector_store %arg5[%c0_34, %c4, %c0_35, %c0_36], %64 {strides = array<i32>} : memref<1x14x16x128xbf16, #tpu.memory_space<vmem>>, vector<1x2x16x128xbf16>,
    %c0_37 = arith.constant 0 : index
    %c192 = arith.constant 192 : index
    %c0_38 = arith.constant 0 : index
    %65 = vector.load %arg1[%c0_37, %c192, %c0_38] : memref<1x448x16xbf16, #tpu.memory_space<vmem>>, vector<1x64x16xbf16>
    %66 = vector.shape_cast %65 : vector<1x64x16xbf16> to vector<64x16xbf16>
    %cst_39 = arith.constant dense<0.000000e+00> : vector<64x128xf32>
    %67 = tpu.matmul %66, %0, %cst_39 {dimension_numbers = #tpu.dot_dimension_numbers<[1], [0], [0], [1], [0, 0, 1, 1], [], []>} : vector<64x16xbf16>, vector<16x128xbf16>, vector<64x128xf32> -> vector<64x128xf32>
    %c0_40 = arith.constant 0 : index
    %c192_41 = arith.constant 192 : index
    %c0_42 = arith.constant 0 : index
    %68 = vector.load %arg2[%c0_40, %c192_41, %c0_42] : memref<1x448x16xbf16, #tpu.memory_space<vmem>>, vector<1x64x16xbf16>
    %69 = vector.shape_cast %68 : vector<1x64x16xbf16> to vector<64x16xbf16>
    %cst_43 = arith.constant dense<0.000000e+00> : vector<64x128xf32>
    %70 = tpu.matmul %69, %0, %cst_43 {dimension_numbers = #tpu.dot_dimension_numbers<[1], [0], [0], [1], [0, 0, 1, 1], [], []>} : vector<64x16xbf16>, vector<16x128xbf16>, vector<64x128xf32> -> vector<64x128xf32>
    %71 = arith.maximumf %67, %70 : vector<64x128xf32>
    %72 = vector.broadcast %1 : vector<1x128xf32> to vector<64x128xf32>
    %73 = arith.addf %71, %72 : vector<64x128xf32>
    %cst_44 = arith.constant 0.000000e+00 : f32
    %74 = vector.broadcast %cst_44 : f32 to vector<64x128xf32>
    %75 = arith.maximumf %73, %74 : vector<64x128xf32>
    %76 = vector.shape_cast %75 : vector<64x128xf32> to vector<2x2x16x128xf32>
    %77 = vector.extract_strided_slice %76 {offsets = [0, 0, 0, 0], sizes = [2, 1, 16, 128], strides = [1, 1, 1, 1]} : vector<2x2x16x128xf32> to vector<2x1x16x128xf32>
    %78 = vector.shape_cast %77 : vector<2x1x16x128xf32> to vector<2x16x128xf32>
    %79 = vector.extract_strided_slice %76 {offsets = [0, 1, 0, 0], sizes = [2, 1, 16, 128], strides = [1, 1, 1, 1]} : vector<2x2x16x128xf32> to vector<2x1x16x128xf32>
    %80 = vector.shape_cast %79 : vector<2x1x16x128xf32> to vector<2x16x128xf32>
    %81 = arith.maximumf %78, %80 : vector<2x16x128xf32>
    %82 = arith.truncf %81 : vector<2x16x128xf32> to vector<2x16x128xbf16>
    %c0_45 = arith.constant 0 : index
    %c6 = arith.constant 6 : index
    %c0_46 = arith.constant 0 : index
    %c0_47 = arith.constant 0 : index
    %83 = vector.load %arg5[%c0_45, %c6, %c0_46, %c0_47] : memref<1x14x16x128xbf16, #tpu.memory_space<vmem>>, vector<1x2x16x128xbf16>
    %84 = vector.shape_cast %83 : vector<1x2x16x128xbf16> to vector<2x16x128xbf16>
    %85 = vector.shape_cast %82 : vector<2x16x128xbf16> to vector<1x2x16x128xbf16>
    tpu.vector_store %arg5[%c0_45, %c6, %c0_46, %c0_47], %85 {strides = array<i32>} : memref<1x14x16x128xbf16, #tpu.memory_space<vmem>>, vector<1x2x16x128xbf16>,
    %c0_48 = arith.constant 0 : index
    %c256 = arith.constant 256 : index
    %c0_49 = arith.constant 0 : index
    %86 = vector.load %arg1[%c0_48, %c256, %c0_49] : memref<1x448x16xbf16, #tpu.memory_space<vmem>>, vector<1x64x16xbf16>
    %87 = vector.shape_cast %86 : vector<1x64x16xbf16> to vector<64x16xbf16>
    %cst_50 = arith.constant dense<0.000000e+00> : vector<64x128xf32>
    %88 = tpu.matmul %87, %0, %cst_50 {dimension_numbers = #tpu.dot_dimension_numbers<[1], [0], [0], [1], [0, 0, 1, 1], [], []>} : vector<64x16xbf16>, vector<16x128xbf16>, vector<64x128xf32> -> vector<64x128xf32>
    %c0_51 = arith.constant 0 : index
    %c256_52 = arith.constant 256 : index
    %c0_53 = arith.constant 0 : index
    %89 = vector.load %arg2[%c0_51, %c256_52, %c0_53] : memref<1x448x16xbf16, #tpu.memory_space<vmem>>, vector<1x64x16xbf16>
    %90 = vector.shape_cast %89 : vector<1x64x16xbf16> to vector<64x16xbf16>
    %cst_54 = arith.constant dense<0.000000e+00> : vector<64x128xf32>
    %91 = tpu.matmul %90, %0, %cst_54 {dimension_numbers = #tpu.dot_dimension_numbers<[1], [0], [0], [1], [0, 0, 1, 1], [], []>} : vector<64x16xbf16>, vector<16x128xbf16>, vector<64x128xf32> -> vector<64x128xf32>
    %92 = arith.maximumf %88, %91 : vector<64x128xf32>
    %93 = vector.broadcast %1 : vector<1x128xf32> to vector<64x128xf32>
    %94 = arith.addf %92, %93 : vector<64x128xf32>
    %cst_55 = arith.constant 0.000000e+00 : f32
    %95 = vector.broadcast %cst_55 : f32 to vector<64x128xf32>
    %96 = arith.maximumf %94, %95 : vector<64x128xf32>
    %97 = vector.shape_cast %96 : vector<64x128xf32> to vector<2x2x16x128xf32>
    %98 = vector.extract_strided_slice %97 {offsets = [0, 0, 0, 0], sizes = [2, 1, 16, 128], strides = [1, 1, 1, 1]} : vector<2x2x16x128xf32> to vector<2x1x16x128xf32>
    %99 = vector.shape_cast %98 : vector<2x1x16x128xf32> to vector<2x16x128xf32>
    %100 = vector.extract_strided_slice %97 {offsets = [0, 1, 0, 0], sizes = [2, 1, 16, 128], strides = [1, 1, 1, 1]} : vector<2x2x16x128xf32> to vector<2x1x16x128xf32>
    %101 = vector.shape_cast %100 : vector<2x1x16x128xf32> to vector<2x16x128xf32>
    %102 = arith.maximumf %99, %101 : vector<2x16x128xf32>
    %103 = arith.truncf %102 : vector<2x16x128xf32> to vector<2x16x128xbf16>
    %c0_56 = arith.constant 0 : index
    %c8 = arith.constant 8 : index
    %c0_57 = arith.constant 0 : index
    %c0_58 = arith.constant 0 : index
    %104 = vector.load %arg5[%c0_56, %c8, %c0_57, %c0_58] : memref<1x14x16x128xbf16, #tpu.memory_space<vmem>>, vector<1x2x16x128xbf16>
    %105 = vector.shape_cast %104 : vector<1x2x16x128xbf16> to vector<2x16x128xbf16>
    %106 = vector.shape_cast %103 : vector<2x16x128xbf16> to vector<1x2x16x128xbf16>
    tpu.vector_store %arg5[%c0_56, %c8, %c0_57, %c0_58], %106 {strides = array<i32>} : memref<1x14x16x128xbf16, #tpu.memory_space<vmem>>, vector<1x2x16x128xbf16>,
    %c0_59 = arith.constant 0 : index
    %c320 = arith.constant 320 : index
    %c0_60 = arith.constant 0 : index
    %107 = vector.load %arg1[%c0_59, %c320, %c0_60] : memref<1x448x16xbf16, #tpu.memory_space<vmem>>, vector<1x64x16xbf16>
    %108 = vector.shape_cast %107 : vector<1x64x16xbf16> to vector<64x16xbf16>
    %cst_61 = arith.constant dense<0.000000e+00> : vector<64x128xf32>
    %109 = tpu.matmul %108, %0, %cst_61 {dimension_numbers = #tpu.dot_dimension_numbers<[1], [0], [0], [1], [0, 0, 1, 1], [], []>} : vector<64x16xbf16>, vector<16x128xbf16>, vector<64x128xf32> -> vector<64x128xf32>
    %c0_62 = arith.constant 0 : index
    %c320_63 = arith.constant 320 : index
    %c0_64 = arith.constant 0 : index
    %110 = vector.load %arg2[%c0_62, %c320_63, %c0_64] : memref<1x448x16xbf16, #tpu.memory_space<vmem>>, vector<1x64x16xbf16>
    %111 = vector.shape_cast %110 : vector<1x64x16xbf16> to vector<64x16xbf16>
    %cst_65 = arith.constant dense<0.000000e+00> : vector<64x128xf32>
    %112 = tpu.matmul %111, %0, %cst_65 {dimension_numbers = #tpu.dot_dimension_numbers<[1], [0], [0], [1], [0, 0, 1, 1], [], []>} : vector<64x16xbf16>, vector<16x128xbf16>, vector<64x128xf32> -> vector<64x128xf32>
    %113 = arith.maximumf %109, %112 : vector<64x128xf32>
    %114 = vector.broadcast %1 : vector<1x128xf32> to vector<64x128xf32>
    %115 = arith.addf %113, %114 : vector<64x128xf32>
    %cst_66 = arith.constant 0.000000e+00 : f32
    %116 = vector.broadcast %cst_66 : f32 to vector<64x128xf32>
    %117 = arith.maximumf %115, %116 : vector<64x128xf32>
    %118 = vector.shape_cast %117 : vector<64x128xf32> to vector<2x2x16x128xf32>
    %119 = vector.extract_strided_slice %118 {offsets = [0, 0, 0, 0], sizes = [2, 1, 16, 128], strides = [1, 1, 1, 1]} : vector<2x2x16x128xf32> to vector<2x1x16x128xf32>
    %120 = vector.shape_cast %119 : vector<2x1x16x128xf32> to vector<2x16x128xf32>
    %121 = vector.extract_strided_slice %118 {offsets = [0, 1, 0, 0], sizes = [2, 1, 16, 128], strides = [1, 1, 1, 1]} : vector<2x2x16x128xf32> to vector<2x1x16x128xf32>
    %122 = vector.shape_cast %121 : vector<2x1x16x128xf32> to vector<2x16x128xf32>
    %123 = arith.maximumf %120, %122 : vector<2x16x128xf32>
    %124 = arith.truncf %123 : vector<2x16x128xf32> to vector<2x16x128xbf16>
    %c0_67 = arith.constant 0 : index
    %c10 = arith.constant 10 : index
    %c0_68 = arith.constant 0 : index
    %c0_69 = arith.constant 0 : index
    %125 = vector.load %arg5[%c0_67, %c10, %c0_68, %c0_69] : memref<1x14x16x128xbf16, #tpu.memory_space<vmem>>, vector<1x2x16x128xbf16>
    %126 = vector.shape_cast %125 : vector<1x2x16x128xbf16> to vector<2x16x128xbf16>
    %127 = vector.shape_cast %124 : vector<2x16x128xbf16> to vector<1x2x16x128xbf16>
    tpu.vector_store %arg5[%c0_67, %c10, %c0_68, %c0_69], %127 {strides = array<i32>} : memref<1x14x16x128xbf16, #tpu.memory_space<vmem>>, vector<1x2x16x128xbf16>,
    %c0_70 = arith.constant 0 : index
    %c384 = arith.constant 384 : index
    %c0_71 = arith.constant 0 : index
    %128 = vector.load %arg1[%c0_70, %c384, %c0_71] : memref<1x448x16xbf16, #tpu.memory_space<vmem>>, vector<1x64x16xbf16>
    %129 = vector.shape_cast %128 : vector<1x64x16xbf16> to vector<64x16xbf16>
    %cst_72 = arith.constant dense<0.000000e+00> : vector<64x128xf32>
    %130 = tpu.matmul %129, %0, %cst_72 {dimension_numbers = #tpu.dot_dimension_numbers<[1], [0], [0], [1], [0, 0, 1, 1], [], []>} : vector<64x16xbf16>, vector<16x128xbf16>, vector<64x128xf32> -> vector<64x128xf32>
    %c0_73 = arith.constant 0 : index
    %c384_74 = arith.constant 384 : index
    %c0_75 = arith.constant 0 : index
    %131 = vector.load %arg2[%c0_73, %c384_74, %c0_75] : memref<1x448x16xbf16, #tpu.memory_space<vmem>>, vector<1x64x16xbf16>
    %132 = vector.shape_cast %131 : vector<1x64x16xbf16> to vector<64x16xbf16>
    %cst_76 = arith.constant dense<0.000000e+00> : vector<64x128xf32>
    %133 = tpu.matmul %132, %0, %cst_76 {dimension_numbers = #tpu.dot_dimension_numbers<[1], [0], [0], [1], [0, 0, 1, 1], [], []>} : vector<64x16xbf16>, vector<16x128xbf16>, vector<64x128xf32> -> vector<64x128xf32>
    %134 = arith.maximumf %130, %133 : vector<64x128xf32>
    %135 = vector.broadcast %1 : vector<1x128xf32> to vector<64x128xf32>
    %136 = arith.addf %134, %135 : vector<64x128xf32>
    %cst_77 = arith.constant 0.000000e+00 : f32
    %137 = vector.broadcast %cst_77 : f32 to vector<64x128xf32>
    %138 = arith.maximumf %136, %137 : vector<64x128xf32>
    %139 = vector.shape_cast %138 : vector<64x128xf32> to vector<2x2x16x128xf32>
    %140 = vector.extract_strided_slice %139 {offsets = [0, 0, 0, 0], sizes = [2, 1, 16, 128], strides = [1, 1, 1, 1]} : vector<2x2x16x128xf32> to vector<2x1x16x128xf32>
    %141 = vector.shape_cast %140 : vector<2x1x16x128xf32> to vector<2x16x128xf32>
    %142 = vector.extract_strided_slice %139 {offsets = [0, 1, 0, 0], sizes = [2, 1, 16, 128], strides = [1, 1, 1, 1]} : vector<2x2x16x128xf32> to vector<2x1x16x128xf32>
    %143 = vector.shape_cast %142 : vector<2x1x16x128xf32> to vector<2x16x128xf32>
    %144 = arith.maximumf %141, %143 : vector<2x16x128xf32>
    %145 = arith.truncf %144 : vector<2x16x128xf32> to vector<2x16x128xbf16>
    %c0_78 = arith.constant 0 : index
    %c12 = arith.constant 12 : index
    %c0_79 = arith.constant 0 : index
    %c0_80 = arith.constant 0 : index
    %146 = vector.load %arg5[%c0_78, %c12, %c0_79, %c0_80] : memref<1x14x16x128xbf16, #tpu.memory_space<vmem>>, vector<1x2x16x128xbf16>
    %147 = vector.shape_cast %146 : vector<1x2x16x128xbf16> to vector<2x16x128xbf16>
    %148 = vector.shape_cast %145 : vector<2x16x128xbf16> to vector<1x2x16x128xbf16>
    tpu.vector_store %arg5[%c0_78, %c12, %c0_79, %c0_80], %148 {strides = array<i32>} : memref<1x14x16x128xbf16, #tpu.memory_space<vmem>>, vector<1x2x16x128xbf16>,
    return
  }
  func.func @transform_0(%arg0: i32) -> (i32, i32, i32) {
    %c0_i32 = arith.constant 0 : i32
    %c0_i32_0 = arith.constant 0 : i32
    %c0_i32_1 = arith.constant 0 : i32
    return %arg0, %c0_i32, %c0_i32_0 : i32, i32, i32
  }
  func.func @transform_1(%arg0: i32) -> (i32, i32, i32) {
    %c0_i32 = arith.constant 0 : i32
    %c0_i32_0 = arith.constant 0 : i32
    %c0_i32_1 = arith.constant 0 : i32
    return %arg0, %c0_i32, %c0_i32_0 : i32, i32, i32
  }
  func.func @transform_2(%arg0: i32) -> (i32, i32) {
    %c0_i32 = arith.constant 0 : i32
    %c0_i32_0 = arith.constant 0 : i32
    %c0_i32_1 = arith.constant 0 : i32
    return %c0_i32, %c0_i32_0 : i32, i32
  }
  func.func @transform_3(%arg0: i32) -> (i32, i32) {
    %c0_i32 = arith.constant 0 : i32
    %c0_i32_0 = arith.constant 0 : i32
    %c0_i32_1 = arith.constant 0 : i32
    return %c0_i32, %c0_i32_0 : i32, i32
  }
  func.func @transform_4(%arg0: i32) -> (i32, i32, i32, i32) {
    %c0_i32 = arith.constant 0 : i32
    %c0_i32_0 = arith.constant 0 : i32
    %c0_i32_1 = arith.constant 0 : i32
    %c0_i32_2 = arith.constant 0 : i32
    return %arg0, %c0_i32, %c0_i32_0, %c0_i32_1 : i32, i32, i32, i32
  }
}

module attributes {stable_mosaic.version = 11 : i64} {
  func.func @mlp_head_kernel(%arg0: i32, %arg1: memref<2x2450xbf16, #tpu.memory_space<vmem>>, %arg2: memref<2450x256xbf16, #tpu.memory_space<vmem>>, %arg3: memref<1x256xf32, #tpu.memory_space<vmem>>, %arg4: memref<256x128xbf16, #tpu.memory_space<vmem>>, %arg5: memref<1x128xf32, #tpu.memory_space<vmem>>, %arg6: memref<128x128xbf16, #tpu.memory_space<vmem>>, %arg7: memref<1x128xf32, #tpu.memory_space<vmem>>, %arg8: memref<2x10xf32, #tpu.memory_space<vmem>>, %arg9: memref<2x128xf32, #tpu.memory_space<vmem>>) attributes {dimension_semantics = [#tpu.dimension_semantics<arbitrary>], iteration_bounds = array<i64: 4>, scalar_prefetch = 0 : i64, scratch_operands = 1 : i64, tpu.core_type = #tpu.core_type<tc>, window_params = [{pipeline_mode = #tpu.pipeline_mode<synchronous>, transform_indices = @transform_0, window_bounds = array<i64: 2, 2450>}, {transform_indices = @transform_1, window_bounds = array<i64: 2450, 256>}, {transform_indices = @transform_2, window_bounds = array<i64: 1, 256>}, {transform_indices = @transform_3, window_bounds = array<i64: 256, 128>}, {pipeline_mode = #tpu.pipeline_mode<synchronous>, transform_indices = @transform_4, window_bounds = array<i64: 1, 128>}, {pipeline_mode = #tpu.pipeline_mode<synchronous>, transform_indices = @transform_5, window_bounds = array<i64: 128, 128>}, {pipeline_mode = #tpu.pipeline_mode<synchronous>, transform_indices = @transform_6, window_bounds = array<i64: 1, 128>}, {pipeline_mode = #tpu.pipeline_mode<synchronous>, transform_indices = @transform_7, window_bounds = array<i64: 2, 10>}]} {
    %c0_i32 = arith.constant 0 : i32
    %0 = arith.cmpi eq, %arg0, %c0_i32 : i32
    %1 = arith.extui %0 : i1 to i32
    %c0_i32_0 = arith.constant 0 : i32
    %2 = arith.cmpi ne, %1, %c0_i32_0 : i32
    scf.if %2 {
      %cst_15 = arith.constant 0.000000e+00 : f32
      %20 = vector.broadcast %cst_15 : f32 to vector<2x128xf32>
      %c0_16 = arith.constant 0 : index
      %c0_17 = arith.constant 0 : index
      %21 = vector.load %arg9[%c0_16, %c0_17] : memref<2x128xf32, #tpu.memory_space<vmem>>, vector<2x128xf32>
      tpu.vector_store %arg9[%c0_16, %c0_17], %20 {strides = array<i32>} : memref<2x128xf32, #tpu.memory_space<vmem>>, vector<2x128xf32>,
    } else {
    }
    %c0 = arith.constant 0 : index
    %c0_1 = arith.constant 0 : index
    %3 = vector.load %arg1[%c0, %c0_1] : memref<2x2450xbf16, #tpu.memory_space<vmem>>, vector<2x2450xbf16>
    %c0_2 = arith.constant 0 : index
    %c0_3 = arith.constant 0 : index
    %4 = vector.load %arg2[%c0_2, %c0_3] : memref<2450x256xbf16, #tpu.memory_space<vmem>>, vector<2450x256xbf16>
    %cst = arith.constant dense<0.000000e+00> : vector<2x256xf32>
    %5 = tpu.matmul %3, %4, %cst {dimension_numbers = #tpu.dot_dimension_numbers<[1], [0], [0], [1], [0, 0, 1, 1], [], []>} : vector<2x2450xbf16>, vector<2450x256xbf16>, vector<2x256xf32> -> vector<2x256xf32>
    %c0_4 = arith.constant 0 : index
    %c0_5 = arith.constant 0 : index
    %6 = vector.load %arg3[%c0_4, %c0_5] : memref<1x256xf32, #tpu.memory_space<vmem>>, vector<1x256xf32>
    %7 = vector.broadcast %6 : vector<1x256xf32> to vector<2x256xf32>
    %8 = arith.addf %5, %7 : vector<2x256xf32>
    %cst_6 = arith.constant 0.000000e+00 : f32
    %9 = vector.broadcast %cst_6 : f32 to vector<2x256xf32>
    %10 = arith.maximumf %8, %9 : vector<2x256xf32>
    %11 = arith.truncf %10 : vector<2x256xf32> to vector<2x256xbf16>
    %c0_7 = arith.constant 0 : index
    %c0_8 = arith.constant 0 : index
    %12 = vector.load %arg9[%c0_7, %c0_8] : memref<2x128xf32, #tpu.memory_space<vmem>>, vector<2x128xf32>
    %c0_9 = arith.constant 0 : index
    %c0_10 = arith.constant 0 : index
    %13 = vector.load %arg4[%c0_9, %c0_10] : memref<256x128xbf16, #tpu.memory_space<vmem>>, vector<256x128xbf16>
    %cst_11 = arith.constant dense<0.000000e+00> : vector<2x128xf32>
    %14 = tpu.matmul %11, %13, %cst_11 {dimension_numbers = #tpu.dot_dimension_numbers<[1], [0], [0], [1], [0, 0, 1, 1], [], []>} : vector<2x256xbf16>, vector<256x128xbf16>, vector<2x128xf32> -> vector<2x128xf32>
    %15 = arith.addf %12, %14 : vector<2x128xf32>
    %c0_12 = arith.constant 0 : index
    %c0_13 = arith.constant 0 : index
    %16 = vector.load %arg9[%c0_12, %c0_13] : memref<2x128xf32, #tpu.memory_space<vmem>>, vector<2x128xf32>
    tpu.vector_store %arg9[%c0_12, %c0_13], %15 {strides = array<i32>} : memref<2x128xf32, #tpu.memory_space<vmem>>, vector<2x128xf32>,
    %c3_i32 = arith.constant 3 : i32
    %17 = arith.cmpi eq, %arg0, %c3_i32 : i32
    %18 = arith.extui %17 : i1 to i32
    %c0_i32_14 = arith.constant 0 : i32
    %19 = arith.cmpi ne, %18, %c0_i32_14 : i32
    scf.if %19 {
      %c0_15 = arith.constant 0 : index
      %c0_16 = arith.constant 0 : index
      %20 = vector.load %arg9[%c0_15, %c0_16] : memref<2x128xf32, #tpu.memory_space<vmem>>, vector<2x128xf32>
      %c0_17 = arith.constant 0 : index
      %c0_18 = arith.constant 0 : index
      %21 = vector.load %arg5[%c0_17, %c0_18] : memref<1x128xf32, #tpu.memory_space<vmem>>, vector<1x128xf32>
      %22 = vector.broadcast %21 : vector<1x128xf32> to vector<2x128xf32>
      %23 = arith.addf %20, %22 : vector<2x128xf32>
      %cst_19 = arith.constant 0.000000e+00 : f32
      %24 = vector.broadcast %cst_19 : f32 to vector<2x128xf32>
      %25 = arith.maximumf %23, %24 : vector<2x128xf32>
      %26 = arith.truncf %25 : vector<2x128xf32> to vector<2x128xbf16>
      %c0_20 = arith.constant 0 : index
      %c0_21 = arith.constant 0 : index
      %27 = vector.load %arg6[%c0_20, %c0_21] : memref<128x128xbf16, #tpu.memory_space<vmem>>, vector<128x128xbf16>
      %cst_22 = arith.constant dense<0.000000e+00> : vector<2x128xf32>
      %28 = tpu.matmul %26, %27, %cst_22 {dimension_numbers = #tpu.dot_dimension_numbers<[1], [0], [0], [1], [0, 0, 1, 1], [], []>} : vector<2x128xbf16>, vector<128x128xbf16>, vector<2x128xf32> -> vector<2x128xf32>
      %c0_23 = arith.constant 0 : index
      %c0_24 = arith.constant 0 : index
      %29 = vector.load %arg7[%c0_23, %c0_24] : memref<1x128xf32, #tpu.memory_space<vmem>>, vector<1x128xf32>
      %30 = vector.broadcast %29 : vector<1x128xf32> to vector<2x128xf32>
      %31 = arith.addf %28, %30 : vector<2x128xf32>
      %32 = vector.extract_strided_slice %31 {offsets = [0, 0], sizes = [2, 10], strides = [1, 1]} : vector<2x128xf32> to vector<2x10xf32>
      %cst_25 = arith.constant dense<0xFF800000> : vector<10xf32>
      %33 = vector.multi_reduction <maximumf>, %32, %cst_25 [0] : vector<2x10xf32> to vector<10xf32>
      %34 = vector.shape_cast %33 : vector<10xf32> to vector<1x10xf32>
      %35 = vector.broadcast %34 : vector<1x10xf32> to vector<2x10xf32>
      %36 = arith.subf %32, %35 : vector<2x10xf32>
      %37 = math.exp %36 : vector<2x10xf32>
      %cst_26 = arith.constant dense<0.000000e+00> : vector<10xf32>
      %38 = vector.multi_reduction <add>, %37, %cst_26 [0] : vector<2x10xf32> to vector<10xf32>
      %39 = vector.shape_cast %38 : vector<10xf32> to vector<1x10xf32>
      %40 = math.log %39 : vector<1x10xf32>
      %41 = arith.addf %34, %40 : vector<1x10xf32>
      %42 = vector.broadcast %41 : vector<1x10xf32> to vector<2x10xf32>
      %43 = arith.subf %32, %42 : vector<2x10xf32>
      %c0_27 = arith.constant 0 : index
      %c0_28 = arith.constant 0 : index
      %44 = vector.load %arg8[%c0_27, %c0_28] : memref<2x10xf32, #tpu.memory_space<vmem>>, vector<2x10xf32>
      tpu.vector_store %arg8[%c0_27, %c0_28], %43 {strides = array<i32>} : memref<2x10xf32, #tpu.memory_space<vmem>>, vector<2x10xf32>,
    } else {
    }
    return
  }
  func.func @transform_0(%arg0: i32) -> (i32, i32) {
    %c0_i32 = arith.constant 0 : i32
    %c0_i32_0 = arith.constant 0 : i32
    %c0_i32_1 = arith.constant 0 : i32
    return %c0_i32, %c0_i32_0 : i32, i32
  }
  func.func @transform_1(%arg0: i32) -> (i32, i32) {
    %c0_i32 = arith.constant 0 : i32
    %c0_i32_0 = arith.constant 0 : i32
    return %c0_i32, %arg0 : i32, i32
  }
  func.func @transform_2(%arg0: i32) -> (i32, i32) {
    %c0_i32 = arith.constant 0 : i32
    %c0_i32_0 = arith.constant 0 : i32
    return %c0_i32, %arg0 : i32, i32
  }
  func.func @transform_3(%arg0: i32) -> (i32, i32) {
    %c0_i32 = arith.constant 0 : i32
    %c0_i32_0 = arith.constant 0 : i32
    return %arg0, %c0_i32 : i32, i32
  }
  func.func @transform_4(%arg0: i32) -> (i32, i32) {
    %c0_i32 = arith.constant 0 : i32
    %c0_i32_0 = arith.constant 0 : i32
    %c0_i32_1 = arith.constant 0 : i32
    return %c0_i32, %c0_i32_0 : i32, i32
  }
  func.func @transform_5(%arg0: i32) -> (i32, i32) {
    %c0_i32 = arith.constant 0 : i32
    %c0_i32_0 = arith.constant 0 : i32
    %c0_i32_1 = arith.constant 0 : i32
    return %c0_i32, %c0_i32_0 : i32, i32
  }
  func.func @transform_6(%arg0: i32) -> (i32, i32) {
    %c0_i32 = arith.constant 0 : i32
    %c0_i32_0 = arith.constant 0 : i32
    %c0_i32_1 = arith.constant 0 : i32
    return %c0_i32, %c0_i32_0 : i32, i32
  }
  func.func @transform_7(%arg0: i32) -> (i32, i32) {
    %c0_i32 = arith.constant 0 : i32
    %c0_i32_0 = arith.constant 0 : i32
    %c0_i32_1 = arith.constant 0 : i32
    return %c0_i32, %c0_i32_0 : i32, i32
  }
}

module attributes {stable_mosaic.version = 11 : i64} {
  func.func @conv2_kernel(%arg0: i32, %arg1: memref<1x112x256xbf16, #tpu.memory_space<vmem>>, %arg2: memref<1x112x256xbf16, #tpu.memory_space<vmem>>, %arg3: memref<256x128xbf16, #tpu.memory_space<vmem>>, %arg4: memref<1x128xf32, #tpu.memory_space<vmem>>, %arg5: memref<1x7x8x128xbf16, #tpu.memory_space<vmem>>) attributes {dimension_semantics = [#tpu.dimension_semantics<parallel>], iteration_bounds = array<i64: 2>, scalar_prefetch = 0 : i64, scratch_operands = 0 : i64, tpu.core_type = #tpu.core_type<tc>, window_params = [{transform_indices = @transform_0, window_bounds = array<i64: 1, 112, 256>}, {transform_indices = @transform_1, window_bounds = array<i64: 1, 112, 256>}, {pipeline_mode = #tpu.pipeline_mode<synchronous>, transform_indices = @transform_2, window_bounds = array<i64: 256, 128>}, {pipeline_mode = #tpu.pipeline_mode<synchronous>, transform_indices = @transform_3, window_bounds = array<i64: 1, 128>}, {transform_indices = @transform_4, window_bounds = array<i64: 1, 7, 8, 128>}]} {
    %c0 = arith.constant 0 : index
    %c0_0 = arith.constant 0 : index
    %0 = vector.load %arg3[%c0, %c0_0] : memref<256x128xbf16, #tpu.memory_space<vmem>>, vector<256x128xbf16>
    %c0_1 = arith.constant 0 : index
    %c0_2 = arith.constant 0 : index
    %c0_3 = arith.constant 0 : index
    %1 = vector.load %arg1[%c0_1, %c0_2, %c0_3] : memref<1x112x256xbf16, #tpu.memory_space<vmem>>, vector<1x112x256xbf16>
    %2 = vector.shape_cast %1 : vector<1x112x256xbf16> to vector<112x256xbf16>
    %cst = arith.constant dense<0.000000e+00> : vector<112x128xf32>
    %3 = tpu.matmul %2, %0, %cst {dimension_numbers = #tpu.dot_dimension_numbers<[1], [0], [0], [1], [0, 0, 1, 1], [], []>} : vector<112x256xbf16>, vector<256x128xbf16>, vector<112x128xf32> -> vector<112x128xf32>
    %c0_4 = arith.constant 0 : index
    %c0_5 = arith.constant 0 : index
    %c0_6 = arith.constant 0 : index
    %4 = vector.load %arg2[%c0_4, %c0_5, %c0_6] : memref<1x112x256xbf16, #tpu.memory_space<vmem>>, vector<1x112x256xbf16>
    %5 = vector.shape_cast %4 : vector<1x112x256xbf16> to vector<112x256xbf16>
    %cst_7 = arith.constant dense<0.000000e+00> : vector<112x128xf32>
    %6 = tpu.matmul %5, %0, %cst_7 {dimension_numbers = #tpu.dot_dimension_numbers<[1], [0], [0], [1], [0, 0, 1, 1], [], []>} : vector<112x256xbf16>, vector<256x128xbf16>, vector<112x128xf32> -> vector<112x128xf32>
    %7 = arith.maximumf %3, %6 : vector<112x128xf32>
    %c0_8 = arith.constant 0 : index
    %c0_9 = arith.constant 0 : index
    %8 = vector.load %arg4[%c0_8, %c0_9] : memref<1x128xf32, #tpu.memory_space<vmem>>, vector<1x128xf32>
    %9 = vector.broadcast %8 : vector<1x128xf32> to vector<112x128xf32>
    %10 = arith.addf %7, %9 : vector<112x128xf32>
    %cst_10 = arith.constant 0.000000e+00 : f32
    %11 = vector.broadcast %cst_10 : f32 to vector<112x128xf32>
    %12 = arith.maximumf %10, %11 : vector<112x128xf32>
    %13 = vector.shape_cast %12 : vector<112x128xf32> to vector<7x2x8x128xf32>
    %14 = vector.extract_strided_slice %13 {offsets = [0, 0, 0, 0], sizes = [7, 1, 8, 128], strides = [1, 1, 1, 1]} : vector<7x2x8x128xf32> to vector<7x1x8x128xf32>
    %15 = vector.shape_cast %14 : vector<7x1x8x128xf32> to vector<7x8x128xf32>
    %16 = vector.extract_strided_slice %13 {offsets = [0, 1, 0, 0], sizes = [7, 1, 8, 128], strides = [1, 1, 1, 1]} : vector<7x2x8x128xf32> to vector<7x1x8x128xf32>
    %17 = vector.shape_cast %16 : vector<7x1x8x128xf32> to vector<7x8x128xf32>
    %18 = arith.maximumf %15, %17 : vector<7x8x128xf32>
    %19 = arith.truncf %18 : vector<7x8x128xf32> to vector<7x8x128xbf16>
    %c0_11 = arith.constant 0 : index
    %c0_12 = arith.constant 0 : index
    %c0_13 = arith.constant 0 : index
    %c0_14 = arith.constant 0 : index
    %20 = vector.load %arg5[%c0_11, %c0_12, %c0_13, %c0_14] : memref<1x7x8x128xbf16, #tpu.memory_space<vmem>>, vector<1x7x8x128xbf16>
    %21 = vector.shape_cast %20 : vector<1x7x8x128xbf16> to vector<7x8x128xbf16>
    %22 = vector.shape_cast %19 : vector<7x8x128xbf16> to vector<1x7x8x128xbf16>
    tpu.vector_store %arg5[%c0_11, %c0_12, %c0_13, %c0_14], %22 {strides = array<i32>} : memref<1x7x8x128xbf16, #tpu.memory_space<vmem>>, vector<1x7x8x128xbf16>,
    return
  }
  func.func @transform_0(%arg0: i32) -> (i32, i32, i32) {
    %c0_i32 = arith.constant 0 : i32
    %c0_i32_0 = arith.constant 0 : i32
    %c0_i32_1 = arith.constant 0 : i32
    return %arg0, %c0_i32, %c0_i32_0 : i32, i32, i32
  }
  func.func @transform_1(%arg0: i32) -> (i32, i32, i32) {
    %c0_i32 = arith.constant 0 : i32
    %c0_i32_0 = arith.constant 0 : i32
    %c0_i32_1 = arith.constant 0 : i32
    return %arg0, %c0_i32, %c0_i32_0 : i32, i32, i32
  }
  func.func @transform_2(%arg0: i32) -> (i32, i32) {
    %c0_i32 = arith.constant 0 : i32
    %c0_i32_0 = arith.constant 0 : i32
    %c0_i32_1 = arith.constant 0 : i32
    return %c0_i32, %c0_i32_0 : i32, i32
  }
  func.func @transform_3(%arg0: i32) -> (i32, i32) {
    %c0_i32 = arith.constant 0 : i32
    %c0_i32_0 = arith.constant 0 : i32
    %c0_i32_1 = arith.constant 0 : i32
    return %c0_i32, %c0_i32_0 : i32, i32
  }
  func.func @transform_4(%arg0: i32) -> (i32, i32, i32, i32) {
    %c0_i32 = arith.constant 0 : i32
    %c0_i32_0 = arith.constant 0 : i32
    %c0_i32_1 = arith.constant 0 : i32
    %c0_i32_2 = arith.constant 0 : i32
    return %arg0, %c0_i32, %c0_i32_0, %c0_i32_1 : i32, i32, i32, i32
  }
}

</mosaic_0001>

<llo_original>
// kernel: net_forward.3
$region0: #{net_forward.3}
  #allocation0 [shape = 'u32[]', space=smem, size = 0x4, offset = 0x4, fixed_abs, tag = 'smem constant byte address 0x4 - core index']
  #allocation1 [shape = 'u32[72,128]{1,0:T(1,128)}', space=vmem, size = 0x9000, scoped, tag = 'internal scratch']
  %s0 = inlined_call_operand.vmem [shape: bf16[2,448,16], index: 0, kind: input, shape index: {}]
  %s1 = inlined_call_operand.vmem [shape: bf16[2,448,16], index: 1, kind: input, shape index: {}]
  %s2 = inlined_call_operand.hbm [shape: bf16[16,128], index: 2, kind: input, shape index: {}]
  %s3 = inlined_call_operand.hbm [shape: f32[1,128], index: 3, kind: input, shape index: {}]
  %s4 = inlined_call_operand.vmem [shape: bf16[2,14,16,128], index: 4, kind: output, shape index: {}]
  %s5 = sld [smem:[#allocation0]]
  $region57: #{net_forward.3} parent=0
    _
  %s7 = ssub.s32 1, %s5
  %s8 = scalar_select 0, %s7, %s5
  $region1: #{net_forward.3} parent=0
    #allocation2 [shape = 'u8[4096]{0}', space=vmem, size = 0x1000, scoped, tag = 'input window, operand 2, single buffered']
    #allocation3 [shape = 's32[2]{0}', space=sflag, size = 0x8, scoped, tag = 'scoped memory for net_forward.3']
    #allocation4 [shape = 'u8[512]{0}', space=vmem, size = 0x400, scoped, tag = 'input window, operand 3, single buffered']
    #allocation5 [shape = 's32[1]{0}', space=sflag, size = 0x4, scoped, tag = 'scoped memory for net_forward.3']
    %9 = vsyncpa [#allocation3], 0
    %10 = vsyncpa [#allocation5], 0
    loop: start=0, step=1, limit=4
    $region2: #{net_forward.3} parent=1 // loop_pre_header
      _
    $region3: #{net_forward.3} parent=1 // loop_header
      %s12 = sphi 0, %s16
      %p13 = scmp.ge.s32.totalorder %s12, 4
      %s22 = sphi 0, %s24
      %s25 = sphi 0, %s22
      %s26 = sphi 0, %s25
      %s42 = sphi 0, %s26
      %s48 = sphi 0, %s50
      %s51 = sphi 0, %s48
      %s52 = sphi 0, %s51
      %s68 = sphi 0, %s52
      %s72 = sphi 0, %s72
      %s74 = sphi 0, %s72
      %s75 = sphi 0, %s74
      %s89 = sphi 0, %s75
      %s93 = sphi 0, %s93
      %s95 = sphi 0, %s93
      %s96 = sphi 0, %s95
      %s110 = sphi 0, %s96
      %s116 = sphi 0, %s118
      %s119 = sphi 0, %s116
      %s120 = sphi 0, %s119
      %s136 = sphi 0, %s120
    $region4: #{net_forward.3} parent=1 // loop_header_branch
      %15 = sbr.rel (%p13) target = $region8
    $region5: #{net_forward.3} parent=1 // loop_body
      %s17 = ssub.s32 %s12, 1
      %s18 = ssub.s32 %s12, 2
      %s19 = sadd.s32 %s12, 1
      %s20 = ssub.s32 %s12, %s19
      %p21 = scmp.eq.s32.totalorder %s20, 0
      %s23 = sadd.s32 %s22, 1
      %s24 = scalar_select %p21, %s22, %s23
      %p27 = pneg %p21
      %p28 = scmp.eq.s32.totalorder %s12, 1
      %p29 = por %p27, %p28
      %p30 = scmp.ne.s32.totalorder %s22, %s25
      %p31 = scmp.eq.s32.totalorder %s12, 0
      %p32 = por %p30, %p31
      %p33 = scmp.ne.s32.totalorder %s22, %s25
      %p34 = scmp.eq.s32.totalorder %s17, 1
      %p35 = por %p33, %p34
      %p36 = scmp.ne.s32.totalorder %s25, %s26
      %p37 = scmp.eq.s32.totalorder %s17, 0
      %p38 = por %p36, %p37
      %p39 = scmp.ne.s32.totalorder %s25, %s26
      %p40 = scmp.eq.s32.totalorder %s18, 1
      %p41 = por %p39, %p40
      %p43 = scmp.ne.s32.totalorder %s26, %s42
      %p44 = scmp.eq.s32.totalorder %s18, 0
      %p45 = por %p43, %p44
      %s46 = ssub.s32 %s12, %s19
      %p47 = scmp.eq.s32.totalorder %s46, 0
      %s49 = sadd.s32 %s48, 1
      %s50 = scalar_select %p47, %s48, %s49
      %p53 = pneg %p47
      %p54 = scmp.eq.s32.totalorder %s12, 1
      %p55 = por %p53, %p54
      %p56 = scmp.ne.s32.totalorder %s48, %s51
      %p57 = scmp.eq.s32.totalorder %s12, 0
      %p58 = por %p56, %p57
      %p59 = scmp.ne.s32.totalorder %s48, %s51
      %p60 = scmp.eq.s32.totalorder %s17, 1
      %p61 = por %p59, %p60
      %p62 = scmp.ne.s32.totalorder %s51, %s52
      %p63 = scmp.eq.s32.totalorder %s17, 0
      %p64 = por %p62, %p63
      %p65 = scmp.ne.s32.totalorder %s51, %s52
      %p66 = scmp.eq.s32.totalorder %s18, 1
      %p67 = por %p65, %p66
      %p69 = scmp.ne.s32.totalorder %s52, %s68
      %p70 = scmp.eq.s32.totalorder %s18, 0
      %p71 = por %p69, %p70
      %s73 = sadd.s32 %s72, 1
      %p76 = scmp.eq.s32.totalorder %s12, 1
      %p77 = scmp.ne.s32.totalorder %s72, %s74
      %p78 = scmp.eq.s32.totalorder %s12, 0
      %p79 = por %p77, %p78
      %p80 = scmp.ne.s32.totalorder %s72, %s74
      %p81 = scmp.eq.s32.totalorder %s17, 1
      %p82 = por %p80, %p81
      %p83 = scmp.ne.s32.totalorder %s74, %s75
      %p84 = scmp.eq.s32.totalorder %s17, 0
      %p85 = por %p83, %p84
      %p86 = scmp.ne.s32.totalorder %s74, %s75
      %p87 = scmp.eq.s32.totalorder %s18, 1
      %p88 = por %p86, %p87
      %p90 = scmp.ne.s32.totalorder %s75, %s89
      %p91 = scmp.eq.s32.totalorder %s18, 0
      %p92 = por %p90, %p91
      %s94 = sadd.s32 %s93, 1
      %p97 = scmp.eq.s32.totalorder %s12, 1
      %p98 = scmp.ne.s32.totalorder %s93, %s95
      %p99 = scmp.eq.s32.totalorder %s12, 0
      %p100 = por %p98, %p99
      %p101 = scmp.ne.s32.totalorder %s93, %s95
      %p102 = scmp.eq.s32.totalorder %s17, 1
      %p103 = por %p101, %p102
      %p104 = scmp.ne.s32.totalorder %s95, %s96
      %p105 = scmp.eq.s32.totalorder %s17, 0
      %p106 = por %p104, %p105
      %p107 = scmp.ne.s32.totalorder %s95, %s96
      %p108 = scmp.eq.s32.totalorder %s18, 1
      %p109 = por %p107, %p108
      %p111 = scmp.ne.s32.totalorder %s96, %s110
      %p112 = scmp.eq.s32.totalorder %s18, 0
      %p113 = por %p111, %p112
      %s114 = ssub.s32 %s12, %s19
      %p115 = scmp.eq.s32.totalorder %s114, 0
      %s117 = sadd.s32 %s116, 1
      %s118 = scalar_select %p115, %s116, %s117
      %p121 = pneg %p115
      %p122 = scmp.eq.s32.totalorder %s12, 1
      %p123 = por %p121, %p122
      %p124 = scmp.ne.s32.totalorder %s116, %s119
      %p125 = scmp.eq.s32.totalorder %s12, 0
      %p126 = por %p124, %p125
      %p127 = scmp.ne.s32.totalorder %s116, %s119
      %p128 = scmp.eq.s32.totalorder %s17, 1
      %p129 = por %p127, %p128
      %p130 = scmp.ne.s32.totalorder %s119, %s120
      %p131 = scmp.eq.s32.totalorder %s17, 0
      %p132 = por %p130, %p131
      %p133 = scmp.ne.s32.totalorder %s119, %s120
      %p134 = scmp.eq.s32.totalorder %s18, 1
      %p135 = por %p133, %p134
      %p137 = scmp.ne.s32.totalorder %s120, %s136
      %p138 = scmp.eq.s32.totalorder %s18, 0
      %p139 = por %p137, %p138
      %p140 = scmp.le.s32.totalorder 1, %s12
      %p141 = scmp.lt.s32.totalorder %s12, 3
      %p142 = pnand %p140, %p141
      %p143 = pneg %p142
      // Predicated region
      $region9: #{net_forward.3} parent=5 // pred_check
        _
      $region10: #{net_forward.3} parent=5 // pred_check_branch
        %145 = sbr.rel (%p142) target = $region12
      $region11: #{net_forward.3} parent=5 // pred_region
        %s146 = ssub.s32 %s12, 1
        // Predicated region
        $region13: #{net_forward.3} parent=11 // pred_check
          %p147 = pneg %p85
        $region14: #{net_forward.3} parent=11 // pred_check_branch
          %149 = sbr.rel (%p147) target = $region16
        $region15: #{net_forward.3} parent=11 // pred_region
          %151 = vsyncadd [#allocation3], 0
          %s152 = sshll.u32 %s2, 4
          %s153 = int_to_ptr.hbm [resolvable:$true] %s152
          %s154 = sshll.u32 [#allocation2], 4
          %s155 = int_to_ptr.vmem [resolvable:$true] %s154
          %160 = dma.hbm_to_vmem [thread:$0]  %s153, 128, %s155, [#allocation3], 64, 64, 4
        $region16: #{net_forward.3} parent=11 // pred_fallthru
          _
        // Predicated region
        $region17: #{net_forward.3} parent=11 // pred_check
          %p161 = pneg %p106
        $region18: #{net_forward.3} parent=11 // pred_check_branch
          %163 = sbr.rel (%p161) target = $region20
        $region19: #{net_forward.3} parent=11 // pred_region
          %165 = vsyncadd [#allocation5], 0
          %s167 = sshll.u32 %s3, 4
          %s168 = int_to_ptr.hbm [resolvable:$true] %s167
          %s169 = sshll.u32 [#allocation4], 4
          %s170 = int_to_ptr.vmem [resolvable:$true] %s169
          %172 = dma.hbm_to_vmem [thread:$0]  %s168, 16, %s170, [#allocation5]
        $region20: #{net_forward.3} parent=11 // pred_fallthru
          _
      $region12: #{net_forward.3} parent=5 // pred_fallthru
        _
      %p173 = scmp.lt.s32.totalorder %s12, 2
      // Predicated region
      $region21: #{net_forward.3} parent=5 // pred_check
        %p174 = pneg %p173
      $region22: #{net_forward.3} parent=5 // pred_check_branch
        %176 = sbr.rel (%p174) target = $region24
      $region23: #{net_forward.3} parent=5 // pred_region
        // Predicated region
        $region25: #{net_forward.3} parent=23 // pred_check
          %p177 = pneg %p32
        $region26: #{net_forward.3} parent=23 // pred_check_branch
          %179 = sbr.rel (%p177) target = $region28
        $region27: #{net_forward.3} parent=23 // pred_region
          %p180 = scmp.lt.s32.totalorder %s12, 1
          %s181 = scalar_select %p180, %s12, 1
          %s182 = smul.addr %s181, 56
          %s183 = smul.addr %s182, 4
          %s184 = scalar_lea.vmem %s0, %s183
        $region28: #{net_forward.3} parent=23 // pred_fallthru
          _
        // Predicated region
        $region29: #{net_forward.3} parent=23 // pred_check
          %p185 = pneg %p58
        $region30: #{net_forward.3} parent=23 // pred_check_branch
          %187 = sbr.rel (%p185) target = $region32
        $region31: #{net_forward.3} parent=23 // pred_region
          %p188 = scmp.lt.s32.totalorder %s12, 1
          %s189 = scalar_select %p188, %s12, 1
          %s190 = smul.addr %s189, 56
          %s191 = smul.addr %s190, 4
          %s192 = scalar_lea.vmem %s1, %s191
        $region32: #{net_forward.3} parent=23 // pred_fallthru
          _
      $region24: #{net_forward.3} parent=5 // pred_fallthru
        _
      %p193 = scmp.le.s32.totalorder 1, %s12
      %p194 = scmp.lt.s32.totalorder %s12, 3
      %p195 = pnand %p193, %p194
      %p196 = pneg %p195
      // Predicated region
      $region33: #{net_forward.3} parent=5 // pred_check
        _
      $region34: #{net_forward.3} parent=5 // pred_check_branch
        %198 = sbr.rel (%p195) target = $region36
      $region35: #{net_forward.3} parent=5 // pred_region
        %s199 = ssub.s32 %s12, 1
        // Predicated region
        $region37: #{net_forward.3} parent=35 // pred_check
          %p200 = pneg %p85
        $region38: #{net_forward.3} parent=35 // pred_check_branch
          %202 = sbr.rel (%p200) target = $region40
        $region39: #{net_forward.3} parent=35 // pred_region
          %204 = dma.done [#allocation3], 128
        $region40: #{net_forward.3} parent=35 // pred_fallthru
          _
        // Predicated region
        $region41: #{net_forward.3} parent=35 // pred_check
          %p205 = pneg %p106
        $region42: #{net_forward.3} parent=35 // pred_check_branch
          %207 = sbr.rel (%p205) target = $region44
        $region43: #{net_forward.3} parent=35 // pred_region
          %209 = dma.done [#allocation5], 16
        $region44: #{net_forward.3} parent=35 // pred_fallthru
          _
        %p210 = scmp.lt.s32.totalorder %s17, 1
        %s211 = scalar_select %p210, %s17, 1
        %s212 = smul.addr %s211, 56
        %s213 = smul.addr %s212, 4
        %s214 = scalar_lea.vmem %s0, %s213
        %p215 = pneg %p38
        %p216 = pneg %p35
        %p217 = scmp.lt.s32.totalorder %s17, 1
        %s218 = scalar_select %p217, %s17, 1
        %s219 = smul.addr %s218, 56
        %s220 = smul.addr %s219, 4
        %s221 = scalar_lea.vmem %s1, %s220
        %p222 = pneg %p64
        %p223 = pneg %p61
        %p224 = pneg %p85
        %p225 = pneg %p82
        %p226 = pneg %p106
        %p227 = pneg %p103
        %p228 = pneg %p132
        %p229 = pneg %p129
        %p230 = scmp.lt.s32.totalorder %s17, 1
        %s231 = scalar_select %p230, %s17, 1
        %s232 = smul.addr %s231, 28
        %s233 = smul.addr %s232, 4
        %s234 = scalar_lea.vmem %s4, %s233
        %p235 = scmp.lt.s32.totalorder %s17, 1
        %s236 = scalar_select %p235, %s17, 1
        %s237 = smul.addr %s236, 56
        %s238 = smul.addr %s237, 4
        %s239 = scalar_lea.vmem %s0, %s238
        %p240 = scmp.lt.s32.totalorder %s17, 1
        %s241 = scalar_select %p240, %s17, 1
        %s242 = smul.addr %s241, 56
        %s243 = smul.addr %s242, 4
        %s244 = scalar_lea.vmem %s1, %s243
        %p245 = scmp.lt.s32.totalorder %s17, 1
        %s246 = scalar_select %p245, %s17, 1
        %s247 = smul.addr %s246, 28
        %s248 = smul.addr %s247, 4
        %s249 = scalar_lea.vmem %s4, %s248
        %v251 = vld [vmem:[#allocation2] sm:$0xf]
        %v252 = vld [vmem:[#allocation2 + $0x4] sm:$0xf]
        %v253 = vld [vmem:[#allocation4] sm:$0x1]
        %v254 = vld [vmem:[%s239] sm:$0xf]
        %v255 = vld [vmem:[%s239 + $0x4] sm:$0xf]
        %v256 = vld [vmem:[%s239 + $0x8] sm:$0xf]
        %v257 = vld [vmem:[%s239 + $0xc] sm:$0xf]
        %v258 = vld [vmem:[%s239 + $0x10] sm:$0xf]
        %v259 = vld [vmem:[%s239 + $0x14] sm:$0xf]
        %v260 = vld [vmem:[%s239 + $0x18] sm:$0xf]
        %v261 = vld [vmem:[%s239 + $0x1c] sm:$0xf]
        %v270 = vunpack.c.l.b16 %v254
        %v271 = vunpack.c.l.b16 %v255
        %v272 = vunpack.c.l.b16 %v256
        %v273 = vunpack.c.l.b16 %v257
        %v274 = vunpack.c.l.b16 %v258
        %v275 = vunpack.c.l.b16 %v259
        %v276 = vunpack.c.l.b16 %v260
        %v277 = vunpack.c.l.b16 %v261
        %v278 = vpack.c.b16 %v271, %v270
        %v279 = vpack.c.b16 %v273, %v272
        %v280 = vpack.c.b16 %v275, %v274
        %v281 = vpack.c.b16 %v277, %v276
        %v284 = vunpack.c.l.b16 %v251
        %v285 = vunpack.c.l.b16 %v252
        %v286 = vpack.c.b16 %v285, %v284
        %vm288 = vcmask 130048
        %v290 = vsel %vm288, %v278, 0
        %v293 = vsel %vm288, %v279, 0
        %v296 = vsel %vm288, %v280, 0
        %v299 = vsel %vm288, %v281, 0
        %301 = vmatpush.bf16.msra.mxu0 0
        %302 = vmatpush.bf16.msra.mxu0 0
        %303 = vmatpush.bf16.msra.mxu0 0
        %304 = vmatpush.bf16.msra.mxu0 0
        %305 = vmatpush.bf16.msra.mxu0 0
        %306 = vmatpush.bf16.msra.mxu0 0
        %307 = vmatpush.bf16.msra.mxu0 0
        %308 = vmatpush.bf16.msra.mxu0 %v286
        %309 = vmatmul.bf16.gmra.mxu0 %v290
        %v310 = vpop.f32.mrf.mxu0
        %v311 = vadd.f32 0.0, %v310
        %v312 = vpop.f32.mrf.mxu0
        %v313 = vadd.f32 0.0, %v312
        %314 = vmatmul.bf16.gmra.mxu0 %v293
        %v315 = vpop.f32.mrf.mxu0
        %v316 = vadd.f32 0.0, %v315
        %v317 = vpop.f32.mrf.mxu0
        %v318 = vadd.f32 0.0, %v317
        %319 = vmatmul.bf16.gmra.mxu0 %v296
        %v320 = vpop.f32.mrf.mxu0
        %v321 = vadd.f32 0.0, %v320
        %v322 = vpop.f32.mrf.mxu0
        %v323 = vadd.f32 0.0, %v322
        %324 = vmatmul.bf16.gmra.mxu0 %v299
        %v325 = vpop.f32.mrf.mxu0
        %v326 = vadd.f32 0.0, %v325
        %v327 = vpop.f32.mrf.mxu0
        %v328 = vadd.f32 0.0, %v327
        %329 = vdwg.mxu0
        %v330 = vld [vmem:[%s244] sm:$0xf]
        %v331 = vld [vmem:[%s244 + $0x4] sm:$0xf]
        %v332 = vld [vmem:[%s244 + $0x8] sm:$0xf]
        %v333 = vld [vmem:[%s244 + $0xc] sm:$0xf]
        %v334 = vld [vmem:[%s244 + $0x10] sm:$0xf]
        %v335 = vld [vmem:[%s244 + $0x14] sm:$0xf]
        %v336 = vld [vmem:[%s244 + $0x18] sm:$0xf]
        %v337 = vld [vmem:[%s244 + $0x1c] sm:$0xf]
        %v346 = vunpack.c.l.b16 %v330
        %v347 = vunpack.c.l.b16 %v331
        %v348 = vunpack.c.l.b16 %v332
        %v349 = vunpack.c.l.b16 %v333
        %v350 = vunpack.c.l.b16 %v334
        %v351 = vunpack.c.l.b16 %v335
        %v352 = vunpack.c.l.b16 %v336
        %v353 = vunpack.c.l.b16 %v337
        %v354 = vpack.c.b16 %v347, %v346
        %v355 = vpack.c.b16 %v349, %v348
        %v356 = vpack.c.b16 %v351, %v350
        %v357 = vpack.c.b16 %v353, %v352
        %v359 = vsel %vm288, %v354, 0
        %v362 = vsel %vm288, %v355, 0
        %v365 = vsel %vm288, %v356, 0
        %v368 = vsel %vm288, %v357, 0
        %370 = vmatpush.bf16.msra.mxu0 0
        %371 = vmatpush.bf16.msra.mxu0 0
        %372 = vmatpush.bf16.msra.mxu0 0
        %373 = vmatpush.bf16.msra.mxu0 0
        %374 = vmatpush.bf16.msra.mxu0 0
        %375 = vmatpush.bf16.msra.mxu0 0
        %376 = vmatpush.bf16.msra.mxu0 0
        %377 = vmatpush.bf16.msra.mxu0 %v286
        %378 = vmatmul.bf16.gmra.mxu0 %v359
        %v379 = vpop.f32.mrf.mxu0
        %v380 = vadd.f32 0.0, %v379
        %v381 = vpop.f32.mrf.mxu0
        %v382 = vadd.f32 0.0, %v381
        %383 = vmatmul.bf16.gmra.mxu0 %v362
        %v384 = vpop.f32.mrf.mxu0
        %v385 = vadd.f32 0.0, %v384
        %v386 = vpop.f32.mrf.mxu0
        %v387 = vadd.f32 0.0, %v386
        %388 = vmatmul.bf16.gmra.mxu0 %v365
        %v389 = vpop.f32.mrf.mxu0
        %v390 = vadd.f32 0.0, %v389
        %v391 = vpop.f32.mrf.mxu0
        %v392 = vadd.f32 0.0, %v391
        %393 = vmatmul.bf16.gmra.mxu0 %v368
        %v394 = vpop.f32.mrf.mxu0
        %v395 = vadd.f32 0.0, %v394
        %v396 = vpop.f32.mrf.mxu0
        %v397 = vadd.f32 0.0, %v396
        %398 = vdwg.mxu0
        %v399 = vmax.f32 %v311, %v380
        %v400 = vmax.f32 %v313, %v382
        %v401 = vmax.f32 %v316, %v385
        %v402 = vmax.f32 %v318, %v387
        %v403 = vmax.f32 %v321, %v390
        %v404 = vmax.f32 %v323, %v392
        %v405 = vmax.f32 %v326, %v395
        %v406 = vmax.f32 %v328, %v397
        %v408 = vperm.slane %v253, 0
        %v410 = vadd.f32 %v399, %v408
        %v411 = vadd.f32 %v400, %v408
        %v412 = vadd.f32 %v401, %v408
        %v413 = vadd.f32 %v402, %v408
        %v414 = vadd.f32 %v403, %v408
        %v415 = vadd.f32 %v404, %v408
        %v416 = vadd.f32 %v405, %v408
        %v417 = vadd.f32 %v406, %v408
        %v418 = vmax.f32 %v410, 0.0
        %v419 = vmax.f32 %v411, 0.0
        %v420 = vmax.f32 %v412, 0.0
        %v421 = vmax.f32 %v413, 0.0
        %v422 = vmax.f32 %v414, 0.0
        %v423 = vmax.f32 %v415, 0.0
        %v424 = vmax.f32 %v416, 0.0
        %v425 = vmax.f32 %v417, 0.0
        %v426 = vmax.f32 %v418, %v420
        %v427 = vmax.f32 %v419, %v421
        %v428 = vmax.f32 %v422, %v424
        %v429 = vmax.f32 %v423, %v425
        %v430 = vpack.c.bf16 %v426, %v426
        %v431 = vpack.c.bf16 %v427, %v427
        %v432 = vpack.c.bf16 %v428, %v428
        %v433 = vpack.c.bf16 %v429, %v429
        %434 = vst [vmem:[%s249] sm:$0xf] %v430
        %435 = vst [vmem:[%s249 + $0x4] sm:$0xf] %v431
        %436 = vst [vmem:[%s249 + $0x8] sm:$0xf] %v432
        %437 = vst [vmem:[%s249 + $0xc] sm:$0xf] %v433
        %v438 = vld [vmem:[%s239 + $0x20] sm:$0xf]
        %v439 = vld [vmem:[%s239 + $0x24] sm:$0xf]
        %v440 = vld [vmem:[%s239 + $0x28] sm:$0xf]
        %v441 = vld [vmem:[%s239 + $0x2c] sm:$0xf]
        %v442 = vld [vmem:[%s239 + $0x30] sm:$0xf]
        %v443 = vld [vmem:[%s239 + $0x34] sm:$0xf]
        %v444 = vld [vmem:[%s239 + $0x38] sm:$0xf]
        %v445 = vld [vmem:[%s239 + $0x3c] sm:$0xf]
        %v454 = vunpack.c.l.b16 %v438
        %v455 = vunpack.c.l.b16 %v439
        %v456 = vunpack.c.l.b16 %v440
        %v457 = vunpack.c.l.b16 %v441
        %v458 = vunpack.c.l.b16 %v442
        %v459 = vunpack.c.l.b16 %v443
        %v460 = vunpack.c.l.b16 %v444
        %v461 = vunpack.c.l.b16 %v445
        %v462 = vpack.c.b16 %v455, %v454
        %v463 = vpack.c.b16 %v457, %v456
        %v464 = vpack.c.b16 %v459, %v458
        %v465 = vpack.c.b16 %v461, %v460
        %v467 = vsel %vm288, %v462, 0
        %v470 = vsel %vm288, %v463, 0
        %v473 = vsel %vm288, %v464, 0
        %v476 = vsel %vm288, %v465, 0
        %478 = vmatpush.bf16.msra.mxu0 0
        %479 = vmatpush.bf16.msra.mxu0 0
        %480 = vmatpush.bf16.msra.mxu0 0
        %481 = vmatpush.bf16.msra.mxu0 0
        %482 = vmatpush.bf16.msra.mxu0 0
        %483 = vmatpush.bf16.msra.mxu0 0
        %484 = vmatpush.bf16.msra.mxu0 0
        %485 = vmatpush.bf16.msra.mxu0 %v286
        %486 = vmatmul.bf16.gmra.mxu0 %v467
        %v487 = vpop.f32.mrf.mxu0
        %v488 = vadd.f32 0.0, %v487
        %v489 = vpop.f32.mrf.mxu0
        %v490 = vadd.f32 0.0, %v489
        %491 = vmatmul.bf16.gmra.mxu0 %v470
        %v492 = vpop.f32.mrf.mxu0
        %v493 = vadd.f32 0.0, %v492
        %v494 = vpop.f32.mrf.mxu0
        %v495 = vadd.f32 0.0, %v494
        %496 = vmatmul.bf16.gmra.mxu0 %v473
        %v497 = vpop.f32.mrf.mxu0
        %v498 = vadd.f32 0.0, %v497
        %v499 = vpop.f32.mrf.mxu0
        %v500 = vadd.f32 0.0, %v499
        %501 = vmatmul.bf16.gmra.mxu0 %v476
        %v502 = vpop.f32.mrf.mxu0
        %v503 = vadd.f32 0.0, %v502
        %v504 = vpop.f32.mrf.mxu0
        %v505 = vadd.f32 0.0, %v504
        %506 = vdwg.mxu0
        %v507 = vld [vmem:[%s244 + $0x20] sm:$0xf]
        %v508 = vld [vmem:[%s244 + $0x24] sm:$0xf]
        %v509 = vld [vmem:[%s244 + $0x28] sm:$0xf]
        %v510 = vld [vmem:[%s244 + $0x2c] sm:$0xf]
        %v511 = vld [vmem:[%s244 + $0x30] sm:$0xf]
        %v512 = vld [vmem:[%s244 + $0x34] sm:$0xf]
        %v513 = vld [vmem:[%s244 + $0x38] sm:$0xf]
        %v514 = vld [vmem:[%s244 + $0x3c] sm:$0xf]
        %v523 = vunpack.c.l.b16 %v507
        %v524 = vunpack.c.l.b16 %v508
        %v525 = vunpack.c.l.b16 %v509
        %v526 = vunpack.c.l.b16 %v510
        %v527 = vunpack.c.l.b16 %v511
        %v528 = vunpack.c.l.b16 %v512
        %v529 = vunpack.c.l.b16 %v513
        %v530 = vunpack.c.l.b16 %v514
        %v531 = vpack.c.b16 %v524, %v523
        %v532 = vpack.c.b16 %v526, %v525
        %v533 = vpack.c.b16 %v528, %v527
        %v534 = vpack.c.b16 %v530, %v529
        %v536 = vsel %vm288, %v531, 0
        %v539 = vsel %vm288, %v532, 0
        %v542 = vsel %vm288, %v533, 0
        %v545 = vsel %vm288, %v534, 0
        %547 = vmatpush.bf16.msra.mxu0 0
        %548 = vmatpush.bf16.msra.mxu0 0
        %549 = vmatpush.bf16.msra.mxu0 0
        %550 = vmatpush.bf16.msra.mxu0 0
        %551 = vmatpush.bf16.msra.mxu0 0
        %552 = vmatpush.bf16.msra.mxu0 0
        %553 = vmatpush.bf16.msra.mxu0 0
        %554 = vmatpush.bf16.msra.mxu0 %v286
        %555 = vmatmul.bf16.gmra.mxu0 %v536
        %v556 = vpop.f32.mrf.mxu0
        %v557 = vadd.f32 0.0, %v556
        %v558 = vpop.f32.mrf.mxu0
        %v559 = vadd.f32 0.0, %v558
        %560 = vmatmul.bf16.gmra.mxu0 %v539
        %v561 = vpop.f32.mrf.mxu0
        %v562 = vadd.f32 0.0, %v561
        %v563 = vpop.f32.mrf.mxu0
        %v564 = vadd.f32 0.0, %v563
        %565 = vmatmul.bf16.gmra.mxu0 %v542
        %v566 = vpop.f32.mrf.mxu0
        %v567 = vadd.f32 0.0, %v566
        %v568 = vpop.f32.mrf.mxu0
        %v569 = vadd.f32 0.0, %v568
        %570 = vmatmul.bf16.gmra.mxu0 %v545
        %v571 = vpop.f32.mrf.mxu0
        %v572 = vadd.f32 0.0, %v571
        %v573 = vpop.f32.mrf.mxu0
        %v574 = vadd.f32 0.0, %v573
        %575 = vdwg.mxu0
        %v576 = vmax.f32 %v488, %v557
        %v577 = vmax.f32 %v490, %v559
        %v578 = vmax.f32 %v493, %v562
        %v579 = vmax.f32 %v495, %v564
        %v580 = vmax.f32 %v498, %v567
        %v581 = vmax.f32 %v500, %v569
        %v582 = vmax.f32 %v503, %v572
        %v583 = vmax.f32 %v505, %v574
        %v584 = vadd.f32 %v576, %v408
        %v585 = vadd.f32 %v577, %v408
        %v586 = vadd.f32 %v578, %v408
        %v587 = vadd.f32 %v579, %v408
        %v588 = vadd.f32 %v580, %v408
        %v589 = vadd.f32 %v581, %v408
        %v590 = vadd.f32 %v582, %v408
        %v591 = vadd.f32 %v583, %v408
        %v592 = vmax.f32 %v584, 0.0
        %v593 = vmax.f32 %v585, 0.0
        %v594 = vmax.f32 %v586, 0.0
        %v595 = vmax.f32 %v587, 0.0
        %v596 = vmax.f32 %v588, 0.0
        %v597 = vmax.f32 %v589, 0.0
        %v598 = vmax.f32 %v590, 0.0
        %v599 = vmax.f32 %v591, 0.0
        %v600 = vmax.f32 %v592, %v594
        %v601 = vmax.f32 %v593, %v595
        %v602 = vmax.f32 %v596, %v598
        %v603 = vmax.f32 %v597, %v599
        %v604 = vpack.c.bf16 %v600, %v600
        %v605 = vpack.c.bf16 %v601, %v601
        %v606 = vpack.c.bf16 %v602, %v602
        %v607 = vpack.c.bf16 %v603, %v603
        %s608 = scalar_lea.vmem %s249, 16
        %609 = vst [vmem:[%s608] sm:$0xf] %v604
        %610 = vst [vmem:[%s608 + $0x4] sm:$0xf] %v605
        %611 = vst [vmem:[%s608 + $0x8] sm:$0xf] %v606
        %612 = vst [vmem:[%s608 + $0xc] sm:$0xf] %v607
        %v613 = vld [vmem:[%s239 + $0x40] sm:$0xf]
        %v614 = vld [vmem:[%s239 + $0x44] sm:$0xf]
        %v615 = vld [vmem:[%s239 + $0x48] sm:$0xf]
        %v616 = vld [vmem:[%s239 + $0x4c] sm:$0xf]
        %v617 = vld [vmem:[%s239 + $0x50] sm:$0xf]
        %v618 = vld [vmem:[%s239 + $0x54] sm:$0xf]
        %v619 = vld [vmem:[%s239 + $0x58] sm:$0xf]
        %v620 = vld [vmem:[%s239 + $0x5c] sm:$0xf]
        %v629 = vunpack.c.l.b16 %v613
        %v630 = vunpack.c.l.b16 %v614
        %v631 = vunpack.c.l.b16 %v615
        %v632 = vunpack.c.l.b16 %v616
        %v633 = vunpack.c.l.b16 %v617
        %v634 = vunpack.c.l.b16 %v618
        %v635 = vunpack.c.l.b16 %v619
        %v636 = vunpack.c.l.b16 %v620
        %v637 = vpack.c.b16 %v630, %v629
        %v638 = vpack.c.b16 %v632, %v631
        %v639 = vpack.c.b16 %v634, %v633
        %v640 = vpack.c.b16 %v636, %v635
        %v642 = vsel %vm288, %v637, 0
        %v645 = vsel %vm288, %v638, 0
        %v648 = vsel %vm288, %v639, 0
        %v651 = vsel %vm288, %v640, 0
        %653 = vmatpush.bf16.msra.mxu0 0
        %654 = vmatpush.bf16.msra.mxu0 0
        %655 = vmatpush.bf16.msra.mxu0 0
        %656 = vmatpush.bf16.msra.mxu0 0
        %657 = vmatpush.bf16.msra.mxu0 0
        %658 = vmatpush.bf16.msra.mxu0 0
        %659 = vmatpush.bf16.msra.mxu0 0
        %660 = vmatpush.bf16.msra.mxu0 %v286
        %661 = vmatmul.bf16.gmra.mxu0 %v642
        %v662 = vpop.f32.mrf.mxu0
        %v663 = vadd.f32 0.0, %v662
        %v664 = vpop.f32.mrf.mxu0
        %v665 = vadd.f32 0.0, %v664
        %666 = vmatmul.bf16.gmra.mxu0 %v645
        %v667 = vpop.f32.mrf.mxu0
        %v668 = vadd.f32 0.0, %v667
        %v669 = vpop.f32.mrf.mxu0
        %v670 = vadd.f32 0.0, %v669
        %671 = vmatmul.bf16.gmra.mxu0 %v648
        %v672 = vpop.f32.mrf.mxu0
        %v673 = vadd.f32 0.0, %v672
        %v674 = vpop.f32.mrf.mxu0
        %v675 = vadd.f32 0.0, %v674
        %676 = vmatmul.bf16.gmra.mxu0 %v651
        %v677 = vpop.f32.mrf.mxu0
        %v678 = vadd.f32 0.0, %v677
        %v679 = vpop.f32.mrf.mxu0
        %v680 = vadd.f32 0.0, %v679
        %681 = vdwg.mxu0
        %v682 = vld [vmem:[%s244 + $0x40] sm:$0xf]
        %v683 = vld [vmem:[%s244 + $0x44] sm:$0xf]
        %v684 = vld [vmem:[%s244 + $0x48] sm:$0xf]
        %v685 = vld [vmem:[%s244 + $0x4c] sm:$0xf]
        %v686 = vld [vmem:[%s244 + $0x50] sm:$0xf]
        %v687 = vld [vmem:[%s244 + $0x54] sm:$0xf]
        %v688 = vld [vmem:[%s244 + $0x58] sm:$0xf]
        %v689 = vld [vmem:[%s244 + $0x5c] sm:$0xf]
        %v698 = vunpack.c.l.b16 %v682
        %v699 = vunpack.c.l.b16 %v683
        %v700 = vunpack.c.l.b16 %v684
        %v701 = vunpack.c.l.b16 %v685
        %v702 = vunpack.c.l.b16 %v686
        %v703 = vunpack.c.l.b16 %v687
        %v704 = vunpack.c.l.b16 %v688
        %v705 = vunpack.c.l.b16 %v689
        %v706 = vpack.c.b16 %v699, %v698
        %v707 = vpack.c.b16 %v701, %v700
        %v708 = vpack.c.b16 %v703, %v702
        %v709 = vpack.c.b16 %v705, %v704
        %v711 = vsel %vm288, %v706, 0
        %v714 = vsel %vm288, %v707, 0
        %v717 = vsel %vm288, %v708, 0
        %v720 = vsel %vm288, %v709, 0
        %722 = vmatpush.bf16.msra.mxu0 0
        %723 = vmatpush.bf16.msra.mxu0 0
        %724 = vmatpush.bf16.msra.mxu0 0
        %725 = vmatpush.bf16.msra.mxu0 0
        %726 = vmatpush.bf16.msra.mxu0 0
        %727 = vmatpush.bf16.msra.mxu0 0
        %728 = vmatpush.bf16.msra.mxu0 0
        %729 = vmatpush.bf16.msra.mxu0 %v286
        %730 = vmatmul.bf16.gmra.mxu0 %v711
        %v731 = vpop.f32.mrf.mxu0
        %v732 = vadd.f32 0.0, %v731
        %v733 = vpop.f32.mrf.mxu0
        %v734 = vadd.f32 0.0, %v733
        %735 = vmatmul.bf16.gmra.mxu0 %v714
        %v736 = vpop.f32.mrf.mxu0
        %v737 = vadd.f32 0.0, %v736
        %v738 = vpop.f32.mrf.mxu0
        %v739 = vadd.f32 0.0, %v738
        %740 = vmatmul.bf16.gmra.mxu0 %v717
        %v741 = vpop.f32.mrf.mxu0
        %v742 = vadd.f32 0.0, %v741
        %v743 = vpop.f32.mrf.mxu0
        %v744 = vadd.f32 0.0, %v743
        %745 = vmatmul.bf16.gmra.mxu0 %v720
        %v746 = vpop.f32.mrf.mxu0
        %v747 = vadd.f32 0.0, %v746
        %v748 = vpop.f32.mrf.mxu0
        %v749 = vadd.f32 0.0, %v748
        %750 = vdwg.mxu0
        %v751 = vmax.f32 %v663, %v732
        %v752 = vmax.f32 %v665, %v734
        %v753 = vmax.f32 %v668, %v737
        %v754 = vmax.f32 %v670, %v739
        %v755 = vmax.f32 %v673, %v742
        %v756 = vmax.f32 %v675, %v744
        %v757 = vmax.f32 %v678, %v747
        %v758 = vmax.f32 %v680, %v749
        %v759 = vadd.f32 %v751, %v408
        %v760 = vadd.f32 %v752, %v408
        %v761 = vadd.f32 %v753, %v408
        %v762 = vadd.f32 %v754, %v408
        %v763 = vadd.f32 %v755, %v408
        %v764 = vadd.f32 %v756, %v408
        %v765 = vadd.f32 %v757, %v408
        %v766 = vadd.f32 %v758, %v408
        %v767 = vmax.f32 %v759, 0.0
        %v768 = vmax.f32 %v760, 0.0
        %v769 = vmax.f32 %v761, 0.0
        %v770 = vmax.f32 %v762, 0.0
        %v771 = vmax.f32 %v763, 0.0
        %v772 = vmax.f32 %v764, 0.0
        %v773 = vmax.f32 %v765, 0.0
        %v774 = vmax.f32 %v766, 0.0
        %v775 = vmax.f32 %v767, %v769
        %v776 = vmax.f32 %v768, %v770
        %v777 = vmax.f32 %v771, %v773
        %v778 = vmax.f32 %v772, %v774
        %v779 = vpack.c.bf16 %v775, %v775
        %v780 = vpack.c.bf16 %v776, %v776
        %v781 = vpack.c.bf16 %v777, %v777
        %v782 = vpack.c.bf16 %v778, %v778
        %s783 = scalar_lea.vmem %s249, 32
        %784 = vst [vmem:[%s783] sm:$0xf] %v779
        %785 = vst [vmem:[%s783 + $0x4] sm:$0xf] %v780
        %786 = vst [vmem:[%s783 + $0x8] sm:$0xf] %v781
        %787 = vst [vmem:[%s783 + $0xc] sm:$0xf] %v782
        %v788 = vld [vmem:[%s239 + $0x60] sm:$0xf]
        %v789 = vld [vmem:[%s239 + $0x64] sm:$0xf]
        %v790 = vld [vmem:[%s239 + $0x68] sm:$0xf]
        %v791 = vld [vmem:[%s239 + $0x6c] sm:$0xf]
        %v792 = vld [vmem:[%s239 + $0x70] sm:$0xf]
        %v793 = vld [vmem:[%s239 + $0x74] sm:$0xf]
        %v794 = vld [vmem:[%s239 + $0x78] sm:$0xf]
        %v795 = vld [vmem:[%s239 + $0x7c] sm:$0xf]
        %v804 = vunpack.c.l.b16 %v788
        %v805 = vunpack.c.l.b16 %v789
        %v806 = vunpack.c.l.b16 %v790
        %v807 = vunpack.c.l.b16 %v791
        %v808 = vunpack.c.l.b16 %v792
        %v809 = vunpack.c.l.b16 %v793
        %v810 = vunpack.c.l.b16 %v794
        %v811 = vunpack.c.l.b16 %v795
        %v812 = vpack.c.b16 %v805, %v804
        %v813 = vpack.c.b16 %v807, %v806
        %v814 = vpack.c.b16 %v809, %v808
        %v815 = vpack.c.b16 %v811, %v810
        %v817 = vsel %vm288, %v812, 0
        %v820 = vsel %vm288, %v813, 0
        %v823 = vsel %vm288, %v814, 0
        %v826 = vsel %vm288, %v815, 0
        %828 = vmatpush.bf16.msra.mxu0 0
        %829 = vmatpush.bf16.msra.mxu0 0
        %830 = vmatpush.bf16.msra.mxu0 0
        %831 = vmatpush.bf16.msra.mxu0 0
        %832 = vmatpush.bf16.msra.mxu0 0
        %833 = vmatpush.bf16.msra.mxu0 0
        %834 = vmatpush.bf16.msra.mxu0 0
        %835 = vmatpush.bf16.msra.mxu0 %v286
        %836 = vmatmul.bf16.gmra.mxu0 %v817
        %v837 = vpop.f32.mrf.mxu0
        %v838 = vadd.f32 0.0, %v837
        %v839 = vpop.f32.mrf.mxu0
        %v840 = vadd.f32 0.0, %v839
        %841 = vmatmul.bf16.gmra.mxu0 %v820
        %v842 = vpop.f32.mrf.mxu0
        %v843 = vadd.f32 0.0, %v842
        %v844 = vpop.f32.mrf.mxu0
        %v845 = vadd.f32 0.0, %v844
        %846 = vmatmul.bf16.gmra.mxu0 %v823
        %v847 = vpop.f32.mrf.mxu0
        %v848 = vadd.f32 0.0, %v847
        %v849 = vpop.f32.mrf.mxu0
        %v850 = vadd.f32 0.0, %v849
        %851 = vmatmul.bf16.gmra.mxu0 %v826
        %v852 = vpop.f32.mrf.mxu0
        %v853 = vadd.f32 0.0, %v852
        %v854 = vpop.f32.mrf.mxu0
        %v855 = vadd.f32 0.0, %v854
        %856 = vdwg.mxu0
        %v857 = vld [vmem:[%s244 + $0x60] sm:$0xf]
        %v858 = vld [vmem:[%s244 + $0x64] sm:$0xf]
        %v859 = vld [vmem:[%s244 + $0x68] sm:$0xf]
        %v860 = vld [vmem:[%s244 + $0x6c] sm:$0xf]
        %v861 = vld [vmem:[%s244 + $0x70] sm:$0xf]
        %v862 = vld [vmem:[%s244 + $0x74] sm:$0xf]
        %v863 = vld [vmem:[%s244 + $0x78] sm:$0xf]
        %v864 = vld [vmem:[%s244 + $0x7c] sm:$0xf]
        %v873 = vunpack.c.l.b16 %v857
        %v874 = vunpack.c.l.b16 %v858
        %v875 = vunpack.c.l.b16 %v859
        %v876 = vunpack.c.l.b16 %v860
        %v877 = vunpack.c.l.b16 %v861
        %v878 = vunpack.c.l.b16 %v862
        %v879 = vunpack.c.l.b16 %v863
        %v880 = vunpack.c.l.b16 %v864
        %v881 = vpack.c.b16 %v874, %v873
        %v882 = vpack.c.b16 %v876, %v875
        %v883 = vpack.c.b16 %v878, %v877
        %v884 = vpack.c.b16 %v880, %v879
        %v886 = vsel %vm288, %v881, 0
        %v889 = vsel %vm288, %v882, 0
        %v892 = vsel %vm288, %v883, 0
        %v895 = vsel %vm288, %v884, 0
        %897 = vmatpush.bf16.msra.mxu0 0
        %898 = vmatpush.bf16.msra.mxu0 0
        %899 = vmatpush.bf16.msra.mxu0 0
        %900 = vmatpush.bf16.msra.mxu0 0
        %901 = vmatpush.bf16.msra.mxu0 0
        %902 = vmatpush.bf16.msra.mxu0 0
        %903 = vmatpush.bf16.msra.mxu0 0
        %904 = vmatpush.bf16.msra.mxu0 %v286
        %905 = vmatmul.bf16.gmra.mxu0 %v886
        %v906 = vpop.f32.mrf.mxu0
        %v907 = vadd.f32 0.0, %v906
        %v908 = vpop.f32.mrf.mxu0
        %v909 = vadd.f32 0.0, %v908
        %910 = vmatmul.bf16.gmra.mxu0 %v889
        %v911 = vpop.f32.mrf.mxu0
        %v912 = vadd.f32 0.0, %v911
        %v913 = vpop.f32.mrf.mxu0
        %v914 = vadd.f32 0.0, %v913
        %915 = vmatmul.bf16.gmra.mxu0 %v892
        %v916 = vpop.f32.mrf.mxu0
        %v917 = vadd.f32 0.0, %v916
        %v918 = vpop.f32.mrf.mxu0
        %v919 = vadd.f32 0.0, %v918
        %920 = vmatmul.bf16.gmra.mxu0 %v895
        %v921 = vpop.f32.mrf.mxu0
        %v922 = vadd.f32 0.0, %v921
        %v923 = vpop.f32.mrf.mxu0
        %v924 = vadd.f32 0.0, %v923
        %925 = vdwg.mxu0
        %v926 = vmax.f32 %v838, %v907
        %v927 = vmax.f32 %v840, %v909
        %v928 = vmax.f32 %v843, %v912
        %v929 = vmax.f32 %v845, %v914
        %v930 = vmax.f32 %v848, %v917
        %v931 = vmax.f32 %v850, %v919
        %v932 = vmax.f32 %v853, %v922
        %v933 = vmax.f32 %v855, %v924
        %v934 = vadd.f32 %v926, %v408
        %v935 = vadd.f32 %v927, %v408
        %v936 = vadd.f32 %v928, %v408
        %v937 = vadd.f32 %v929, %v408
        %v938 = vadd.f32 %v930, %v408
        %v939 = vadd.f32 %v931, %v408
        %v940 = vadd.f32 %v932, %v408
        %v941 = vadd.f32 %v933, %v408
        %v942 = vmax.f32 %v934, 0.0
        %v943 = vmax.f32 %v935, 0.0
        %v944 = vmax.f32 %v936, 0.0
        %v945 = vmax.f32 %v937, 0.0
        %v946 = vmax.f32 %v938, 0.0
        %v947 = vmax.f32 %v939, 0.0
        %v948 = vmax.f32 %v940, 0.0
        %v949 = vmax.f32 %v941, 0.0
        %v950 = vmax.f32 %v942, %v944
        %v951 = vmax.f32 %v943, %v945
        %v952 = vmax.f32 %v946, %v948
        %v953 = vmax.f32 %v947, %v949
        %v954 = vpack.c.bf16 %v950, %v950
        %v955 = vpack.c.bf16 %v951, %v951
        %v956 = vpack.c.bf16 %v952, %v952
        %v957 = vpack.c.bf16 %v953, %v953
        %s958 = scalar_lea.vmem %s249, 48
        %959 = vst [vmem:[%s958] sm:$0xf] %v954
        %960 = vst [vmem:[%s958 + $0x4] sm:$0xf] %v955
        %961 = vst [vmem:[%s958 + $0x8] sm:$0xf] %v956
        %962 = vst [vmem:[%s958 + $0xc] sm:$0xf] %v957
        %v963 = vld [vmem:[%s239 + $0x80] sm:$0xf]
        %v964 = vld [vmem:[%s239 + $0x84] sm:$0xf]
        %v965 = vld [vmem:[%s239 + $0x88] sm:$0xf]
        %v966 = vld [vmem:[%s239 + $0x8c] sm:$0xf]
        %v967 = vld [vmem:[%s239 + $0x90] sm:$0xf]
        %v968 = vld [vmem:[%s239 + $0x94] sm:$0xf]
        %v969 = vld [vmem:[%s239 + $0x98] sm:$0xf]
        %v970 = vld [vmem:[%s239 + $0x9c] sm:$0xf]
        %v979 = vunpack.c.l.b16 %v963
        %v980 = vunpack.c.l.b16 %v964
        %v981 = vunpack.c.l.b16 %v965
        %v982 = vunpack.c.l.b16 %v966
        %v983 = vunpack.c.l.b16 %v967
        %v984 = vunpack.c.l.b16 %v968
        %v985 = vunpack.c.l.b16 %v969
        %v986 = vunpack.c.l.b16 %v970
        %v987 = vpack.c.b16 %v980, %v979
        %v988 = vpack.c.b16 %v982, %v981
        %v989 = vpack.c.b16 %v984, %v983
        %v990 = vpack.c.b16 %v986, %v985
        %v992 = vsel %vm288, %v987, 0
        %v995 = vsel %vm288, %v988, 0
        %v998 = vsel %vm288, %v989, 0
        %v1001 = vsel %vm288, %v990, 0
        %1003 = vmatpush.bf16.msra.mxu0 0
        %1004 = vmatpush.bf16.msra.mxu0 0
        %1005 = vmatpush.bf16.msra.mxu0 0
        %1006 = vmatpush.bf16.msra.mxu0 0
        %1007 = vmatpush.bf16.msra.mxu0 0
        %1008 = vmatpush.bf16.msra.mxu0 0
        %1009 = vmatpush.bf16.msra.mxu0 0
        %1010 = vmatpush.bf16.msra.mxu0 %v286
        %1011 = vmatmul.bf16.gmra.mxu0 %v992
        %v1012 = vpop.f32.mrf.mxu0
        %v1013 = vadd.f32 0.0, %v1012
        %v1014 = vpop.f32.mrf.mxu0
        %v1015 = vadd.f32 0.0, %v1014
        %1016 = vmatmul.bf16.gmra.mxu0 %v995
        %v1017 = vpop.f32.mrf.mxu0
        %v1018 = vadd.f32 0.0, %v1017
        %v1019 = vpop.f32.mrf.mxu0
        %v1020 = vadd.f32 0.0, %v1019
        %1021 = vmatmul.bf16.gmra.mxu0 %v998
        %v1022 = vpop.f32.mrf.mxu0
        %v1023 = vadd.f32 0.0, %v1022
        %v1024 = vpop.f32.mrf.mxu0
        %v1025 = vadd.f32 0.0, %v1024
        %1026 = vmatmul.bf16.gmra.mxu0 %v1001
        %v1027 = vpop.f32.mrf.mxu0
        %v1028 = vadd.f32 0.0, %v1027
        %v1029 = vpop.f32.mrf.mxu0
        %v1030 = vadd.f32 0.0, %v1029
        %1031 = vdwg.mxu0
        %v1032 = vld [vmem:[%s244 + $0x80] sm:$0xf]
        %v1033 = vld [vmem:[%s244 + $0x84] sm:$0xf]
        %v1034 = vld [vmem:[%s244 + $0x88] sm:$0xf]
        %v1035 = vld [vmem:[%s244 + $0x8c] sm:$0xf]
        %v1036 = vld [vmem:[%s244 + $0x90] sm:$0xf]
        %v1037 = vld [vmem:[%s244 + $0x94] sm:$0xf]
        %v1038 = vld [vmem:[%s244 + $0x98] sm:$0xf]
        %v1039 = vld [vmem:[%s244 + $0x9c] sm:$0xf]
        %v1048 = vunpack.c.l.b16 %v1032
        %v1049 = vunpack.c.l.b16 %v1033
        %v1050 = vunpack.c.l.b16 %v1034
        %v1051 = vunpack.c.l.b16 %v1035
        %v1052 = vunpack.c.l.b16 %v1036
        %v1053 = vunpack.c.l.b16 %v1037
        %v1054 = vunpack.c.l.b16 %v1038
        %v1055 = vunpack.c.l.b16 %v1039
        %v1056 = vpack.c.b16 %v1049, %v1048
        %v1057 = vpack.c.b16 %v1051, %v1050
        %v1058 = vpack.c.b16 %v1053, %v1052
        %v1059 = vpack.c.b16 %v1055, %v1054
        %v1061 = vsel %vm288, %v1056, 0
        %v1064 = vsel %vm288, %v1057, 0
        %v1067 = vsel %vm288, %v1058, 0
        %v1070 = vsel %vm288, %v1059, 0
        %1072 = vmatpush.bf16.msra.mxu0 0
        %1073 = vmatpush.bf16.msra.mxu0 0
        %1074 = vmatpush.bf16.msra.mxu0 0
        %1075 = vmatpush.bf16.msra.mxu0 0
        %1076 = vmatpush.bf16.msra.mxu0 0
        %1077 = vmatpush.bf16.msra.mxu0 0
        %1078 = vmatpush.bf16.msra.mxu0 0
        %1079 = vmatpush.bf16.msra.mxu0 %v286
        %1080 = vmatmul.bf16.gmra.mxu0 %v1061
        %v1081 = vpop.f32.mrf.mxu0
        %v1082 = vadd.f32 0.0, %v1081
        %v1083 = vpop.f32.mrf.mxu0
        %v1084 = vadd.f32 0.0, %v1083
        %1085 = vmatmul.bf16.gmra.mxu0 %v1064
        %v1086 = vpop.f32.mrf.mxu0
        %v1087 = vadd.f32 0.0, %v1086
        %v1088 = vpop.f32.mrf.mxu0
        %v1089 = vadd.f32 0.0, %v1088
        %1090 = vmatmul.bf16.gmra.mxu0 %v1067
        %v1091 = vpop.f32.mrf.mxu0
        %v1092 = vadd.f32 0.0, %v1091
        %v1093 = vpop.f32.mrf.mxu0
        %v1094 = vadd.f32 0.0, %v1093
        %1095 = vmatmul.bf16.gmra.mxu0 %v1070
        %v1096 = vpop.f32.mrf.mxu0
        %v1097 = vadd.f32 0.0, %v1096
        %v1098 = vpop.f32.mrf.mxu0
        %v1099 = vadd.f32 0.0, %v1098
        %1100 = vdwg.mxu0
        %v1101 = vmax.f32 %v1013, %v1082
        %v1102 = vmax.f32 %v1015, %v1084
        %v1103 = vmax.f32 %v1018, %v1087
        %v1104 = vmax.f32 %v1020, %v1089
        %v1105 = vmax.f32 %v1023, %v1092
        %v1106 = vmax.f32 %v1025, %v1094
        %v1107 = vmax.f32 %v1028, %v1097
        %v1108 = vmax.f32 %v1030, %v1099
        %v1109 = vadd.f32 %v1101, %v408
        %v1110 = vadd.f32 %v1102, %v408
        %v1111 = vadd.f32 %v1103, %v408
        %v1112 = vadd.f32 %v1104, %v408
        %v1113 = vadd.f32 %v1105, %v408
        %v1114 = vadd.f32 %v1106, %v408
        %v1115 = vadd.f32 %v1107, %v408
        %v1116 = vadd.f32 %v1108, %v408
        %v1117 = vmax.f32 %v1109, 0.0
        %v1118 = vmax.f32 %v1110, 0.0
        %v1119 = vmax.f32 %v1111, 0.0
        %v1120 = vmax.f32 %v1112, 0.0
        %v1121 = vmax.f32 %v1113, 0.0
        %v1122 = vmax.f32 %v1114, 0.0
        %v1123 = vmax.f32 %v1115, 0.0
        %v1124 = vmax.f32 %v1116, 0.0
        %v1125 = vmax.f32 %v1117, %v1119
        %v1126 = vmax.f32 %v1118, %v1120
        %v1127 = vmax.f32 %v1121, %v1123
        %v1128 = vmax.f32 %v1122, %v1124
        %v1129 = vpack.c.bf16 %v1125, %v1125
        %v1130 = vpack.c.bf16 %v1126, %v1126
        %v1131 = vpack.c.bf16 %v1127, %v1127
        %v1132 = vpack.c.bf16 %v1128, %v1128
        %s1133 = scalar_lea.vmem %s249, 64
        %1134 = vst [vmem:[%s1133] sm:$0xf] %v1129
        %1135 = vst [vmem:[%s1133 + $0x4] sm:$0xf] %v1130
        %1136 = vst [vmem:[%s1133 + $0x8] sm:$0xf] %v1131
        %1137 = vst [vmem:[%s1133 + $0xc] sm:$0xf] %v1132
        %v1138 = vld [vmem:[%s239 + $0xa0] sm:$0xf]
        %v1139 = vld [vmem:[%s239 + $0xa4] sm:$0xf]
        %v1140 = vld [vmem:[%s239 + $0xa8] sm:$0xf]
        %v1141 = vld [vmem:[%s239 + $0xac] sm:$0xf]
        %v1142 = vld [vmem:[%s239 + $0xb0] sm:$0xf]
        %v1143 = vld [vmem:[%s239 + $0xb4] sm:$0xf]
        %v1144 = vld [vmem:[%s239 + $0xb8] sm:$0xf]
        %v1145 = vld [vmem:[%s239 + $0xbc] sm:$0xf]
        %v1154 = vunpack.c.l.b16 %v1138
        %v1155 = vunpack.c.l.b16 %v1139
        %v1156 = vunpack.c.l.b16 %v1140
        %v1157 = vunpack.c.l.b16 %v1141
        %v1158 = vunpack.c.l.b16 %v1142
        %v1159 = vunpack.c.l.b16 %v1143
        %v1160 = vunpack.c.l.b16 %v1144
        %v1161 = vunpack.c.l.b16 %v1145
        %v1162 = vpack.c.b16 %v1155, %v1154
        %v1163 = vpack.c.b16 %v1157, %v1156
        %v1164 = vpack.c.b16 %v1159, %v1158
        %v1165 = vpack.c.b16 %v1161, %v1160
        %v1167 = vsel %vm288, %v1162, 0
        %v1170 = vsel %vm288, %v1163, 0
        %v1173 = vsel %vm288, %v1164, 0
        %v1176 = vsel %vm288, %v1165, 0
        %1178 = vmatpush.bf16.msra.mxu0 0
        %1179 = vmatpush.bf16.msra.mxu0 0
        %1180 = vmatpush.bf16.msra.mxu0 0
        %1181 = vmatpush.bf16.msra.mxu0 0
        %1182 = vmatpush.bf16.msra.mxu0 0
        %1183 = vmatpush.bf16.msra.mxu0 0
        %1184 = vmatpush.bf16.msra.mxu0 0
        %1185 = vmatpush.bf16.msra.mxu0 %v286
        %1186 = vmatmul.bf16.gmra.mxu0 %v1167
        %v1187 = vpop.f32.mrf.mxu0
        %v1188 = vadd.f32 0.0, %v1187
        %v1189 = vpop.f32.mrf.mxu0
        %v1190 = vadd.f32 0.0, %v1189
        %1191 = vmatmul.bf16.gmra.mxu0 %v1170
        %v1192 = vpop.f32.mrf.mxu0
        %v1193 = vadd.f32 0.0, %v1192
        %v1194 = vpop.f32.mrf.mxu0
        %v1195 = vadd.f32 0.0, %v1194
        %1196 = vmatmul.bf16.gmra.mxu0 %v1173
        %v1197 = vpop.f32.mrf.mxu0
        %v1198 = vadd.f32 0.0, %v1197
        %v1199 = vpop.f32.mrf.mxu0
        %v1200 = vadd.f32 0.0, %v1199
        %1201 = vmatmul.bf16.gmra.mxu0 %v1176
        %v1202 = vpop.f32.mrf.mxu0
        %v1203 = vadd.f32 0.0, %v1202
        %v1204 = vpop.f32.mrf.mxu0
        %v1205 = vadd.f32 0.0, %v1204
        %1206 = vdwg.mxu0
        %v1207 = vld [vmem:[%s244 + $0xa0] sm:$0xf]
        %v1208 = vld [vmem:[%s244 + $0xa4] sm:$0xf]
        %v1209 = vld [vmem:[%s244 + $0xa8] sm:$0xf]
        %v1210 = vld [vmem:[%s244 + $0xac] sm:$0xf]
        %v1211 = vld [vmem:[%s244 + $0xb0] sm:$0xf]
        %v1212 = vld [vmem:[%s244 + $0xb4] sm:$0xf]
        %v1213 = vld [vmem:[%s244 + $0xb8] sm:$0xf]
        %v1214 = vld [vmem:[%s244 + $0xbc] sm:$0xf]
        %v1223 = vunpack.c.l.b16 %v1207
        %v1224 = vunpack.c.l.b16 %v1208
        %v1225 = vunpack.c.l.b16 %v1209
        %v1226 = vunpack.c.l.b16 %v1210
        %v1227 = vunpack.c.l.b16 %v1211
        %v1228 = vunpack.c.l.b16 %v1212
        %v1229 = vunpack.c.l.b16 %v1213
        %v1230 = vunpack.c.l.b16 %v1214
        %v1231 = vpack.c.b16 %v1224, %v1223
        %v1232 = vpack.c.b16 %v1226, %v1225
        %v1233 = vpack.c.b16 %v1228, %v1227
        %v1234 = vpack.c.b16 %v1230, %v1229
        %v1236 = vsel %vm288, %v1231, 0
        %v1239 = vsel %vm288, %v1232, 0
        %v1242 = vsel %vm288, %v1233, 0
        %v1245 = vsel %vm288, %v1234, 0
        %1247 = vmatpush.bf16.msra.mxu0 0
        %1248 = vmatpush.bf16.msra.mxu0 0
        %1249 = vmatpush.bf16.msra.mxu0 0
        %1250 = vmatpush.bf16.msra.mxu0 0
        %1251 = vmatpush.bf16.msra.mxu0 0
        %1252 = vmatpush.bf16.msra.mxu0 0
        %1253 = vmatpush.bf16.msra.mxu0 0
        %1254 = vmatpush.bf16.msra.mxu0 %v286
        %1255 = vmatmul.bf16.gmra.mxu0 %v1236
        %v1256 = vpop.f32.mrf.mxu0
        %v1257 = vadd.f32 0.0, %v1256
        %v1258 = vpop.f32.mrf.mxu0
        %v1259 = vadd.f32 0.0, %v1258
        %1260 = vmatmul.bf16.gmra.mxu0 %v1239
        %v1261 = vpop.f32.mrf.mxu0
        %v1262 = vadd.f32 0.0, %v1261
        %v1263 = vpop.f32.mrf.mxu0
        %v1264 = vadd.f32 0.0, %v1263
        %1265 = vmatmul.bf16.gmra.mxu0 %v1242
        %v1266 = vpop.f32.mrf.mxu0
        %v1267 = vadd.f32 0.0, %v1266
        %v1268 = vpop.f32.mrf.mxu0
        %v1269 = vadd.f32 0.0, %v1268
        %1270 = vmatmul.bf16.gmra.mxu0 %v1245
        %v1271 = vpop.f32.mrf.mxu0
        %v1272 = vadd.f32 0.0, %v1271
        %v1273 = vpop.f32.mrf.mxu0
        %v1274 = vadd.f32 0.0, %v1273
        %1275 = vdwg.mxu0
        %v1276 = vmax.f32 %v1188, %v1257
        %v1277 = vmax.f32 %v1190, %v1259
        %v1278 = vmax.f32 %v1193, %v1262
        %v1279 = vmax.f32 %v1195, %v1264
        %v1280 = vmax.f32 %v1198, %v1267
        %v1281 = vmax.f32 %v1200, %v1269
        %v1282 = vmax.f32 %v1203, %v1272
        %v1283 = vmax.f32 %v1205, %v1274
        %v1284 = vadd.f32 %v1276, %v408
        %v1285 = vadd.f32 %v1277, %v408
        %v1286 = vadd.f32 %v1278, %v408
        %v1287 = vadd.f32 %v1279, %v408
        %v1288 = vadd.f32 %v1280, %v408
        %v1289 = vadd.f32 %v1281, %v408
        %v1290 = vadd.f32 %v1282, %v408
        %v1291 = vadd.f32 %v1283, %v408
        %v1292 = vmax.f32 %v1284, 0.0
        %v1293 = vmax.f32 %v1285, 0.0
        %v1294 = vmax.f32 %v1286, 0.0
        %v1295 = vmax.f32 %v1287, 0.0
        %v1296 = vmax.f32 %v1288, 0.0
        %v1297 = vmax.f32 %v1289, 0.0
        %v1298 = vmax.f32 %v1290, 0.0
        %v1299 = vmax.f32 %v1291, 0.0
        %v1300 = vmax.f32 %v1292, %v1294
        %v1301 = vmax.f32 %v1293, %v1295
        %v1302 = vmax.f32 %v1296, %v1298
        %v1303 = vmax.f32 %v1297, %v1299
        %v1304 = vpack.c.bf16 %v1300, %v1300
        %v1305 = vpack.c.bf16 %v1301, %v1301
        %v1306 = vpack.c.bf16 %v1302, %v1302
        %v1307 = vpack.c.bf16 %v1303, %v1303
        %s1308 = scalar_lea.vmem %s249, 80
        %1309 = vst [vmem:[%s1308] sm:$0xf] %v1304
        %1310 = vst [vmem:[%s1308 + $0x4] sm:$0xf] %v1305
        %1311 = vst [vmem:[%s1308 + $0x8] sm:$0xf] %v1306
        %1312 = vst [vmem:[%s1308 + $0xc] sm:$0xf] %v1307
        %v1313 = vld [vmem:[%s239 + $0xc0] sm:$0xf]
        %v1314 = vld [vmem:[%s239 + $0xc4] sm:$0xf]
        %v1315 = vld [vmem:[%s239 + $0xc8] sm:$0xf]
        %v1316 = vld [vmem:[%s239 + $0xcc] sm:$0xf]
        %v1317 = vld [vmem:[%s239 + $0xd0] sm:$0xf]
        %v1318 = vld [vmem:[%s239 + $0xd4] sm:$0xf]
        %v1319 = vld [vmem:[%s239 + $0xd8] sm:$0xf]
        %v1320 = vld [vmem:[%s239 + $0xdc] sm:$0xf]
        %v1329 = vunpack.c.l.b16 %v1313
        %v1330 = vunpack.c.l.b16 %v1314
        %v1331 = vunpack.c.l.b16 %v1315
        %v1332 = vunpack.c.l.b16 %v1316
        %v1333 = vunpack.c.l.b16 %v1317
        %v1334 = vunpack.c.l.b16 %v1318
        %v1335 = vunpack.c.l.b16 %v1319
        %v1336 = vunpack.c.l.b16 %v1320
        %v1337 = vpack.c.b16 %v1330, %v1329
        %v1338 = vpack.c.b16 %v1332, %v1331
        %v1339 = vpack.c.b16 %v1334, %v1333
        %v1340 = vpack.c.b16 %v1336, %v1335
        %v1342 = vsel %vm288, %v1337, 0
        %v1345 = vsel %vm288, %v1338, 0
        %v1348 = vsel %vm288, %v1339, 0
        %v1351 = vsel %vm288, %v1340, 0
        %1353 = vmatpush.bf16.msra.mxu0 0
        %1354 = vmatpush.bf16.msra.mxu0 0
        %1355 = vmatpush.bf16.msra.mxu0 0
        %1356 = vmatpush.bf16.msra.mxu0 0
        %1357 = vmatpush.bf16.msra.mxu0 0
        %1358 = vmatpush.bf16.msra.mxu0 0
        %1359 = vmatpush.bf16.msra.mxu0 0
        %1360 = vmatpush.bf16.msra.mxu0 %v286
        %1361 = vmatmul.bf16.gmra.mxu0 %v1342
        %v1362 = vpop.f32.mrf.mxu0
        %v1363 = vadd.f32 0.0, %v1362
        %v1364 = vpop.f32.mrf.mxu0
        %v1365 = vadd.f32 0.0, %v1364
        %1366 = vmatmul.bf16.gmra.mxu0 %v1345
        %v1367 = vpop.f32.mrf.mxu0
        %v1368 = vadd.f32 0.0, %v1367
        %v1369 = vpop.f32.mrf.mxu0
        %v1370 = vadd.f32 0.0, %v1369
        %1371 = vmatmul.bf16.gmra.mxu0 %v1348
        %v1372 = vpop.f32.mrf.mxu0
        %v1373 = vadd.f32 0.0, %v1372
        %v1374 = vpop.f32.mrf.mxu0
        %v1375 = vadd.f32 0.0, %v1374
        %1376 = vmatmul.bf16.gmra.mxu0 %v1351
        %v1377 = vpop.f32.mrf.mxu0
        %v1378 = vadd.f32 0.0, %v1377
        %v1379 = vpop.f32.mrf.mxu0
        %v1380 = vadd.f32 0.0, %v1379
        %1381 = vdwg.mxu0
        %v1382 = vld [vmem:[%s244 + $0xc0] sm:$0xf]
        %v1383 = vld [vmem:[%s244 + $0xc4] sm:$0xf]
        %v1384 = vld [vmem:[%s244 + $0xc8] sm:$0xf]
        %v1385 = vld [vmem:[%s244 + $0xcc] sm:$0xf]
        %v1386 = vld [vmem:[%s244 + $0xd0] sm:$0xf]
        %v1387 = vld [vmem:[%s244 + $0xd4] sm:$0xf]
        %v1388 = vld [vmem:[%s244 + $0xd8] sm:$0xf]
        %v1389 = vld [vmem:[%s244 + $0xdc] sm:$0xf]
        %v1398 = vunpack.c.l.b16 %v1382
        %v1399 = vunpack.c.l.b16 %v1383
        %v1400 = vunpack.c.l.b16 %v1384
        %v1401 = vunpack.c.l.b16 %v1385
        %v1402 = vunpack.c.l.b16 %v1386
        %v1403 = vunpack.c.l.b16 %v1387
        %v1404 = vunpack.c.l.b16 %v1388
        %v1405 = vunpack.c.l.b16 %v1389
        %v1406 = vpack.c.b16 %v1399, %v1398
        %v1407 = vpack.c.b16 %v1401, %v1400
        %v1408 = vpack.c.b16 %v1403, %v1402
        %v1409 = vpack.c.b16 %v1405, %v1404
        %v1411 = vsel %vm288, %v1406, 0
        %v1414 = vsel %vm288, %v1407, 0
        %v1417 = vsel %vm288, %v1408, 0
        %v1420 = vsel %vm288, %v1409, 0
        %1422 = vmatpush.bf16.msra.mxu0 0
        %1423 = vmatpush.bf16.msra.mxu0 0
        %1424 = vmatpush.bf16.msra.mxu0 0
        %1425 = vmatpush.bf16.msra.mxu0 0
        %1426 = vmatpush.bf16.msra.mxu0 0
        %1427 = vmatpush.bf16.msra.mxu0 0
        %1428 = vmatpush.bf16.msra.mxu0 0
        %1429 = vmatpush.bf16.msra.mxu0 %v286
        %1430 = vmatmul.bf16.gmra.mxu0 %v1411
        %v1431 = vpop.f32.mrf.mxu0
        %v1432 = vadd.f32 0.0, %v1431
        %v1433 = vpop.f32.mrf.mxu0
        %v1434 = vadd.f32 0.0, %v1433
        %1435 = vmatmul.bf16.gmra.mxu0 %v1414
        %v1436 = vpop.f32.mrf.mxu0
        %v1437 = vadd.f32 0.0, %v1436
        %v1438 = vpop.f32.mrf.mxu0
        %v1439 = vadd.f32 0.0, %v1438
        %1440 = vmatmul.bf16.gmra.mxu0 %v1417
        %v1441 = vpop.f32.mrf.mxu0
        %v1442 = vadd.f32 0.0, %v1441
        %v1443 = vpop.f32.mrf.mxu0
        %v1444 = vadd.f32 0.0, %v1443
        %1445 = vmatmul.bf16.gmra.mxu0 %v1420
        %v1446 = vpop.f32.mrf.mxu0
        %v1447 = vadd.f32 0.0, %v1446
        %v1448 = vpop.f32.mrf.mxu0
        %v1449 = vadd.f32 0.0, %v1448
        %1450 = vdwg.mxu0
        %v1451 = vmax.f32 %v1363, %v1432
        %v1452 = vmax.f32 %v1365, %v1434
        %v1453 = vmax.f32 %v1368, %v1437
        %v1454 = vmax.f32 %v1370, %v1439
        %v1455 = vmax.f32 %v1373, %v1442
        %v1456 = vmax.f32 %v1375, %v1444
        %v1457 = vmax.f32 %v1378, %v1447
        %v1458 = vmax.f32 %v1380, %v1449
        %v1459 = vadd.f32 %v1451, %v408
        %v1460 = vadd.f32 %v1452, %v408
        %v1461 = vadd.f32 %v1453, %v408
        %v1462 = vadd.f32 %v1454, %v408
        %v1463 = vadd.f32 %v1455, %v408
        %v1464 = vadd.f32 %v1456, %v408
        %v1465 = vadd.f32 %v1457, %v408
        %v1466 = vadd.f32 %v1458, %v408
        %v1467 = vmax.f32 %v1459, 0.0
        %v1468 = vmax.f32 %v1460, 0.0
        %v1469 = vmax.f32 %v1461, 0.0
        %v1470 = vmax.f32 %v1462, 0.0
        %v1471 = vmax.f32 %v1463, 0.0
        %v1472 = vmax.f32 %v1464, 0.0
        %v1473 = vmax.f32 %v1465, 0.0
        %v1474 = vmax.f32 %v1466, 0.0
        %v1475 = vmax.f32 %v1467, %v1469
        %v1476 = vmax.f32 %v1468, %v1470
        %v1477 = vmax.f32 %v1471, %v1473
        %v1478 = vmax.f32 %v1472, %v1474
        %v1479 = vpack.c.bf16 %v1475, %v1475
        %v1480 = vpack.c.bf16 %v1476, %v1476
        %v1481 = vpack.c.bf16 %v1477, %v1477
        %v1482 = vpack.c.bf16 %v1478, %v1478
        %s1483 = scalar_lea.vmem %s249, 96
        %1484 = vst [vmem:[%s1483] sm:$0xf] %v1479
        %1485 = vst [vmem:[%s1483 + $0x4] sm:$0xf] %v1480
        %1486 = vst [vmem:[%s1483 + $0x8] sm:$0xf] %v1481
        %1487 = vst [vmem:[%s1483 + $0xc] sm:$0xf] %v1482
        %p1488 = scmp.lt.s32.totalorder %s17, 1
        %s1489 = scalar_select %p1488, %s17, 1
        %s1490 = smul.addr %s1489, 28
        %s1491 = smul.addr %s1490, 4
        %s1492 = scalar_lea.vmem %s4, %s1491
        // Predicated region
        $region45: #{net_forward.3} parent=35 // pred_check
          %p1493 = pneg %p129
        $region46: #{net_forward.3} parent=35 // pred_check_branch
          %1495 = sbr.rel (%p1493) target = $region48
        $region47: #{net_forward.3} parent=35 // pred_region
          _
        $region48: #{net_forward.3} parent=35 // pred_fallthru
          _
      $region36: #{net_forward.3} parent=5 // pred_fallthru
        _
      %p1496 = scmp.le.s32.totalorder 2, %s12
      // Predicated region
      $region49: #{net_forward.3} parent=5 // pred_check
        %p1497 = pneg %p1496
      $region50: #{net_forward.3} parent=5 // pred_check_branch
        %1499 = sbr.rel (%p1497) target = $region52
      $region51: #{net_forward.3} parent=5 // pred_region
        %s1500 = ssub.s32 %s12, 2
        // Predicated region
        $region53: #{net_forward.3} parent=51 // pred_check
          %p1501 = pneg %p135
        $region54: #{net_forward.3} parent=51 // pred_check_branch
          %1503 = sbr.rel (%p1501) target = $region56
        $region55: #{net_forward.3} parent=51 // pred_region
          %p1504 = scmp.lt.s32.totalorder %s18, 1
          %s1505 = scalar_select %p1504, %s18, 1
          %s1506 = smul.addr %s1505, 28
          %s1507 = smul.addr %s1506, 4
          %s1508 = scalar_lea.vmem %s4, %s1507
        $region56: #{net_forward.3} parent=51 // pred_fallthru
          _
      $region52: #{net_forward.3} parent=5 // pred_fallthru
        _
    $region6: #{net_forward.3} parent=1 // loop_footer
      %s16 = sadd.s32 1, %s12
    $region7: #{net_forward.3} parent=1 // loop_footer_branch
      %11 = sbr.rel target = $region3
    $region8: #{net_forward.3} parent=1 // loop_exit
      _
    %1509 = vsyncpa [#allocation3], 1
    %s1510 = scalar_lea.sflag [#allocation3], 1
    %1511 = vsyncpa %s1510, 1
    %1512 = vsyncpa [#allocation5], 1

// kernel: net_forward.4
$region0: #{net_forward.4}
  #allocation0 [shape = 'u32[]', space=smem, size = 0x4, offset = 0x4, fixed_abs, tag = 'smem constant byte address 0x4 - core index']
  #allocation1 [shape = 'u32[72,128]{1,0:T(1,128)}', space=vmem, size = 0x9000, scoped, tag = 'internal scratch']
  %s0 = inlined_call_operand.vmem [shape: bf16[2,112,256], index: 0, kind: input, shape index: {}]
  %s1 = inlined_call_operand.vmem [shape: bf16[2,112,256], index: 1, kind: input, shape index: {}]
  %s2 = inlined_call_operand.vmem [shape: bf16[256,128], index: 2, kind: input, shape index: {}]
  %s3 = inlined_call_operand.vmem [shape: f32[1,128], index: 3, kind: input, shape index: {}]
  %s4 = inlined_call_operand.vmem [shape: bf16[2,7,8,128], index: 4, kind: output, shape index: {}]
  %s5 = sld [smem:[#allocation0]]
  $region49: #{net_forward.4} parent=0
    _
  %s7 = ssub.s32 1, %s5
  %s8 = scalar_select 0, %s7, %s5
  loop: start=0, step=1, limit=4
  $region2: #{net_forward.4} parent=0 // loop_pre_header
    _
  $region3: #{net_forward.4} parent=0 // loop_header
    %s10 = sphi 0, %s14
    %p11 = scmp.ge.s32.totalorder %s10, 4
    %s20 = sphi 0, %s22
    %s23 = sphi 0, %s20
    %s24 = sphi 0, %s23
    %s40 = sphi 0, %s24
    %s46 = sphi 0, %s48
    %s49 = sphi 0, %s46
    %s50 = sphi 0, %s49
    %s66 = sphi 0, %s50
    %s70 = sphi 0, %s70
    %s72 = sphi 0, %s70
    %s73 = sphi 0, %s72
    %s87 = sphi 0, %s73
    %s91 = sphi 0, %s91
    %s93 = sphi 0, %s91
    %s94 = sphi 0, %s93
    %s108 = sphi 0, %s94
    %s114 = sphi 0, %s116
    %s117 = sphi 0, %s114
    %s118 = sphi 0, %s117
    %s134 = sphi 0, %s118
  $region4: #{net_forward.4} parent=0 // loop_header_branch
    %13 = sbr.rel (%p11) target = $region8
  $region5: #{net_forward.4} parent=0 // loop_body
    %s15 = ssub.s32 %s10, 1
    %s16 = ssub.s32 %s10, 2
    %s17 = sadd.s32 %s10, 1
    %s18 = ssub.s32 %s10, %s17
    %p19 = scmp.eq.s32.totalorder %s18, 0
    %s21 = sadd.s32 %s20, 1
    %s22 = scalar_select %p19, %s20, %s21
    %p25 = pneg %p19
    %p26 = scmp.eq.s32.totalorder %s10, 1
    %p27 = por %p25, %p26
    %p28 = scmp.ne.s32.totalorder %s20, %s23
    %p29 = scmp.eq.s32.totalorder %s10, 0
    %p30 = por %p28, %p29
    %p31 = scmp.ne.s32.totalorder %s20, %s23
    %p32 = scmp.eq.s32.totalorder %s15, 1
    %p33 = por %p31, %p32
    %p34 = scmp.ne.s32.totalorder %s23, %s24
    %p35 = scmp.eq.s32.totalorder %s15, 0
    %p36 = por %p34, %p35
    %p37 = scmp.ne.s32.totalorder %s23, %s24
    %p38 = scmp.eq.s32.totalorder %s16, 1
    %p39 = por %p37, %p38
    %p41 = scmp.ne.s32.totalorder %s24, %s40
    %p42 = scmp.eq.s32.totalorder %s16, 0
    %p43 = por %p41, %p42
    %s44 = ssub.s32 %s10, %s17
    %p45 = scmp.eq.s32.totalorder %s44, 0
    %s47 = sadd.s32 %s46, 1
    %s48 = scalar_select %p45, %s46, %s47
    %p51 = pneg %p45
    %p52 = scmp.eq.s32.totalorder %s10, 1
    %p53 = por %p51, %p52
    %p54 = scmp.ne.s32.totalorder %s46, %s49
    %p55 = scmp.eq.s32.totalorder %s10, 0
    %p56 = por %p54, %p55
    %p57 = scmp.ne.s32.totalorder %s46, %s49
    %p58 = scmp.eq.s32.totalorder %s15, 1
    %p59 = por %p57, %p58
    %p60 = scmp.ne.s32.totalorder %s49, %s50
    %p61 = scmp.eq.s32.totalorder %s15, 0
    %p62 = por %p60, %p61
    %p63 = scmp.ne.s32.totalorder %s49, %s50
    %p64 = scmp.eq.s32.totalorder %s16, 1
    %p65 = por %p63, %p64
    %p67 = scmp.ne.s32.totalorder %s50, %s66
    %p68 = scmp.eq.s32.totalorder %s16, 0
    %p69 = por %p67, %p68
    %s71 = sadd.s32 %s70, 1
    %p74 = scmp.eq.s32.totalorder %s10, 1
    %p75 = scmp.ne.s32.totalorder %s70, %s72
    %p76 = scmp.eq.s32.totalorder %s10, 0
    %p77 = por %p75, %p76
    %p78 = scmp.ne.s32.totalorder %s70, %s72
    %p79 = scmp.eq.s32.totalorder %s15, 1
    %p80 = por %p78, %p79
    %p81 = scmp.ne.s32.totalorder %s72, %s73
    %p82 = scmp.eq.s32.totalorder %s15, 0
    %p83 = por %p81, %p82
    %p84 = scmp.ne.s32.totalorder %s72, %s73
    %p85 = scmp.eq.s32.totalorder %s16, 1
    %p86 = por %p84, %p85
    %p88 = scmp.ne.s32.totalorder %s73, %s87
    %p89 = scmp.eq.s32.totalorder %s16, 0
    %p90 = por %p88, %p89
    %s92 = sadd.s32 %s91, 1
    %p95 = scmp.eq.s32.totalorder %s10, 1
    %p96 = scmp.ne.s32.totalorder %s91, %s93
    %p97 = scmp.eq.s32.totalorder %s10, 0
    %p98 = por %p96, %p97
    %p99 = scmp.ne.s32.totalorder %s91, %s93
    %p100 = scmp.eq.s32.totalorder %s15, 1
    %p101 = por %p99, %p100
    %p102 = scmp.ne.s32.totalorder %s93, %s94
    %p103 = scmp.eq.s32.totalorder %s15, 0
    %p104 = por %p102, %p103
    %p105 = scmp.ne.s32.totalorder %s93, %s94
    %p106 = scmp.eq.s32.totalorder %s16, 1
    %p107 = por %p105, %p106
    %p109 = scmp.ne.s32.totalorder %s94, %s108
    %p110 = scmp.eq.s32.totalorder %s16, 0
    %p111 = por %p109, %p110
    %s112 = ssub.s32 %s10, %s17
    %p113 = scmp.eq.s32.totalorder %s112, 0
    %s115 = sadd.s32 %s114, 1
    %s116 = scalar_select %p113, %s114, %s115
    %p119 = pneg %p113
    %p120 = scmp.eq.s32.totalorder %s10, 1
    %p121 = por %p119, %p120
    %p122 = scmp.ne.s32.totalorder %s114, %s117
    %p123 = scmp.eq.s32.totalorder %s10, 0
    %p124 = por %p122, %p123
    %p125 = scmp.ne.s32.totalorder %s114, %s117
    %p126 = scmp.eq.s32.totalorder %s15, 1
    %p127 = por %p125, %p126
    %p128 = scmp.ne.s32.totalorder %s117, %s118
    %p129 = scmp.eq.s32.totalorder %s15, 0
    %p130 = por %p128, %p129
    %p131 = scmp.ne.s32.totalorder %s117, %s118
    %p132 = scmp.eq.s32.totalorder %s16, 1
    %p133 = por %p131, %p132
    %p135 = scmp.ne.s32.totalorder %s118, %s134
    %p136 = scmp.eq.s32.totalorder %s16, 0
    %p137 = por %p135, %p136
    %p138 = scmp.le.s32.totalorder 1, %s10
    %p139 = scmp.lt.s32.totalorder %s10, 3
    %p140 = pnand %p138, %p139
    %p141 = pneg %p140
    // Predicated region
    $region9: #{net_forward.4} parent=5 // pred_check
      _
    $region10: #{net_forward.4} parent=5 // pred_check_branch
      %143 = sbr.rel (%p140) target = $region12
    $region11: #{net_forward.4} parent=5 // pred_region
      %s144 = ssub.s32 %s10, 1
      // Predicated region
      $region13: #{net_forward.4} parent=11 // pred_check
        %p145 = pneg %p83
      $region14: #{net_forward.4} parent=11 // pred_check_branch
        %147 = sbr.rel (%p145) target = $region16
      $region15: #{net_forward.4} parent=11 // pred_region
        _
      $region16: #{net_forward.4} parent=11 // pred_fallthru
        _
      // Predicated region
      $region17: #{net_forward.4} parent=11 // pred_check
        %p148 = pneg %p104
      $region18: #{net_forward.4} parent=11 // pred_check_branch
        %150 = sbr.rel (%p148) target = $region20
      $region19: #{net_forward.4} parent=11 // pred_region
        _
      $region20: #{net_forward.4} parent=11 // pred_fallthru
        _
    $region12: #{net_forward.4} parent=5 // pred_fallthru
      _
    %p151 = scmp.lt.s32.totalorder %s10, 2
    // Predicated region
    $region21: #{net_forward.4} parent=5 // pred_check
      %p152 = pneg %p151
    $region22: #{net_forward.4} parent=5 // pred_check_branch
      %154 = sbr.rel (%p152) target = $region24
    $region23: #{net_forward.4} parent=5 // pred_region
      // Predicated region
      $region25: #{net_forward.4} parent=23 // pred_check
        %p155 = pneg %p30
      $region26: #{net_forward.4} parent=23 // pred_check_branch
        %157 = sbr.rel (%p155) target = $region28
      $region27: #{net_forward.4} parent=23 // pred_region
        %p158 = scmp.lt.s32.totalorder %s10, 1
        %s159 = scalar_select %p158, %s10, 1
        %s160 = smul.addr %s159, 28
        %s161 = smul.addr %s160, 4
        %s162 = scalar_lea.vmem %s0, %s161
      $region28: #{net_forward.4} parent=23 // pred_fallthru
        _
      // Predicated region
      $region29: #{net_forward.4} parent=23 // pred_check
        %p163 = pneg %p56
      $region30: #{net_forward.4} parent=23 // pred_check_branch
        %165 = sbr.rel (%p163) target = $region32
      $region31: #{net_forward.4} parent=23 // pred_region
        %p166 = scmp.lt.s32.totalorder %s10, 1
        %s167 = scalar_select %p166, %s10, 1
        %s168 = smul.addr %s167, 28
        %s169 = smul.addr %s168, 4
        %s170 = scalar_lea.vmem %s1, %s169
      $region32: #{net_forward.4} parent=23 // pred_fallthru
        _
    $region24: #{net_forward.4} parent=5 // pred_fallthru
      _
    %p171 = scmp.le.s32.totalorder 1, %s10
    %p172 = scmp.lt.s32.totalorder %s10, 3
    %p173 = pnand %p171, %p172
    %p174 = pneg %p173
    // Predicated region
    $region33: #{net_forward.4} parent=5 // pred_check
      _
    $region34: #{net_forward.4} parent=5 // pred_check_branch
      %176 = sbr.rel (%p173) target = $region36
    $region35: #{net_forward.4} parent=5 // pred_region
      %s177 = ssub.s32 %s10, 1
      %p178 = scmp.lt.s32.totalorder %s15, 1
      %s179 = scalar_select %p178, %s15, 1
      %s180 = smul.addr %s179, 28
      %s181 = smul.addr %s180, 4
      %s182 = scalar_lea.vmem %s0, %s181
      %p183 = pneg %p36
      %p184 = pneg %p33
      %p185 = scmp.lt.s32.totalorder %s15, 1
      %s186 = scalar_select %p185, %s15, 1
      %s187 = smul.addr %s186, 28
      %s188 = smul.addr %s187, 4
      %s189 = scalar_lea.vmem %s1, %s188
      %p190 = pneg %p62
      %p191 = pneg %p59
      %p192 = pneg %p83
      %p193 = pneg %p80
      %p194 = pneg %p104
      %p195 = pneg %p101
      %p196 = pneg %p130
      %p197 = pneg %p127
      %p198 = scmp.lt.s32.totalorder %s15, 1
      %s199 = scalar_select %p198, %s15, 1
      %s200 = smul.addr %s199, 7
      %s201 = smul.addr %s200, 4
      %s202 = scalar_lea.vmem %s4, %s201
      %p203 = scmp.lt.s32.totalorder %s15, 1
      %s204 = scalar_select %p203, %s15, 1
      %s205 = smul.addr %s204, 28
      %s206 = smul.addr %s205, 4
      %s207 = scalar_lea.vmem %s0, %s206
      %p208 = scmp.lt.s32.totalorder %s15, 1
      %s209 = scalar_select %p208, %s15, 1
      %s210 = smul.addr %s209, 28
      %s211 = smul.addr %s210, 4
      %s212 = scalar_lea.vmem %s1, %s211
      %p213 = scmp.lt.s32.totalorder %s15, 1
      %s214 = scalar_select %p213, %s15, 1
      %s215 = smul.addr %s214, 7
      %s216 = smul.addr %s215, 4
      %s217 = scalar_lea.vmem %s4, %s216
      %v218 = vld [vmem:[%s2] sm:$0xf]
      %v219 = vld [vmem:[%s2 + $0x4] sm:$0xf]
      %v220 = vld [vmem:[%s2 + $0x8] sm:$0xf]
      %v221 = vld [vmem:[%s2 + $0xc] sm:$0xf]
      %v222 = vld [vmem:[%s2 + $0x10] sm:$0xf]
      %v223 = vld [vmem:[%s2 + $0x14] sm:$0xf]
      %v224 = vld [vmem:[%s2 + $0x18] sm:$0xf]
      %v225 = vld [vmem:[%s2 + $0x1c] sm:$0xf]
      %v226 = vld [vmem:[%s2 + $0x20] sm:$0xf]
      %v227 = vld [vmem:[%s2 + $0x24] sm:$0xf]
      %v228 = vld [vmem:[%s2 + $0x28] sm:$0xf]
      %v229 = vld [vmem:[%s2 + $0x2c] sm:$0xf]
      %v230 = vld [vmem:[%s2 + $0x30] sm:$0xf]
      %v231 = vld [vmem:[%s2 + $0x34] sm:$0xf]
      %v232 = vld [vmem:[%s2 + $0x38] sm:$0xf]
      %v233 = vld [vmem:[%s2 + $0x3c] sm:$0xf]
      %v234 = vld [vmem:[%s2 + $0x40] sm:$0xf]
      %v235 = vld [vmem:[%s2 + $0x44] sm:$0xf]
      %v236 = vld [vmem:[%s2 + $0x48] sm:$0xf]
      %v237 = vld [vmem:[%s2 + $0x4c] sm:$0xf]
      %v238 = vld [vmem:[%s2 + $0x50] sm:$0xf]
      %v239 = vld [vmem:[%s2 + $0x54] sm:$0xf]
      %v240 = vld [vmem:[%s2 + $0x58] sm:$0xf]
      %v241 = vld [vmem:[%s2 + $0x5c] sm:$0xf]
      %v242 = vld [vmem:[%s2 + $0x60] sm:$0xf]
      %v243 = vld [vmem:[%s2 + $0x64] sm:$0xf]
      %v244 = vld [vmem:[%s2 + $0x68] sm:$0xf]
      %v245 = vld [vmem:[%s2 + $0x6c] sm:$0xf]
      %v246 = vld [vmem:[%s2 + $0x70] sm:$0xf]
      %v247 = vld [vmem:[%s2 + $0x74] sm:$0xf]
      %v248 = vld [vmem:[%s2 + $0x78] sm:$0xf]
      %v249 = vld [vmem:[%s2 + $0x7c] sm:$0xf]
      %v250 = vld [vmem:[%s207] sm:$0xff]
      %v251 = vld [vmem:[%s207 + $0x8] sm:$0xff]
      %v252 = vld [vmem:[%s207 + $0x10] sm:$0xff]
      %v253 = vld [vmem:[%s207 + $0x18] sm:$0xff]
      %v254 = vld [vmem:[%s207 + $0x20] sm:$0xff]
      %v255 = vld [vmem:[%s207 + $0x28] sm:$0xff]
      %v256 = vld [vmem:[%s207 + $0x30] sm:$0xff]
      %v257 = vld [vmem:[%s207 + $0x38] sm:$0xff]
      %v258 = vld [vmem:[%s207 + $0x40] sm:$0xff]
      %v259 = vld [vmem:[%s207 + $0x48] sm:$0xff]
      %v260 = vld [vmem:[%s207 + $0x50] sm:$0xff]
      %v261 = vld [vmem:[%s207 + $0x58] sm:$0xff]
      %v262 = vld [vmem:[%s207 + $0x60] sm:$0xff]
      %v263 = vld [vmem:[%s207 + $0x68] sm:$0xff]
      %v278 = vunpack.c.l.b16 %v250
      %v279 = vunpack.c.h.b16 %v250
      %v280 = vunpack.c.l.b16 %v251
      %v281 = vunpack.c.h.b16 %v251
      %v282 = vunpack.c.l.b16 %v252
      %v283 = vunpack.c.h.b16 %v252
      %v284 = vunpack.c.l.b16 %v253
      %v285 = vunpack.c.h.b16 %v253
      %v286 = vunpack.c.l.b16 %v254
      %v287 = vunpack.c.h.b16 %v254
      %v288 = vunpack.c.l.b16 %v255
      %v289 = vunpack.c.h.b16 %v255
      %v290 = vunpack.c.l.b16 %v256
      %v291 = vunpack.c.h.b16 %v256
      %v292 = vunpack.c.l.b16 %v257
      %v293 = vunpack.c.h.b16 %v257
      %v294 = vunpack.c.l.b16 %v258
      %v295 = vunpack.c.h.b16 %v258
      %v296 = vunpack.c.l.b16 %v259
      %v297 = vunpack.c.h.b16 %v259
      %v298 = vunpack.c.l.b16 %v260
      %v299 = vunpack.c.h.b16 %v260
      %v300 = vunpack.c.l.b16 %v261
      %v301 = vunpack.c.h.b16 %v261
      %v302 = vunpack.c.l.b16 %v262
      %v303 = vunpack.c.h.b16 %v262
      %v304 = vunpack.c.l.b16 %v263
      %v305 = vunpack.c.h.b16 %v263
      %v306 = vpack.c.b16 %v280, %v278
      %v307 = vpack.c.b16 %v281, %v279
      %v308 = vpack.c.b16 %v284, %v282
      %v309 = vpack.c.b16 %v285, %v283
      %v310 = vpack.c.b16 %v288, %v286
      %v311 = vpack.c.b16 %v289, %v287
      %v312 = vpack.c.b16 %v292, %v290
      %v313 = vpack.c.b16 %v293, %v291
      %v314 = vpack.c.b16 %v296, %v294
      %v315 = vpack.c.b16 %v297, %v295
      %v316 = vpack.c.b16 %v300, %v298
      %v317 = vpack.c.b16 %v301, %v299
      %v318 = vpack.c.b16 %v304, %v302
      %v319 = vpack.c.b16 %v305, %v303
      %v366 = vunpack.c.l.b16 %v218
      %v367 = vunpack.c.l.b16 %v219
      %v368 = vunpack.c.l.b16 %v220
      %v369 = vunpack.c.l.b16 %v221
      %v370 = vunpack.c.l.b16 %v222
      %v371 = vunpack.c.l.b16 %v223
      %v372 = vunpack.c.l.b16 %v224
      %v373 = vunpack.c.l.b16 %v225
      %v374 = vunpack.c.l.b16 %v226
      %v375 = vunpack.c.l.b16 %v227
      %v376 = vunpack.c.l.b16 %v228
      %v377 = vunpack.c.l.b16 %v229
      %v378 = vunpack.c.l.b16 %v230
      %v379 = vunpack.c.l.b16 %v231
      %v380 = vunpack.c.l.b16 %v232
      %v381 = vunpack.c.l.b16 %v233
      %v382 = vunpack.c.l.b16 %v234
      %v383 = vunpack.c.l.b16 %v235
      %v384 = vunpack.c.l.b16 %v236
      %v385 = vunpack.c.l.b16 %v237
      %v386 = vunpack.c.l.b16 %v238
      %v387 = vunpack.c.l.b16 %v239
      %v388 = vunpack.c.l.b16 %v240
      %v389 = vunpack.c.l.b16 %v241
      %v390 = vunpack.c.l.b16 %v242
      %v391 = vunpack.c.l.b16 %v243
      %v392 = vunpack.c.l.b16 %v244
      %v393 = vunpack.c.l.b16 %v245
      %v394 = vunpack.c.l.b16 %v246
      %v395 = vunpack.c.l.b16 %v247
      %v396 = vunpack.c.l.b16 %v248
      %v397 = vunpack.c.l.b16 %v249
      %v398 = vpack.c.b16 %v367, %v366
      %v399 = vpack.c.b16 %v369, %v368
      %v400 = vpack.c.b16 %v371, %v370
      %v401 = vpack.c.b16 %v373, %v372
      %v402 = vpack.c.b16 %v375, %v374
      %v403 = vpack.c.b16 %v377, %v376
      %v404 = vpack.c.b16 %v379, %v378
      %v405 = vpack.c.b16 %v381, %v380
      %v406 = vpack.c.b16 %v383, %v382
      %v407 = vpack.c.b16 %v385, %v384
      %v408 = vpack.c.b16 %v387, %v386
      %v409 = vpack.c.b16 %v389, %v388
      %v410 = vpack.c.b16 %v391, %v390
      %v411 = vpack.c.b16 %v393, %v392
      %v412 = vpack.c.b16 %v395, %v394
      %v413 = vpack.c.b16 %v397, %v396
      %430 = vmatpush.bf16.msra.mxu0 %v405
      %431 = vmatpush.bf16.msra.mxu0 %v404
      %432 = vmatpush.bf16.msra.mxu0 %v403
      %433 = vmatpush.bf16.msra.mxu0 %v402
      %434 = vmatpush.bf16.msra.mxu0 %v401
      %435 = vmatpush.bf16.msra.mxu0 %v400
      %436 = vmatpush.bf16.msra.mxu0 %v399
      %437 = vmatpush.bf16.msra.mxu0 %v398
      %438 = vmatmul.bf16.gmra.mxu0 %v306
      %v439 = vpop.f32.mrf.mxu0
      %v440 = vadd.f32 0.0, %v439
      %v441 = vpop.f32.mrf.mxu0
      %v442 = vadd.f32 0.0, %v441
      %443 = vmatmul.bf16.gmra.mxu0 %v308
      %v444 = vpop.f32.mrf.mxu0
      %v445 = vadd.f32 0.0, %v444
      %v446 = vpop.f32.mrf.mxu0
      %v447 = vadd.f32 0.0, %v446
      %448 = vmatmul.bf16.gmra.mxu0 %v310
      %v449 = vpop.f32.mrf.mxu0
      %v450 = vadd.f32 0.0, %v449
      %v451 = vpop.f32.mrf.mxu0
      %v452 = vadd.f32 0.0, %v451
      %453 = vmatmul.bf16.gmra.mxu0 %v312
      %v454 = vpop.f32.mrf.mxu0
      %v455 = vadd.f32 0.0, %v454
      %v456 = vpop.f32.mrf.mxu0
      %v457 = vadd.f32 0.0, %v456
      %458 = vmatmul.bf16.gmra.mxu0 %v314
      %v459 = vpop.f32.mrf.mxu0
      %v460 = vadd.f32 0.0, %v459
      %v461 = vpop.f32.mrf.mxu0
      %v462 = vadd.f32 0.0, %v461
      %463 = vmatmul.bf16.gmra.mxu0 %v316
      %v464 = vpop.f32.mrf.mxu0
      %v465 = vadd.f32 0.0, %v464
      %v466 = vpop.f32.mrf.mxu0
      %v467 = vadd.f32 0.0, %v466
      %468 = vmatmul.bf16.gmra.mxu0 %v318
      %v469 = vpop.f32.mrf.mxu0
      %v470 = vadd.f32 0.0, %v469
      %v471 = vpop.f32.mrf.mxu0
      %v472 = vadd.f32 0.0, %v471
      %473 = vdwg.mxu0
      %474 = vmatpush.bf16.msra.mxu0 %v413
      %475 = vmatpush.bf16.msra.mxu0 %v412
      %476 = vmatpush.bf16.msra.mxu0 %v411
      %477 = vmatpush.bf16.msra.mxu0 %v410
      %478 = vmatpush.bf16.msra.mxu0 %v409
      %479 = vmatpush.bf16.msra.mxu0 %v408
      %480 = vmatpush.bf16.msra.mxu0 %v407
      %481 = vmatpush.bf16.msra.mxu0 %v406
      %482 = vmatmul.bf16.gmra.mxu0 %v307
      %v483 = vpop.f32.mrf.mxu0
      %v484 = vadd.f32 %v440, %v483
      %v485 = vpop.f32.mrf.mxu0
      %v486 = vadd.f32 %v442, %v485
      %487 = vmatmul.bf16.gmra.mxu0 %v309
      %v488 = vpop.f32.mrf.mxu0
      %v489 = vadd.f32 %v445, %v488
      %v490 = vpop.f32.mrf.mxu0
      %v491 = vadd.f32 %v447, %v490
      %492 = vmatmul.bf16.gmra.mxu0 %v311
      %v493 = vpop.f32.mrf.mxu0
      %v494 = vadd.f32 %v450, %v493
      %v495 = vpop.f32.mrf.mxu0
      %v496 = vadd.f32 %v452, %v495
      %497 = vmatmul.bf16.gmra.mxu0 %v313
      %v498 = vpop.f32.mrf.mxu0
      %v499 = vadd.f32 %v455, %v498
      %v500 = vpop.f32.mrf.mxu0
      %v501 = vadd.f32 %v457, %v500
      %502 = vmatmul.bf16.gmra.mxu0 %v315
      %v503 = vpop.f32.mrf.mxu0
      %v504 = vadd.f32 %v460, %v503
      %v505 = vpop.f32.mrf.mxu0
      %v506 = vadd.f32 %v462, %v505
      %507 = vmatmul.bf16.gmra.mxu0 %v317
      %v508 = vpop.f32.mrf.mxu0
      %v509 = vadd.f32 %v465, %v508
      %v510 = vpop.f32.mrf.mxu0
      %v511 = vadd.f32 %v467, %v510
      %512 = vmatmul.bf16.gmra.mxu0 %v319
      %v513 = vpop.f32.mrf.mxu0
      %v514 = vadd.f32 %v470, %v513
      %v515 = vpop.f32.mrf.mxu0
      %v516 = vadd.f32 %v472, %v515
      %517 = vdwg.mxu0
      %v518 = vld [vmem:[%s212] sm:$0xff]
      %v519 = vld [vmem:[%s212 + $0x8] sm:$0xff]
      %v520 = vld [vmem:[%s212 + $0x10] sm:$0xff]
      %v521 = vld [vmem:[%s212 + $0x18] sm:$0xff]
      %v522 = vld [vmem:[%s212 + $0x20] sm:$0xff]
      %v523 = vld [vmem:[%s212 + $0x28] sm:$0xff]
      %v524 = vld [vmem:[%s212 + $0x30] sm:$0xff]
      %v525 = vld [vmem:[%s212 + $0x38] sm:$0xff]
      %v526 = vld [vmem:[%s212 + $0x40] sm:$0xff]
      %v527 = vld [vmem:[%s212 + $0x48] sm:$0xff]
      %v528 = vld [vmem:[%s212 + $0x50] sm:$0xff]
      %v529 = vld [vmem:[%s212 + $0x58] sm:$0xff]
      %v530 = vld [vmem:[%s212 + $0x60] sm:$0xff]
      %v531 = vld [vmem:[%s212 + $0x68] sm:$0xff]
      %v546 = vunpack.c.l.b16 %v518
      %v547 = vunpack.c.h.b16 %v518
      %v548 = vunpack.c.l.b16 %v519
      %v549 = vunpack.c.h.b16 %v519
      %v550 = vunpack.c.l.b16 %v520
      %v551 = vunpack.c.h.b16 %v520
      %v552 = vunpack.c.l.b16 %v521
      %v553 = vunpack.c.h.b16 %v521
      %v554 = vunpack.c.l.b16 %v522
      %v555 = vunpack.c.h.b16 %v522
      %v556 = vunpack.c.l.b16 %v523
      %v557 = vunpack.c.h.b16 %v523
      %v558 = vunpack.c.l.b16 %v524
      %v559 = vunpack.c.h.b16 %v524
      %v560 = vunpack.c.l.b16 %v525
      %v561 = vunpack.c.h.b16 %v525
      %v562 = vunpack.c.l.b16 %v526
      %v563 = vunpack.c.h.b16 %v526
      %v564 = vunpack.c.l.b16 %v527
      %v565 = vunpack.c.h.b16 %v527
      %v566 = vunpack.c.l.b16 %v528
      %v567 = vunpack.c.h.b16 %v528
      %v568 = vunpack.c.l.b16 %v529
      %v569 = vunpack.c.h.b16 %v529
      %v570 = vunpack.c.l.b16 %v530
      %v571 = vunpack.c.h.b16 %v530
      %v572 = vunpack.c.l.b16 %v531
      %v573 = vunpack.c.h.b16 %v531
      %v574 = vpack.c.b16 %v548, %v546
      %v575 = vpack.c.b16 %v549, %v547
      %v576 = vpack.c.b16 %v552, %v550
      %v577 = vpack.c.b16 %v553, %v551
      %v578 = vpack.c.b16 %v556, %v554
      %v579 = vpack.c.b16 %v557, %v555
      %v580 = vpack.c.b16 %v560, %v558
      %v581 = vpack.c.b16 %v561, %v559
      %v582 = vpack.c.b16 %v564, %v562
      %v583 = vpack.c.b16 %v565, %v563
      %v584 = vpack.c.b16 %v568, %v566
      %v585 = vpack.c.b16 %v569, %v567
      %v586 = vpack.c.b16 %v572, %v570
      %v587 = vpack.c.b16 %v573, %v571
      %602 = vmatpush.bf16.msra.mxu0 %v405
      %603 = vmatpush.bf16.msra.mxu0 %v404
      %604 = vmatpush.bf16.msra.mxu0 %v403
      %605 = vmatpush.bf16.msra.mxu0 %v402
      %606 = vmatpush.bf16.msra.mxu0 %v401
      %607 = vmatpush.bf16.msra.mxu0 %v400
      %608 = vmatpush.bf16.msra.mxu0 %v399
      %609 = vmatpush.bf16.msra.mxu0 %v398
      %610 = vmatmul.bf16.gmra.mxu0 %v574
      %v611 = vpop.f32.mrf.mxu0
      %v612 = vadd.f32 0.0, %v611
      %v613 = vpop.f32.mrf.mxu0
      %v614 = vadd.f32 0.0, %v613
      %615 = vmatmul.bf16.gmra.mxu0 %v576
      %v616 = vpop.f32.mrf.mxu0
      %v617 = vadd.f32 0.0, %v616
      %v618 = vpop.f32.mrf.mxu0
      %v619 = vadd.f32 0.0, %v618
      %620 = vmatmul.bf16.gmra.mxu0 %v578
      %v621 = vpop.f32.mrf.mxu0
      %v622 = vadd.f32 0.0, %v621
      %v623 = vpop.f32.mrf.mxu0
      %v624 = vadd.f32 0.0, %v623
      %625 = vmatmul.bf16.gmra.mxu0 %v580
      %v626 = vpop.f32.mrf.mxu0
      %v627 = vadd.f32 0.0, %v626
      %v628 = vpop.f32.mrf.mxu0
      %v629 = vadd.f32 0.0, %v628
      %630 = vmatmul.bf16.gmra.mxu0 %v582
      %v631 = vpop.f32.mrf.mxu0
      %v632 = vadd.f32 0.0, %v631
      %v633 = vpop.f32.mrf.mxu0
      %v634 = vadd.f32 0.0, %v633
      %635 = vmatmul.bf16.gmra.mxu0 %v584
      %v636 = vpop.f32.mrf.mxu0
      %v637 = vadd.f32 0.0, %v636
      %v638 = vpop.f32.mrf.mxu0
      %v639 = vadd.f32 0.0, %v638
      %640 = vmatmul.bf16.gmra.mxu0 %v586
      %v641 = vpop.f32.mrf.mxu0
      %v642 = vadd.f32 0.0, %v641
      %v643 = vpop.f32.mrf.mxu0
      %v644 = vadd.f32 0.0, %v643
      %645 = vdwg.mxu0
      %646 = vmatpush.bf16.msra.mxu0 %v413
      %647 = vmatpush.bf16.msra.mxu0 %v412
      %648 = vmatpush.bf16.msra.mxu0 %v411
      %649 = vmatpush.bf16.msra.mxu0 %v410
      %650 = vmatpush.bf16.msra.mxu0 %v409
      %651 = vmatpush.bf16.msra.mxu0 %v408
      %652 = vmatpush.bf16.msra.mxu0 %v407
      %653 = vmatpush.bf16.msra.mxu0 %v406
      %654 = vmatmul.bf16.gmra.mxu0 %v575
      %v655 = vpop.f32.mrf.mxu0
      %v656 = vadd.f32 %v612, %v655
      %v657 = vpop.f32.mrf.mxu0
      %v658 = vadd.f32 %v614, %v657
      %659 = vmatmul.bf16.gmra.mxu0 %v577
      %v660 = vpop.f32.mrf.mxu0
      %v661 = vadd.f32 %v617, %v660
      %v662 = vpop.f32.mrf.mxu0
      %v663 = vadd.f32 %v619, %v662
      %664 = vmatmul.bf16.gmra.mxu0 %v579
      %v665 = vpop.f32.mrf.mxu0
      %v666 = vadd.f32 %v622, %v665
      %v667 = vpop.f32.mrf.mxu0
      %v668 = vadd.f32 %v624, %v667
      %669 = vmatmul.bf16.gmra.mxu0 %v581
      %v670 = vpop.f32.mrf.mxu0
      %v671 = vadd.f32 %v627, %v670
      %v672 = vpop.f32.mrf.mxu0
      %v673 = vadd.f32 %v629, %v672
      %674 = vmatmul.bf16.gmra.mxu0 %v583
      %v675 = vpop.f32.mrf.mxu0
      %v676 = vadd.f32 %v632, %v675
      %v677 = vpop.f32.mrf.mxu0
      %v678 = vadd.f32 %v634, %v677
      %679 = vmatmul.bf16.gmra.mxu0 %v585
      %v680 = vpop.f32.mrf.mxu0
      %v681 = vadd.f32 %v637, %v680
      %v682 = vpop.f32.mrf.mxu0
      %v683 = vadd.f32 %v639, %v682
      %684 = vmatmul.bf16.gmra.mxu0 %v587
      %v685 = vpop.f32.mrf.mxu0
      %v686 = vadd.f32 %v642, %v685
      %v687 = vpop.f32.mrf.mxu0
      %v688 = vadd.f32 %v644, %v687
      %689 = vdwg.mxu0
      %v690 = vmax.f32 %v484, %v656
      %v691 = vmax.f32 %v486, %v658
      %v692 = vmax.f32 %v489, %v661
      %v693 = vmax.f32 %v491, %v663
      %v694 = vmax.f32 %v494, %v666
      %v695 = vmax.f32 %v496, %v668
      %v696 = vmax.f32 %v499, %v671
      %v697 = vmax.f32 %v501, %v673
      %v698 = vmax.f32 %v504, %v676
      %v699 = vmax.f32 %v506, %v678
      %v700 = vmax.f32 %v509, %v681
      %v701 = vmax.f32 %v511, %v683
      %v702 = vmax.f32 %v514, %v686
      %v703 = vmax.f32 %v516, %v688
      %v704 = vld [vmem:[%s3] sm:$0x1]
      %v706 = vperm.slane %v704, 0
      %v708 = vadd.f32 %v690, %v706
      %v709 = vadd.f32 %v691, %v706
      %v710 = vadd.f32 %v692, %v706
      %v711 = vadd.f32 %v693, %v706
      %v712 = vadd.f32 %v694, %v706
      %v713 = vadd.f32 %v695, %v706
      %v714 = vadd.f32 %v696, %v706
      %v715 = vadd.f32 %v697, %v706
      %v716 = vadd.f32 %v698, %v706
      %v717 = vadd.f32 %v699, %v706
      %v718 = vadd.f32 %v700, %v706
      %v719 = vadd.f32 %v701, %v706
      %v720 = vadd.f32 %v702, %v706
      %v721 = vadd.f32 %v703, %v706
      %v722 = vmax.f32 %v708, 0.0
      %v723 = vmax.f32 %v709, 0.0
      %v724 = vmax.f32 %v710, 0.0
      %v725 = vmax.f32 %v711, 0.0
      %v726 = vmax.f32 %v712, 0.0
      %v727 = vmax.f32 %v713, 0.0
      %v728 = vmax.f32 %v714, 0.0
      %v729 = vmax.f32 %v715, 0.0
      %v730 = vmax.f32 %v716, 0.0
      %v731 = vmax.f32 %v717, 0.0
      %v732 = vmax.f32 %v718, 0.0
      %v733 = vmax.f32 %v719, 0.0
      %v734 = vmax.f32 %v720, 0.0
      %v735 = vmax.f32 %v721, 0.0
      %v736 = vmax.f32 %v722, %v723
      %v737 = vmax.f32 %v724, %v725
      %v738 = vmax.f32 %v726, %v727
      %v739 = vmax.f32 %v728, %v729
      %v740 = vmax.f32 %v730, %v731
      %v741 = vmax.f32 %v732, %v733
      %v742 = vmax.f32 %v734, %v735
      %v743 = vpack.c.bf16 %v736, %v736
      %v744 = vpack.c.bf16 %v737, %v737
      %v745 = vpack.c.bf16 %v738, %v738
      %v746 = vpack.c.bf16 %v739, %v739
      %v747 = vpack.c.bf16 %v740, %v740
      %v748 = vpack.c.bf16 %v741, %v741
      %v749 = vpack.c.bf16 %v742, %v742
      %750 = vst [vmem:[%s217] sm:$0xf] %v743
      %751 = vst [vmem:[%s217 + $0x4] sm:$0xf] %v744
      %752 = vst [vmem:[%s217 + $0x8] sm:$0xf] %v745
      %753 = vst [vmem:[%s217 + $0xc] sm:$0xf] %v746
      %754 = vst [vmem:[%s217 + $0x10] sm:$0xf] %v747
      %755 = vst [vmem:[%s217 + $0x14] sm:$0xf] %v748
      %756 = vst [vmem:[%s217 + $0x18] sm:$0xf] %v749
      %p757 = scmp.lt.s32.totalorder %s15, 1
      %s758 = scalar_select %p757, %s15, 1
      %s759 = smul.addr %s758, 7
      %s760 = smul.addr %s759, 4
      %s761 = scalar_lea.vmem %s4, %s760
      // Predicated region
      $region37: #{net_forward.4} parent=35 // pred_check
        %p762 = pneg %p127
      $region38: #{net_forward.4} parent=35 // pred_check_branch
        %764 = sbr.rel (%p762) target = $region40
      $region39: #{net_forward.4} parent=35 // pred_region
        _
      $region40: #{net_forward.4} parent=35 // pred_fallthru
        _
    $region36: #{net_forward.4} parent=5 // pred_fallthru
      _
    %p765 = scmp.le.s32.totalorder 2, %s10
    // Predicated region
    $region41: #{net_forward.4} parent=5 // pred_check
      %p766 = pneg %p765
    $region42: #{net_forward.4} parent=5 // pred_check_branch
      %768 = sbr.rel (%p766) target = $region44
    $region43: #{net_forward.4} parent=5 // pred_region
      %s769 = ssub.s32 %s10, 2
      // Predicated region
      $region45: #{net_forward.4} parent=43 // pred_check
        %p770 = pneg %p133
      $region46: #{net_forward.4} parent=43 // pred_check_branch
        %772 = sbr.rel (%p770) target = $region48
      $region47: #{net_forward.4} parent=43 // pred_region
        %p773 = scmp.lt.s32.totalorder %s16, 1
        %s774 = scalar_select %p773, %s16, 1
        %s775 = smul.addr %s774, 7
        %s776 = smul.addr %s775, 4
        %s777 = scalar_lea.vmem %s4, %s776
      $region48: #{net_forward.4} parent=43 // pred_fallthru
        _
    $region44: #{net_forward.4} parent=5 // pred_fallthru
      _
  $region6: #{net_forward.4} parent=0 // loop_footer
    %s14 = sadd.s32 1, %s10
  $region7: #{net_forward.4} parent=0 // loop_footer_branch
    %9 = sbr.rel target = $region3
  $region8: #{net_forward.4} parent=0 // loop_exit
    _

// kernel: net_forward.5
$region0: #{net_forward.5}
  #allocation0 [shape = 'u32[]', space=smem, size = 0x4, offset = 0x4, fixed_abs, tag = 'smem constant byte address 0x4 - core index']
  #allocation1 [shape = 'u32[72,128]{1,0:T(1,128)}', space=vmem, size = 0x9000, scoped, tag = 'internal scratch']
  #allocation2 [shape = 'f32[2,128]{1,0:T(2,128)}', space=vmem, size = 0x400, scoped, tag = 'scratch operand']
  %s0 = inlined_call_operand.vmem [shape: bf16[2,2450], index: 0, kind: input, shape index: {}]
  %s1 = inlined_call_operand.vmem [shape: bf16[2450,1024], index: 1, kind: input, shape index: {}]
  %s2 = inlined_call_operand.vmem [shape: f32[1,1024], index: 2, kind: input, shape index: {}]
  %s3 = inlined_call_operand.vmem [shape: bf16[1024,128], index: 3, kind: input, shape index: {}]
  %s4 = inlined_call_operand.vmem [shape: f32[1,128], index: 4, kind: input, shape index: {}]
  %s5 = inlined_call_operand.vmem [shape: bf16[128,128], index: 5, kind: input, shape index: {}]
  %s6 = inlined_call_operand.vmem [shape: f32[1,128], index: 6, kind: input, shape index: {}]
  %s7 = inlined_call_operand.hbm [shape: f32[2,10], index: 7, kind: output, shape index: {}]
  %s8 = sld [smem:[#allocation0]]
  $region121: #{net_forward.5} parent=0
    _
  %s10 = ssub.s32 1, %s8
  %s11 = scalar_select 0, %s10, %s8
  $region1: #{net_forward.5} parent=0
    #allocation3 [shape = 'u8[2514944]{0}', space=vmem, size = 0x266000, scoped, tag = 'input window, operand 1']
    #allocation4 [shape = 'u8[1024]{0}', space=vmem, size = 0x400, scoped, tag = 'output window, operand 0, single buffered']
    #allocation5 [shape = 's32[2]{0}', space=sflag, size = 0x8, scoped, tag = 'scoped memory for net_forward.5']
    %12 = vsyncpa [#allocation5], 0
    loop: start=0, step=1, limit=6
    $region2: #{net_forward.5} parent=1 // loop_pre_header
      _
    $region3: #{net_forward.5} parent=1 // loop_header
      %s14 = sphi 0, %s18
      %p15 = scmp.ge.s32.totalorder %s14, 6
      %s22 = sphi 0, %s22
      %s24 = sphi 0, %s22
      %s25 = sphi 0, %s24
      %s39 = sphi 0, %s25
      %s45 = sphi 0, %s47
      %s48 = sphi 0, %s45
      %s49 = sphi 0, %s48
      %s65 = sphi 0, %s49
      %s71 = sphi 0, %s73
      %s74 = sphi 0, %s71
      %s75 = sphi 0, %s74
      %s91 = sphi 0, %s75
      %s97 = sphi 0, %s99
      %s100 = sphi 0, %s97
      %s101 = sphi 0, %s100
      %s117 = sphi 0, %s101
      %s121 = sphi 0, %s121
      %s123 = sphi 0, %s121
      %s124 = sphi 0, %s123
      %s138 = sphi 0, %s124
      %s142 = sphi 0, %s142
      %s144 = sphi 0, %s142
      %s145 = sphi 0, %s144
      %s159 = sphi 0, %s145
      %s163 = sphi 0, %s163
      %s165 = sphi 0, %s163
      %s166 = sphi 0, %s165
      %s180 = sphi 0, %s166
      %s184 = sphi 0, %s184
      %s186 = sphi 0, %s184
      %s187 = sphi 0, %s186
      %s201 = sphi 0, %s187
    $region4: #{net_forward.5} parent=1 // loop_header_branch
      %17 = sbr.rel (%p15) target = $region8
    $region5: #{net_forward.5} parent=1 // loop_body
      %s19 = ssub.s32 %s14, 1
      %s20 = ssub.s32 %s14, 2
      %s21 = sadd.s32 %s14, 1
      %s23 = sadd.s32 %s22, 1
      %p26 = scmp.eq.s32.totalorder %s14, 3
      %p27 = scmp.ne.s32.totalorder %s22, %s24
      %p28 = scmp.eq.s32.totalorder %s14, 0
      %p29 = por %p27, %p28
      %p30 = scmp.ne.s32.totalorder %s22, %s24
      %p31 = scmp.eq.s32.totalorder %s19, 3
      %p32 = por %p30, %p31
      %p33 = scmp.ne.s32.totalorder %s24, %s25
      %p34 = scmp.eq.s32.totalorder %s19, 0
      %p35 = por %p33, %p34
      %p36 = scmp.ne.s32.totalorder %s24, %s25
      %p37 = scmp.eq.s32.totalorder %s20, 3
      %p38 = por %p36, %p37
      %p40 = scmp.ne.s32.totalorder %s25, %s39
      %p41 = scmp.eq.s32.totalorder %s20, 0
      %p42 = por %p40, %p41
      %s43 = ssub.s32 %s14, %s21
      %p44 = scmp.eq.s32.totalorder %s43, 0
      %s46 = sadd.s32 %s45, 1
      %s47 = scalar_select %p44, %s45, %s46
      %p50 = pneg %p44
      %p51 = scmp.eq.s32.totalorder %s14, 3
      %p52 = por %p50, %p51
      %p53 = scmp.ne.s32.totalorder %s45, %s48
      %p54 = scmp.eq.s32.totalorder %s14, 0
      %p55 = por %p53, %p54
      %p56 = scmp.ne.s32.totalorder %s45, %s48
      %p57 = scmp.eq.s32.totalorder %s19, 3
      %p58 = por %p56, %p57
      %p59 = scmp.ne.s32.totalorder %s48, %s49
      %p60 = scmp.eq.s32.totalorder %s19, 0
      %p61 = por %p59, %p60
      %p62 = scmp.ne.s32.totalorder %s48, %s49
      %p63 = scmp.eq.s32.totalorder %s20, 3
      %p64 = por %p62, %p63
      %p66 = scmp.ne.s32.totalorder %s49, %s65
      %p67 = scmp.eq.s32.totalorder %s20, 0
      %p68 = por %p66, %p67
      %s69 = ssub.s32 %s14, %s21
      %p70 = scmp.eq.s32.totalorder %s69, 0
      %s72 = sadd.s32 %s71, 1
      %s73 = scalar_select %p70, %s71, %s72
      %p76 = pneg %p70
      %p77 = scmp.eq.s32.totalorder %s14, 3
      %p78 = por %p76, %p77
      %p79 = scmp.ne.s32.totalorder %s71, %s74
      %p80 = scmp.eq.s32.totalorder %s14, 0
      %p81 = por %p79, %p80
      %p82 = scmp.ne.s32.totalorder %s71, %s74
      %p83 = scmp.eq.s32.totalorder %s19, 3
      %p84 = por %p82, %p83
      %p85 = scmp.ne.s32.totalorder %s74, %s75
      %p86 = scmp.eq.s32.totalorder %s19, 0
      %p87 = por %p85, %p86
      %p88 = scmp.ne.s32.totalorder %s74, %s75
      %p89 = scmp.eq.s32.totalorder %s20, 3
      %p90 = por %p88, %p89
      %p92 = scmp.ne.s32.totalorder %s75, %s91
      %p93 = scmp.eq.s32.totalorder %s20, 0
      %p94 = por %p92, %p93
      %s95 = ssub.s32 %s14, %s21
      %p96 = scmp.eq.s32.totalorder %s95, 0
      %s98 = sadd.s32 %s97, 1
      %s99 = scalar_select %p96, %s97, %s98
      %p102 = pneg %p96
      %p103 = scmp.eq.s32.totalorder %s14, 3
      %p104 = por %p102, %p103
      %p105 = scmp.ne.s32.totalorder %s97, %s100
      %p106 = scmp.eq.s32.totalorder %s14, 0
      %p107 = por %p105, %p106
      %p108 = scmp.ne.s32.totalorder %s97, %s100
      %p109 = scmp.eq.s32.totalorder %s19, 3
      %p110 = por %p108, %p109
      %p111 = scmp.ne.s32.totalorder %s100, %s101
      %p112 = scmp.eq.s32.totalorder %s19, 0
      %p113 = por %p111, %p112
      %p114 = scmp.ne.s32.totalorder %s100, %s101
      %p115 = scmp.eq.s32.totalorder %s20, 3
      %p116 = por %p114, %p115
      %p118 = scmp.ne.s32.totalorder %s101, %s117
      %p119 = scmp.eq.s32.totalorder %s20, 0
      %p120 = por %p118, %p119
      %s122 = sadd.s32 %s121, 1
      %p125 = scmp.eq.s32.totalorder %s14, 3
      %p126 = scmp.ne.s32.totalorder %s121, %s123
      %p127 = scmp.eq.s32.totalorder %s14, 0
      %p128 = por %p126, %p127
      %p129 = scmp.ne.s32.totalorder %s121, %s123
      %p130 = scmp.eq.s32.totalorder %s19, 3
      %p131 = por %p129, %p130
      %p132 = scmp.ne.s32.totalorder %s123, %s124
      %p133 = scmp.eq.s32.totalorder %s19, 0
      %p134 = por %p132, %p133
      %p135 = scmp.ne.s32.totalorder %s123, %s124
      %p136 = scmp.eq.s32.totalorder %s20, 3
      %p137 = por %p135, %p136
      %p139 = scmp.ne.s32.totalorder %s124, %s138
      %p140 = scmp.eq.s32.totalorder %s20, 0
      %p141 = por %p139, %p140
      %s143 = sadd.s32 %s142, 1
      %p146 = scmp.eq.s32.totalorder %s14, 3
      %p147 = scmp.ne.s32.totalorder %s142, %s144
      %p148 = scmp.eq.s32.totalorder %s14, 0
      %p149 = por %p147, %p148
      %p150 = scmp.ne.s32.totalorder %s142, %s144
      %p151 = scmp.eq.s32.totalorder %s19, 3
      %p152 = por %p150, %p151
      %p153 = scmp.ne.s32.totalorder %s144, %s145
      %p154 = scmp.eq.s32.totalorder %s19, 0
      %p155 = por %p153, %p154
      %p156 = scmp.ne.s32.totalorder %s144, %s145
      %p157 = scmp.eq.s32.totalorder %s20, 3
      %p158 = por %p156, %p157
      %p160 = scmp.ne.s32.totalorder %s145, %s159
      %p161 = scmp.eq.s32.totalorder %s20, 0
      %p162 = por %p160, %p161
      %s164 = sadd.s32 %s163, 1
      %p167 = scmp.eq.s32.totalorder %s14, 3
      %p168 = scmp.ne.s32.totalorder %s163, %s165
      %p169 = scmp.eq.s32.totalorder %s14, 0
      %p170 = por %p168, %p169
      %p171 = scmp.ne.s32.totalorder %s163, %s165
      %p172 = scmp.eq.s32.totalorder %s19, 3
      %p173 = por %p171, %p172
      %p174 = scmp.ne.s32.totalorder %s165, %s166
      %p175 = scmp.eq.s32.totalorder %s19, 0
      %p176 = por %p174, %p175
      %p177 = scmp.ne.s32.totalorder %s165, %s166
      %p178 = scmp.eq.s32.totalorder %s20, 3
      %p179 = por %p177, %p178
      %p181 = scmp.ne.s32.totalorder %s166, %s180
      %p182 = scmp.eq.s32.totalorder %s20, 0
      %p183 = por %p181, %p182
      %s185 = sadd.s32 %s184, 1
      %p188 = scmp.eq.s32.totalorder %s14, 3
      %p189 = scmp.ne.s32.totalorder %s184, %s186
      %p190 = scmp.eq.s32.totalorder %s14, 0
      %p191 = por %p189, %p190
      %p192 = scmp.ne.s32.totalorder %s184, %s186
      %p193 = scmp.eq.s32.totalorder %s19, 3
      %p194 = por %p192, %p193
      %p195 = scmp.ne.s32.totalorder %s186, %s187
      %p196 = scmp.eq.s32.totalorder %s19, 0
      %p197 = por %p195, %p196
      %p198 = scmp.ne.s32.totalorder %s186, %s187
      %p199 = scmp.eq.s32.totalorder %s20, 3
      %p200 = por %p198, %p199
      %p202 = scmp.ne.s32.totalorder %s187, %s201
      %p203 = scmp.eq.s32.totalorder %s20, 0
      %p204 = por %p202, %p203
      %p205 = scmp.le.s32.totalorder 1, %s14
      %p206 = scmp.lt.s32.totalorder %s14, 5
      %p207 = pnand %p205, %p206
      %p208 = pneg %p207
      // Predicated region
      $region9: #{net_forward.5} parent=5 // pred_check
        _
      $region10: #{net_forward.5} parent=5 // pred_check_branch
        %210 = sbr.rel (%p207) target = $region12
      $region11: #{net_forward.5} parent=5 // pred_region
        %s211 = ssub.s32 %s14, 1
        // Predicated region
        $region13: #{net_forward.5} parent=11 // pred_check
          %p212 = pneg %p35
        $region14: #{net_forward.5} parent=11 // pred_check_branch
          %214 = sbr.rel (%p212) target = $region16
        $region15: #{net_forward.5} parent=11 // pred_region
          _
        $region16: #{net_forward.5} parent=11 // pred_fallthru
          _
        // Predicated region
        $region17: #{net_forward.5} parent=11 // pred_check
          %p215 = pneg %p134
        $region18: #{net_forward.5} parent=11 // pred_check_branch
          %217 = sbr.rel (%p215) target = $region20
        $region19: #{net_forward.5} parent=11 // pred_region
          _
        $region20: #{net_forward.5} parent=11 // pred_fallthru
          _
        // Predicated region
        $region21: #{net_forward.5} parent=11 // pred_check
          %p218 = pneg %p155
        $region22: #{net_forward.5} parent=11 // pred_check_branch
          %220 = sbr.rel (%p218) target = $region24
        $region23: #{net_forward.5} parent=11 // pred_region
          _
        $region24: #{net_forward.5} parent=11 // pred_fallthru
          _
        // Predicated region
        $region25: #{net_forward.5} parent=11 // pred_check
          %p221 = pneg %p176
        $region26: #{net_forward.5} parent=11 // pred_check_branch
          %223 = sbr.rel (%p221) target = $region28
        $region27: #{net_forward.5} parent=11 // pred_region
          _
        $region28: #{net_forward.5} parent=11 // pred_fallthru
          _
      $region12: #{net_forward.5} parent=5 // pred_fallthru
        _
      %p224 = scmp.lt.s32.totalorder %s14, 4
      // Predicated region
      $region29: #{net_forward.5} parent=5 // pred_check
        %p225 = pneg %p224
      $region30: #{net_forward.5} parent=5 // pred_check_branch
        %227 = sbr.rel (%p225) target = $region32
      $region31: #{net_forward.5} parent=5 // pred_region
        // Predicated region
        $region33: #{net_forward.5} parent=31 // pred_check
          %p228 = pneg %p55
        $region34: #{net_forward.5} parent=31 // pred_check_branch
          %230 = sbr.rel (%p228) target = $region36
        $region35: #{net_forward.5} parent=31 // pred_region
          %s231 = sand.u32 %s45, 1
          %s232 = sand.u32 %s45, 1
          %s233 = smul.addr %s232, 2456
          %s234 = scalar_lea.vmem [#allocation3], %s233
          %s235 = smul.u32 2, %s14
          %s236 = smul.addr %s235, 4
          %s237 = scalar_lea.vmem %s1, %s236
          // Predicated region
          $region37: #{net_forward.5} parent=35 // pred_check
            _
          $region38: #{net_forward.5} parent=35 // pred_check_branch
            %239 = sbr.rel (0) target = $region40
          $region39: #{net_forward.5} parent=35 // pred_region
            // Predicated region
            $region41: #{net_forward.5} parent=39 // pred_check
              _
            $region42: #{net_forward.5} parent=39 // pred_check_branch
              %241 = sbr.rel (0) target = $region44
            $region43: #{net_forward.5} parent=39 // pred_region
              // Predicated region
              $region56: #{net_forward.5} parent=43 // pred_check
                _
              $region57: #{net_forward.5} parent=43 // pred_check_branch
                %869 = sbr.rel (0) target = $region59
              $region58: #{net_forward.5} parent=43 // pred_region
                loop: start=0, step=1, limit=1
                $region60: #{net_forward.5} parent=58 // loop_pre_header
                  _
                $region61: #{net_forward.5} parent=58 // loop_header
                  %s871 = sphi 0, %s875
                  %p872 = scmp.ge.s32.totalorder %s871, 1
                  %s876 = sphi 0, %s1495
                  %s877 = sphi %s237, %s1498
                  %s878 = sphi %s234, %s1499
                $region62: #{net_forward.5} parent=58 // loop_header_branch
                  %874 = sbr.rel (%p872) target = $region66
                $region63: #{net_forward.5} parent=58 // loop_body
                  %v879 = vld [vmem:[%s877] sm:$0xff]
                  %880 = vst [vmem:[%s878] sm:$0xff] %v879
                  %v881 = vld [vmem:[%s877 + $0x20] sm:$0xff]
                  %882 = vst [vmem:[%s878 + $0x8] sm:$0xff] %v881
                  %v883 = vld [vmem:[%s877 + $0x40] sm:$0xff]
                  %884 = vst [vmem:[%s878 + $0x10] sm:$0xff] %v883
                  %v885 = vld [vmem:[%s877 + $0x60] sm:$0xff]
                  %886 = vst [vmem:[%s878 + $0x18] sm:$0xff] %v885
                  %v887 = vld [vmem:[%s877 + $0x80] sm:$0xff]
                  %888 = vst [vmem:[%s878 + $0x20] sm:$0xff] %v887
                  %v889 = vld [vmem:[%s877 + $0xa0] sm:$0xff]
                  %890 = vst [vmem:[%s878 + $0x28] sm:$0xff] %v889
                  %v891 = vld [vmem:[%s877 + $0xc0] sm:$0xff]
                  %892 = vst [vmem:[%s878 + $0x30] sm:$0xff] %v891
                  %v893 = vld [vmem:[%s877 + $0xe0] sm:$0xff]
                  %894 = vst [vmem:[%s878 + $0x38] sm:$0xff] %v893
                  %v895 = vld [vmem:[%s877 + $0x100] sm:$0xff]
                  %896 = vst [vmem:[%s878 + $0x40] sm:$0xff] %v895
                  %v897 = vld [vmem:[%s877 + $0x120] sm:$0xff]
                  %898 = vst [vmem:[%s878 + $0x48] sm:$0xff] %v897
                  %v899 = vld [vmem:[%s877 + $0x140] sm:$0xff]
                  %900 = vst [vmem:[%s878 + $0x50] sm:$0xff] %v899
                  %v901 = vld [vmem:[%s877 + $0x160] sm:$0xff]
                  %902 = vst [vmem:[%s878 + $0x58] sm:$0xff] %v901
                  %v903 = vld [vmem:[%s877 + $0x180] sm:$0xff]
                  %904 = vst [vmem:[%s878 + $0x60] sm:$0xff] %v903
                  %v905 = vld [vmem:[%s877 + $0x1a0] sm:$0xff]
                  %906 = vst [vmem:[%s878 + $0x68] sm:$0xff] %v905
                  %v907 = vld [vmem:[%s877 + $0x1c0] sm:$0xff]
                  %908 = vst [vmem:[%s878 + $0x70] sm:$0xff] %v907
                  %v909 = vld [vmem:[%s877 + $0x1e0] sm:$0xff]
                  %910 = vst [vmem:[%s878 + $0x78] sm:$0xff] %v909
                  %v911 = vld [vmem:[%s877 + $0x200] sm:$0xff]
                  %912 = vst [vmem:[%s878 + $0x80] sm:$0xff] %v911
                  %v913 = vld [vmem:[%s877 + $0x220] sm:$0xff]
                  %914 = vst [vmem:[%s878 + $0x88] sm:$0xff] %v913
                  %v915 = vld [vmem:[%s877 + $0x240] sm:$0xff]
                  %916 = vst [vmem:[%s878 + $0x90] sm:$0xff] %v915
                  %v917 = vld [vmem:[%s877 + $0x260] sm:$0xff]
                  %918 = vst [vmem:[%s878 + $0x98] sm:$0xff] %v917
                  %v919 = vld [vmem:[%s877 + $0x280] sm:$0xff]
                  %920 = vst [vmem:[%s878 + $0xa0] sm:$0xff] %v919
                  %v921 = vld [vmem:[%s877 + $0x2a0] sm:$0xff]
                  %922 = vst [vmem:[%s878 + $0xa8] sm:$0xff] %v921
                  %v923 = vld [vmem:[%s877 + $0x2c0] sm:$0xff]
                  %924 = vst [vmem:[%s878 + $0xb0] sm:$0xff] %v923
                  %v925 = vld [vmem:[%s877 + $0x2e0] sm:$0xff]
                  %926 = vst [vmem:[%s878 + $0xb8] sm:$0xff] %v925
                  %v927 = vld [vmem:[%s877 + $0x300] sm:$0xff]
                  %928 = vst [vmem:[%s878 + $0xc0] sm:$0xff] %v927
                  %v929 = vld [vmem:[%s877 + $0x320] sm:$0xff]
                  %930 = vst [vmem:[%s878 + $0xc8] sm:$0xff] %v929
                  %v931 = vld [vmem:[%s877 + $0x340] sm:$0xff]
                  %932 = vst [vmem:[%s878 + $0xd0] sm:$0xff] %v931
                  %v933 = vld [vmem:[%s877 + $0x360] sm:$0xff]
                  %934 = vst [vmem:[%s878 + $0xd8] sm:$0xff] %v933
                  %v935 = vld [vmem:[%s877 + $0x380] sm:$0xff]
                  %936 = vst [vmem:[%s878 + $0xe0] sm:$0xff] %v935
                  %v937 = vld [vmem:[%s877 + $0x3a0] sm:$0xff]
                  %938 = vst [vmem:[%s878 + $0xe8] sm:$0xff] %v937
                  %v939 = vld [vmem:[%s877 + $0x3c0] sm:$0xff]
                  %940 = vst [vmem:[%s878 + $0xf0] sm:$0xff] %v939
                  %v941 = vld [vmem:[%s877 + $0x3e0] sm:$0xff]
                  %942 = vst [vmem:[%s878 + $0xf8] sm:$0xff] %v941
                  %v943 = vld [vmem:[%s877 + $0x400] sm:$0xff]
                  %944 = vst [vmem:[%s878 + $0x100] sm:$0xff] %v943
                  %v945 = vld [vmem:[%s877 + $0x420] sm:$0xff]
                  %946 = vst [vmem:[%s878 + $0x108] sm:$0xff] %v945
                  %v947 = vld [vmem:[%s877 + $0x440] sm:$0xff]
                  %948 = vst [vmem:[%s878 + $0x110] sm:$0xff] %v947
                  %v949 = vld [vmem:[%s877 + $0x460] sm:$0xff]
                  %950 = vst [vmem:[%s878 + $0x118] sm:$0xff] %v949
                  %v951 = vld [vmem:[%s877 + $0x480] sm:$0xff]
                  %952 = vst [vmem:[%s878 + $0x120] sm:$0xff] %v951
                  %v953 = vld [vmem:[%s877 + $0x4a0] sm:$0xff]
                  %954 = vst [vmem:[%s878 + $0x128] sm:$0xff] %v953
                  %v955 = vld [vmem:[%s877 + $0x4c0] sm:$0xff]
                  %956 = vst [vmem:[%s878 + $0x130] sm:$0xff] %v955
                  %v957 = vld [vmem:[%s877 + $0x4e0] sm:$0xff]
                  %958 = vst [vmem:[%s878 + $0x138] sm:$0xff] %v957
                  %v959 = vld [vmem:[%s877 + $0x500] sm:$0xff]
                  %960 = vst [vmem:[%s878 + $0x140] sm:$0xff] %v959
                  %v961 = vld [vmem:[%s877 + $0x520] sm:$0xff]
                  %962 = vst [vmem:[%s878 + $0x148] sm:$0xff] %v961
                  %v963 = vld [vmem:[%s877 + $0x540] sm:$0xff]
                  %964 = vst [vmem:[%s878 + $0x150] sm:$0xff] %v963
                  %v965 = vld [vmem:[%s877 + $0x560] sm:$0xff]
                  %966 = vst [vmem:[%s878 + $0x158] sm:$0xff] %v965
                  %v967 = vld [vmem:[%s877 + $0x580] sm:$0xff]
                  %968 = vst [vmem:[%s878 + $0x160] sm:$0xff] %v967
                  %v969 = vld [vmem:[%s877 + $0x5a0] sm:$0xff]
                  %970 = vst [vmem:[%s878 + $0x168] sm:$0xff] %v969
                  %v971 = vld [vmem:[%s877 + $0x5c0] sm:$0xff]
                  %972 = vst [vmem:[%s878 + $0x170] sm:$0xff] %v971
                  %v973 = vld [vmem:[%s877 + $0x5e0] sm:$0xff]
                  %974 = vst [vmem:[%s878 + $0x178] sm:$0xff] %v973
                  %v975 = vld [vmem:[%s877 + $0x600] sm:$0xff]
                  %976 = vst [vmem:[%s878 + $0x180] sm:$0xff] %v975
                  %v977 = vld [vmem:[%s877 + $0x620] sm:$0xff]
                  %978 = vst [vmem:[%s878 + $0x188] sm:$0xff] %v977
                  %v979 = vld [vmem:[%s877 + $0x640] sm:$0xff]
                  %980 = vst [vmem:[%s878 + $0x190] sm:$0xff] %v979
                  %v981 = vld [vmem:[%s877 + $0x660] sm:$0xff]
                  %982 = vst [vmem:[%s878 + $0x198] sm:$0xff] %v981
                  %v983 = vld [vmem:[%s877 + $0x680] sm:$0xff]
                  %984 = vst [vmem:[%s878 + $0x1a0] sm:$0xff] %v983
                  %v985 = vld [vmem:[%s877 + $0x6a0] sm:$0xff]
                  %986 = vst [vmem:[%s878 + $0x1a8] sm:$0xff] %v985
                  %v987 = vld [vmem:[%s877 + $0x6c0] sm:$0xff]
                  %988 = vst [vmem:[%s878 + $0x1b0] sm:$0xff] %v987
                  %v989 = vld [vmem:[%s877 + $0x6e0] sm:$0xff]
                  %990 = vst [vmem:[%s878 + $0x1b8] sm:$0xff] %v989
                  %v991 = vld [vmem:[%s877 + $0x700] sm:$0xff]
                  %992 = vst [vmem:[%s878 + $0x1c0] sm:$0xff] %v991
                  %v993 = vld [vmem:[%s877 + $0x720] sm:$0xff]
                  %994 = vst [vmem:[%s878 + $0x1c8] sm:$0xff] %v993
                  %v995 = vld [vmem:[%s877 + $0x740] sm:$0xff]
                  %996 = vst [vmem:[%s878 + $0x1d0] sm:$0xff] %v995
                  %v997 = vld [vmem:[%s877 + $0x760] sm:$0xff]
                  %998 = vst [vmem:[%s878 + $0x1d8] sm:$0xff] %v997
                  %v999 = vld [vmem:[%s877 + $0x780] sm:$0xff]
                  %1000 = vst [vmem:[%s878 + $0x1e0] sm:$0xff] %v999
                  %v1001 = vld [vmem:[%s877 + $0x7a0] sm:$0xff]
                  %1002 = vst [vmem:[%s878 + $0x1e8] sm:$0xff] %v1001
                  %v1003 = vld [vmem:[%s877 + $0x7c0] sm:$0xff]
                  %1004 = vst [vmem:[%s878 + $0x1f0] sm:$0xff] %v1003
                  %v1005 = vld [vmem:[%s877 + $0x7e0] sm:$0xff]
                  %1006 = vst [vmem:[%s878 + $0x1f8] sm:$0xff] %v1005
                  %v1007 = vld [vmem:[%s877 + $0x800] sm:$0xff]
                  %1008 = vst [vmem:[%s878 + $0x200] sm:$0xff] %v1007
                  %v1009 = vld [vmem:[%s877 + $0x820] sm:$0xff]
                  %1010 = vst [vmem:[%s878 + $0x208] sm:$0xff] %v1009
                  %v1011 = vld [vmem:[%s877 + $0x840] sm:$0xff]
                  %1012 = vst [vmem:[%s878 + $0x210] sm:$0xff] %v1011
                  %v1013 = vld [vmem:[%s877 + $0x860] sm:$0xff]
                  %1014 = vst [vmem:[%s878 + $0x218] sm:$0xff] %v1013
                  %v1015 = vld [vmem:[%s877 + $0x880] sm:$0xff]
                  %1016 = vst [vmem:[%s878 + $0x220] sm:$0xff] %v1015
                  %v1017 = vld [vmem:[%s877 + $0x8a0] sm:$0xff]
                  %1018 = vst [vmem:[%s878 + $0x228] sm:$0xff] %v1017
                  %v1019 = vld [vmem:[%s877 + $0x8c0] sm:$0xff]
                  %1020 = vst [vmem:[%s878 + $0x230] sm:$0xff] %v1019
                  %v1021 = vld [vmem:[%s877 + $0x8e0] sm:$0xff]
                  %1022 = vst [vmem:[%s878 + $0x238] sm:$0xff] %v1021
                  %v1023 = vld [vmem:[%s877 + $0x900] sm:$0xff]
                  %1024 = vst [vmem:[%s878 + $0x240] sm:$0xff] %v1023
                  %v1025 = vld [vmem:[%s877 + $0x920] sm:$0xff]
                  %1026 = vst [vmem:[%s878 + $0x248] sm:$0xff] %v1025
                  %v1027 = vld [vmem:[%s877 + $0x940] sm:$0xff]
                  %1028 = vst [vmem:[%s878 + $0x250] sm:$0xff] %v1027
                  %v1029 = vld [vmem:[%s877 + $0x960] sm:$0xff]
                  %1030 = vst [vmem:[%s878 + $0x258] sm:$0xff] %v1029
                  %v1031 = vld [vmem:[%s877 + $0x980] sm:$0xff]
                  %1032 = vst [vmem:[%s878 + $0x260] sm:$0xff] %v1031
                  %v1033 = vld [vmem:[%s877 + $0x9a0] sm:$0xff]
                  %1034 = vst [vmem:[%s878 + $0x268] sm:$0xff] %v1033
                  %v1035 = vld [vmem:[%s877 + $0x9c0] sm:$0xff]
                  %1036 = vst [vmem:[%s878 + $0x270] sm:$0xff] %v1035
                  %v1037 = vld [vmem:[%s877 + $0x9e0] sm:$0xff]
                  %1038 = vst [vmem:[%s878 + $0x278] sm:$0xff] %v1037
                  %v1039 = vld [vmem:[%s877 + $0xa00] sm:$0xff]
                  %1040 = vst [vmem:[%s878 + $0x280] sm:$0xff] %v1039
                  %v1041 = vld [vmem:[%s877 + $0xa20] sm:$0xff]
                  %1042 = vst [vmem:[%s878 + $0x288] sm:$0xff] %v1041
                  %v1043 = vld [vmem:[%s877 + $0xa40] sm:$0xff]
                  %1044 = vst [vmem:[%s878 + $0x290] sm:$0xff] %v1043
                  %v1045 = vld [vmem:[%s877 + $0xa60] sm:$0xff]
                  %1046 = vst [vmem:[%s878 + $0x298] sm:$0xff] %v1045
                  %v1047 = vld [vmem:[%s877 + $0xa80] sm:$0xff]
                  %1048 = vst [vmem:[%s878 + $0x2a0] sm:$0xff] %v1047
                  %v1049 = vld [vmem:[%s877 + $0xaa0] sm:$0xff]
                  %1050 = vst [vmem:[%s878 + $0x2a8] sm:$0xff] %v1049
                  %v1051 = vld [vmem:[%s877 + $0xac0] sm:$0xff]
                  %1052 = vst [vmem:[%s878 + $0x2b0] sm:$0xff] %v1051
                  %v1053 = vld [vmem:[%s877 + $0xae0] sm:$0xff]
                  %1054 = vst [vmem:[%s878 + $0x2b8] sm:$0xff] %v1053
                  %v1055 = vld [vmem:[%s877 + $0xb00] sm:$0xff]
                  %1056 = vst [vmem:[%s878 + $0x2c0] sm:$0xff] %v1055
                  %v1057 = vld [vmem:[%s877 + $0xb20] sm:$0xff]
                  %1058 = vst [vmem:[%s878 + $0x2c8] sm:$0xff] %v1057
                  %v1059 = vld [vmem:[%s877 + $0xb40] sm:$0xff]
                  %1060 = vst [vmem:[%s878 + $0x2d0] sm:$0xff] %v1059
                  %v1061 = vld [vmem:[%s877 + $0xb60] sm:$0xff]
                  %1062 = vst [vmem:[%s878 + $0x2d8] sm:$0xff] %v1061
                  %v1063 = vld [vmem:[%s877 + $0xb80] sm:$0xff]
                  %1064 = vst [vmem:[%s878 + $0x2e0] sm:$0xff] %v1063
                  %v1065 = vld [vmem:[%s877 + $0xba0] sm:$0xff]
                  %1066 = vst [vmem:[%s878 + $0x2e8] sm:$0xff] %v1065
                  %v1067 = vld [vmem:[%s877 + $0xbc0] sm:$0xff]
                  %1068 = vst [vmem:[%s878 + $0x2f0] sm:$0xff] %v1067
                  %v1069 = vld [vmem:[%s877 + $0xbe0] sm:$0xff]
                  %1070 = vst [vmem:[%s878 + $0x2f8] sm:$0xff] %v1069
                  %v1071 = vld [vmem:[%s877 + $0xc00] sm:$0xff]
                  %1072 = vst [vmem:[%s878 + $0x300] sm:$0xff] %v1071
                  %v1073 = vld [vmem:[%s877 + $0xc20] sm:$0xff]
                  %1074 = vst [vmem:[%s878 + $0x308] sm:$0xff] %v1073
                  %v1075 = vld [vmem:[%s877 + $0xc40] sm:$0xff]
                  %1076 = vst [vmem:[%s878 + $0x310] sm:$0xff] %v1075
                  %v1077 = vld [vmem:[%s877 + $0xc60] sm:$0xff]
                  %1078 = vst [vmem:[%s878 + $0x318] sm:$0xff] %v1077
                  %v1079 = vld [vmem:[%s877 + $0xc80] sm:$0xff]
                  %1080 = vst [vmem:[%s878 + $0x320] sm:$0xff] %v1079
                  %v1081 = vld [vmem:[%s877 + $0xca0] sm:$0xff]
                  %1082 = vst [vmem:[%s878 + $0x328] sm:$0xff] %v1081
                  %v1083 = vld [vmem:[%s877 + $0xcc0] sm:$0xff]
                  %1084 = vst [vmem:[%s878 + $0x330] sm:$0xff] %v1083
                  %v1085 = vld [vmem:[%s877 + $0xce0] sm:$0xff]
                  %1086 = vst [vmem:[%s878 + $0x338] sm:$0xff] %v1085
                  %v1087 = vld [vmem:[%s877 + $0xd00] sm:$0xff]
                  %1088 = vst [vmem:[%s878 + $0x340] sm:$0xff] %v1087
                  %v1089 = vld [vmem:[%s877 + $0xd20] sm:$0xff]
                  %1090 = vst [vmem:[%s878 + $0x348] sm:$0xff] %v1089
                  %v1091 = vld [vmem:[%s877 + $0xd40] sm:$0xff]
                  %1092 = vst [vmem:[%s878 + $0x350] sm:$0xff] %v1091
                  %v1093 = vld [vmem:[%s877 + $0xd60] sm:$0xff]
                  %1094 = vst [vmem:[%s878 + $0x358] sm:$0xff] %v1093
                  %v1095 = vld [vmem:[%s877 + $0xd80] sm:$0xff]
                  %1096 = vst [vmem:[%s878 + $0x360] sm:$0xff] %v1095
                  %v1097 = vld [vmem:[%s877 + $0xda0] sm:$0xff]
                  %1098 = vst [vmem:[%s878 + $0x368] sm:$0xff] %v1097
                  %v1099 = vld [vmem:[%s877 + $0xdc0] sm:$0xff]
                  %1100 = vst [vmem:[%s878 + $0x370] sm:$0xff] %v1099
                  %v1101 = vld [vmem:[%s877 + $0xde0] sm:$0xff]
                  %1102 = vst [vmem:[%s878 + $0x378] sm:$0xff] %v1101
                  %v1103 = vld [vmem:[%s877 + $0xe00] sm:$0xff]
                  %1104 = vst [vmem:[%s878 + $0x380] sm:$0xff] %v1103
                  %v1105 = vld [vmem:[%s877 + $0xe20] sm:$0xff]
                  %1106 = vst [vmem:[%s878 + $0x388] sm:$0xff] %v1105
                  %v1107 = vld [vmem:[%s877 + $0xe40] sm:$0xff]
                  %1108 = vst [vmem:[%s878 + $0x390] sm:$0xff] %v1107
                  %v1109 = vld [vmem:[%s877 + $0xe60] sm:$0xff]
                  %1110 = vst [vmem:[%s878 + $0x398] sm:$0xff] %v1109
                  %v1111 = vld [vmem:[%s877 + $0xe80] sm:$0xff]
                  %1112 = vst [vmem:[%s878 + $0x3a0] sm:$0xff] %v1111
                  %v1113 = vld [vmem:[%s877 + $0xea0] sm:$0xff]
                  %1114 = vst [vmem:[%s878 + $0x3a8] sm:$0xff] %v1113
                  %v1115 = vld [vmem:[%s877 + $0xec0] sm:$0xff]
                  %1116 = vst [vmem:[%s878 + $0x3b0] sm:$0xff] %v1115
                  %v1117 = vld [vmem:[%s877 + $0xee0] sm:$0xff]
                  %1118 = vst [vmem:[%s878 + $0x3b8] sm:$0xff] %v1117
                  %v1119 = vld [vmem:[%s877 + $0xf00] sm:$0xff]
                  %1120 = vst [vmem:[%s878 + $0x3c0] sm:$0xff] %v1119
                  %v1121 = vld [vmem:[%s877 + $0xf20] sm:$0xff]
                  %1122 = vst [vmem:[%s878 + $0x3c8] sm:$0xff] %v1121
                  %v1123 = vld [vmem:[%s877 + $0xf40] sm:$0xff]
                  %1124 = vst [vmem:[%s878 + $0x3d0] sm:$0xff] %v1123
                  %v1125 = vld [vmem:[%s877 + $0xf60] sm:$0xff]
                  %1126 = vst [vmem:[%s878 + $0x3d8] sm:$0xff] %v1125
                  %v1127 = vld [vmem:[%s877 + $0xf80] sm:$0xff]
                  %1128 = vst [vmem:[%s878 + $0x3e0] sm:$0xff] %v1127
                  %v1129 = vld [vmem:[%s877 + $0xfa0] sm:$0xff]
                  %1130 = vst [vmem:[%s878 + $0x3e8] sm:$0xff] %v1129
                  %v1131 = vld [vmem:[%s877 + $0xfc0] sm:$0xff]
                  %1132 = vst [vmem:[%s878 + $0x3f0] sm:$0xff] %v1131
                  %v1133 = vld [vmem:[%s877 + $0xfe0] sm:$0xff]
                  %1134 = vst [vmem:[%s878 + $0x3f8] sm:$0xff] %v1133
                  %v1135 = vld [vmem:[%s877 + $0x1000] sm:$0xff]
                  %1136 = vst [vmem:[%s878 + $0x400] sm:$0xff] %v1135
                  %v1137 = vld [vmem:[%s877 + $0x1020] sm:$0xff]
                  %1138 = vst [vmem:[%s878 + $0x408] sm:$0xff] %v1137
                  %v1139 = vld [vmem:[%s877 + $0x1040] sm:$0xff]
                  %1140 = vst [vmem:[%s878 + $0x410] sm:$0xff] %v1139
                  %v1141 = vld [vmem:[%s877 + $0x1060] sm:$0xff]
                  %1142 = vst [vmem:[%s878 + $0x418] sm:$0xff] %v1141
                  %v1143 = vld [vmem:[%s877 + $0x1080] sm:$0xff]
                  %1144 = vst [vmem:[%s878 + $0x420] sm:$0xff] %v1143
                  %v1145 = vld [vmem:[%s877 + $0x10a0] sm:$0xff]
                  %1146 = vst [vmem:[%s878 + $0x428] sm:$0xff] %v1145
                  %v1147 = vld [vmem:[%s877 + $0x10c0] sm:$0xff]
                  %1148 = vst [vmem:[%s878 + $0x430] sm:$0xff] %v1147
                  %v1149 = vld [vmem:[%s877 + $0x10e0] sm:$0xff]
                  %1150 = vst [vmem:[%s878 + $0x438] sm:$0xff] %v1149
                  %v1151 = vld [vmem:[%s877 + $0x1100] sm:$0xff]
                  %1152 = vst [vmem:[%s878 + $0x440] sm:$0xff] %v1151
                  %v1153 = vld [vmem:[%s877 + $0x1120] sm:$0xff]
                  %1154 = vst [vmem:[%s878 + $0x448] sm:$0xff] %v1153
                  %v1155 = vld [vmem:[%s877 + $0x1140] sm:$0xff]
                  %1156 = vst [vmem:[%s878 + $0x450] sm:$0xff] %v1155
                  %v1157 = vld [vmem:[%s877 + $0x1160] sm:$0xff]
                  %1158 = vst [vmem:[%s878 + $0x458] sm:$0xff] %v1157
                  %v1159 = vld [vmem:[%s877 + $0x1180] sm:$0xff]
                  %1160 = vst [vmem:[%s878 + $0x460] sm:$0xff] %v1159
                  %v1161 = vld [vmem:[%s877 + $0x11a0] sm:$0xff]
                  %1162 = vst [vmem:[%s878 + $0x468] sm:$0xff] %v1161
                  %v1163 = vld [vmem:[%s877 + $0x11c0] sm:$0xff]
                  %1164 = vst [vmem:[%s878 + $0x470] sm:$0xff] %v1163
                  %v1165 = vld [vmem:[%s877 + $0x11e0] sm:$0xff]
                  %1166 = vst [vmem:[%s878 + $0x478] sm:$0xff] %v1165
                  %v1167 = vld [vmem:[%s877 + $0x1200] sm:$0xff]
                  %1168 = vst [vmem:[%s878 + $0x480] sm:$0xff] %v1167
                  %v1169 = vld [vmem:[%s877 + $0x1220] sm:$0xff]
                  %1170 = vst [vmem:[%s878 + $0x488] sm:$0xff] %v1169
                  %v1171 = vld [vmem:[%s877 + $0x1240] sm:$0xff]
                  %1172 = vst [vmem:[%s878 + $0x490] sm:$0xff] %v1171
                  %v1173 = vld [vmem:[%s877 + $0x1260] sm:$0xff]
                  %1174 = vst [vmem:[%s878 + $0x498] sm:$0xff] %v1173
                  %v1175 = vld [vmem:[%s877 + $0x1280] sm:$0xff]
                  %1176 = vst [vmem:[%s878 + $0x4a0] sm:$0xff] %v1175
                  %v1177 = vld [vmem:[%s877 + $0x12a0] sm:$0xff]
                  %1178 = vst [vmem:[%s878 + $0x4a8] sm:$0xff] %v1177
                  %v1179 = vld [vmem:[%s877 + $0x12c0] sm:$0xff]
                  %1180 = vst [vmem:[%s878 + $0x4b0] sm:$0xff] %v1179
                  %v1181 = vld [vmem:[%s877 + $0x12e0] sm:$0xff]
                  %1182 = vst [vmem:[%s878 + $0x4b8] sm:$0xff] %v1181
                  %v1183 = vld [vmem:[%s877 + $0x1300] sm:$0xff]
                  %1184 = vst [vmem:[%s878 + $0x4c0] sm:$0xff] %v1183
                  %v1185 = vld [vmem:[%s877 + $0x1320] sm:$0xff]
                  %1186 = vst [vmem:[%s878 + $0x4c8] sm:$0xff] %v1185
                  %v1187 = vld [vmem:[%s877 + $0x1340] sm:$0xff]
                  %1188 = vst [vmem:[%s878 + $0x4d0] sm:$0xff] %v1187
                  %v1189 = vld [vmem:[%s877 + $0x1360] sm:$0xff]
                  %1190 = vst [vmem:[%s878 + $0x4d8] sm:$0xff] %v1189
                  %v1191 = vld [vmem:[%s877 + $0x1380] sm:$0xff]
                  %1192 = vst [vmem:[%s878 + $0x4e0] sm:$0xff] %v1191
                  %v1193 = vld [vmem:[%s877 + $0x13a0] sm:$0xff]
                  %1194 = vst [vmem:[%s878 + $0x4e8] sm:$0xff] %v1193
                  %v1195 = vld [vmem:[%s877 + $0x13c0] sm:$0xff]
                  %1196 = vst [vmem:[%s878 + $0x4f0] sm:$0xff] %v1195
                  %v1197 = vld [vmem:[%s877 + $0x13e0] sm:$0xff]
                  %1198 = vst [vmem:[%s878 + $0x4f8] sm:$0xff] %v1197
                  %v1199 = vld [vmem:[%s877 + $0x1400] sm:$0xff]
                  %1200 = vst [vmem:[%s878 + $0x500] sm:$0xff] %v1199
                  %v1201 = vld [vmem:[%s877 + $0x1420] sm:$0xff]
                  %1202 = vst [vmem:[%s878 + $0x508] sm:$0xff] %v1201
                  %v1203 = vld [vmem:[%s877 + $0x1440] sm:$0xff]
                  %1204 = vst [vmem:[%s878 + $0x510] sm:$0xff] %v1203
                  %v1205 = vld [vmem:[%s877 + $0x1460] sm:$0xff]
                  %1206 = vst [vmem:[%s878 + $0x518] sm:$0xff] %v1205
                  %v1207 = vld [vmem:[%s877 + $0x1480] sm:$0xff]
                  %1208 = vst [vmem:[%s878 + $0x520] sm:$0xff] %v1207
                  %v1209 = vld [vmem:[%s877 + $0x14a0] sm:$0xff]
                  %1210 = vst [vmem:[%s878 + $0x528] sm:$0xff] %v1209
                  %v1211 = vld [vmem:[%s877 + $0x14c0] sm:$0xff]
                  %1212 = vst [vmem:[%s878 + $0x530] sm:$0xff] %v1211
                  %v1213 = vld [vmem:[%s877 + $0x14e0] sm:$0xff]
                  %1214 = vst [vmem:[%s878 + $0x538] sm:$0xff] %v1213
                  %v1215 = vld [vmem:[%s877 + $0x1500] sm:$0xff]
                  %1216 = vst [vmem:[%s878 + $0x540] sm:$0xff] %v1215
                  %v1217 = vld [vmem:[%s877 + $0x1520] sm:$0xff]
                  %1218 = vst [vmem:[%s878 + $0x548] sm:$0xff] %v1217
                  %v1219 = vld [vmem:[%s877 + $0x1540] sm:$0xff]
                  %1220 = vst [vmem:[%s878 + $0x550] sm:$0xff] %v1219
                  %v1221 = vld [vmem:[%s877 + $0x1560] sm:$0xff]
                  %1222 = vst [vmem:[%s878 + $0x558] sm:$0xff] %v1221
                  %v1223 = vld [vmem:[%s877 + $0x1580] sm:$0xff]
                  %1224 = vst [vmem:[%s878 + $0x560] sm:$0xff] %v1223
                  %v1225 = vld [vmem:[%s877 + $0x15a0] sm:$0xff]
                  %1226 = vst [vmem:[%s878 + $0x568] sm:$0xff] %v1225
                  %v1227 = vld [vmem:[%s877 + $0x15c0] sm:$0xff]
                  %1228 = vst [vmem:[%s878 + $0x570] sm:$0xff] %v1227
                  %v1229 = vld [vmem:[%s877 + $0x15e0] sm:$0xff]
                  %1230 = vst [vmem:[%s878 + $0x578] sm:$0xff] %v1229
                  %v1231 = vld [vmem:[%s877 + $0x1600] sm:$0xff]
                  %1232 = vst [vmem:[%s878 + $0x580] sm:$0xff] %v1231
                  %v1233 = vld [vmem:[%s877 + $0x1620] sm:$0xff]
                  %1234 = vst [vmem:[%s878 + $0x588] sm:$0xff] %v1233
                  %v1235 = vld [vmem:[%s877 + $0x1640] sm:$0xff]
                  %1236 = vst [vmem:[%s878 + $0x590] sm:$0xff] %v1235
                  %v1237 = vld [vmem:[%s877 + $0x1660] sm:$0xff]
                  %1238 = vst [vmem:[%s878 + $0x598] sm:$0xff] %v1237
                  %v1239 = vld [vmem:[%s877 + $0x1680] sm:$0xff]
                  %1240 = vst [vmem:[%s878 + $0x5a0] sm:$0xff] %v1239
                  %v1241 = vld [vmem:[%s877 + $0x16a0] sm:$0xff]
                  %1242 = vst [vmem:[%s878 + $0x5a8] sm:$0xff] %v1241
                  %v1243 = vld [vmem:[%s877 + $0x16c0] sm:$0xff]
                  %1244 = vst [vmem:[%s878 + $0x5b0] sm:$0xff] %v1243
                  %v1245 = vld [vmem:[%s877 + $0x16e0] sm:$0xff]
                  %1246 = vst [vmem:[%s878 + $0x5b8] sm:$0xff] %v1245
                  %v1247 = vld [vmem:[%s877 + $0x1700] sm:$0xff]
                  %1248 = vst [vmem:[%s878 + $0x5c0] sm:$0xff] %v1247
                  %v1249 = vld [vmem:[%s877 + $0x1720] sm:$0xff]
                  %1250 = vst [vmem:[%s878 + $0x5c8] sm:$0xff] %v1249
                  %v1251 = vld [vmem:[%s877 + $0x1740] sm:$0xff]
                  %1252 = vst [vmem:[%s878 + $0x5d0] sm:$0xff] %v1251
                  %v1253 = vld [vmem:[%s877 + $0x1760] sm:$0xff]
                  %1254 = vst [vmem:[%s878 + $0x5d8] sm:$0xff] %v1253
                  %v1255 = vld [vmem:[%s877 + $0x1780] sm:$0xff]
                  %1256 = vst [vmem:[%s878 + $0x5e0] sm:$0xff] %v1255
                  %v1257 = vld [vmem:[%s877 + $0x17a0] sm:$0xff]
                  %1258 = vst [vmem:[%s878 + $0x5e8] sm:$0xff] %v1257
                  %v1259 = vld [vmem:[%s877 + $0x17c0] sm:$0xff]
                  %1260 = vst [vmem:[%s878 + $0x5f0] sm:$0xff] %v1259
                  %v1261 = vld [vmem:[%s877 + $0x17e0] sm:$0xff]
                  %1262 = vst [vmem:[%s878 + $0x5f8] sm:$0xff] %v1261
                  %v1263 = vld [vmem:[%s877 + $0x1800] sm:$0xff]
                  %1264 = vst [vmem:[%s878 + $0x600] sm:$0xff] %v1263
                  %v1265 = vld [vmem:[%s877 + $0x1820] sm:$0xff]
                  %1266 = vst [vmem:[%s878 + $0x608] sm:$0xff] %v1265
                  %v1267 = vld [vmem:[%s877 + $0x1840] sm:$0xff]
                  %1268 = vst [vmem:[%s878 + $0x610] sm:$0xff] %v1267
                  %v1269 = vld [vmem:[%s877 + $0x1860] sm:$0xff]
                  %1270 = vst [vmem:[%s878 + $0x618] sm:$0xff] %v1269
                  %v1271 = vld [vmem:[%s877 + $0x1880] sm:$0xff]
                  %1272 = vst [vmem:[%s878 + $0x620] sm:$0xff] %v1271
                  %v1273 = vld [vmem:[%s877 + $0x18a0] sm:$0xff]
                  %1274 = vst [vmem:[%s878 + $0x628] sm:$0xff] %v1273
                  %v1275 = vld [vmem:[%s877 + $0x18c0] sm:$0xff]
                  %1276 = vst [vmem:[%s878 + $0x630] sm:$0xff] %v1275
                  %v1277 = vld [vmem:[%s877 + $0x18e0] sm:$0xff]
                  %1278 = vst [vmem:[%s878 + $0x638] sm:$0xff] %v1277
                  %v1279 = vld [vmem:[%s877 + $0x1900] sm:$0xff]
                  %1280 = vst [vmem:[%s878 + $0x640] sm:$0xff] %v1279
                  %v1281 = vld [vmem:[%s877 + $0x1920] sm:$0xff]
                  %1282 = vst [vmem:[%s878 + $0x648] sm:$0xff] %v1281
                  %v1283 = vld [vmem:[%s877 + $0x1940] sm:$0xff]
                  %1284 = vst [vmem:[%s878 + $0x650] sm:$0xff] %v1283
                  %v1285 = vld [vmem:[%s877 + $0x1960] sm:$0xff]
                  %1286 = vst [vmem:[%s878 + $0x658] sm:$0xff] %v1285
                  %v1287 = vld [vmem:[%s877 + $0x1980] sm:$0xff]
                  %1288 = vst [vmem:[%s878 + $0x660] sm:$0xff] %v1287
                  %v1289 = vld [vmem:[%s877 + $0x19a0] sm:$0xff]
                  %1290 = vst [vmem:[%s878 + $0x668] sm:$0xff] %v1289
                  %v1291 = vld [vmem:[%s877 + $0x19c0] sm:$0xff]
                  %1292 = vst [vmem:[%s878 + $0x670] sm:$0xff] %v1291
                  %v1293 = vld [vmem:[%s877 + $0x19e0] sm:$0xff]
                  %1294 = vst [vmem:[%s878 + $0x678] sm:$0xff] %v1293
                  %v1295 = vld [vmem:[%s877 + $0x1a00] sm:$0xff]
                  %1296 = vst [vmem:[%s878 + $0x680] sm:$0xff] %v1295
                  %v1297 = vld [vmem:[%s877 + $0x1a20] sm:$0xff]
                  %1298 = vst [vmem:[%s878 + $0x688] sm:$0xff] %v1297
                  %v1299 = vld [vmem:[%s877 + $0x1a40] sm:$0xff]
                  %1300 = vst [vmem:[%s878 + $0x690] sm:$0xff] %v1299
                  %v1301 = vld [vmem:[%s877 + $0x1a60] sm:$0xff]
                  %1302 = vst [vmem:[%s878 + $0x698] sm:$0xff] %v1301
                  %v1303 = vld [vmem:[%s877 + $0x1a80] sm:$0xff]
                  %1304 = vst [vmem:[%s878 + $0x6a0] sm:$0xff] %v1303
                  %v1305 = vld [vmem:[%s877 + $0x1aa0] sm:$0xff]
                  %1306 = vst [vmem:[%s878 + $0x6a8] sm:$0xff] %v1305
                  %v1307 = vld [vmem:[%s877 + $0x1ac0] sm:$0xff]
                  %1308 = vst [vmem:[%s878 + $0x6b0] sm:$0xff] %v1307
                  %v1309 = vld [vmem:[%s877 + $0x1ae0] sm:$0xff]
                  %1310 = vst [vmem:[%s878 + $0x6b8] sm:$0xff] %v1309
                  %v1311 = vld [vmem:[%s877 + $0x1b00] sm:$0xff]
                  %1312 = vst [vmem:[%s878 + $0x6c0] sm:$0xff] %v1311
                  %v1313 = vld [vmem:[%s877 + $0x1b20] sm:$0xff]
                  %1314 = vst [vmem:[%s878 + $0x6c8] sm:$0xff] %v1313
                  %v1315 = vld [vmem:[%s877 + $0x1b40] sm:$0xff]
                  %1316 = vst [vmem:[%s878 + $0x6d0] sm:$0xff] %v1315
                  %v1317 = vld [vmem:[%s877 + $0x1b60] sm:$0xff]
                  %1318 = vst [vmem:[%s878 + $0x6d8] sm:$0xff] %v1317
                  %v1319 = vld [vmem:[%s877 + $0x1b80] sm:$0xff]
                  %1320 = vst [vmem:[%s878 + $0x6e0] sm:$0xff] %v1319
                  %v1321 = vld [vmem:[%s877 + $0x1ba0] sm:$0xff]
                  %1322 = vst [vmem:[%s878 + $0x6e8] sm:$0xff] %v1321
                  %v1323 = vld [vmem:[%s877 + $0x1bc0] sm:$0xff]
                  %1324 = vst [vmem:[%s878 + $0x6f0] sm:$0xff] %v1323
                  %v1325 = vld [vmem:[%s877 + $0x1be0] sm:$0xff]
                  %1326 = vst [vmem:[%s878 + $0x6f8] sm:$0xff] %v1325
                  %v1327 = vld [vmem:[%s877 + $0x1c00] sm:$0xff]
                  %1328 = vst [vmem:[%s878 + $0x700] sm:$0xff] %v1327
                  %v1329 = vld [vmem:[%s877 + $0x1c20] sm:$0xff]
                  %1330 = vst [vmem:[%s878 + $0x708] sm:$0xff] %v1329
                  %v1331 = vld [vmem:[%s877 + $0x1c40] sm:$0xff]
                  %1332 = vst [vmem:[%s878 + $0x710] sm:$0xff] %v1331
                  %v1333 = vld [vmem:[%s877 + $0x1c60] sm:$0xff]
                  %1334 = vst [vmem:[%s878 + $0x718] sm:$0xff] %v1333
                  %v1335 = vld [vmem:[%s877 + $0x1c80] sm:$0xff]
                  %1336 = vst [vmem:[%s878 + $0x720] sm:$0xff] %v1335
                  %v1337 = vld [vmem:[%s877 + $0x1ca0] sm:$0xff]
                  %1338 = vst [vmem:[%s878 + $0x728] sm:$0xff] %v1337
                  %v1339 = vld [vmem:[%s877 + $0x1cc0] sm:$0xff]
                  %1340 = vst [vmem:[%s878 + $0x730] sm:$0xff] %v1339
                  %v1341 = vld [vmem:[%s877 + $0x1ce0] sm:$0xff]
                  %1342 = vst [vmem:[%s878 + $0x738] sm:$0xff] %v1341
                  %v1343 = vld [vmem:[%s877 + $0x1d00] sm:$0xff]
                  %1344 = vst [vmem:[%s878 + $0x740] sm:$0xff] %v1343
                  %v1345 = vld [vmem:[%s877 + $0x1d20] sm:$0xff]
                  %1346 = vst [vmem:[%s878 + $0x748] sm:$0xff] %v1345
                  %v1347 = vld [vmem:[%s877 + $0x1d40] sm:$0xff]
                  %1348 = vst [vmem:[%s878 + $0x750] sm:$0xff] %v1347
                  %v1349 = vld [vmem:[%s877 + $0x1d60] sm:$0xff]
                  %1350 = vst [vmem:[%s878 + $0x758] sm:$0xff] %v1349
                  %v1351 = vld [vmem:[%s877 + $0x1d80] sm:$0xff]
                  %1352 = vst [vmem:[%s878 + $0x760] sm:$0xff] %v1351
                  %v1353 = vld [vmem:[%s877 + $0x1da0] sm:$0xff]
                  %1354 = vst [vmem:[%s878 + $0x768] sm:$0xff] %v1353
                  %v1355 = vld [vmem:[%s877 + $0x1dc0] sm:$0xff]
                  %1356 = vst [vmem:[%s878 + $0x770] sm:$0xff] %v1355
                  %v1357 = vld [vmem:[%s877 + $0x1de0] sm:$0xff]
                  %1358 = vst [vmem:[%s878 + $0x778] sm:$0xff] %v1357
                  %v1359 = vld [vmem:[%s877 + $0x1e00] sm:$0xff]
                  %1360 = vst [vmem:[%s878 + $0x780] sm:$0xff] %v1359
                  %v1361 = vld [vmem:[%s877 + $0x1e20] sm:$0xff]
                  %1362 = vst [vmem:[%s878 + $0x788] sm:$0xff] %v1361
                  %v1363 = vld [vmem:[%s877 + $0x1e40] sm:$0xff]
                  %1364 = vst [vmem:[%s878 + $0x790] sm:$0xff] %v1363
                  %v1365 = vld [vmem:[%s877 + $0x1e60] sm:$0xff]
                  %1366 = vst [vmem:[%s878 + $0x798] sm:$0xff] %v1365
                  %v1367 = vld [vmem:[%s877 + $0x1e80] sm:$0xff]
                  %1368 = vst [vmem:[%s878 + $0x7a0] sm:$0xff] %v1367
                  %v1369 = vld [vmem:[%s877 + $0x1ea0] sm:$0xff]
                  %1370 = vst [vmem:[%s878 + $0x7a8] sm:$0xff] %v1369
                  %v1371 = vld [vmem:[%s877 + $0x1ec0] sm:$0xff]
                  %1372 = vst [vmem:[%s878 + $0x7b0] sm:$0xff] %v1371
                  %v1373 = vld [vmem:[%s877 + $0x1ee0] sm:$0xff]
                  %1374 = vst [vmem:[%s878 + $0x7b8] sm:$0xff] %v1373
                  %v1375 = vld [vmem:[%s877 + $0x1f00] sm:$0xff]
                  %1376 = vst [vmem:[%s878 + $0x7c0] sm:$0xff] %v1375
                  %v1377 = vld [vmem:[%s877 + $0x1f20] sm:$0xff]
                  %1378 = vst [vmem:[%s878 + $0x7c8] sm:$0xff] %v1377
                  %v1379 = vld [vmem:[%s877 + $0x1f40] sm:$0xff]
                  %1380 = vst [vmem:[%s878 + $0x7d0] sm:$0xff] %v1379
                  %v1381 = vld [vmem:[%s877 + $0x1f60] sm:$0xff]
                  %1382 = vst [vmem:[%s878 + $0x7d8] sm:$0xff] %v1381
                  %v1383 = vld [vmem:[%s877 + $0x1f80] sm:$0xff]
                  %1384 = vst [vmem:[%s878 + $0x7e0] sm:$0xff] %v1383
                  %v1385 = vld [vmem:[%s877 + $0x1fa0] sm:$0xff]
                  %1386 = vst [vmem:[%s878 + $0x7e8] sm:$0xff] %v1385
                  %v1387 = vld [vmem:[%s877 + $0x1fc0] sm:$0xff]
                  %1388 = vst [vmem:[%s878 + $0x7f0] sm:$0xff] %v1387
                  %v1389 = vld [vmem:[%s877 + $0x1fe0] sm:$0xff]
                  %1390 = vst [vmem:[%s878 + $0x7f8] sm:$0xff] %v1389
                  %v1391 = vld [vmem:[%s877 + $0x2000] sm:$0xff]
                  %1392 = vst [vmem:[%s878 + $0x800] sm:$0xff] %v1391
                  %v1393 = vld [vmem:[%s877 + $0x2020] sm:$0xff]
                  %1394 = vst [vmem:[%s878 + $0x808] sm:$0xff] %v1393
                  %v1395 = vld [vmem:[%s877 + $0x2040] sm:$0xff]
                  %1396 = vst [vmem:[%s878 + $0x810] sm:$0xff] %v1395
                  %v1397 = vld [vmem:[%s877 + $0x2060] sm:$0xff]
                  %1398 = vst [vmem:[%s878 + $0x818] sm:$0xff] %v1397
                  %v1399 = vld [vmem:[%s877 + $0x2080] sm:$0xff]
                  %1400 = vst [vmem:[%s878 + $0x820] sm:$0xff] %v1399
                  %v1401 = vld [vmem:[%s877 + $0x20a0] sm:$0xff]
                  %1402 = vst [vmem:[%s878 + $0x828] sm:$0xff] %v1401
                  %v1403 = vld [vmem:[%s877 + $0x20c0] sm:$0xff]
                  %1404 = vst [vmem:[%s878 + $0x830] sm:$0xff] %v1403
                  %v1405 = vld [vmem:[%s877 + $0x20e0] sm:$0xff]
                  %1406 = vst [vmem:[%s878 + $0x838] sm:$0xff] %v1405
                  %v1407 = vld [vmem:[%s877 + $0x2100] sm:$0xff]
                  %1408 = vst [vmem:[%s878 + $0x840] sm:$0xff] %v1407
                  %v1409 = vld [vmem:[%s877 + $0x2120] sm:$0xff]
                  %1410 = vst [vmem:[%s878 + $0x848] sm:$0xff] %v1409
                  %v1411 = vld [vmem:[%s877 + $0x2140] sm:$0xff]
                  %1412 = vst [vmem:[%s878 + $0x850] sm:$0xff] %v1411
                  %v1413 = vld [vmem:[%s877 + $0x2160] sm:$0xff]
                  %1414 = vst [vmem:[%s878 + $0x858] sm:$0xff] %v1413
                  %v1415 = vld [vmem:[%s877 + $0x2180] sm:$0xff]
                  %1416 = vst [vmem:[%s878 + $0x860] sm:$0xff] %v1415
                  %v1417 = vld [vmem:[%s877 + $0x21a0] sm:$0xff]
                  %1418 = vst [vmem:[%s878 + $0x868] sm:$0xff] %v1417
                  %v1419 = vld [vmem:[%s877 + $0x21c0] sm:$0xff]
                  %1420 = vst [vmem:[%s878 + $0x870] sm:$0xff] %v1419
                  %v1421 = vld [vmem:[%s877 + $0x21e0] sm:$0xff]
                  %1422 = vst [vmem:[%s878 + $0x878] sm:$0xff] %v1421
                  %v1423 = vld [vmem:[%s877 + $0x2200] sm:$0xff]
                  %1424 = vst [vmem:[%s878 + $0x880] sm:$0xff] %v1423
                  %v1425 = vld [vmem:[%s877 + $0x2220] sm:$0xff]
                  %1426 = vst [vmem:[%s878 + $0x888] sm:$0xff] %v1425
                  %v1427 = vld [vmem:[%s877 + $0x2240] sm:$0xff]
                  %1428 = vst [vmem:[%s878 + $0x890] sm:$0xff] %v1427
                  %v1429 = vld [vmem:[%s877 + $0x2260] sm:$0xff]
                  %1430 = vst [vmem:[%s878 + $0x898] sm:$0xff] %v1429
                  %v1431 = vld [vmem:[%s877 + $0x2280] sm:$0xff]
                  %1432 = vst [vmem:[%s878 + $0x8a0] sm:$0xff] %v1431
                  %v1433 = vld [vmem:[%s877 + $0x22a0] sm:$0xff]
                  %1434 = vst [vmem:[%s878 + $0x8a8] sm:$0xff] %v1433
                  %v1435 = vld [vmem:[%s877 + $0x22c0] sm:$0xff]
                  %1436 = vst [vmem:[%s878 + $0x8b0] sm:$0xff] %v1435
                  %v1437 = vld [vmem:[%s877 + $0x22e0] sm:$0xff]
                  %1438 = vst [vmem:[%s878 + $0x8b8] sm:$0xff] %v1437
                  %v1439 = vld [vmem:[%s877 + $0x2300] sm:$0xff]
                  %1440 = vst [vmem:[%s878 + $0x8c0] sm:$0xff] %v1439
                  %v1441 = vld [vmem:[%s877 + $0x2320] sm:$0xff]
                  %1442 = vst [vmem:[%s878 + $0x8c8] sm:$0xff] %v1441
                  %v1443 = vld [vmem:[%s877 + $0x2340] sm:$0xff]
                  %1444 = vst [vmem:[%s878 + $0x8d0] sm:$0xff] %v1443
                  %v1445 = vld [vmem:[%s877 + $0x2360] sm:$0xff]
                  %1446 = vst [vmem:[%s878 + $0x8d8] sm:$0xff] %v1445
                  %v1447 = vld [vmem:[%s877 + $0x2380] sm:$0xff]
                  %1448 = vst [vmem:[%s878 + $0x8e0] sm:$0xff] %v1447
                  %v1449 = vld [vmem:[%s877 + $0x23a0] sm:$0xff]
                  %1450 = vst [vmem:[%s878 + $0x8e8] sm:$0xff] %v1449
                  %v1451 = vld [vmem:[%s877 + $0x23c0] sm:$0xff]
                  %1452 = vst [vmem:[%s878 + $0x8f0] sm:$0xff] %v1451
                  %v1453 = vld [vmem:[%s877 + $0x23e0] sm:$0xff]
                  %1454 = vst [vmem:[%s878 + $0x8f8] sm:$0xff] %v1453
                  %v1455 = vld [vmem:[%s877 + $0x2400] sm:$0xff]
                  %1456 = vst [vmem:[%s878 + $0x900] sm:$0xff] %v1455
                  %v1457 = vld [vmem:[%s877 + $0x2420] sm:$0xff]
                  %1458 = vst [vmem:[%s878 + $0x908] sm:$0xff] %v1457
                  %v1459 = vld [vmem:[%s877 + $0x2440] sm:$0xff]
                  %1460 = vst [vmem:[%s878 + $0x910] sm:$0xff] %v1459
                  %v1461 = vld [vmem:[%s877 + $0x2460] sm:$0xff]
                  %1462 = vst [vmem:[%s878 + $0x918] sm:$0xff] %v1461
                  %v1463 = vld [vmem:[%s877 + $0x2480] sm:$0xff]
                  %1464 = vst [vmem:[%s878 + $0x920] sm:$0xff] %v1463
                  %v1465 = vld [vmem:[%s877 + $0x24a0] sm:$0xff]
                  %1466 = vst [vmem:[%s878 + $0x928] sm:$0xff] %v1465
                  %v1467 = vld [vmem:[%s877 + $0x24c0] sm:$0xff]
                  %1468 = vst [vmem:[%s878 + $0x930] sm:$0xff] %v1467
                  %v1469 = vld [vmem:[%s877 + $0x24e0] sm:$0xff]
                  %1470 = vst [vmem:[%s878 + $0x938] sm:$0xff] %v1469
                  %v1471 = vld [vmem:[%s877 + $0x2500] sm:$0xff]
                  %1472 = vst [vmem:[%s878 + $0x940] sm:$0xff] %v1471
                  %v1473 = vld [vmem:[%s877 + $0x2520] sm:$0xff]
                  %1474 = vst [vmem:[%s878 + $0x948] sm:$0xff] %v1473
                  %v1475 = vld [vmem:[%s877 + $0x2540] sm:$0xff]
                  %1476 = vst [vmem:[%s878 + $0x950] sm:$0xff] %v1475
                  %v1477 = vld [vmem:[%s877 + $0x2560] sm:$0xff]
                  %1478 = vst [vmem:[%s878 + $0x958] sm:$0xff] %v1477
                  %v1479 = vld [vmem:[%s877 + $0x2580] sm:$0xff]
                  %1480 = vst [vmem:[%s878 + $0x960] sm:$0xff] %v1479
                  %v1481 = vld [vmem:[%s877 + $0x25a0] sm:$0xff]
                  %1482 = vst [vmem:[%s878 + $0x968] sm:$0xff] %v1481
                  %v1483 = vld [vmem:[%s877 + $0x25c0] sm:$0xff]
                  %1484 = vst [vmem:[%s878 + $0x970] sm:$0xff] %v1483
                  %v1485 = vld [vmem:[%s877 + $0x25e0] sm:$0xff]
                  %1486 = vst [vmem:[%s878 + $0x978] sm:$0xff] %v1485
                  %v1487 = vld [vmem:[%s877 + $0x2600] sm:$0xff]
                  %1488 = vst [vmem:[%s878 + $0x980] sm:$0xff] %v1487
                  %v1489 = vld [vmem:[%s877 + $0x2620] sm:$0xff]
                  %1490 = vst [vmem:[%s878 + $0x988] sm:$0xff] %v1489
                  %v1491 = vld [vmem:[%s877 + $0x2640] sm:$0xff]
                  %1492 = vst [vmem:[%s878 + $0x990] sm:$0xff] %v1491
                  %s1493 = sadd.s32 1, %s876
                  %p1494 = scmp.ge.s32.totalorder %s1493, 1
                  %s1495 = scalar_select %p1494, 0, %s1493
                  %s1496 = smul.u32 %s1495, 8
                  %s1497 = smul.u32 %s1495, 8
                  %s1498 = scalar_lea.vmem %s237, %s1496
                  %s1499 = scalar_lea.vmem %s234, %s1497 [#allocation3]
                $region64: #{net_forward.5} parent=58 // loop_footer
                  %s875 = sadd.s32 1, %s871
                $region65: #{net_forward.5} parent=58 // loop_footer_branch
                  %870 = sbr.rel target = $region61
                $region66: #{net_forward.5} parent=58 // loop_exit
                  _
              $region59: #{net_forward.5} parent=43 // pred_fallthru
                _
              // Predicated region
              $region67: #{net_forward.5} parent=43 // pred_check
                _
              $region68: #{net_forward.5} parent=43 // pred_check_branch
                %1501 = sbr.rel target = $region70
              $region69: #{net_forward.5} parent=43 // pred_region
                %s1502 = scalar_lea.vmem %s237, 8
                %s1503 = scalar_lea.vmem %s234, 8 [#allocation3]
                loop: start=0, step=1, limit=1
                $region71: #{net_forward.5} parent=69 // loop_pre_header
                  _
                $region72: #{net_forward.5} parent=69 // loop_header
                  %s1505 = sphi 0, %s1509
                  %p1506 = scmp.ge.s32.totalorder %s1505, 1
                  %s1510 = sphi 0, %s2129
                  %s1511 = sphi %s237, %s2132
                  %s1512 = sphi %s234, %s2133
                $region73: #{net_forward.5} parent=69 // loop_header_branch
                  %1508 = sbr.rel (%p1506) target = $region77
                $region74: #{net_forward.5} parent=69 // loop_body
                  %v1513 = vld [vmem:[%s1511] sm:$0xff]
                  %1514 = vst [vmem:[%s1512] sm:$0xff] %v1513
                  %v1515 = vld [vmem:[%s1511 + $0x20] sm:$0xff]
                  %1516 = vst [vmem:[%s1512 + $0x8] sm:$0xff] %v1515
                  %v1517 = vld [vmem:[%s1511 + $0x40] sm:$0xff]
                  %1518 = vst [vmem:[%s1512 + $0x10] sm:$0xff] %v1517
                  %v1519 = vld [vmem:[%s1511 + $0x60] sm:$0xff]
                  %1520 = vst [vmem:[%s1512 + $0x18] sm:$0xff] %v1519
                  %v1521 = vld [vmem:[%s1511 + $0x80] sm:$0xff]
                  %1522 = vst [vmem:[%s1512 + $0x20] sm:$0xff] %v1521
                  %v1523 = vld [vmem:[%s1511 + $0xa0] sm:$0xff]
                  %1524 = vst [vmem:[%s1512 + $0x28] sm:$0xff] %v1523
                  %v1525 = vld [vmem:[%s1511 + $0xc0] sm:$0xff]
                  %1526 = vst [vmem:[%s1512 + $0x30] sm:$0xff] %v1525
                  %v1527 = vld [vmem:[%s1511 + $0xe0] sm:$0xff]
                  %1528 = vst [vmem:[%s1512 + $0x38] sm:$0xff] %v1527
                  %v1529 = vld [vmem:[%s1511 + $0x100] sm:$0xff]
                  %1530 = vst [vmem:[%s1512 + $0x40] sm:$0xff] %v1529
                  %v1531 = vld [vmem:[%s1511 + $0x120] sm:$0xff]
                  %1532 = vst [vmem:[%s1512 + $0x48] sm:$0xff] %v1531
                  %v1533 = vld [vmem:[%s1511 + $0x140] sm:$0xff]
                  %1534 = vst [vmem:[%s1512 + $0x50] sm:$0xff] %v1533
                  %v1535 = vld [vmem:[%s1511 + $0x160] sm:$0xff]
                  %1536 = vst [vmem:[%s1512 + $0x58] sm:$0xff] %v1535
                  %v1537 = vld [vmem:[%s1511 + $0x180] sm:$0xff]
                  %1538 = vst [vmem:[%s1512 + $0x60] sm:$0xff] %v1537
                  %v1539 = vld [vmem:[%s1511 + $0x1a0] sm:$0xff]
                  %1540 = vst [vmem:[%s1512 + $0x68] sm:$0xff] %v1539
                  %v1541 = vld [vmem:[%s1511 + $0x1c0] sm:$0xff]
                  %1542 = vst [vmem:[%s1512 + $0x70] sm:$0xff] %v1541
                  %v1543 = vld [vmem:[%s1511 + $0x1e0] sm:$0xff]
                  %1544 = vst [vmem:[%s1512 + $0x78] sm:$0xff] %v1543
                  %v1545 = vld [vmem:[%s1511 + $0x200] sm:$0xff]
                  %1546 = vst [vmem:[%s1512 + $0x80] sm:$0xff] %v1545
                  %v1547 = vld [vmem:[%s1511 + $0x220] sm:$0xff]
                  %1548 = vst [vmem:[%s1512 + $0x88] sm:$0xff] %v1547
                  %v1549 = vld [vmem:[%s1511 + $0x240] sm:$0xff]
                  %1550 = vst [vmem:[%s1512 + $0x90] sm:$0xff] %v1549
                  %v1551 = vld [vmem:[%s1511 + $0x260] sm:$0xff]
                  %1552 = vst [vmem:[%s1512 + $0x98] sm:$0xff] %v1551
                  %v1553 = vld [vmem:[%s1511 + $0x280] sm:$0xff]
                  %1554 = vst [vmem:[%s1512 + $0xa0] sm:$0xff] %v1553
                  %v1555 = vld [vmem:[%s1511 + $0x2a0] sm:$0xff]
                  %1556 = vst [vmem:[%s1512 + $0xa8] sm:$0xff] %v1555
                  %v1557 = vld [vmem:[%s1511 + $0x2c0] sm:$0xff]
                  %1558 = vst [vmem:[%s1512 + $0xb0] sm:$0xff] %v1557
                  %v1559 = vld [vmem:[%s1511 + $0x2e0] sm:$0xff]
                  %1560 = vst [vmem:[%s1512 + $0xb8] sm:$0xff] %v1559
                  %v1561 = vld [vmem:[%s1511 + $0x300] sm:$0xff]
                  %1562 = vst [vmem:[%s1512 + $0xc0] sm:$0xff] %v1561
                  %v1563 = vld [vmem:[%s1511 + $0x320] sm:$0xff]
                  %1564 = vst [vmem:[%s1512 + $0xc8] sm:$0xff] %v1563
                  %v1565 = vld [vmem:[%s1511 + $0x340] sm:$0xff]
                  %1566 = vst [vmem:[%s1512 + $0xd0] sm:$0xff] %v1565
                  %v1567 = vld [vmem:[%s1511 + $0x360] sm:$0xff]
                  %1568 = vst [vmem:[%s1512 + $0xd8] sm:$0xff] %v1567
                  %v1569 = vld [vmem:[%s1511 + $0x380] sm:$0xff]
                  %1570 = vst [vmem:[%s1512 + $0xe0] sm:$0xff] %v1569
                  %v1571 = vld [vmem:[%s1511 + $0x3a0] sm:$0xff]
                  %1572 = vst [vmem:[%s1512 + $0xe8] sm:$0xff] %v1571
                  %v1573 = vld [vmem:[%s1511 + $0x3c0] sm:$0xff]
                  %1574 = vst [vmem:[%s1512 + $0xf0] sm:$0xff] %v1573
                  %v1575 = vld [vmem:[%s1511 + $0x3e0] sm:$0xff]
                  %1576 = vst [vmem:[%s1512 + $0xf8] sm:$0xff] %v1575
                  %v1577 = vld [vmem:[%s1511 + $0x400] sm:$0xff]
                  %1578 = vst [vmem:[%s1512 + $0x100] sm:$0xff] %v1577
                  %v1579 = vld [vmem:[%s1511 + $0x420] sm:$0xff]
                  %1580 = vst [vmem:[%s1512 + $0x108] sm:$0xff] %v1579
                  %v1581 = vld [vmem:[%s1511 + $0x440] sm:$0xff]
                  %1582 = vst [vmem:[%s1512 + $0x110] sm:$0xff] %v1581
                  %v1583 = vld [vmem:[%s1511 + $0x460] sm:$0xff]
                  %1584 = vst [vmem:[%s1512 + $0x118] sm:$0xff] %v1583
                  %v1585 = vld [vmem:[%s1511 + $0x480] sm:$0xff]
                  %1586 = vst [vmem:[%s1512 + $0x120] sm:$0xff] %v1585
                  %v1587 = vld [vmem:[%s1511 + $0x4a0] sm:$0xff]
                  %1588 = vst [vmem:[%s1512 + $0x128] sm:$0xff] %v1587
                  %v1589 = vld [vmem:[%s1511 + $0x4c0] sm:$0xff]
                  %1590 = vst [vmem:[%s1512 + $0x130] sm:$0xff] %v1589
                  %v1591 = vld [vmem:[%s1511 + $0x4e0] sm:$0xff]
                  %1592 = vst [vmem:[%s1512 + $0x138] sm:$0xff] %v1591
                  %v1593 = vld [vmem:[%s1511 + $0x500] sm:$0xff]
                  %1594 = vst [vmem:[%s1512 + $0x140] sm:$0xff] %v1593
                  %v1595 = vld [vmem:[%s1511 + $0x520] sm:$0xff]
                  %1596 = vst [vmem:[%s1512 + $0x148] sm:$0xff] %v1595
                  %v1597 = vld [vmem:[%s1511 + $0x540] sm:$0xff]
                  %1598 = vst [vmem:[%s1512 + $0x150] sm:$0xff] %v1597
                  %v1599 = vld [vmem:[%s1511 + $0x560] sm:$0xff]
                  %1600 = vst [vmem:[%s1512 + $0x158] sm:$0xff] %v1599
                  %v1601 = vld [vmem:[%s1511 + $0x580] sm:$0xff]
                  %1602 = vst [vmem:[%s1512 + $0x160] sm:$0xff] %v1601
                  %v1603 = vld [vmem:[%s1511 + $0x5a0] sm:$0xff]
                  %1604 = vst [vmem:[%s1512 + $0x168] sm:$0xff] %v1603
                  %v1605 = vld [vmem:[%s1511 + $0x5c0] sm:$0xff]
                  %1606 = vst [vmem:[%s1512 + $0x170] sm:$0xff] %v1605
                  %v1607 = vld [vmem:[%s1511 + $0x5e0] sm:$0xff]
                  %1608 = vst [vmem:[%s1512 + $0x178] sm:$0xff] %v1607
                  %v1609 = vld [vmem:[%s1511 + $0x600] sm:$0xff]
                  %1610 = vst [vmem:[%s1512 + $0x180] sm:$0xff] %v1609
                  %v1611 = vld [vmem:[%s1511 + $0x620] sm:$0xff]
                  %1612 = vst [vmem:[%s1512 + $0x188] sm:$0xff] %v1611
                  %v1613 = vld [vmem:[%s1511 + $0x640] sm:$0xff]
                  %1614 = vst [vmem:[%s1512 + $0x190] sm:$0xff] %v1613
                  %v1615 = vld [vmem:[%s1511 + $0x660] sm:$0xff]
                  %1616 = vst [vmem:[%s1512 + $0x198] sm:$0xff] %v1615
                  %v1617 = vld [vmem:[%s1511 + $0x680] sm:$0xff]
                  %1618 = vst [vmem:[%s1512 + $0x1a0] sm:$0xff] %v1617
                  %v1619 = vld [vmem:[%s1511 + $0x6a0] sm:$0xff]
                  %1620 = vst [vmem:[%s1512 + $0x1a8] sm:$0xff] %v1619
                  %v1621 = vld [vmem:[%s1511 + $0x6c0] sm:$0xff]
                  %1622 = vst [vmem:[%s1512 + $0x1b0] sm:$0xff] %v1621
                  %v1623 = vld [vmem:[%s1511 + $0x6e0] sm:$0xff]
                  %1624 = vst [vmem:[%s1512 + $0x1b8] sm:$0xff] %v1623
                  %v1625 = vld [vmem:[%s1511 + $0x700] sm:$0xff]
                  %1626 = vst [vmem:[%s1512 + $0x1c0] sm:$0xff] %v1625
                  %v1627 = vld [vmem:[%s1511 + $0x720] sm:$0xff]
                  %1628 = vst [vmem:[%s1512 + $0x1c8] sm:$0xff] %v1627
                  %v1629 = vld [vmem:[%s1511 + $0x740] sm:$0xff]
                  %1630 = vst [vmem:[%s1512 + $0x1d0] sm:$0xff] %v1629
                  %v1631 = vld [vmem:[%s1511 + $0x760] sm:$0xff]
                  %1632 = vst [vmem:[%s1512 + $0x1d8] sm:$0xff] %v1631
                  %v1633 = vld [vmem:[%s1511 + $0x780] sm:$0xff]
                  %1634 = vst [vmem:[%s1512 + $0x1e0] sm:$0xff] %v1633
                  %v1635 = vld [vmem:[%s1511 + $0x7a0] sm:$0xff]
                  %1636 = vst [vmem:[%s1512 + $0x1e8] sm:$0xff] %v1635
                  %v1637 = vld [vmem:[%s1511 + $0x7c0] sm:$0xff]
                  %1638 = vst [vmem:[%s1512 + $0x1f0] sm:$0xff] %v1637
                  %v1639 = vld [vmem:[%s1511 + $0x7e0] sm:$0xff]
                  %1640 = vst [vmem:[%s1512 + $0x1f8] sm:$0xff] %v1639
                  %v1641 = vld [vmem:[%s1511 + $0x800] sm:$0xff]
                  %1642 = vst [vmem:[%s1512 + $0x200] sm:$0xff] %v1641
                  %v1643 = vld [vmem:[%s1511 + $0x820] sm:$0xff]
                  %1644 = vst [vmem:[%s1512 + $0x208] sm:$0xff] %v1643
                  %v1645 = vld [vmem:[%s1511 + $0x840] sm:$0xff]
                  %1646 = vst [vmem:[%s1512 + $0x210] sm:$0xff] %v1645
                  %v1647 = vld [vmem:[%s1511 + $0x860] sm:$0xff]
                  %1648 = vst [vmem:[%s1512 + $0x218] sm:$0xff] %v1647
                  %v1649 = vld [vmem:[%s1511 + $0x880] sm:$0xff]
                  %1650 = vst [vmem:[%s1512 + $0x220] sm:$0xff] %v1649
                  %v1651 = vld [vmem:[%s1511 + $0x8a0] sm:$0xff]
                  %1652 = vst [vmem:[%s1512 + $0x228] sm:$0xff] %v1651
                  %v1653 = vld [vmem:[%s1511 + $0x8c0] sm:$0xff]
                  %1654 = vst [vmem:[%s1512 + $0x230] sm:$0xff] %v1653
                  %v1655 = vld [vmem:[%s1511 + $0x8e0] sm:$0xff]
                  %1656 = vst [vmem:[%s1512 + $0x238] sm:$0xff] %v1655
                  %v1657 = vld [vmem:[%s1511 + $0x900] sm:$0xff]
                  %1658 = vst [vmem:[%s1512 + $0x240] sm:$0xff] %v1657
                  %v1659 = vld [vmem:[%s1511 + $0x920] sm:$0xff]
                  %1660 = vst [vmem:[%s1512 + $0x248] sm:$0xff] %v1659
                  %v1661 = vld [vmem:[%s1511 + $0x940] sm:$0xff]
                  %1662 = vst [vmem:[%s1512 + $0x250] sm:$0xff] %v1661
                  %v1663 = vld [vmem:[%s1511 + $0x960] sm:$0xff]
                  %1664 = vst [vmem:[%s1512 + $0x258] sm:$0xff] %v1663
                  %v1665 = vld [vmem:[%s1511 + $0x980] sm:$0xff]
                  %1666 = vst [vmem:[%s1512 + $0x260] sm:$0xff] %v1665
                  %v1667 = vld [vmem:[%s1511 + $0x9a0] sm:$0xff]
                  %1668 = vst [vmem:[%s1512 + $0x268] sm:$0xff] %v1667
                  %v1669 = vld [vmem:[%s1511 + $0x9c0] sm:$0xff]
                  %1670 = vst [vmem:[%s1512 + $0x270] sm:$0xff] %v1669
                  %v1671 = vld [vmem:[%s1511 + $0x9e0] sm:$0xff]
                  %1672 = vst [vmem:[%s1512 + $0x278] sm:$0xff] %v1671
                  %v1673 = vld [vmem:[%s1511 + $0xa00] sm:$0xff]
                  %1674 = vst [vmem:[%s1512 + $0x280] sm:$0xff] %v1673
                  %v1675 = vld [vmem:[%s1511 + $0xa20] sm:$0xff]
                  %1676 = vst [vmem:[%s1512 + $0x288] sm:$0xff] %v1675
                  %v1677 = vld [vmem:[%s1511 + $0xa40] sm:$0xff]
                  %1678 = vst [vmem:[%s1512 + $0x290] sm:$0xff] %v1677
                  %v1679 = vld [vmem:[%s1511 + $0xa60] sm:$0xff]
                  %1680 = vst [vmem:[%s1512 + $0x298] sm:$0xff] %v1679
                  %v1681 = vld [vmem:[%s1511 + $0xa80] sm:$0xff]
                  %1682 = vst [vmem:[%s1512 + $0x2a0] sm:$0xff] %v1681
                  %v1683 = vld [vmem:[%s1511 + $0xaa0] sm:$0xff]
                  %1684 = vst [vmem:[%s1512 + $0x2a8] sm:$0xff] %v1683
                  %v1685 = vld [vmem:[%s1511 + $0xac0] sm:$0xff]
                  %1686 = vst [vmem:[%s1512 + $0x2b0] sm:$0xff] %v1685
                  %v1687 = vld [vmem:[%s1511 + $0xae0] sm:$0xff]
                  %1688 = vst [vmem:[%s1512 + $0x2b8] sm:$0xff] %v1687
                  %v1689 = vld [vmem:[%s1511 + $0xb00] sm:$0xff]
                  %1690 = vst [vmem:[%s1512 + $0x2c0] sm:$0xff] %v1689
                  %v1691 = vld [vmem:[%s1511 + $0xb20] sm:$0xff]
                  %1692 = vst [vmem:[%s1512 + $0x2c8] sm:$0xff] %v1691
                  %v1693 = vld [vmem:[%s1511 + $0xb40] sm:$0xff]
                  %1694 = vst [vmem:[%s1512 + $0x2d0] sm:$0xff] %v1693
                  %v1695 = vld [vmem:[%s1511 + $0xb60] sm:$0xff]
                  %1696 = vst [vmem:[%s1512 + $0x2d8] sm:$0xff] %v1695
                  %v1697 = vld [vmem:[%s1511 + $0xb80] sm:$0xff]
                  %1698 = vst [vmem:[%s1512 + $0x2e0] sm:$0xff] %v1697
                  %v1699 = vld [vmem:[%s1511 + $0xba0] sm:$0xff]
                  %1700 = vst [vmem:[%s1512 + $0x2e8] sm:$0xff] %v1699
                  %v1701 = vld [vmem:[%s1511 + $0xbc0] sm:$0xff]
                  %1702 = vst [vmem:[%s1512 + $0x2f0] sm:$0xff] %v1701
                  %v1703 = vld [vmem:[%s1511 + $0xbe0] sm:$0xff]
                  %1704 = vst [vmem:[%s1512 + $0x2f8] sm:$0xff] %v1703
                  %v1705 = vld [vmem:[%s1511 + $0xc00] sm:$0xff]
                  %1706 = vst [vmem:[%s1512 + $0x300] sm:$0xff] %v1705
                  %v1707 = vld [vmem:[%s1511 + $0xc20] sm:$0xff]
                  %1708 = vst [vmem:[%s1512 + $0x308] sm:$0xff] %v1707
                  %v1709 = vld [vmem:[%s1511 + $0xc40] sm:$0xff]
                  %1710 = vst [vmem:[%s1512 + $0x310] sm:$0xff] %v1709
                  %v1711 = vld [vmem:[%s1511 + $0xc60] sm:$0xff]
                  %1712 = vst [vmem:[%s1512 + $0x318] sm:$0xff] %v1711
                  %v1713 = vld [vmem:[%s1511 + $0xc80] sm:$0xff]
                  %1714 = vst [vmem:[%s1512 + $0x320] sm:$0xff] %v1713
                  %v1715 = vld [vmem:[%s1511 + $0xca0] sm:$0xff]
                  %1716 = vst [vmem:[%s1512 + $0x328] sm:$0xff] %v1715
                  %v1717 = vld [vmem:[%s1511 + $0xcc0] sm:$0xff]
                  %1718 = vst [vmem:[%s1512 + $0x330] sm:$0xff] %v1717
                  %v1719 = vld [vmem:[%s1511 + $0xce0] sm:$0xff]
                  %1720 = vst [vmem:[%s1512 + $0x338] sm:$0xff] %v1719
                  %v1721 = vld [vmem:[%s1511 + $0xd00] sm:$0xff]
                  %1722 = vst [vmem:[%s1512 + $0x340] sm:$0xff] %v1721
                  %v1723 = vld [vmem:[%s1511 + $0xd20] sm:$0xff]
                  %1724 = vst [vmem:[%s1512 + $0x348] sm:$0xff] %v1723
                  %v1725 = vld [vmem:[%s1511 + $0xd40] sm:$0xff]
                  %1726 = vst [vmem:[%s1512 + $0x350] sm:$0xff] %v1725
                  %v1727 = vld [vmem:[%s1511 + $0xd60] sm:$0xff]
                  %1728 = vst [vmem:[%s1512 + $0x358] sm:$0xff] %v1727
                  %v1729 = vld [vmem:[%s1511 + $0xd80] sm:$0xff]
                  %1730 = vst [vmem:[%s1512 + $0x360] sm:$0xff] %v1729
                  %v1731 = vld [vmem:[%s1511 + $0xda0] sm:$0xff]
                  %1732 = vst [vmem:[%s1512 + $0x368] sm:$0xff] %v1731
                  %v1733 = vld [vmem:[%s1511 + $0xdc0] sm:$0xff]
                  %1734 = vst [vmem:[%s1512 + $0x370] sm:$0xff] %v1733
                  %v1735 = vld [vmem:[%s1511 + $0xde0] sm:$0xff]
                  %1736 = vst [vmem:[%s1512 + $0x378] sm:$0xff] %v1735
                  %v1737 = vld [vmem:[%s1511 + $0xe00] sm:$0xff]
                  %1738 = vst [vmem:[%s1512 + $0x380] sm:$0xff] %v1737
                  %v1739 = vld [vmem:[%s1511 + $0xe20] sm:$0xff]
                  %1740 = vst [vmem:[%s1512 + $0x388] sm:$0xff] %v1739
                  %v1741 = vld [vmem:[%s1511 + $0xe40] sm:$0xff]
                  %1742 = vst [vmem:[%s1512 + $0x390] sm:$0xff] %v1741
                  %v1743 = vld [vmem:[%s1511 + $0xe60] sm:$0xff]
                  %1744 = vst [vmem:[%s1512 + $0x398] sm:$0xff] %v1743
                  %v1745 = vld [vmem:[%s1511 + $0xe80] sm:$0xff]
                  %1746 = vst [vmem:[%s1512 + $0x3a0] sm:$0xff] %v1745
                  %v1747 = vld [vmem:[%s1511 + $0xea0] sm:$0xff]
                  %1748 = vst [vmem:[%s1512 + $0x3a8] sm:$0xff] %v1747
                  %v1749 = vld [vmem:[%s1511 + $0xec0] sm:$0xff]
                  %1750 = vst [vmem:[%s1512 + $0x3b0] sm:$0xff] %v1749
                  %v1751 = vld [vmem:[%s1511 + $0xee0] sm:$0xff]
                  %1752 = vst [vmem:[%s1512 + $0x3b8] sm:$0xff] %v1751
                  %v1753 = vld [vmem:[%s1511 + $0xf00] sm:$0xff]
                  %1754 = vst [vmem:[%s1512 + $0x3c0] sm:$0xff] %v1753
                  %v1755 = vld [vmem:[%s1511 + $0xf20] sm:$0xff]
                  %1756 = vst [vmem:[%s1512 + $0x3c8] sm:$0xff] %v1755
                  %v1757 = vld [vmem:[%s1511 + $0xf40] sm:$0xff]
                  %1758 = vst [vmem:[%s1512 + $0x3d0] sm:$0xff] %v1757
                  %v1759 = vld [vmem:[%s1511 + $0xf60] sm:$0xff]
                  %1760 = vst [vmem:[%s1512 + $0x3d8] sm:$0xff] %v1759
                  %v1761 = vld [vmem:[%s1511 + $0xf80] sm:$0xff]
                  %1762 = vst [vmem:[%s1512 + $0x3e0] sm:$0xff] %v1761
                  %v1763 = vld [vmem:[%s1511 + $0xfa0] sm:$0xff]
                  %1764 = vst [vmem:[%s1512 + $0x3e8] sm:$0xff] %v1763
                  %v1765 = vld [vmem:[%s1511 + $0xfc0] sm:$0xff]
                  %1766 = vst [vmem:[%s1512 + $0x3f0] sm:$0xff] %v1765
                  %v1767 = vld [vmem:[%s1511 + $0xfe0] sm:$0xff]
                  %1768 = vst [vmem:[%s1512 + $0x3f8] sm:$0xff] %v1767
                  %v1769 = vld [vmem:[%s1511 + $0x1000] sm:$0xff]
                  %1770 = vst [vmem:[%s1512 + $0x400] sm:$0xff] %v1769
                  %v1771 = vld [vmem:[%s1511 + $0x1020] sm:$0xff]
                  %1772 = vst [vmem:[%s1512 + $0x408] sm:$0xff] %v1771
                  %v1773 = vld [vmem:[%s1511 + $0x1040] sm:$0xff]
                  %1774 = vst [vmem:[%s1512 + $0x410] sm:$0xff] %v1773
                  %v1775 = vld [vmem:[%s1511 + $0x1060] sm:$0xff]
                  %1776 = vst [vmem:[%s1512 + $0x418] sm:$0xff] %v1775
                  %v1777 = vld [vmem:[%s1511 + $0x1080] sm:$0xff]
                  %1778 = vst [vmem:[%s1512 + $0x420] sm:$0xff] %v1777
                  %v1779 = vld [vmem:[%s1511 + $0x10a0] sm:$0xff]
                  %1780 = vst [vmem:[%s1512 + $0x428] sm:$0xff] %v1779
                  %v1781 = vld [vmem:[%s1511 + $0x10c0] sm:$0xff]
                  %1782 = vst [vmem:[%s1512 + $0x430] sm:$0xff] %v1781
                  %v1783 = vld [vmem:[%s1511 + $0x10e0] sm:$0xff]
                  %1784 = vst [vmem:[%s1512 + $0x438] sm:$0xff] %v1783
                  %v1785 = vld [vmem:[%s1511 + $0x1100] sm:$0xff]
                  %1786 = vst [vmem:[%s1512 + $0x440] sm:$0xff] %v1785
                  %v1787 = vld [vmem:[%s1511 + $0x1120] sm:$0xff]
                  %1788 = vst [vmem:[%s1512 + $0x448] sm:$0xff] %v1787
                  %v1789 = vld [vmem:[%s1511 + $0x1140] sm:$0xff]
                  %1790 = vst [vmem:[%s1512 + $0x450] sm:$0xff] %v1789
                  %v1791 = vld [vmem:[%s1511 + $0x1160] sm:$0xff]
                  %1792 = vst [vmem:[%s1512 + $0x458] sm:$0xff] %v1791
                  %v1793 = vld [vmem:[%s1511 + $0x1180] sm:$0xff]
                  %1794 = vst [vmem:[%s1512 + $0x460] sm:$0xff] %v1793
                  %v1795 = vld [vmem:[%s1511 + $0x11a0] sm:$0xff]
                  %1796 = vst [vmem:[%s1512 + $0x468] sm:$0xff] %v1795
                  %v1797 = vld [vmem:[%s1511 + $0x11c0] sm:$0xff]
                  %1798 = vst [vmem:[%s1512 + $0x470] sm:$0xff] %v1797
                  %v1799 = vld [vmem:[%s1511 + $0x11e0] sm:$0xff]
                  %1800 = vst [vmem:[%s1512 + $0x478] sm:$0xff] %v1799
                  %v1801 = vld [vmem:[%s1511 + $0x1200] sm:$0xff]
                  %1802 = vst [vmem:[%s1512 + $0x480] sm:$0xff] %v1801
                  %v1803 = vld [vmem:[%s1511 + $0x1220] sm:$0xff]
                  %1804 = vst [vmem:[%s1512 + $0x488] sm:$0xff] %v1803
                  %v1805 = vld [vmem:[%s1511 + $0x1240] sm:$0xff]
                  %1806 = vst [vmem:[%s1512 + $0x490] sm:$0xff] %v1805
                  %v1807 = vld [vmem:[%s1511 + $0x1260] sm:$0xff]
                  %1808 = vst [vmem:[%s1512 + $0x498] sm:$0xff] %v1807
                  %v1809 = vld [vmem:[%s1511 + $0x1280] sm:$0xff]
                  %1810 = vst [vmem:[%s1512 + $0x4a0] sm:$0xff] %v1809
                  %v1811 = vld [vmem:[%s1511 + $0x12a0] sm:$0xff]
                  %1812 = vst [vmem:[%s1512 + $0x4a8] sm:$0xff] %v1811
                  %v1813 = vld [vmem:[%s1511 + $0x12c0] sm:$0xff]
                  %1814 = vst [vmem:[%s1512 + $0x4b0] sm:$0xff] %v1813
                  %v1815 = vld [vmem:[%s1511 + $0x12e0] sm:$0xff]
                  %1816 = vst [vmem:[%s1512 + $0x4b8] sm:$0xff] %v1815
                  %v1817 = vld [vmem:[%s1511 + $0x1300] sm:$0xff]
                  %1818 = vst [vmem:[%s1512 + $0x4c0] sm:$0xff] %v1817
                  %v1819 = vld [vmem:[%s1511 + $0x1320] sm:$0xff]
                  %1820 = vst [vmem:[%s1512 + $0x4c8] sm:$0xff] %v1819
                  %v1821 = vld [vmem:[%s1511 + $0x1340] sm:$0xff]
                  %1822 = vst [vmem:[%s1512 + $0x4d0] sm:$0xff] %v1821
                  %v1823 = vld [vmem:[%s1511 + $0x1360] sm:$0xff]
                  %1824 = vst [vmem:[%s1512 + $0x4d8] sm:$0xff] %v1823
                  %v1825 = vld [vmem:[%s1511 + $0x1380] sm:$0xff]
                  %1826 = vst [vmem:[%s1512 + $0x4e0] sm:$0xff] %v1825
                  %v1827 = vld [vmem:[%s1511 + $0x13a0] sm:$0xff]
                  %1828 = vst [vmem:[%s1512 + $0x4e8] sm:$0xff] %v1827
                  %v1829 = vld [vmem:[%s1511 + $0x13c0] sm:$0xff]
                  %1830 = vst [vmem:[%s1512 + $0x4f0] sm:$0xff] %v1829
                  %v1831 = vld [vmem:[%s1511 + $0x13e0] sm:$0xff]
                  %1832 = vst [vmem:[%s1512 + $0x4f8] sm:$0xff] %v1831
                  %v1833 = vld [vmem:[%s1511 + $0x1400] sm:$0xff]
                  %1834 = vst [vmem:[%s1512 + $0x500] sm:$0xff] %v1833
                  %v1835 = vld [vmem:[%s1511 + $0x1420] sm:$0xff]
                  %1836 = vst [vmem:[%s1512 + $0x508] sm:$0xff] %v1835
                  %v1837 = vld [vmem:[%s1511 + $0x1440] sm:$0xff]
                  %1838 = vst [vmem:[%s1512 + $0x510] sm:$0xff] %v1837
                  %v1839 = vld [vmem:[%s1511 + $0x1460] sm:$0xff]
                  %1840 = vst [vmem:[%s1512 + $0x518] sm:$0xff] %v1839
                  %v1841 = vld [vmem:[%s1511 + $0x1480] sm:$0xff]
                  %1842 = vst [vmem:[%s1512 + $0x520] sm:$0xff] %v1841
                  %v1843 = vld [vmem:[%s1511 + $0x14a0] sm:$0xff]
                  %1844 = vst [vmem:[%s1512 + $0x528] sm:$0xff] %v1843
                  %v1845 = vld [vmem:[%s1511 + $0x14c0] sm:$0xff]
                  %1846 = vst [vmem:[%s1512 + $0x530] sm:$0xff] %v1845
                  %v1847 = vld [vmem:[%s1511 + $0x14e0] sm:$0xff]
                  %1848 = vst [vmem:[%s1512 + $0x538] sm:$0xff] %v1847
                  %v1849 = vld [vmem:[%s1511 + $0x1500] sm:$0xff]
                  %1850 = vst [vmem:[%s1512 + $0x540] sm:$0xff] %v1849
                  %v1851 = vld [vmem:[%s1511 + $0x1520] sm:$0xff]
                  %1852 = vst [vmem:[%s1512 + $0x548] sm:$0xff] %v1851
                  %v1853 = vld [vmem:[%s1511 + $0x1540] sm:$0xff]
                  %1854 = vst [vmem:[%s1512 + $0x550] sm:$0xff] %v1853
                  %v1855 = vld [vmem:[%s1511 + $0x1560] sm:$0xff]
                  %1856 = vst [vmem:[%s1512 + $0x558] sm:$0xff] %v1855
                  %v1857 = vld [vmem:[%s1511 + $0x1580] sm:$0xff]
                  %1858 = vst [vmem:[%s1512 + $0x560] sm:$0xff] %v1857
                  %v1859 = vld [vmem:[%s1511 + $0x15a0] sm:$0xff]
                  %1860 = vst [vmem:[%s1512 + $0x568] sm:$0xff] %v1859
                  %v1861 = vld [vmem:[%s1511 + $0x15c0] sm:$0xff]
                  %1862 = vst [vmem:[%s1512 + $0x570] sm:$0xff] %v1861
                  %v1863 = vld [vmem:[%s1511 + $0x15e0] sm:$0xff]
                  %1864 = vst [vmem:[%s1512 + $0x578] sm:$0xff] %v1863
                  %v1865 = vld [vmem:[%s1511 + $0x1600] sm:$0xff]
                  %1866 = vst [vmem:[%s1512 + $0x580] sm:$0xff] %v1865
                  %v1867 = vld [vmem:[%s1511 + $0x1620] sm:$0xff]
                  %1868 = vst [vmem:[%s1512 + $0x588] sm:$0xff] %v1867
                  %v1869 = vld [vmem:[%s1511 + $0x1640] sm:$0xff]
                  %1870 = vst [vmem:[%s1512 + $0x590] sm:$0xff] %v1869
                  %v1871 = vld [vmem:[%s1511 + $0x1660] sm:$0xff]
                  %1872 = vst [vmem:[%s1512 + $0x598] sm:$0xff] %v1871
                  %v1873 = vld [vmem:[%s1511 + $0x1680] sm:$0xff]
                  %1874 = vst [vmem:[%s1512 + $0x5a0] sm:$0xff] %v1873
                  %v1875 = vld [vmem:[%s1511 + $0x16a0] sm:$0xff]
                  %1876 = vst [vmem:[%s1512 + $0x5a8] sm:$0xff] %v1875
                  %v1877 = vld [vmem:[%s1511 + $0x16c0] sm:$0xff]
                  %1878 = vst [vmem:[%s1512 + $0x5b0] sm:$0xff] %v1877
                  %v1879 = vld [vmem:[%s1511 + $0x16e0] sm:$0xff]
                  %1880 = vst [vmem:[%s1512 + $0x5b8] sm:$0xff] %v1879
                  %v1881 = vld [vmem:[%s1511 + $0x1700] sm:$0xff]
                  %1882 = vst [vmem:[%s1512 + $0x5c0] sm:$0xff] %v1881
                  %v1883 = vld [vmem:[%s1511 + $0x1720] sm:$0xff]
                  %1884 = vst [vmem:[%s1512 + $0x5c8] sm:$0xff] %v1883
                  %v1885 = vld [vmem:[%s1511 + $0x1740] sm:$0xff]
                  %1886 = vst [vmem:[%s1512 + $0x5d0] sm:$0xff] %v1885
                  %v1887 = vld [vmem:[%s1511 + $0x1760] sm:$0xff]
                  %1888 = vst [vmem:[%s1512 + $0x5d8] sm:$0xff] %v1887
                  %v1889 = vld [vmem:[%s1511 + $0x1780] sm:$0xff]
                  %1890 = vst [vmem:[%s1512 + $0x5e0] sm:$0xff] %v1889
                  %v1891 = vld [vmem:[%s1511 + $0x17a0] sm:$0xff]
                  %1892 = vst [vmem:[%s1512 + $0x5e8] sm:$0xff] %v1891
                  %v1893 = vld [vmem:[%s1511 + $0x17c0] sm:$0xff]
                  %1894 = vst [vmem:[%s1512 + $0x5f0] sm:$0xff] %v1893
                  %v1895 = vld [vmem:[%s1511 + $0x17e0] sm:$0xff]
                  %1896 = vst [vmem:[%s1512 + $0x5f8] sm:$0xff] %v1895
                  %v1897 = vld [vmem:[%s1511 + $0x1800] sm:$0xff]
                  %1898 = vst [vmem:[%s1512 + $0x600] sm:$0xff] %v1897
                  %v1899 = vld [vmem:[%s1511 + $0x1820] sm:$0xff]
                  %1900 = vst [vmem:[%s1512 + $0x608] sm:$0xff] %v1899
                  %v1901 = vld [vmem:[%s1511 + $0x1840] sm:$0xff]
                  %1902 = vst [vmem:[%s1512 + $0x610] sm:$0xff] %v1901
                  %v1903 = vld [vmem:[%s1511 + $0x1860] sm:$0xff]
                  %1904 = vst [vmem:[%s1512 + $0x618] sm:$0xff] %v1903
                  %v1905 = vld [vmem:[%s1511 + $0x1880] sm:$0xff]
                  %1906 = vst [vmem:[%s1512 + $0x620] sm:$0xff] %v1905
                  %v1907 = vld [vmem:[%s1511 + $0x18a0] sm:$0xff]
                  %1908 = vst [vmem:[%s1512 + $0x628] sm:$0xff] %v1907
                  %v1909 = vld [vmem:[%s1511 + $0x18c0] sm:$0xff]
                  %1910 = vst [vmem:[%s1512 + $0x630] sm:$0xff] %v1909
                  %v1911 = vld [vmem:[%s1511 + $0x18e0] sm:$0xff]
                  %1912 = vst [vmem:[%s1512 + $0x638] sm:$0xff] %v1911
                  %v1913 = vld [vmem:[%s1511 + $0x1900] sm:$0xff]
                  %1914 = vst [vmem:[%s1512 + $0x640] sm:$0xff] %v1913
                  %v1915 = vld [vmem:[%s1511 + $0x1920] sm:$0xff]
                  %1916 = vst [vmem:[%s1512 + $0x648] sm:$0xff] %v1915
                  %v1917 = vld [vmem:[%s1511 + $0x1940] sm:$0xff]
                  %1918 = vst [vmem:[%s1512 + $0x650] sm:$0xff] %v1917
                  %v1919 = vld [vmem:[%s1511 + $0x1960] sm:$0xff]
                  %1920 = vst [vmem:[%s1512 + $0x658] sm:$0xff] %v1919
                  %v1921 = vld [vmem:[%s1511 + $0x1980] sm:$0xff]
                  %1922 = vst [vmem:[%s1512 + $0x660] sm:$0xff] %v1921
                  %v1923 = vld [vmem:[%s1511 + $0x19a0] sm:$0xff]
                  %1924 = vst [vmem:[%s1512 + $0x668] sm:$0xff] %v1923
                  %v1925 = vld [vmem:[%s1511 + $0x19c0] sm:$0xff]
                  %1926 = vst [vmem:[%s1512 + $0x670] sm:$0xff] %v1925
                  %v1927 = vld [vmem:[%s1511 + $0x19e0] sm:$0xff]
                  %1928 = vst [vmem:[%s1512 + $0x678] sm:$0xff] %v1927
                  %v1929 = vld [vmem:[%s1511 + $0x1a00] sm:$0xff]
                  %1930 = vst [vmem:[%s1512 + $0x680] sm:$0xff] %v1929
                  %v1931 = vld [vmem:[%s1511 + $0x1a20] sm:$0xff]
                  %1932 = vst [vmem:[%s1512 + $0x688] sm:$0xff] %v1931
                  %v1933 = vld [vmem:[%s1511 + $0x1a40] sm:$0xff]
                  %1934 = vst [vmem:[%s1512 + $0x690] sm:$0xff] %v1933
                  %v1935 = vld [vmem:[%s1511 + $0x1a60] sm:$0xff]
                  %1936 = vst [vmem:[%s1512 + $0x698] sm:$0xff] %v1935
                  %v1937 = vld [vmem:[%s1511 + $0x1a80] sm:$0xff]
                  %1938 = vst [vmem:[%s1512 + $0x6a0] sm:$0xff] %v1937
                  %v1939 = vld [vmem:[%s1511 + $0x1aa0] sm:$0xff]
                  %1940 = vst [vmem:[%s1512 + $0x6a8] sm:$0xff] %v1939
                  %v1941 = vld [vmem:[%s1511 + $0x1ac0] sm:$0xff]
                  %1942 = vst [vmem:[%s1512 + $0x6b0] sm:$0xff] %v1941
                  %v1943 = vld [vmem:[%s1511 + $0x1ae0] sm:$0xff]
                  %1944 = vst [vmem:[%s1512 + $0x6b8] sm:$0xff] %v1943
                  %v1945 = vld [vmem:[%s1511 + $0x1b00] sm:$0xff]
                  %1946 = vst [vmem:[%s1512 + $0x6c0] sm:$0xff] %v1945
                  %v1947 = vld [vmem:[%s1511 + $0x1b20] sm:$0xff]
                  %1948 = vst [vmem:[%s1512 + $0x6c8] sm:$0xff] %v1947
                  %v1949 = vld [vmem:[%s1511 + $0x1b40] sm:$0xff]
                  %1950 = vst [vmem:[%s1512 + $0x6d0] sm:$0xff] %v1949
                  %v1951 = vld [vmem:[%s1511 + $0x1b60] sm:$0xff]
                  %1952 = vst [vmem:[%s1512 + $0x6d8] sm:$0xff] %v1951
                  %v1953 = vld [vmem:[%s1511 + $0x1b80] sm:$0xff]
                  %1954 = vst [vmem:[%s1512 + $0x6e0] sm:$0xff] %v1953
                  %v1955 = vld [vmem:[%s1511 + $0x1ba0] sm:$0xff]
                  %1956 = vst [vmem:[%s1512 + $0x6e8] sm:$0xff] %v1955
                  %v1957 = vld [vmem:[%s1511 + $0x1bc0] sm:$0xff]
                  %1958 = vst [vmem:[%s1512 + $0x6f0] sm:$0xff] %v1957
                  %v1959 = vld [vmem:[%s1511 + $0x1be0] sm:$0xff]
                  %1960 = vst [vmem:[%s1512 + $0x6f8] sm:$0xff] %v1959
                  %v1961 = vld [vmem:[%s1511 + $0x1c00] sm:$0xff]
                  %1962 = vst [vmem:[%s1512 + $0x700] sm:$0xff] %v1961
                  %v1963 = vld [vmem:[%s1511 + $0x1c20] sm:$0xff]
                  %1964 = vst [vmem:[%s1512 + $0x708] sm:$0xff] %v1963
                  %v1965 = vld [vmem:[%s1511 + $0x1c40] sm:$0xff]
                  %1966 = vst [vmem:[%s1512 + $0x710] sm:$0xff] %v1965
                  %v1967 = vld [vmem:[%s1511 + $0x1c60] sm:$0xff]
                  %1968 = vst [vmem:[%s1512 + $0x718] sm:$0xff] %v1967
                  %v1969 = vld [vmem:[%s1511 + $0x1c80] sm:$0xff]
                  %1970 = vst [vmem:[%s1512 + $0x720] sm:$0xff] %v1969
                  %v1971 = vld [vmem:[%s1511 + $0x1ca0] sm:$0xff]
                  %1972 = vst [vmem:[%s1512 + $0x728] sm:$0xff] %v1971
                  %v1973 = vld [vmem:[%s1511 + $0x1cc0] sm:$0xff]
                  %1974 = vst [vmem:[%s1512 + $0x730] sm:$0xff] %v1973
                  %v1975 = vld [vmem:[%s1511 + $0x1ce0] sm:$0xff]
                  %1976 = vst [vmem:[%s1512 + $0x738] sm:$0xff] %v1975
                  %v1977 = vld [vmem:[%s1511 + $0x1d00] sm:$0xff]
                  %1978 = vst [vmem:[%s1512 + $0x740] sm:$0xff] %v1977
                  %v1979 = vld [vmem:[%s1511 + $0x1d20] sm:$0xff]
                  %1980 = vst [vmem:[%s1512 + $0x748] sm:$0xff] %v1979
                  %v1981 = vld [vmem:[%s1511 + $0x1d40] sm:$0xff]
                  %1982 = vst [vmem:[%s1512 + $0x750] sm:$0xff] %v1981
                  %v1983 = vld [vmem:[%s1511 + $0x1d60] sm:$0xff]
                  %1984 = vst [vmem:[%s1512 + $0x758] sm:$0xff] %v1983
                  %v1985 = vld [vmem:[%s1511 + $0x1d80] sm:$0xff]
                  %1986 = vst [vmem:[%s1512 + $0x760] sm:$0xff] %v1985
                  %v1987 = vld [vmem:[%s1511 + $0x1da0] sm:$0xff]
                  %1988 = vst [vmem:[%s1512 + $0x768] sm:$0xff] %v1987
                  %v1989 = vld [vmem:[%s1511 + $0x1dc0] sm:$0xff]
                  %1990 = vst [vmem:[%s1512 + $0x770] sm:$0xff] %v1989
                  %v1991 = vld [vmem:[%s1511 + $0x1de0] sm:$0xff]
                  %1992 = vst [vmem:[%s1512 + $0x778] sm:$0xff] %v1991
                  %v1993 = vld [vmem:[%s1511 + $0x1e00] sm:$0xff]
                  %1994 = vst [vmem:[%s1512 + $0x780] sm:$0xff] %v1993
                  %v1995 = vld [vmem:[%s1511 + $0x1e20] sm:$0xff]
                  %1996 = vst [vmem:[%s1512 + $0x788] sm:$0xff] %v1995
                  %v1997 = vld [vmem:[%s1511 + $0x1e40] sm:$0xff]
                  %1998 = vst [vmem:[%s1512 + $0x790] sm:$0xff] %v1997
                  %v1999 = vld [vmem:[%s1511 + $0x1e60] sm:$0xff]
                  %2000 = vst [vmem:[%s1512 + $0x798] sm:$0xff] %v1999
                  %v2001 = vld [vmem:[%s1511 + $0x1e80] sm:$0xff]
                  %2002 = vst [vmem:[%s1512 + $0x7a0] sm:$0xff] %v2001
                  %v2003 = vld [vmem:[%s1511 + $0x1ea0] sm:$0xff]
                  %2004 = vst [vmem:[%s1512 + $0x7a8] sm:$0xff] %v2003
                  %v2005 = vld [vmem:[%s1511 + $0x1ec0] sm:$0xff]
                  %2006 = vst [vmem:[%s1512 + $0x7b0] sm:$0xff] %v2005
                  %v2007 = vld [vmem:[%s1511 + $0x1ee0] sm:$0xff]
                  %2008 = vst [vmem:[%s1512 + $0x7b8] sm:$0xff] %v2007
                  %v2009 = vld [vmem:[%s1511 + $0x1f00] sm:$0xff]
                  %2010 = vst [vmem:[%s1512 + $0x7c0] sm:$0xff] %v2009
                  %v2011 = vld [vmem:[%s1511 + $0x1f20] sm:$0xff]
                  %2012 = vst [vmem:[%s1512 + $0x7c8] sm:$0xff] %v2011
                  %v2013 = vld [vmem:[%s1511 + $0x1f40] sm:$0xff]
                  %2014 = vst [vmem:[%s1512 + $0x7d0] sm:$0xff] %v2013
                  %v2015 = vld [vmem:[%s1511 + $0x1f60] sm:$0xff]
                  %2016 = vst [vmem:[%s1512 + $0x7d8] sm:$0xff] %v2015
                  %v2017 = vld [vmem:[%s1511 + $0x1f80] sm:$0xff]
                  %2018 = vst [vmem:[%s1512 + $0x7e0] sm:$0xff] %v2017
                  %v2019 = vld [vmem:[%s1511 + $0x1fa0] sm:$0xff]
                  %2020 = vst [vmem:[%s1512 + $0x7e8] sm:$0xff] %v2019
                  %v2021 = vld [vmem:[%s1511 + $0x1fc0] sm:$0xff]
                  %2022 = vst [vmem:[%s1512 + $0x7f0] sm:$0xff] %v2021
                  %v2023 = vld [vmem:[%s1511 + $0x1fe0] sm:$0xff]
                  %2024 = vst [vmem:[%s1512 + $0x7f8] sm:$0xff] %v2023
                  %v2025 = vld [vmem:[%s1511 + $0x2000] sm:$0xff]
                  %2026 = vst [vmem:[%s1512 + $0x800] sm:$0xff] %v2025
                  %v2027 = vld [vmem:[%s1511 + $0x2020] sm:$0xff]
                  %2028 = vst [vmem:[%s1512 + $0x808] sm:$0xff] %v2027
                  %v2029 = vld [vmem:[%s1511 + $0x2040] sm:$0xff]
                  %2030 = vst [vmem:[%s1512 + $0x810] sm:$0xff] %v2029
                  %v2031 = vld [vmem:[%s1511 + $0x2060] sm:$0xff]
                  %2032 = vst [vmem:[%s1512 + $0x818] sm:$0xff] %v2031
                  %v2033 = vld [vmem:[%s1511 + $0x2080] sm:$0xff]
                  %2034 = vst [vmem:[%s1512 + $0x820] sm:$0xff] %v2033
                  %v2035 = vld [vmem:[%s1511 + $0x20a0] sm:$0xff]
                  %2036 = vst [vmem:[%s1512 + $0x828] sm:$0xff] %v2035
                  %v2037 = vld [vmem:[%s1511 + $0x20c0] sm:$0xff]
                  %2038 = vst [vmem:[%s1512 + $0x830] sm:$0xff] %v2037
                  %v2039 = vld [vmem:[%s1511 + $0x20e0] sm:$0xff]
                  %2040 = vst [vmem:[%s1512 + $0x838] sm:$0xff] %v2039
                  %v2041 = vld [vmem:[%s1511 + $0x2100] sm:$0xff]
                  %2042 = vst [vmem:[%s1512 + $0x840] sm:$0xff] %v2041
                  %v2043 = vld [vmem:[%s1511 + $0x2120] sm:$0xff]
                  %2044 = vst [vmem:[%s1512 + $0x848] sm:$0xff] %v2043
                  %v2045 = vld [vmem:[%s1511 + $0x2140] sm:$0xff]
                  %2046 = vst [vmem:[%s1512 + $0x850] sm:$0xff] %v2045
                  %v2047 = vld [vmem:[%s1511 + $0x2160] sm:$0xff]
                  %2048 = vst [vmem:[%s1512 + $0x858] sm:$0xff] %v2047
                  %v2049 = vld [vmem:[%s1511 + $0x2180] sm:$0xff]
                  %2050 = vst [vmem:[%s1512 + $0x860] sm:$0xff] %v2049
                  %v2051 = vld [vmem:[%s1511 + $0x21a0] sm:$0xff]
                  %2052 = vst [vmem:[%s1512 + $0x868] sm:$0xff] %v2051
                  %v2053 = vld [vmem:[%s1511 + $0x21c0] sm:$0xff]
                  %2054 = vst [vmem:[%s1512 + $0x870] sm:$0xff] %v2053
                  %v2055 = vld [vmem:[%s1511 + $0x21e0] sm:$0xff]
                  %2056 = vst [vmem:[%s1512 + $0x878] sm:$0xff] %v2055
                  %v2057 = vld [vmem:[%s1511 + $0x2200] sm:$0xff]
                  %2058 = vst [vmem:[%s1512 + $0x880] sm:$0xff] %v2057
                  %v2059 = vld [vmem:[%s1511 + $0x2220] sm:$0xff]
                  %2060 = vst [vmem:[%s1512 + $0x888] sm:$0xff] %v2059
                  %v2061 = vld [vmem:[%s1511 + $0x2240] sm:$0xff]
                  %2062 = vst [vmem:[%s1512 + $0x890] sm:$0xff] %v2061
                  %v2063 = vld [vmem:[%s1511 + $0x2260] sm:$0xff]
                  %2064 = vst [vmem:[%s1512 + $0x898] sm:$0xff] %v2063
                  %v2065 = vld [vmem:[%s1511 + $0x2280] sm:$0xff]
                  %2066 = vst [vmem:[%s1512 + $0x8a0] sm:$0xff] %v2065
                  %v2067 = vld [vmem:[%s1511 + $0x22a0] sm:$0xff]
                  %2068 = vst [vmem:[%s1512 + $0x8a8] sm:$0xff] %v2067
                  %v2069 = vld [vmem:[%s1511 + $0x22c0] sm:$0xff]
                  %2070 = vst [vmem:[%s1512 + $0x8b0] sm:$0xff] %v2069
                  %v2071 = vld [vmem:[%s1511 + $0x22e0] sm:$0xff]
                  %2072 = vst [vmem:[%s1512 + $0x8b8] sm:$0xff] %v2071
                  %v2073 = vld [vmem:[%s1511 + $0x2300] sm:$0xff]
                  %2074 = vst [vmem:[%s1512 + $0x8c0] sm:$0xff] %v2073
                  %v2075 = vld [vmem:[%s1511 + $0x2320] sm:$0xff]
                  %2076 = vst [vmem:[%s1512 + $0x8c8] sm:$0xff] %v2075
                  %v2077 = vld [vmem:[%s1511 + $0x2340] sm:$0xff]
                  %2078 = vst [vmem:[%s1512 + $0x8d0] sm:$0xff] %v2077
                  %v2079 = vld [vmem:[%s1511 + $0x2360] sm:$0xff]
                  %2080 = vst [vmem:[%s1512 + $0x8d8] sm:$0xff] %v2079
                  %v2081 = vld [vmem:[%s1511 + $0x2380] sm:$0xff]
                  %2082 = vst [vmem:[%s1512 + $0x8e0] sm:$0xff] %v2081
                  %v2083 = vld [vmem:[%s1511 + $0x23a0] sm:$0xff]
                  %2084 = vst [vmem:[%s1512 + $0x8e8] sm:$0xff] %v2083
                  %v2085 = vld [vmem:[%s1511 + $0x23c0] sm:$0xff]
                  %2086 = vst [vmem:[%s1512 + $0x8f0] sm:$0xff] %v2085
                  %v2087 = vld [vmem:[%s1511 + $0x23e0] sm:$0xff]
                  %2088 = vst [vmem:[%s1512 + $0x8f8] sm:$0xff] %v2087
                  %v2089 = vld [vmem:[%s1511 + $0x2400] sm:$0xff]
                  %2090 = vst [vmem:[%s1512 + $0x900] sm:$0xff] %v2089
                  %v2091 = vld [vmem:[%s1511 + $0x2420] sm:$0xff]
                  %2092 = vst [vmem:[%s1512 + $0x908] sm:$0xff] %v2091
                  %v2093 = vld [vmem:[%s1511 + $0x2440] sm:$0xff]
                  %2094 = vst [vmem:[%s1512 + $0x910] sm:$0xff] %v2093
                  %v2095 = vld [vmem:[%s1511 + $0x2460] sm:$0xff]
                  %2096 = vst [vmem:[%s1512 + $0x918] sm:$0xff] %v2095
                  %v2097 = vld [vmem:[%s1511 + $0x2480] sm:$0xff]
                  %2098 = vst [vmem:[%s1512 + $0x920] sm:$0xff] %v2097
                  %v2099 = vld [vmem:[%s1511 + $0x24a0] sm:$0xff]
                  %2100 = vst [vmem:[%s1512 + $0x928] sm:$0xff] %v2099
                  %v2101 = vld [vmem:[%s1511 + $0x24c0] sm:$0xff]
                  %2102 = vst [vmem:[%s1512 + $0x930] sm:$0xff] %v2101
                  %v2103 = vld [vmem:[%s1511 + $0x24e0] sm:$0xff]
                  %2104 = vst [vmem:[%s1512 + $0x938] sm:$0xff] %v2103
                  %v2105 = vld [vmem:[%s1511 + $0x2500] sm:$0xff]
                  %2106 = vst [vmem:[%s1512 + $0x940] sm:$0xff] %v2105
                  %v2107 = vld [vmem:[%s1511 + $0x2520] sm:$0xff]
                  %2108 = vst [vmem:[%s1512 + $0x948] sm:$0xff] %v2107
                  %v2109 = vld [vmem:[%s1511 + $0x2540] sm:$0xff]
                  %2110 = vst [vmem:[%s1512 + $0x950] sm:$0xff] %v2109
                  %v2111 = vld [vmem:[%s1511 + $0x2560] sm:$0xff]
                  %2112 = vst [vmem:[%s1512 + $0x958] sm:$0xff] %v2111
                  %v2113 = vld [vmem:[%s1511 + $0x2580] sm:$0xff]
                  %2114 = vst [vmem:[%s1512 + $0x960] sm:$0xff] %v2113
                  %v2115 = vld [vmem:[%s1511 + $0x25a0] sm:$0xff]
                  %2116 = vst [vmem:[%s1512 + $0x968] sm:$0xff] %v2115
                  %v2117 = vld [vmem:[%s1511 + $0x25c0] sm:$0xff]
                  %2118 = vst [vmem:[%s1512 + $0x970] sm:$0xff] %v2117
                  %v2119 = vld [vmem:[%s1511 + $0x25e0] sm:$0xff]
                  %2120 = vst [vmem:[%s1512 + $0x978] sm:$0xff] %v2119
                  %v2121 = vld [vmem:[%s1511 + $0x2600] sm:$0xff]
                  %2122 = vst [vmem:[%s1512 + $0x980] sm:$0xff] %v2121
                  %v2123 = vld [vmem:[%s1511 + $0x2620] sm:$0xff]
                  %2124 = vst [vmem:[%s1512 + $0x988] sm:$0xff] %v2123
                  %v2125 = vld [vmem:[%s1511 + $0x2640] sm:$0xff]
                  %2126 = vst [vmem:[%s1512 + $0x990] sm:$0xff] %v2125
                  %s2127 = sadd.s32 1, %s1510
                  %p2128 = scmp.ge.s32.totalorder %s2127, 1
                  %s2129 = scalar_select %p2128, 0, %s2127
                  %s2130 = smul.u32 %s2129, 8
                  %s2131 = smul.u32 %s2129, 8
                  %s2132 = scalar_lea.vmem %s237, %s2130
                  %s2133 = scalar_lea.vmem %s234, %s2131 [#allocation3]
                $region75: #{net_forward.5} parent=69 // loop_footer
                  %s1509 = sadd.s32 1, %s1505
                $region76: #{net_forward.5} parent=69 // loop_footer_branch
                  %1504 = sbr.rel target = $region72
                $region77: #{net_forward.5} parent=69 // loop_exit
                  _
                %s2135 = ssub.s32 1, 1
                loop: start=0, step=1, limit=1
                $region78: #{net_forward.5} parent=69 // loop_pre_header
                  _
                $region79: #{net_forward.5} parent=69 // loop_header
                  %s2137 = sphi 0, %s2141
                  %p2138 = scmp.ge.s32.totalorder %s2137, 1
                  %s2142 = sphi %s1502, %s1502
                  %s2143 = sphi %s1503, %s1503
                $region80: #{net_forward.5} parent=69 // loop_header_branch
                  %2140 = sbr.rel (%p2138) target = $region84
                $region81: #{net_forward.5} parent=69 // loop_body
                  %v2144 = vld [vmem:[%s2142] sm:%s2135]
                  %2145 = vst [vmem:[%s2143] sm:%s2135] %v2144
                  %v2146 = vld [vmem:[%s2142 + $0x20] sm:%s2135]
                  %2147 = vst [vmem:[%s2143 + $0x8] sm:%s2135] %v2146
                  %v2148 = vld [vmem:[%s2142 + $0x40] sm:%s2135]
                  %2149 = vst [vmem:[%s2143 + $0x10] sm:%s2135] %v2148
                  %v2150 = vld [vmem:[%s2142 + $0x60] sm:%s2135]
                  %2151 = vst [vmem:[%s2143 + $0x18] sm:%s2135] %v2150
                  %v2152 = vld [vmem:[%s2142 + $0x80] sm:%s2135]
                  %2153 = vst [vmem:[%s2143 + $0x20] sm:%s2135] %v2152
                  %v2154 = vld [vmem:[%s2142 + $0xa0] sm:%s2135]
                  %2155 = vst [vmem:[%s2143 + $0x28] sm:%s2135] %v2154
                  %v2156 = vld [vmem:[%s2142 + $0xc0] sm:%s2135]
                  %2157 = vst [vmem:[%s2143 + $0x30] sm:%s2135] %v2156
                  %v2158 = vld [vmem:[%s2142 + $0xe0] sm:%s2135]
                  %2159 = vst [vmem:[%s2143 + $0x38] sm:%s2135] %v2158
                  %v2160 = vld [vmem:[%s2142 + $0x100] sm:%s2135]
                  %2161 = vst [vmem:[%s2143 + $0x40] sm:%s2135] %v2160
                  %v2162 = vld [vmem:[%s2142 + $0x120] sm:%s2135]
                  %2163 = vst [vmem:[%s2143 + $0x48] sm:%s2135] %v2162
                  %v2164 = vld [vmem:[%s2142 + $0x140] sm:%s2135]
                  %2165 = vst [vmem:[%s2143 + $0x50] sm:%s2135] %v2164
                  %v2166 = vld [vmem:[%s2142 + $0x160] sm:%s2135]
                  %2167 = vst [vmem:[%s2143 + $0x58] sm:%s2135] %v2166
                  %v2168 = vld [vmem:[%s2142 + $0x180] sm:%s2135]
                  %2169 = vst [vmem:[%s2143 + $0x60] sm:%s2135] %v2168
                  %v2170 = vld [vmem:[%s2142 + $0x1a0] sm:%s2135]
                  %2171 = vst [vmem:[%s2143 + $0x68] sm:%s2135] %v2170
                  %v2172 = vld [vmem:[%s2142 + $0x1c0] sm:%s2135]
                  %2173 = vst [vmem:[%s2143 + $0x70] sm:%s2135] %v2172
                  %v2174 = vld [vmem:[%s2142 + $0x1e0] sm:%s2135]
                  %2175 = vst [vmem:[%s2143 + $0x78] sm:%s2135] %v2174
                  %v2176 = vld [vmem:[%s2142 + $0x200] sm:%s2135]
                  %2177 = vst [vmem:[%s2143 + $0x80] sm:%s2135] %v2176
                  %v2178 = vld [vmem:[%s2142 + $0x220] sm:%s2135]
                  %2179 = vst [vmem:[%s2143 + $0x88] sm:%s2135] %v2178
                  %v2180 = vld [vmem:[%s2142 + $0x240] sm:%s2135]
                  %2181 = vst [vmem:[%s2143 + $0x90] sm:%s2135] %v2180
                  %v2182 = vld [vmem:[%s2142 + $0x260] sm:%s2135]
                  %2183 = vst [vmem:[%s2143 + $0x98] sm:%s2135] %v2182
                  %v2184 = vld [vmem:[%s2142 + $0x280] sm:%s2135]
                  %2185 = vst [vmem:[%s2143 + $0xa0] sm:%s2135] %v2184
                  %v2186 = vld [vmem:[%s2142 + $0x2a0] sm:%s2135]
                  %2187 = vst [vmem:[%s2143 + $0xa8] sm:%s2135] %v2186
                  %v2188 = vld [vmem:[%s2142 + $0x2c0] sm:%s2135]
                  %2189 = vst [vmem:[%s2143 + $0xb0] sm:%s2135] %v2188
                  %v2190 = vld [vmem:[%s2142 + $0x2e0] sm:%s2135]
                  %2191 = vst [vmem:[%s2143 + $0xb8] sm:%s2135] %v2190
                  %v2192 = vld [vmem:[%s2142 + $0x300] sm:%s2135]
                  %2193 = vst [vmem:[%s2143 + $0xc0] sm:%s2135] %v2192
                  %v2194 = vld [vmem:[%s2142 + $0x320] sm:%s2135]
                  %2195 = vst [vmem:[%s2143 + $0xc8] sm:%s2135] %v2194
                  %v2196 = vld [vmem:[%s2142 + $0x340] sm:%s2135]
                  %2197 = vst [vmem:[%s2143 + $0xd0] sm:%s2135] %v2196
                  %v2198 = vld [vmem:[%s2142 + $0x360] sm:%s2135]
                  %2199 = vst [vmem:[%s2143 + $0xd8] sm:%s2135] %v2198
                  %v2200 = vld [vmem:[%s2142 + $0x380] sm:%s2135]
                  %2201 = vst [vmem:[%s2143 + $0xe0] sm:%s2135] %v2200
                  %v2202 = vld [vmem:[%s2142 + $0x3a0] sm:%s2135]
                  %2203 = vst [vmem:[%s2143 + $0xe8] sm:%s2135] %v2202
                  %v2204 = vld [vmem:[%s2142 + $0x3c0] sm:%s2135]
                  %2205 = vst [vmem:[%s2143 + $0xf0] sm:%s2135] %v2204
                  %v2206 = vld [vmem:[%s2142 + $0x3e0] sm:%s2135]
                  %2207 = vst [vmem:[%s2143 + $0xf8] sm:%s2135] %v2206
                  %v2208 = vld [vmem:[%s2142 + $0x400] sm:%s2135]
                  %2209 = vst [vmem:[%s2143 + $0x100] sm:%s2135] %v2208
                  %v2210 = vld [vmem:[%s2142 + $0x420] sm:%s2135]
                  %2211 = vst [vmem:[%s2143 + $0x108] sm:%s2135] %v2210
                  %v2212 = vld [vmem:[%s2142 + $0x440] sm:%s2135]
                  %2213 = vst [vmem:[%s2143 + $0x110] sm:%s2135] %v2212
                  %v2214 = vld [vmem:[%s2142 + $0x460] sm:%s2135]
                  %2215 = vst [vmem:[%s2143 + $0x118] sm:%s2135] %v2214
                  %v2216 = vld [vmem:[%s2142 + $0x480] sm:%s2135]
                  %2217 = vst [vmem:[%s2143 + $0x120] sm:%s2135] %v2216
                  %v2218 = vld [vmem:[%s2142 + $0x4a0] sm:%s2135]
                  %2219 = vst [vmem:[%s2143 + $0x128] sm:%s2135] %v2218
                  %v2220 = vld [vmem:[%s2142 + $0x4c0] sm:%s2135]
                  %2221 = vst [vmem:[%s2143 + $0x130] sm:%s2135] %v2220
                  %v2222 = vld [vmem:[%s2142 + $0x4e0] sm:%s2135]
                  %2223 = vst [vmem:[%s2143 + $0x138] sm:%s2135] %v2222
                  %v2224 = vld [vmem:[%s2142 + $0x500] sm:%s2135]
                  %2225 = vst [vmem:[%s2143 + $0x140] sm:%s2135] %v2224
                  %v2226 = vld [vmem:[%s2142 + $0x520] sm:%s2135]
                  %2227 = vst [vmem:[%s2143 + $0x148] sm:%s2135] %v2226
                  %v2228 = vld [vmem:[%s2142 + $0x540] sm:%s2135]
                  %2229 = vst [vmem:[%s2143 + $0x150] sm:%s2135] %v2228
                  %v2230 = vld [vmem:[%s2142 + $0x560] sm:%s2135]
                  %2231 = vst [vmem:[%s2143 + $0x158] sm:%s2135] %v2230
                  %v2232 = vld [vmem:[%s2142 + $0x580] sm:%s2135]
                  %2233 = vst [vmem:[%s2143 + $0x160] sm:%s2135] %v2232
                  %v2234 = vld [vmem:[%s2142 + $0x5a0] sm:%s2135]
                  %2235 = vst [vmem:[%s2143 + $0x168] sm:%s2135] %v2234
                  %v2236 = vld [vmem:[%s2142 + $0x5c0] sm:%s2135]
                  %2237 = vst [vmem:[%s2143 + $0x170] sm:%s2135] %v2236
                  %v2238 = vld [vmem:[%s2142 + $0x5e0] sm:%s2135]
                  %2239 = vst [vmem:[%s2143 + $0x178] sm:%s2135] %v2238
                  %v2240 = vld [vmem:[%s2142 + $0x600] sm:%s2135]
                  %2241 = vst [vmem:[%s2143 + $0x180] sm:%s2135] %v2240
                  %v2242 = vld [vmem:[%s2142 + $0x620] sm:%s2135]
                  %2243 = vst [vmem:[%s2143 + $0x188] sm:%s2135] %v2242
                  %v2244 = vld [vmem:[%s2142 + $0x640] sm:%s2135]
                  %2245 = vst [vmem:[%s2143 + $0x190] sm:%s2135] %v2244
                  %v2246 = vld [vmem:[%s2142 + $0x660] sm:%s2135]
                  %2247 = vst [vmem:[%s2143 + $0x198] sm:%s2135] %v2246
                  %v2248 = vld [vmem:[%s2142 + $0x680] sm:%s2135]
                  %2249 = vst [vmem:[%s2143 + $0x1a0] sm:%s2135] %v2248
                  %v2250 = vld [vmem:[%s2142 + $0x6a0] sm:%s2135]
                  %2251 = vst [vmem:[%s2143 + $0x1a8] sm:%s2135] %v2250
                  %v2252 = vld [vmem:[%s2142 + $0x6c0] sm:%s2135]
                  %2253 = vst [vmem:[%s2143 + $0x1b0] sm:%s2135] %v2252
                  %v2254 = vld [vmem:[%s2142 + $0x6e0] sm:%s2135]
                  %2255 = vst [vmem:[%s2143 + $0x1b8] sm:%s2135] %v2254
                  %v2256 = vld [vmem:[%s2142 + $0x700] sm:%s2135]
                  %2257 = vst [vmem:[%s2143 + $0x1c0] sm:%s2135] %v2256
                  %v2258 = vld [vmem:[%s2142 + $0x720] sm:%s2135]
                  %2259 = vst [vmem:[%s2143 + $0x1c8] sm:%s2135] %v2258
                  %v2260 = vld [vmem:[%s2142 + $0x740] sm:%s2135]
                  %2261 = vst [vmem:[%s2143 + $0x1d0] sm:%s2135] %v2260
                  %v2262 = vld [vmem:[%s2142 + $0x760] sm:%s2135]
                  %2263 = vst [vmem:[%s2143 + $0x1d8] sm:%s2135] %v2262
                  %v2264 = vld [vmem:[%s2142 + $0x780] sm:%s2135]
                  %2265 = vst [vmem:[%s2143 + $0x1e0] sm:%s2135] %v2264
                  %v2266 = vld [vmem:[%s2142 + $0x7a0] sm:%s2135]
                  %2267 = vst [vmem:[%s2143 + $0x1e8] sm:%s2135] %v2266
                  %v2268 = vld [vmem:[%s2142 + $0x7c0] sm:%s2135]
                  %2269 = vst [vmem:[%s2143 + $0x1f0] sm:%s2135] %v2268
                  %v2270 = vld [vmem:[%s2142 + $0x7e0] sm:%s2135]
                  %2271 = vst [vmem:[%s2143 + $0x1f8] sm:%s2135] %v2270
                  %v2272 = vld [vmem:[%s2142 + $0x800] sm:%s2135]
                  %2273 = vst [vmem:[%s2143 + $0x200] sm:%s2135] %v2272
                  %v2274 = vld [vmem:[%s2142 + $0x820] sm:%s2135]
                  %2275 = vst [vmem:[%s2143 + $0x208] sm:%s2135] %v2274
                  %v2276 = vld [vmem:[%s2142 + $0x840] sm:%s2135]
                  %2277 = vst [vmem:[%s2143 + $0x210] sm:%s2135] %v2276
                  %v2278 = vld [vmem:[%s2142 + $0x860] sm:%s2135]
                  %2279 = vst [vmem:[%s2143 + $0x218] sm:%s2135] %v2278
                  %v2280 = vld [vmem:[%s2142 + $0x880] sm:%s2135]
                  %2281 = vst [vmem:[%s2143 + $0x220] sm:%s2135] %v2280
                  %v2282 = vld [vmem:[%s2142 + $0x8a0] sm:%s2135]
                  %2283 = vst [vmem:[%s2143 + $0x228] sm:%s2135] %v2282
                  %v2284 = vld [vmem:[%s2142 + $0x8c0] sm:%s2135]
                  %2285 = vst [vmem:[%s2143 + $0x230] sm:%s2135] %v2284
                  %v2286 = vld [vmem:[%s2142 + $0x8e0] sm:%s2135]
                  %2287 = vst [vmem:[%s2143 + $0x238] sm:%s2135] %v2286
                  %v2288 = vld [vmem:[%s2142 + $0x900] sm:%s2135]
                  %2289 = vst [vmem:[%s2143 + $0x240] sm:%s2135] %v2288
                  %v2290 = vld [vmem:[%s2142 + $0x920] sm:%s2135]
                  %2291 = vst [vmem:[%s2143 + $0x248] sm:%s2135] %v2290
                  %v2292 = vld [vmem:[%s2142 + $0x940] sm:%s2135]
                  %2293 = vst [vmem:[%s2143 + $0x250] sm:%s2135] %v2292
                  %v2294 = vld [vmem:[%s2142 + $0x960] sm:%s2135]
                  %2295 = vst [vmem:[%s2143 + $0x258] sm:%s2135] %v2294
                  %v2296 = vld [vmem:[%s2142 + $0x980] sm:%s2135]
                  %2297 = vst [vmem:[%s2143 + $0x260] sm:%s2135] %v2296
                  %v2298 = vld [vmem:[%s2142 + $0x9a0] sm:%s2135]
                  %2299 = vst [vmem:[%s2143 + $0x268] sm:%s2135] %v2298
                  %v2300 = vld [vmem:[%s2142 + $0x9c0] sm:%s2135]
                  %2301 = vst [vmem:[%s2143 + $0x270] sm:%s2135] %v2300
                  %v2302 = vld [vmem:[%s2142 + $0x9e0] sm:%s2135]
                  %2303 = vst [vmem:[%s2143 + $0x278] sm:%s2135] %v2302
                  %v2304 = vld [vmem:[%s2142 + $0xa00] sm:%s2135]
                  %2305 = vst [vmem:[%s2143 + $0x280] sm:%s2135] %v2304
                  %v2306 = vld [vmem:[%s2142 + $0xa20] sm:%s2135]
                  %2307 = vst [vmem:[%s2143 + $0x288] sm:%s2135] %v2306
                  %v2308 = vld [vmem:[%s2142 + $0xa40] sm:%s2135]
                  %2309 = vst [vmem:[%s2143 + $0x290] sm:%s2135] %v2308
                  %v2310 = vld [vmem:[%s2142 + $0xa60] sm:%s2135]
                  %2311 = vst [vmem:[%s2143 + $0x298] sm:%s2135] %v2310
                  %v2312 = vld [vmem:[%s2142 + $0xa80] sm:%s2135]
                  %2313 = vst [vmem:[%s2143 + $0x2a0] sm:%s2135] %v2312
                  %v2314 = vld [vmem:[%s2142 + $0xaa0] sm:%s2135]
                  %2315 = vst [vmem:[%s2143 + $0x2a8] sm:%s2135] %v2314
                  %v2316 = vld [vmem:[%s2142 + $0xac0] sm:%s2135]
                  %2317 = vst [vmem:[%s2143 + $0x2b0] sm:%s2135] %v2316
                  %v2318 = vld [vmem:[%s2142 + $0xae0] sm:%s2135]
                  %2319 = vst [vmem:[%s2143 + $0x2b8] sm:%s2135] %v2318
                  %v2320 = vld [vmem:[%s2142 + $0xb00] sm:%s2135]
                  %2321 = vst [vmem:[%s2143 + $0x2c0] sm:%s2135] %v2320
                  %v2322 = vld [vmem:[%s2142 + $0xb20] sm:%s2135]
                  %2323 = vst [vmem:[%s2143 + $0x2c8] sm:%s2135] %v2322
                  %v2324 = vld [vmem:[%s2142 + $0xb40] sm:%s2135]
                  %2325 = vst [vmem:[%s2143 + $0x2d0] sm:%s2135] %v2324
                  %v2326 = vld [vmem:[%s2142 + $0xb60] sm:%s2135]
                  %2327 = vst [vmem:[%s2143 + $0x2d8] sm:%s2135] %v2326
                  %v2328 = vld [vmem:[%s2142 + $0xb80] sm:%s2135]
                  %2329 = vst [vmem:[%s2143 + $0x2e0] sm:%s2135] %v2328
                  %v2330 = vld [vmem:[%s2142 + $0xba0] sm:%s2135]
                  %2331 = vst [vmem:[%s2143 + $0x2e8] sm:%s2135] %v2330
                  %v2332 = vld [vmem:[%s2142 + $0xbc0] sm:%s2135]
                  %2333 = vst [vmem:[%s2143 + $0x2f0] sm:%s2135] %v2332
                  %v2334 = vld [vmem:[%s2142 + $0xbe0] sm:%s2135]
                  %2335 = vst [vmem:[%s2143 + $0x2f8] sm:%s2135] %v2334
                  %v2336 = vld [vmem:[%s2142 + $0xc00] sm:%s2135]
                  %2337 = vst [vmem:[%s2143 + $0x300] sm:%s2135] %v2336
                  %v2338 = vld [vmem:[%s2142 + $0xc20] sm:%s2135]
                  %2339 = vst [vmem:[%s2143 + $0x308] sm:%s2135] %v2338
                  %v2340 = vld [vmem:[%s2142 + $0xc40] sm:%s2135]
                  %2341 = vst [vmem:[%s2143 + $0x310] sm:%s2135] %v2340
                  %v2342 = vld [vmem:[%s2142 + $0xc60] sm:%s2135]
                  %2343 = vst [vmem:[%s2143 + $0x318] sm:%s2135] %v2342
                  %v2344 = vld [vmem:[%s2142 + $0xc80] sm:%s2135]
                  %2345 = vst [vmem:[%s2143 + $0x320] sm:%s2135] %v2344
                  %v2346 = vld [vmem:[%s2142 + $0xca0] sm:%s2135]
                  %2347 = vst [vmem:[%s2143 + $0x328] sm:%s2135] %v2346
                  %v2348 = vld [vmem:[%s2142 + $0xcc0] sm:%s2135]
                  %2349 = vst [vmem:[%s2143 + $0x330] sm:%s2135] %v2348
                  %v2350 = vld [vmem:[%s2142 + $0xce0] sm:%s2135]
                  %2351 = vst [vmem:[%s2143 + $0x338] sm:%s2135] %v2350
                  %v2352 = vld [vmem:[%s2142 + $0xd00] sm:%s2135]
                  %2353 = vst [vmem:[%s2143 + $0x340] sm:%s2135] %v2352
                  %v2354 = vld [vmem:[%s2142 + $0xd20] sm:%s2135]
                  %2355 = vst [vmem:[%s2143 + $0x348] sm:%s2135] %v2354
                  %v2356 = vld [vmem:[%s2142 + $0xd40] sm:%s2135]
                  %2357 = vst [vmem:[%s2143 + $0x350] sm:%s2135] %v2356
                  %v2358 = vld [vmem:[%s2142 + $0xd60] sm:%s2135]
                  %2359 = vst [vmem:[%s2143 + $0x358] sm:%s2135] %v2358
                  %v2360 = vld [vmem:[%s2142 + $0xd80] sm:%s2135]
                  %2361 = vst [vmem:[%s2143 + $0x360] sm:%s2135] %v2360
                  %v2362 = vld [vmem:[%s2142 + $0xda0] sm:%s2135]
                  %2363 = vst [vmem:[%s2143 + $0x368] sm:%s2135] %v2362
                  %v2364 = vld [vmem:[%s2142 + $0xdc0] sm:%s2135]
                  %2365 = vst [vmem:[%s2143 + $0x370] sm:%s2135] %v2364
                  %v2366 = vld [vmem:[%s2142 + $0xde0] sm:%s2135]
                  %2367 = vst [vmem:[%s2143 + $0x378] sm:%s2135] %v2366
                  %v2368 = vld [vmem:[%s2142 + $0xe00] sm:%s2135]
                  %2369 = vst [vmem:[%s2143 + $0x380] sm:%s2135] %v2368
                  %v2370 = vld [vmem:[%s2142 + $0xe20] sm:%s2135]
                  %2371 = vst [vmem:[%s2143 + $0x388] sm:%s2135] %v2370
                  %v2372 = vld [vmem:[%s2142 + $0xe40] sm:%s2135]
                  %2373 = vst [vmem:[%s2143 + $0x390] sm:%s2135] %v2372
                  %v2374 = vld [vmem:[%s2142 + $0xe60] sm:%s2135]
                  %2375 = vst [vmem:[%s2143 + $0x398] sm:%s2135] %v2374
                  %v2376 = vld [vmem:[%s2142 + $0xe80] sm:%s2135]
                  %2377 = vst [vmem:[%s2143 + $0x3a0] sm:%s2135] %v2376
                  %v2378 = vld [vmem:[%s2142 + $0xea0] sm:%s2135]
                  %2379 = vst [vmem:[%s2143 + $0x3a8] sm:%s2135] %v2378
                  %v2380 = vld [vmem:[%s2142 + $0xec0] sm:%s2135]
                  %2381 = vst [vmem:[%s2143 + $0x3b0] sm:%s2135] %v2380
                  %v2382 = vld [vmem:[%s2142 + $0xee0] sm:%s2135]
                  %2383 = vst [vmem:[%s2143 + $0x3b8] sm:%s2135] %v2382
                  %v2384 = vld [vmem:[%s2142 + $0xf00] sm:%s2135]
                  %2385 = vst [vmem:[%s2143 + $0x3c0] sm:%s2135] %v2384
                  %v2386 = vld [vmem:[%s2142 + $0xf20] sm:%s2135]
                  %2387 = vst [vmem:[%s2143 + $0x3c8] sm:%s2135] %v2386
                  %v2388 = vld [vmem:[%s2142 + $0xf40] sm:%s2135]
                  %2389 = vst [vmem:[%s2143 + $0x3d0] sm:%s2135] %v2388
                  %v2390 = vld [vmem:[%s2142 + $0xf60] sm:%s2135]
                  %2391 = vst [vmem:[%s2143 + $0x3d8] sm:%s2135] %v2390
                  %v2392 = vld [vmem:[%s2142 + $0xf80] sm:%s2135]
                  %2393 = vst [vmem:[%s2143 + $0x3e0] sm:%s2135] %v2392
                  %v2394 = vld [vmem:[%s2142 + $0xfa0] sm:%s2135]
                  %2395 = vst [vmem:[%s2143 + $0x3e8] sm:%s2135] %v2394
                  %v2396 = vld [vmem:[%s2142 + $0xfc0] sm:%s2135]
                  %2397 = vst [vmem:[%s2143 + $0x3f0] sm:%s2135] %v2396
                  %v2398 = vld [vmem:[%s2142 + $0xfe0] sm:%s2135]
                  %2399 = vst [vmem:[%s2143 + $0x3f8] sm:%s2135] %v2398
                  %v2400 = vld [vmem:[%s2142 + $0x1000] sm:%s2135]
                  %2401 = vst [vmem:[%s2143 + $0x400] sm:%s2135] %v2400
                  %v2402 = vld [vmem:[%s2142 + $0x1020] sm:%s2135]
                  %2403 = vst [vmem:[%s2143 + $0x408] sm:%s2135] %v2402
                  %v2404 = vld [vmem:[%s2142 + $0x1040] sm:%s2135]
                  %2405 = vst [vmem:[%s2143 + $0x410] sm:%s2135] %v2404
                  %v2406 = vld [vmem:[%s2142 + $0x1060] sm:%s2135]
                  %2407 = vst [vmem:[%s2143 + $0x418] sm:%s2135] %v2406
                  %v2408 = vld [vmem:[%s2142 + $0x1080] sm:%s2135]
                  %2409 = vst [vmem:[%s2143 + $0x420] sm:%s2135] %v2408
                  %v2410 = vld [vmem:[%s2142 + $0x10a0] sm:%s2135]
                  %2411 = vst [vmem:[%s2143 + $0x428] sm:%s2135] %v2410
                  %v2412 = vld [vmem:[%s2142 + $0x10c0] sm:%s2135]
                  %2413 = vst [vmem:[%s2143 + $0x430] sm:%s2135] %v2412
                  %v2414 = vld [vmem:[%s2142 + $0x10e0] sm:%s2135]
                  %2415 = vst [vmem:[%s2143 + $0x438] sm:%s2135] %v2414
                  %v2416 = vld [vmem:[%s2142 + $0x1100] sm:%s2135]
                  %2417 = vst [vmem:[%s2143 + $0x440] sm:%s2135] %v2416
                  %v2418 = vld [vmem:[%s2142 + $0x1120] sm:%s2135]
                  %2419 = vst [vmem:[%s2143 + $0x448] sm:%s2135] %v2418
                  %v2420 = vld [vmem:[%s2142 + $0x1140] sm:%s2135]
                  %2421 = vst [vmem:[%s2143 + $0x450] sm:%s2135] %v2420
                  %v2422 = vld [vmem:[%s2142 + $0x1160] sm:%s2135]
                  %2423 = vst [vmem:[%s2143 + $0x458] sm:%s2135] %v2422
                  %v2424 = vld [vmem:[%s2142 + $0x1180] sm:%s2135]
                  %2425 = vst [vmem:[%s2143 + $0x460] sm:%s2135] %v2424
                  %v2426 = vld [vmem:[%s2142 + $0x11a0] sm:%s2135]
                  %2427 = vst [vmem:[%s2143 + $0x468] sm:%s2135] %v2426
                  %v2428 = vld [vmem:[%s2142 + $0x11c0] sm:%s2135]
                  %2429 = vst [vmem:[%s2143 + $0x470] sm:%s2135] %v2428
                  %v2430 = vld [vmem:[%s2142 + $0x11e0] sm:%s2135]
                  %2431 = vst [vmem:[%s2143 + $0x478] sm:%s2135] %v2430
                  %v2432 = vld [vmem:[%s2142 + $0x1200] sm:%s2135]
                  %2433 = vst [vmem:[%s2143 + $0x480] sm:%s2135] %v2432
                  %v2434 = vld [vmem:[%s2142 + $0x1220] sm:%s2135]
                  %2435 = vst [vmem:[%s2143 + $0x488] sm:%s2135] %v2434
                  %v2436 = vld [vmem:[%s2142 + $0x1240] sm:%s2135]
                  %2437 = vst [vmem:[%s2143 + $0x490] sm:%s2135] %v2436
                  %v2438 = vld [vmem:[%s2142 + $0x1260] sm:%s2135]
                  %2439 = vst [vmem:[%s2143 + $0x498] sm:%s2135] %v2438
                  %v2440 = vld [vmem:[%s2142 + $0x1280] sm:%s2135]
                  %2441 = vst [vmem:[%s2143 + $0x4a0] sm:%s2135] %v2440
                  %v2442 = vld [vmem:[%s2142 + $0x12a0] sm:%s2135]
                  %2443 = vst [vmem:[%s2143 + $0x4a8] sm:%s2135] %v2442
                  %v2444 = vld [vmem:[%s2142 + $0x12c0] sm:%s2135]
                  %2445 = vst [vmem:[%s2143 + $0x4b0] sm:%s2135] %v2444
                  %v2446 = vld [vmem:[%s2142 + $0x12e0] sm:%s2135]
                  %2447 = vst [vmem:[%s2143 + $0x4b8] sm:%s2135] %v2446
                  %v2448 = vld [vmem:[%s2142 + $0x1300] sm:%s2135]
                  %2449 = vst [vmem:[%s2143 + $0x4c0] sm:%s2135] %v2448
                  %v2450 = vld [vmem:[%s2142 + $0x1320] sm:%s2135]
                  %2451 = vst [vmem:[%s2143 + $0x4c8] sm:%s2135] %v2450
                  %v2452 = vld [vmem:[%s2142 + $0x1340] sm:%s2135]
                  %2453 = vst [vmem:[%s2143 + $0x4d0] sm:%s2135] %v2452
                  %v2454 = vld [vmem:[%s2142 + $0x1360] sm:%s2135]
                  %2455 = vst [vmem:[%s2143 + $0x4d8] sm:%s2135] %v2454
                  %v2456 = vld [vmem:[%s2142 + $0x1380] sm:%s2135]
                  %2457 = vst [vmem:[%s2143 + $0x4e0] sm:%s2135] %v2456
                  %v2458 = vld [vmem:[%s2142 + $0x13a0] sm:%s2135]
                  %2459 = vst [vmem:[%s2143 + $0x4e8] sm:%s2135] %v2458
                  %v2460 = vld [vmem:[%s2142 + $0x13c0] sm:%s2135]
                  %2461 = vst [vmem:[%s2143 + $0x4f0] sm:%s2135] %v2460
                  %v2462 = vld [vmem:[%s2142 + $0x13e0] sm:%s2135]
                  %2463 = vst [vmem:[%s2143 + $0x4f8] sm:%s2135] %v2462
                  %v2464 = vld [vmem:[%s2142 + $0x1400] sm:%s2135]
                  %2465 = vst [vmem:[%s2143 + $0x500] sm:%s2135] %v2464
                  %v2466 = vld [vmem:[%s2142 + $0x1420] sm:%s2135]
                  %2467 = vst [vmem:[%s2143 + $0x508] sm:%s2135] %v2466
                  %v2468 = vld [vmem:[%s2142 + $0x1440] sm:%s2135]
                  %2469 = vst [vmem:[%s2143 + $0x510] sm:%s2135] %v2468
                  %v2470 = vld [vmem:[%s2142 + $0x1460] sm:%s2135]
                  %2471 = vst [vmem:[%s2143 + $0x518] sm:%s2135] %v2470
                  %v2472 = vld [vmem:[%s2142 + $0x1480] sm:%s2135]
                  %2473 = vst [vmem:[%s2143 + $0x520] sm:%s2135] %v2472
                  %v2474 = vld [vmem:[%s2142 + $0x14a0] sm:%s2135]
                  %2475 = vst [vmem:[%s2143 + $0x528] sm:%s2135] %v2474
                  %v2476 = vld [vmem:[%s2142 + $0x14c0] sm:%s2135]
                  %2477 = vst [vmem:[%s2143 + $0x530] sm:%s2135] %v2476
                  %v2478 = vld [vmem:[%s2142 + $0x14e0] sm:%s2135]
                  %2479 = vst [vmem:[%s2143 + $0x538] sm:%s2135] %v2478
                  %v2480 = vld [vmem:[%s2142 + $0x1500] sm:%s2135]
                  %2481 = vst [vmem:[%s2143 + $0x540] sm:%s2135] %v2480
                  %v2482 = vld [vmem:[%s2142 + $0x1520] sm:%s2135]
                  %2483 = vst [vmem:[%s2143 + $0x548] sm:%s2135] %v2482
                  %v2484 = vld [vmem:[%s2142 + $0x1540] sm:%s2135]
                  %2485 = vst [vmem:[%s2143 + $0x550] sm:%s2135] %v2484
                  %v2486 = vld [vmem:[%s2142 + $0x1560] sm:%s2135]
                  %2487 = vst [vmem:[%s2143 + $0x558] sm:%s2135] %v2486
                  %v2488 = vld [vmem:[%s2142 + $0x1580] sm:%s2135]
                  %2489 = vst [vmem:[%s2143 + $0x560] sm:%s2135] %v2488
                  %v2490 = vld [vmem:[%s2142 + $0x15a0] sm:%s2135]
                  %2491 = vst [vmem:[%s2143 + $0x568] sm:%s2135] %v2490
                  %v2492 = vld [vmem:[%s2142 + $0x15c0] sm:%s2135]
                  %2493 = vst [vmem:[%s2143 + $0x570] sm:%s2135] %v2492
                  %v2494 = vld [vmem:[%s2142 + $0x15e0] sm:%s2135]
                  %2495 = vst [vmem:[%s2143 + $0x578] sm:%s2135] %v2494
                  %v2496 = vld [vmem:[%s2142 + $0x1600] sm:%s2135]
                  %2497 = vst [vmem:[%s2143 + $0x580] sm:%s2135] %v2496
                  %v2498 = vld [vmem:[%s2142 + $0x1620] sm:%s2135]
                  %2499 = vst [vmem:[%s2143 + $0x588] sm:%s2135] %v2498
                  %v2500 = vld [vmem:[%s2142 + $0x1640] sm:%s2135]
                  %2501 = vst [vmem:[%s2143 + $0x590] sm:%s2135] %v2500
                  %v2502 = vld [vmem:[%s2142 + $0x1660] sm:%s2135]
                  %2503 = vst [vmem:[%s2143 + $0x598] sm:%s2135] %v2502
                  %v2504 = vld [vmem:[%s2142 + $0x1680] sm:%s2135]
                  %2505 = vst [vmem:[%s2143 + $0x5a0] sm:%s2135] %v2504
                  %v2506 = vld [vmem:[%s2142 + $0x16a0] sm:%s2135]
                  %2507 = vst [vmem:[%s2143 + $0x5a8] sm:%s2135] %v2506
                  %v2508 = vld [vmem:[%s2142 + $0x16c0] sm:%s2135]
                  %2509 = vst [vmem:[%s2143 + $0x5b0] sm:%s2135] %v2508
                  %v2510 = vld [vmem:[%s2142 + $0x16e0] sm:%s2135]
                  %2511 = vst [vmem:[%s2143 + $0x5b8] sm:%s2135] %v2510
                  %v2512 = vld [vmem:[%s2142 + $0x1700] sm:%s2135]
                  %2513 = vst [vmem:[%s2143 + $0x5c0] sm:%s2135] %v2512
                  %v2514 = vld [vmem:[%s2142 + $0x1720] sm:%s2135]
                  %2515 = vst [vmem:[%s2143 + $0x5c8] sm:%s2135] %v2514
                  %v2516 = vld [vmem:[%s2142 + $0x1740] sm:%s2135]
                  %2517 = vst [vmem:[%s2143 + $0x5d0] sm:%s2135] %v2516
                  %v2518 = vld [vmem:[%s2142 + $0x1760] sm:%s2135]
                  %2519 = vst [vmem:[%s2143 + $0x5d8] sm:%s2135] %v2518
                  %v2520 = vld [vmem:[%s2142 + $0x1780] sm:%s2135]
                  %2521 = vst [vmem:[%s2143 + $0x5e0] sm:%s2135] %v2520
                  %v2522 = vld [vmem:[%s2142 + $0x17a0] sm:%s2135]
                  %2523 = vst [vmem:[%s2143 + $0x5e8] sm:%s2135] %v2522
                  %v2524 = vld [vmem:[%s2142 + $0x17c0] sm:%s2135]
                  %2525 = vst [vmem:[%s2143 + $0x5f0] sm:%s2135] %v2524
                  %v2526 = vld [vmem:[%s2142 + $0x17e0] sm:%s2135]
                  %2527 = vst [vmem:[%s2143 + $0x5f8] sm:%s2135] %v2526
                  %v2528 = vld [vmem:[%s2142 + $0x1800] sm:%s2135]
                  %2529 = vst [vmem:[%s2143 + $0x600] sm:%s2135] %v2528
                  %v2530 = vld [vmem:[%s2142 + $0x1820] sm:%s2135]
                  %2531 = vst [vmem:[%s2143 + $0x608] sm:%s2135] %v2530
                  %v2532 = vld [vmem:[%s2142 + $0x1840] sm:%s2135]
                  %2533 = vst [vmem:[%s2143 + $0x610] sm:%s2135] %v2532
                  %v2534 = vld [vmem:[%s2142 + $0x1860] sm:%s2135]
                  %2535 = vst [vmem:[%s2143 + $0x618] sm:%s2135] %v2534
                  %v2536 = vld [vmem:[%s2142 + $0x1880] sm:%s2135]
                  %2537 = vst [vmem:[%s2143 + $0x620] sm:%s2135] %v2536
                  %v2538 = vld [vmem:[%s2142 + $0x18a0] sm:%s2135]
                  %2539 = vst [vmem:[%s2143 + $0x628] sm:%s2135] %v2538
                  %v2540 = vld [vmem:[%s2142 + $0x18c0] sm:%s2135]
                  %2541 = vst [vmem:[%s2143 + $0x630] sm:%s2135] %v2540
                  %v2542 = vld [vmem:[%s2142 + $0x18e0] sm:%s2135]
                  %2543 = vst [vmem:[%s2143 + $0x638] sm:%s2135] %v2542
                  %v2544 = vld [vmem:[%s2142 + $0x1900] sm:%s2135]
                  %2545 = vst [vmem:[%s2143 + $0x640] sm:%s2135] %v2544
                  %v2546 = vld [vmem:[%s2142 + $0x1920] sm:%s2135]
                  %2547 = vst [vmem:[%s2143 + $0x648] sm:%s2135] %v2546
                  %v2548 = vld [vmem:[%s2142 + $0x1940] sm:%s2135]
                  %2549 = vst [vmem:[%s2143 + $0x650] sm:%s2135] %v2548
                  %v2550 = vld [vmem:[%s2142 + $0x1960] sm:%s2135]
                  %2551 = vst [vmem:[%s2143 + $0x658] sm:%s2135] %v2550
                  %v2552 = vld [vmem:[%s2142 + $0x1980] sm:%s2135]
                  %2553 = vst [vmem:[%s2143 + $0x660] sm:%s2135] %v2552
                  %v2554 = vld [vmem:[%s2142 + $0x19a0] sm:%s2135]
                  %2555 = vst [vmem:[%s2143 + $0x668] sm:%s2135] %v2554
                  %v2556 = vld [vmem:[%s2142 + $0x19c0] sm:%s2135]
                  %2557 = vst [vmem:[%s2143 + $0x670] sm:%s2135] %v2556
                  %v2558 = vld [vmem:[%s2142 + $0x19e0] sm:%s2135]
                  %2559 = vst [vmem:[%s2143 + $0x678] sm:%s2135] %v2558
                  %v2560 = vld [vmem:[%s2142 + $0x1a00] sm:%s2135]
                  %2561 = vst [vmem:[%s2143 + $0x680] sm:%s2135] %v2560
                  %v2562 = vld [vmem:[%s2142 + $0x1a20] sm:%s2135]
                  %2563 = vst [vmem:[%s2143 + $0x688] sm:%s2135] %v2562
                  %v2564 = vld [vmem:[%s2142 + $0x1a40] sm:%s2135]
                  %2565 = vst [vmem:[%s2143 + $0x690] sm:%s2135] %v2564
                  %v2566 = vld [vmem:[%s2142 + $0x1a60] sm:%s2135]
                  %2567 = vst [vmem:[%s2143 + $0x698] sm:%s2135] %v2566
                  %v2568 = vld [vmem:[%s2142 + $0x1a80] sm:%s2135]
                  %2569 = vst [vmem:[%s2143 + $0x6a0] sm:%s2135] %v2568
                  %v2570 = vld [vmem:[%s2142 + $0x1aa0] sm:%s2135]
                  %2571 = vst [vmem:[%s2143 + $0x6a8] sm:%s2135] %v2570
                  %v2572 = vld [vmem:[%s2142 + $0x1ac0] sm:%s2135]
                  %2573 = vst [vmem:[%s2143 + $0x6b0] sm:%s2135] %v2572
                  %v2574 = vld [vmem:[%s2142 + $0x1ae0] sm:%s2135]
                  %2575 = vst [vmem:[%s2143 + $0x6b8] sm:%s2135] %v2574
                  %v2576 = vld [vmem:[%s2142 + $0x1b00] sm:%s2135]
                  %2577 = vst [vmem:[%s2143 + $0x6c0] sm:%s2135] %v2576
                  %v2578 = vld [vmem:[%s2142 + $0x1b20] sm:%s2135]
                  %2579 = vst [vmem:[%s2143 + $0x6c8] sm:%s2135] %v2578
                  %v2580 = vld [vmem:[%s2142 + $0x1b40] sm:%s2135]
                  %2581 = vst [vmem:[%s2143 + $0x6d0] sm:%s2135] %v2580
                  %v2582 = vld [vmem:[%s2142 + $0x1b60] sm:%s2135]
                  %2583 = vst [vmem:[%s2143 + $0x6d8] sm:%s2135] %v2582
                  %v2584 = vld [vmem:[%s2142 + $0x1b80] sm:%s2135]
                  %2585 = vst [vmem:[%s2143 + $0x6e0] sm:%s2135] %v2584
                  %v2586 = vld [vmem:[%s2142 + $0x1ba0] sm:%s2135]
                  %2587 = vst [vmem:[%s2143 + $0x6e8] sm:%s2135] %v2586
                  %v2588 = vld [vmem:[%s2142 + $0x1bc0] sm:%s2135]
                  %2589 = vst [vmem:[%s2143 + $0x6f0] sm:%s2135] %v2588
                  %v2590 = vld [vmem:[%s2142 + $0x1be0] sm:%s2135]
                  %2591 = vst [vmem:[%s2143 + $0x6f8] sm:%s2135] %v2590
                  %v2592 = vld [vmem:[%s2142 + $0x1c00] sm:%s2135]
                  %2593 = vst [vmem:[%s2143 + $0x700] sm:%s2135] %v2592
                  %v2594 = vld [vmem:[%s2142 + $0x1c20] sm:%s2135]
                  %2595 = vst [vmem:[%s2143 + $0x708] sm:%s2135] %v2594
                  %v2596 = vld [vmem:[%s2142 + $0x1c40] sm:%s2135]
                  %2597 = vst [vmem:[%s2143 + $0x710] sm:%s2135] %v2596
                  %v2598 = vld [vmem:[%s2142 + $0x1c60] sm:%s2135]
                  %2599 = vst [vmem:[%s2143 + $0x718] sm:%s2135] %v2598
                  %v2600 = vld [vmem:[%s2142 + $0x1c80] sm:%s2135]
                  %2601 = vst [vmem:[%s2143 + $0x720] sm:%s2135] %v2600
                  %v2602 = vld [vmem:[%s2142 + $0x1ca0] sm:%s2135]
                  %2603 = vst [vmem:[%s2143 + $0x728] sm:%s2135] %v2602
                  %v2604 = vld [vmem:[%s2142 + $0x1cc0] sm:%s2135]
                  %2605 = vst [vmem:[%s2143 + $0x730] sm:%s2135] %v2604
                  %v2606 = vld [vmem:[%s2142 + $0x1ce0] sm:%s2135]
                  %2607 = vst [vmem:[%s2143 + $0x738] sm:%s2135] %v2606
                  %v2608 = vld [vmem:[%s2142 + $0x1d00] sm:%s2135]
                  %2609 = vst [vmem:[%s2143 + $0x740] sm:%s2135] %v2608
                  %v2610 = vld [vmem:[%s2142 + $0x1d20] sm:%s2135]
                  %2611 = vst [vmem:[%s2143 + $0x748] sm:%s2135] %v2610
                  %v2612 = vld [vmem:[%s2142 + $0x1d40] sm:%s2135]
                  %2613 = vst [vmem:[%s2143 + $0x750] sm:%s2135] %v2612
                  %v2614 = vld [vmem:[%s2142 + $0x1d60] sm:%s2135]
                  %2615 = vst [vmem:[%s2143 + $0x758] sm:%s2135] %v2614
                  %v2616 = vld [vmem:[%s2142 + $0x1d80] sm:%s2135]
                  %2617 = vst [vmem:[%s2143 + $0x760] sm:%s2135] %v2616
                  %v2618 = vld [vmem:[%s2142 + $0x1da0] sm:%s2135]
                  %2619 = vst [vmem:[%s2143 + $0x768] sm:%s2135] %v2618
                  %v2620 = vld [vmem:[%s2142 + $0x1dc0] sm:%s2135]
                  %2621 = vst [vmem:[%s2143 + $0x770] sm:%s2135] %v2620
                  %v2622 = vld [vmem:[%s2142 + $0x1de0] sm:%s2135]
                  %2623 = vst [vmem:[%s2143 + $0x778] sm:%s2135] %v2622
                  %v2624 = vld [vmem:[%s2142 + $0x1e00] sm:%s2135]
                  %2625 = vst [vmem:[%s2143 + $0x780] sm:%s2135] %v2624
                  %v2626 = vld [vmem:[%s2142 + $0x1e20] sm:%s2135]
                  %2627 = vst [vmem:[%s2143 + $0x788] sm:%s2135] %v2626
                  %v2628 = vld [vmem:[%s2142 + $0x1e40] sm:%s2135]
                  %2629 = vst [vmem:[%s2143 + $0x790] sm:%s2135] %v2628
                  %v2630 = vld [vmem:[%s2142 + $0x1e60] sm:%s2135]
                  %2631 = vst [vmem:[%s2143 + $0x798] sm:%s2135] %v2630
                  %v2632 = vld [vmem:[%s2142 + $0x1e80] sm:%s2135]
                  %2633 = vst [vmem:[%s2143 + $0x7a0] sm:%s2135] %v2632
                  %v2634 = vld [vmem:[%s2142 + $0x1ea0] sm:%s2135]
                  %2635 = vst [vmem:[%s2143 + $0x7a8] sm:%s2135] %v2634
                  %v2636 = vld [vmem:[%s2142 + $0x1ec0] sm:%s2135]
                  %2637 = vst [vmem:[%s2143 + $0x7b0] sm:%s2135] %v2636
                  %v2638 = vld [vmem:[%s2142 + $0x1ee0] sm:%s2135]
                  %2639 = vst [vmem:[%s2143 + $0x7b8] sm:%s2135] %v2638
                  %v2640 = vld [vmem:[%s2142 + $0x1f00] sm:%s2135]
                  %2641 = vst [vmem:[%s2143 + $0x7c0] sm:%s2135] %v2640
                  %v2642 = vld [vmem:[%s2142 + $0x1f20] sm:%s2135]
                  %2643 = vst [vmem:[%s2143 + $0x7c8] sm:%s2135] %v2642
                  %v2644 = vld [vmem:[%s2142 + $0x1f40] sm:%s2135]
                  %2645 = vst [vmem:[%s2143 + $0x7d0] sm:%s2135] %v2644
                  %v2646 = vld [vmem:[%s2142 + $0x1f60] sm:%s2135]
                  %2647 = vst [vmem:[%s2143 + $0x7d8] sm:%s2135] %v2646
                  %v2648 = vld [vmem:[%s2142 + $0x1f80] sm:%s2135]
                  %2649 = vst [vmem:[%s2143 + $0x7e0] sm:%s2135] %v2648
                  %v2650 = vld [vmem:[%s2142 + $0x1fa0] sm:%s2135]
                  %2651 = vst [vmem:[%s2143 + $0x7e8] sm:%s2135] %v2650
                  %v2652 = vld [vmem:[%s2142 + $0x1fc0] sm:%s2135]
                  %2653 = vst [vmem:[%s2143 + $0x7f0] sm:%s2135] %v2652
                  %v2654 = vld [vmem:[%s2142 + $0x1fe0] sm:%s2135]
                  %2655 = vst [vmem:[%s2143 + $0x7f8] sm:%s2135] %v2654
                  %v2656 = vld [vmem:[%s2142 + $0x2000] sm:%s2135]
                  %2657 = vst [vmem:[%s2143 + $0x800] sm:%s2135] %v2656
                  %v2658 = vld [vmem:[%s2142 + $0x2020] sm:%s2135]
                  %2659 = vst [vmem:[%s2143 + $0x808] sm:%s2135] %v2658
                  %v2660 = vld [vmem:[%s2142 + $0x2040] sm:%s2135]
                  %2661 = vst [vmem:[%s2143 + $0x810] sm:%s2135] %v2660
                  %v2662 = vld [vmem:[%s2142 + $0x2060] sm:%s2135]
                  %2663 = vst [vmem:[%s2143 + $0x818] sm:%s2135] %v2662
                  %v2664 = vld [vmem:[%s2142 + $0x2080] sm:%s2135]
                  %2665 = vst [vmem:[%s2143 + $0x820] sm:%s2135] %v2664
                  %v2666 = vld [vmem:[%s2142 + $0x20a0] sm:%s2135]
                  %2667 = vst [vmem:[%s2143 + $0x828] sm:%s2135] %v2666
                  %v2668 = vld [vmem:[%s2142 + $0x20c0] sm:%s2135]
                  %2669 = vst [vmem:[%s2143 + $0x830] sm:%s2135] %v2668
                  %v2670 = vld [vmem:[%s2142 + $0x20e0] sm:%s2135]
                  %2671 = vst [vmem:[%s2143 + $0x838] sm:%s2135] %v2670
                  %v2672 = vld [vmem:[%s2142 + $0x2100] sm:%s2135]
                  %2673 = vst [vmem:[%s2143 + $0x840] sm:%s2135] %v2672
                  %v2674 = vld [vmem:[%s2142 + $0x2120] sm:%s2135]
                  %2675 = vst [vmem:[%s2143 + $0x848] sm:%s2135] %v2674
                  %v2676 = vld [vmem:[%s2142 + $0x2140] sm:%s2135]
                  %2677 = vst [vmem:[%s2143 + $0x850] sm:%s2135] %v2676
                  %v2678 = vld [vmem:[%s2142 + $0x2160] sm:%s2135]
                  %2679 = vst [vmem:[%s2143 + $0x858] sm:%s2135] %v2678
                  %v2680 = vld [vmem:[%s2142 + $0x2180] sm:%s2135]
                  %2681 = vst [vmem:[%s2143 + $0x860] sm:%s2135] %v2680
                  %v2682 = vld [vmem:[%s2142 + $0x21a0] sm:%s2135]
                  %2683 = vst [vmem:[%s2143 + $0x868] sm:%s2135] %v2682
                  %v2684 = vld [vmem:[%s2142 + $0x21c0] sm:%s2135]
                  %2685 = vst [vmem:[%s2143 + $0x870] sm:%s2135] %v2684
                  %v2686 = vld [vmem:[%s2142 + $0x21e0] sm:%s2135]
                  %2687 = vst [vmem:[%s2143 + $0x878] sm:%s2135] %v2686
                  %v2688 = vld [vmem:[%s2142 + $0x2200] sm:%s2135]
                  %2689 = vst [vmem:[%s2143 + $0x880] sm:%s2135] %v2688
                  %v2690 = vld [vmem:[%s2142 + $0x2220] sm:%s2135]
                  %2691 = vst [vmem:[%s2143 + $0x888] sm:%s2135] %v2690
                  %v2692 = vld [vmem:[%s2142 + $0x2240] sm:%s2135]
                  %2693 = vst [vmem:[%s2143 + $0x890] sm:%s2135] %v2692
                  %v2694 = vld [vmem:[%s2142 + $0x2260] sm:%s2135]
                  %2695 = vst [vmem:[%s2143 + $0x898] sm:%s2135] %v2694
                  %v2696 = vld [vmem:[%s2142 + $0x2280] sm:%s2135]
                  %2697 = vst [vmem:[%s2143 + $0x8a0] sm:%s2135] %v2696
                  %v2698 = vld [vmem:[%s2142 + $0x22a0] sm:%s2135]
                  %2699 = vst [vmem:[%s2143 + $0x8a8] sm:%s2135] %v2698
                  %v2700 = vld [vmem:[%s2142 + $0x22c0] sm:%s2135]
                  %2701 = vst [vmem:[%s2143 + $0x8b0] sm:%s2135] %v2700
                  %v2702 = vld [vmem:[%s2142 + $0x22e0] sm:%s2135]
                  %2703 = vst [vmem:[%s2143 + $0x8b8] sm:%s2135] %v2702
                  %v2704 = vld [vmem:[%s2142 + $0x2300] sm:%s2135]
                  %2705 = vst [vmem:[%s2143 + $0x8c0] sm:%s2135] %v2704
                  %v2706 = vld [vmem:[%s2142 + $0x2320] sm:%s2135]
                  %2707 = vst [vmem:[%s2143 + $0x8c8] sm:%s2135] %v2706
                  %v2708 = vld [vmem:[%s2142 + $0x2340] sm:%s2135]
                  %2709 = vst [vmem:[%s2143 + $0x8d0] sm:%s2135] %v2708
                  %v2710 = vld [vmem:[%s2142 + $0x2360] sm:%s2135]
                  %2711 = vst [vmem:[%s2143 + $0x8d8] sm:%s2135] %v2710
                  %v2712 = vld [vmem:[%s2142 + $0x2380] sm:%s2135]
                  %2713 = vst [vmem:[%s2143 + $0x8e0] sm:%s2135] %v2712
                  %v2714 = vld [vmem:[%s2142 + $0x23a0] sm:%s2135]
                  %2715 = vst [vmem:[%s2143 + $0x8e8] sm:%s2135] %v2714
                  %v2716 = vld [vmem:[%s2142 + $0x23c0] sm:%s2135]
                  %2717 = vst [vmem:[%s2143 + $0x8f0] sm:%s2135] %v2716
                  %v2718 = vld [vmem:[%s2142 + $0x23e0] sm:%s2135]
                  %2719 = vst [vmem:[%s2143 + $0x8f8] sm:%s2135] %v2718
                  %v2720 = vld [vmem:[%s2142 + $0x2400] sm:%s2135]
                  %2721 = vst [vmem:[%s2143 + $0x900] sm:%s2135] %v2720
                  %v2722 = vld [vmem:[%s2142 + $0x2420] sm:%s2135]
                  %2723 = vst [vmem:[%s2143 + $0x908] sm:%s2135] %v2722
                  %v2724 = vld [vmem:[%s2142 + $0x2440] sm:%s2135]
                  %2725 = vst [vmem:[%s2143 + $0x910] sm:%s2135] %v2724
                  %v2726 = vld [vmem:[%s2142 + $0x2460] sm:%s2135]
                  %2727 = vst [vmem:[%s2143 + $0x918] sm:%s2135] %v2726
                  %v2728 = vld [vmem:[%s2142 + $0x2480] sm:%s2135]
                  %2729 = vst [vmem:[%s2143 + $0x920] sm:%s2135] %v2728
                  %v2730 = vld [vmem:[%s2142 + $0x24a0] sm:%s2135]
                  %2731 = vst [vmem:[%s2143 + $0x928] sm:%s2135] %v2730
                  %v2732 = vld [vmem:[%s2142 + $0x24c0] sm:%s2135]
                  %2733 = vst [vmem:[%s2143 + $0x930] sm:%s2135] %v2732
                  %v2734 = vld [vmem:[%s2142 + $0x24e0] sm:%s2135]
                  %2735 = vst [vmem:[%s2143 + $0x938] sm:%s2135] %v2734
                  %v2736 = vld [vmem:[%s2142 + $0x2500] sm:%s2135]
                  %2737 = vst [vmem:[%s2143 + $0x940] sm:%s2135] %v2736
                  %v2738 = vld [vmem:[%s2142 + $0x2520] sm:%s2135]
                  %2739 = vst [vmem:[%s2143 + $0x948] sm:%s2135] %v2738
                  %v2740 = vld [vmem:[%s2142 + $0x2540] sm:%s2135]
                  %2741 = vst [vmem:[%s2143 + $0x950] sm:%s2135] %v2740
                  %v2742 = vld [vmem:[%s2142 + $0x2560] sm:%s2135]
                  %2743 = vst [vmem:[%s2143 + $0x958] sm:%s2135] %v2742
                  %v2744 = vld [vmem:[%s2142 + $0x2580] sm:%s2135]
                  %2745 = vst [vmem:[%s2143 + $0x960] sm:%s2135] %v2744
                  %v2746 = vld [vmem:[%s2142 + $0x25a0] sm:%s2135]
                  %2747 = vst [vmem:[%s2143 + $0x968] sm:%s2135] %v2746
                  %v2748 = vld [vmem:[%s2142 + $0x25c0] sm:%s2135]
                  %2749 = vst [vmem:[%s2143 + $0x970] sm:%s2135] %v2748
                  %v2750 = vld [vmem:[%s2142 + $0x25e0] sm:%s2135]
                  %2751 = vst [vmem:[%s2143 + $0x978] sm:%s2135] %v2750
                  %v2752 = vld [vmem:[%s2142 + $0x2600] sm:%s2135]
                  %2753 = vst [vmem:[%s2143 + $0x980] sm:%s2135] %v2752
                  %v2754 = vld [vmem:[%s2142 + $0x2620] sm:%s2135]
                  %2755 = vst [vmem:[%s2143 + $0x988] sm:%s2135] %v2754
                  %v2756 = vld [vmem:[%s2142 + $0x2640] sm:%s2135]
                  %2757 = vst [vmem:[%s2143 + $0x990] sm:%s2135] %v2756
                $region82: #{net_forward.5} parent=69 // loop_footer
                  %s2141 = sadd.s32 1, %s2137
                $region83: #{net_forward.5} parent=69 // loop_footer_branch
                  %2136 = sbr.rel target = $region79
                $region84: #{net_forward.5} parent=69 // loop_exit
                  _
              $region70: #{net_forward.5} parent=43 // pred_fallthru
                _
            $region44: #{net_forward.5} parent=39 // pred_fallthru
              _
            // Predicated region
            $region45: #{net_forward.5} parent=39 // pred_check
              _
            $region46: #{net_forward.5} parent=39 // pred_check_branch
              %243 = sbr.rel target = $region48
            $region47: #{net_forward.5} parent=39 // pred_region
              %s245 = ssub.s32 256, 1
              loop: start=0, step=1, limit=1
              $region49: #{net_forward.5} parent=47 // loop_pre_header
                _
              $region50: #{net_forward.5} parent=47 // loop_header
                %s247 = sphi 0, %s251
                %p248 = scmp.ge.s32.totalorder %s247, 1
                %s252 = sphi %s237, %s237
                %s253 = sphi %s234, %s234
              $region51: #{net_forward.5} parent=47 // loop_header_branch
                %250 = sbr.rel (%p248) target = $region55
              $region52: #{net_forward.5} parent=47 // loop_body
                %v254 = vld [vmem:[%s252] sm:%s245]
                %255 = vst [vmem:[%s253] sm:%s245] %v254
                %v256 = vld [vmem:[%s252 + $0x20] sm:%s245]
                %257 = vst [vmem:[%s253 + $0x8] sm:%s245] %v256
                %v258 = vld [vmem:[%s252 + $0x40] sm:%s245]
                %259 = vst [vmem:[%s253 + $0x10] sm:%s245] %v258
                %v260 = vld [vmem:[%s252 + $0x60] sm:%s245]
                %261 = vst [vmem:[%s253 + $0x18] sm:%s245] %v260
                %v262 = vld [vmem:[%s252 + $0x80] sm:%s245]
                %263 = vst [vmem:[%s253 + $0x20] sm:%s245] %v262
                %v264 = vld [vmem:[%s252 + $0xa0] sm:%s245]
                %265 = vst [vmem:[%s253 + $0x28] sm:%s245] %v264
                %v266 = vld [vmem:[%s252 + $0xc0] sm:%s245]
                %267 = vst [vmem:[%s253 + $0x30] sm:%s245] %v266
                %v268 = vld [vmem:[%s252 + $0xe0] sm:%s245]
                %269 = vst [vmem:[%s253 + $0x38] sm:%s245] %v268
                %v270 = vld [vmem:[%s252 + $0x100] sm:%s245]
                %271 = vst [vmem:[%s253 + $0x40] sm:%s245] %v270
                %v272 = vld [vmem:[%s252 + $0x120] sm:%s245]
                %273 = vst [vmem:[%s253 + $0x48] sm:%s245] %v272
                %v274 = vld [vmem:[%s252 + $0x140] sm:%s245]
                %275 = vst [vmem:[%s253 + $0x50] sm:%s245] %v274
                %v276 = vld [vmem:[%s252 + $0x160] sm:%s245]
                %277 = vst [vmem:[%s253 + $0x58] sm:%s245] %v276
                %v278 = vld [vmem:[%s252 + $0x180] sm:%s245]
                %279 = vst [vmem:[%s253 + $0x60] sm:%s245] %v278
                %v280 = vld [vmem:[%s252 + $0x1a0] sm:%s245]
                %281 = vst [vmem:[%s253 + $0x68] sm:%s245] %v280
                %v282 = vld [vmem:[%s252 + $0x1c0] sm:%s245]
                %283 = vst [vmem:[%s253 + $0x70] sm:%s245] %v282
                %v284 = vld [vmem:[%s252 + $0x1e0] sm:%s245]
                %285 = vst [vmem:[%s253 + $0x78] sm:%s245] %v284
                %v286 = vld [vmem:[%s252 + $0x200] sm:%s245]
                %287 = vst [vmem:[%s253 + $0x80] sm:%s245] %v286
                %v288 = vld [vmem:[%s252 + $0x220] sm:%s245]
                %289 = vst [vmem:[%s253 + $0x88] sm:%s245] %v288
                %v290 = vld [vmem:[%s252 + $0x240] sm:%s245]
                %291 = vst [vmem:[%s253 + $0x90] sm:%s245] %v290
                %v292 = vld [vmem:[%s252 + $0x260] sm:%s245]
                %293 = vst [vmem:[%s253 + $0x98] sm:%s245] %v292
                %v294 = vld [vmem:[%s252 + $0x280] sm:%s245]
                %295 = vst [vmem:[%s253 + $0xa0] sm:%s245] %v294
                %v296 = vld [vmem:[%s252 + $0x2a0] sm:%s245]
                %297 = vst [vmem:[%s253 + $0xa8] sm:%s245] %v296
                %v298 = vld [vmem:[%s252 + $0x2c0] sm:%s245]
                %299 = vst [vmem:[%s253 + $0xb0] sm:%s245] %v298
                %v300 = vld [vmem:[%s252 + $0x2e0] sm:%s245]
                %301 = vst [vmem:[%s253 + $0xb8] sm:%s245] %v300
                %v302 = vld [vmem:[%s252 + $0x300] sm:%s245]
                %303 = vst [vmem:[%s253 + $0xc0] sm:%s245] %v302
                %v304 = vld [vmem:[%s252 + $0x320] sm:%s245]
                %305 = vst [vmem:[%s253 + $0xc8] sm:%s245] %v304
                %v306 = vld [vmem:[%s252 + $0x340] sm:%s245]
                %307 = vst [vmem:[%s253 + $0xd0] sm:%s245] %v306
                %v308 = vld [vmem:[%s252 + $0x360] sm:%s245]
                %309 = vst [vmem:[%s253 + $0xd8] sm:%s245] %v308
                %v310 = vld [vmem:[%s252 + $0x380] sm:%s245]
                %311 = vst [vmem:[%s253 + $0xe0] sm:%s245] %v310
                %v312 = vld [vmem:[%s252 + $0x3a0] sm:%s245]
                %313 = vst [vmem:[%s253 + $0xe8] sm:%s245] %v312
                %v314 = vld [vmem:[%s252 + $0x3c0] sm:%s245]
                %315 = vst [vmem:[%s253 + $0xf0] sm:%s245] %v314
                %v316 = vld [vmem:[%s252 + $0x3e0] sm:%s245]
                %317 = vst [vmem:[%s253 + $0xf8] sm:%s245] %v316
                %v318 = vld [vmem:[%s252 + $0x400] sm:%s245]
                %319 = vst [vmem:[%s253 + $0x100] sm:%s245] %v318
                %v320 = vld [vmem:[%s252 + $0x420] sm:%s245]
                %321 = vst [vmem:[%s253 + $0x108] sm:%s245] %v320
                %v322 = vld [vmem:[%s252 + $0x440] sm:%s245]
                %323 = vst [vmem:[%s253 + $0x110] sm:%s245] %v322
                %v324 = vld [vmem:[%s252 + $0x460] sm:%s245]
                %325 = vst [vmem:[%s253 + $0x118] sm:%s245] %v324
                %v326 = vld [vmem:[%s252 + $0x480] sm:%s245]
                %327 = vst [vmem:[%s253 + $0x120] sm:%s245] %v326
                %v328 = vld [vmem:[%s252 + $0x4a0] sm:%s245]
                %329 = vst [vmem:[%s253 + $0x128] sm:%s245] %v328
                %v330 = vld [vmem:[%s252 + $0x4c0] sm:%s245]
                %331 = vst [vmem:[%s253 + $0x130] sm:%s245] %v330
                %v332 = vld [vmem:[%s252 + $0x4e0] sm:%s245]
                %333 = vst [vmem:[%s253 + $0x138] sm:%s245] %v332
                %v334 = vld [vmem:[%s252 + $0x500] sm:%s245]
                %335 = vst [vmem:[%s253 + $0x140] sm:%s245] %v334
                %v336 = vld [vmem:[%s252 + $0x520] sm:%s245]
                %337 = vst [vmem:[%s253 + $0x148] sm:%s245] %v336
                %v338 = vld [vmem:[%s252 + $0x540] sm:%s245]
                %339 = vst [vmem:[%s253 + $0x150] sm:%s245] %v338
                %v340 = vld [vmem:[%s252 + $0x560] sm:%s245]
                %341 = vst [vmem:[%s253 + $0x158] sm:%s245] %v340
                %v342 = vld [vmem:[%s252 + $0x580] sm:%s245]
                %343 = vst [vmem:[%s253 + $0x160] sm:%s245] %v342
                %v344 = vld [vmem:[%s252 + $0x5a0] sm:%s245]
                %345 = vst [vmem:[%s253 + $0x168] sm:%s245] %v344
                %v346 = vld [vmem:[%s252 + $0x5c0] sm:%s245]
                %347 = vst [vmem:[%s253 + $0x170] sm:%s245] %v346
                %v348 = vld [vmem:[%s252 + $0x5e0] sm:%s245]
                %349 = vst [vmem:[%s253 + $0x178] sm:%s245] %v348
                %v350 = vld [vmem:[%s252 + $0x600] sm:%s245]
                %351 = vst [vmem:[%s253 + $0x180] sm:%s245] %v350
                %v352 = vld [vmem:[%s252 + $0x620] sm:%s245]
                %353 = vst [vmem:[%s253 + $0x188] sm:%s245] %v352
                %v354 = vld [vmem:[%s252 + $0x640] sm:%s245]
                %355 = vst [vmem:[%s253 + $0x190] sm:%s245] %v354
                %v356 = vld [vmem:[%s252 + $0x660] sm:%s245]
                %357 = vst [vmem:[%s253 + $0x198] sm:%s245] %v356
                %v358 = vld [vmem:[%s252 + $0x680] sm:%s245]
                %359 = vst [vmem:[%s253 + $0x1a0] sm:%s245] %v358
                %v360 = vld [vmem:[%s252 + $0x6a0] sm:%s245]
                %361 = vst [vmem:[%s253 + $0x1a8] sm:%s245] %v360
                %v362 = vld [vmem:[%s252 + $0x6c0] sm:%s245]
                %363 = vst [vmem:[%s253 + $0x1b0] sm:%s245] %v362
                %v364 = vld [vmem:[%s252 + $0x6e0] sm:%s245]
                %365 = vst [vmem:[%s253 + $0x1b8] sm:%s245] %v364
                %v366 = vld [vmem:[%s252 + $0x700] sm:%s245]
                %367 = vst [vmem:[%s253 + $0x1c0] sm:%s245] %v366
                %v368 = vld [vmem:[%s252 + $0x720] sm:%s245]
                %369 = vst [vmem:[%s253 + $0x1c8] sm:%s245] %v368
                %v370 = vld [vmem:[%s252 + $0x740] sm:%s245]
                %371 = vst [vmem:[%s253 + $0x1d0] sm:%s245] %v370
                %v372 = vld [vmem:[%s252 + $0x760] sm:%s245]
                %373 = vst [vmem:[%s253 + $0x1d8] sm:%s245] %v372
                %v374 = vld [vmem:[%s252 + $0x780] sm:%s245]
                %375 = vst [vmem:[%s253 + $0x1e0] sm:%s245] %v374
                %v376 = vld [vmem:[%s252 + $0x7a0] sm:%s245]
                %377 = vst [vmem:[%s253 + $0x1e8] sm:%s245] %v376
                %v378 = vld [vmem:[%s252 + $0x7c0] sm:%s245]
                %379 = vst [vmem:[%s253 + $0x1f0] sm:%s245] %v378
                %v380 = vld [vmem:[%s252 + $0x7e0] sm:%s245]
                %381 = vst [vmem:[%s253 + $0x1f8] sm:%s245] %v380
                %v382 = vld [vmem:[%s252 + $0x800] sm:%s245]
                %383 = vst [vmem:[%s253 + $0x200] sm:%s245] %v382
                %v384 = vld [vmem:[%s252 + $0x820] sm:%s245]
                %385 = vst [vmem:[%s253 + $0x208] sm:%s245] %v384
                %v386 = vld [vmem:[%s252 + $0x840] sm:%s245]
                %387 = vst [vmem:[%s253 + $0x210] sm:%s245] %v386
                %v388 = vld [vmem:[%s252 + $0x860] sm:%s245]
                %389 = vst [vmem:[%s253 + $0x218] sm:%s245] %v388
                %v390 = vld [vmem:[%s252 + $0x880] sm:%s245]
                %391 = vst [vmem:[%s253 + $0x220] sm:%s245] %v390
                %v392 = vld [vmem:[%s252 + $0x8a0] sm:%s245]
                %393 = vst [vmem:[%s253 + $0x228] sm:%s245] %v392
                %v394 = vld [vmem:[%s252 + $0x8c0] sm:%s245]
                %395 = vst [vmem:[%s253 + $0x230] sm:%s245] %v394
                %v396 = vld [vmem:[%s252 + $0x8e0] sm:%s245]
                %397 = vst [vmem:[%s253 + $0x238] sm:%s245] %v396
                %v398 = vld [vmem:[%s252 + $0x900] sm:%s245]
                %399 = vst [vmem:[%s253 + $0x240] sm:%s245] %v398
                %v400 = vld [vmem:[%s252 + $0x920] sm:%s245]
                %401 = vst [vmem:[%s253 + $0x248] sm:%s245] %v400
                %v402 = vld [vmem:[%s252 + $0x940] sm:%s245]
                %403 = vst [vmem:[%s253 + $0x250] sm:%s245] %v402
                %v404 = vld [vmem:[%s252 + $0x960] sm:%s245]
                %405 = vst [vmem:[%s253 + $0x258] sm:%s245] %v404
                %v406 = vld [vmem:[%s252 + $0x980] sm:%s245]
                %407 = vst [vmem:[%s253 + $0x260] sm:%s245] %v406
                %v408 = vld [vmem:[%s252 + $0x9a0] sm:%s245]
                %409 = vst [vmem:[%s253 + $0x268] sm:%s245] %v408
                %v410 = vld [vmem:[%s252 + $0x9c0] sm:%s245]
                %411 = vst [vmem:[%s253 + $0x270] sm:%s245] %v410
                %v412 = vld [vmem:[%s252 + $0x9e0] sm:%s245]
                %413 = vst [vmem:[%s253 + $0x278] sm:%s245] %v412
                %v414 = vld [vmem:[%s252 + $0xa00] sm:%s245]
                %415 = vst [vmem:[%s253 + $0x280] sm:%s245] %v414
                %v416 = vld [vmem:[%s252 + $0xa20] sm:%s245]
                %417 = vst [vmem:[%s253 + $0x288] sm:%s245] %v416
                %v418 = vld [vmem:[%s252 + $0xa40] sm:%s245]
                %419 = vst [vmem:[%s253 + $0x290] sm:%s245] %v418
                %v420 = vld [vmem:[%s252 + $0xa60] sm:%s245]
                %421 = vst [vmem:[%s253 + $0x298] sm:%s245] %v420
                %v422 = vld [vmem:[%s252 + $0xa80] sm:%s245]
                %423 = vst [vmem:[%s253 + $0x2a0] sm:%s245] %v422
                %v424 = vld [vmem:[%s252 + $0xaa0] sm:%s245]
                %425 = vst [vmem:[%s253 + $0x2a8] sm:%s245] %v424
                %v426 = vld [vmem:[%s252 + $0xac0] sm:%s245]
                %427 = vst [vmem:[%s253 + $0x2b0] sm:%s245] %v426
                %v428 = vld [vmem:[%s252 + $0xae0] sm:%s245]
                %429 = vst [vmem:[%s253 + $0x2b8] sm:%s245] %v428
                %v430 = vld [vmem:[%s252 + $0xb00] sm:%s245]
                %431 = vst [vmem:[%s253 + $0x2c0] sm:%s245] %v430
                %v432 = vld [vmem:[%s252 + $0xb20] sm:%s245]
                %433 = vst [vmem:[%s253 + $0x2c8] sm:%s245] %v432
                %v434 = vld [vmem:[%s252 + $0xb40] sm:%s245]
                %435 = vst [vmem:[%s253 + $0x2d0] sm:%s245] %v434
                %v436 = vld [vmem:[%s252 + $0xb60] sm:%s245]
                %437 = vst [vmem:[%s253 + $0x2d8] sm:%s245] %v436
                %v438 = vld [vmem:[%s252 + $0xb80] sm:%s245]
                %439 = vst [vmem:[%s253 + $0x2e0] sm:%s245] %v438
                %v440 = vld [vmem:[%s252 + $0xba0] sm:%s245]
                %441 = vst [vmem:[%s253 + $0x2e8] sm:%s245] %v440
                %v442 = vld [vmem:[%s252 + $0xbc0] sm:%s245]
                %443 = vst [vmem:[%s253 + $0x2f0] sm:%s245] %v442
                %v444 = vld [vmem:[%s252 + $0xbe0] sm:%s245]
                %445 = vst [vmem:[%s253 + $0x2f8] sm:%s245] %v444
                %v446 = vld [vmem:[%s252 + $0xc00] sm:%s245]
                %447 = vst [vmem:[%s253 + $0x300] sm:%s245] %v446
                %v448 = vld [vmem:[%s252 + $0xc20] sm:%s245]
                %449 = vst [vmem:[%s253 + $0x308] sm:%s245] %v448
                %v450 = vld [vmem:[%s252 + $0xc40] sm:%s245]
                %451 = vst [vmem:[%s253 + $0x310] sm:%s245] %v450
                %v452 = vld [vmem:[%s252 + $0xc60] sm:%s245]
                %453 = vst [vmem:[%s253 + $0x318] sm:%s245] %v452
                %v454 = vld [vmem:[%s252 + $0xc80] sm:%s245]
                %455 = vst [vmem:[%s253 + $0x320] sm:%s245] %v454
                %v456 = vld [vmem:[%s252 + $0xca0] sm:%s245]
                %457 = vst [vmem:[%s253 + $0x328] sm:%s245] %v456
                %v458 = vld [vmem:[%s252 + $0xcc0] sm:%s245]
                %459 = vst [vmem:[%s253 + $0x330] sm:%s245] %v458
                %v460 = vld [vmem:[%s252 + $0xce0] sm:%s245]
                %461 = vst [vmem:[%s253 + $0x338] sm:%s245] %v460
                %v462 = vld [vmem:[%s252 + $0xd00] sm:%s245]
                %463 = vst [vmem:[%s253 + $0x340] sm:%s245] %v462
                %v464 = vld [vmem:[%s252 + $0xd20] sm:%s245]
                %465 = vst [vmem:[%s253 + $0x348] sm:%s245] %v464
                %v466 = vld [vmem:[%s252 + $0xd40] sm:%s245]
                %467 = vst [vmem:[%s253 + $0x350] sm:%s245] %v466
                %v468 = vld [vmem:[%s252 + $0xd60] sm:%s245]
                %469 = vst [vmem:[%s253 + $0x358] sm:%s245] %v468
                %v470 = vld [vmem:[%s252 + $0xd80] sm:%s245]
                %471 = vst [vmem:[%s253 + $0x360] sm:%s245] %v470
                %v472 = vld [vmem:[%s252 + $0xda0] sm:%s245]
                %473 = vst [vmem:[%s253 + $0x368] sm:%s245] %v472
                %v474 = vld [vmem:[%s252 + $0xdc0] sm:%s245]
                %475 = vst [vmem:[%s253 + $0x370] sm:%s245] %v474
                %v476 = vld [vmem:[%s252 + $0xde0] sm:%s245]
                %477 = vst [vmem:[%s253 + $0x378] sm:%s245] %v476
                %v478 = vld [vmem:[%s252 + $0xe00] sm:%s245]
                %479 = vst [vmem:[%s253 + $0x380] sm:%s245] %v478
                %v480 = vld [vmem:[%s252 + $0xe20] sm:%s245]
                %481 = vst [vmem:[%s253 + $0x388] sm:%s245] %v480
                %v482 = vld [vmem:[%s252 + $0xe40] sm:%s245]
                %483 = vst [vmem:[%s253 + $0x390] sm:%s245] %v482
                %v484 = vld [vmem:[%s252 + $0xe60] sm:%s245]
                %485 = vst [vmem:[%s253 + $0x398] sm:%s245] %v484
                %v486 = vld [vmem:[%s252 + $0xe80] sm:%s245]
                %487 = vst [vmem:[%s253 + $0x3a0] sm:%s245] %v486
                %v488 = vld [vmem:[%s252 + $0xea0] sm:%s245]
                %489 = vst [vmem:[%s253 + $0x3a8] sm:%s245] %v488
                %v490 = vld [vmem:[%s252 + $0xec0] sm:%s245]
                %491 = vst [vmem:[%s253 + $0x3b0] sm:%s245] %v490
                %v492 = vld [vmem:[%s252 + $0xee0] sm:%s245]
                %493 = vst [vmem:[%s253 + $0x3b8] sm:%s245] %v492
                %v494 = vld [vmem:[%s252 + $0xf00] sm:%s245]
                %495 = vst [vmem:[%s253 + $0x3c0] sm:%s245] %v494
                %v496 = vld [vmem:[%s252 + $0xf20] sm:%s245]
                %497 = vst [vmem:[%s253 + $0x3c8] sm:%s245] %v496
                %v498 = vld [vmem:[%s252 + $0xf40] sm:%s245]
                %499 = vst [vmem:[%s253 + $0x3d0] sm:%s245] %v498
                %v500 = vld [vmem:[%s252 + $0xf60] sm:%s245]
                %501 = vst [vmem:[%s253 + $0x3d8] sm:%s245] %v500
                %v502 = vld [vmem:[%s252 + $0xf80] sm:%s245]
                %503 = vst [vmem:[%s253 + $0x3e0] sm:%s245] %v502
                %v504 = vld [vmem:[%s252 + $0xfa0] sm:%s245]
                %505 = vst [vmem:[%s253 + $0x3e8] sm:%s245] %v504
                %v506 = vld [vmem:[%s252 + $0xfc0] sm:%s245]
                %507 = vst [vmem:[%s253 + $0x3f0] sm:%s245] %v506
                %v508 = vld [vmem:[%s252 + $0xfe0] sm:%s245]
                %509 = vst [vmem:[%s253 + $0x3f8] sm:%s245] %v508
                %v510 = vld [vmem:[%s252 + $0x1000] sm:%s245]
                %511 = vst [vmem:[%s253 + $0x400] sm:%s245] %v510
                %v512 = vld [vmem:[%s252 + $0x1020] sm:%s245]
                %513 = vst [vmem:[%s253 + $0x408] sm:%s245] %v512
                %v514 = vld [vmem:[%s252 + $0x1040] sm:%s245]
                %515 = vst [vmem:[%s253 + $0x410] sm:%s245] %v514
                %v516 = vld [vmem:[%s252 + $0x1060] sm:%s245]
                %517 = vst [vmem:[%s253 + $0x418] sm:%s245] %v516
                %v518 = vld [vmem:[%s252 + $0x1080] sm:%s245]
                %519 = vst [vmem:[%s253 + $0x420] sm:%s245] %v518
                %v520 = vld [vmem:[%s252 + $0x10a0] sm:%s245]
                %521 = vst [vmem:[%s253 + $0x428] sm:%s245] %v520
                %v522 = vld [vmem:[%s252 + $0x10c0] sm:%s245]
                %523 = vst [vmem:[%s253 + $0x430] sm:%s245] %v522
                %v524 = vld [vmem:[%s252 + $0x10e0] sm:%s245]
                %525 = vst [vmem:[%s253 + $0x438] sm:%s245] %v524
                %v526 = vld [vmem:[%s252 + $0x1100] sm:%s245]
                %527 = vst [vmem:[%s253 + $0x440] sm:%s245] %v526
                %v528 = vld [vmem:[%s252 + $0x1120] sm:%s245]
                %529 = vst [vmem:[%s253 + $0x448] sm:%s245] %v528
                %v530 = vld [vmem:[%s252 + $0x1140] sm:%s245]
                %531 = vst [vmem:[%s253 + $0x450] sm:%s245] %v530
                %v532 = vld [vmem:[%s252 + $0x1160] sm:%s245]
                %533 = vst [vmem:[%s253 + $0x458] sm:%s245] %v532
                %v534 = vld [vmem:[%s252 + $0x1180] sm:%s245]
                %535 = vst [vmem:[%s253 + $0x460] sm:%s245] %v534
                %v536 = vld [vmem:[%s252 + $0x11a0] sm:%s245]
                %537 = vst [vmem:[%s253 + $0x468] sm:%s245] %v536
                %v538 = vld [vmem:[%s252 + $0x11c0] sm:%s245]
                %539 = vst [vmem:[%s253 + $0x470] sm:%s245] %v538
                %v540 = vld [vmem:[%s252 + $0x11e0] sm:%s245]
                %541 = vst [vmem:[%s253 + $0x478] sm:%s245] %v540
                %v542 = vld [vmem:[%s252 + $0x1200] sm:%s245]
                %543 = vst [vmem:[%s253 + $0x480] sm:%s245] %v542
                %v544 = vld [vmem:[%s252 + $0x1220] sm:%s245]
                %545 = vst [vmem:[%s253 + $0x488] sm:%s245] %v544
                %v546 = vld [vmem:[%s252 + $0x1240] sm:%s245]
                %547 = vst [vmem:[%s253 + $0x490] sm:%s245] %v546
                %v548 = vld [vmem:[%s252 + $0x1260] sm:%s245]
                %549 = vst [vmem:[%s253 + $0x498] sm:%s245] %v548
                %v550 = vld [vmem:[%s252 + $0x1280] sm:%s245]
                %551 = vst [vmem:[%s253 + $0x4a0] sm:%s245] %v550
                %v552 = vld [vmem:[%s252 + $0x12a0] sm:%s245]
                %553 = vst [vmem:[%s253 + $0x4a8] sm:%s245] %v552
                %v554 = vld [vmem:[%s252 + $0x12c0] sm:%s245]
                %555 = vst [vmem:[%s253 + $0x4b0] sm:%s245] %v554
                %v556 = vld [vmem:[%s252 + $0x12e0] sm:%s245]
                %557 = vst [vmem:[%s253 + $0x4b8] sm:%s245] %v556
                %v558 = vld [vmem:[%s252 + $0x1300] sm:%s245]
                %559 = vst [vmem:[%s253 + $0x4c0] sm:%s245] %v558
                %v560 = vld [vmem:[%s252 + $0x1320] sm:%s245]
                %561 = vst [vmem:[%s253 + $0x4c8] sm:%s245] %v560
                %v562 = vld [vmem:[%s252 + $0x1340] sm:%s245]
                %563 = vst [vmem:[%s253 + $0x4d0] sm:%s245] %v562
                %v564 = vld [vmem:[%s252 + $0x1360] sm:%s245]
                %565 = vst [vmem:[%s253 + $0x4d8] sm:%s245] %v564
                %v566 = vld [vmem:[%s252 + $0x1380] sm:%s245]
                %567 = vst [vmem:[%s253 + $0x4e0] sm:%s245] %v566
                %v568 = vld [vmem:[%s252 + $0x13a0] sm:%s245]
                %569 = vst [vmem:[%s253 + $0x4e8] sm:%s245] %v568
                %v570 = vld [vmem:[%s252 + $0x13c0] sm:%s245]
                %571 = vst [vmem:[%s253 + $0x4f0] sm:%s245] %v570
                %v572 = vld [vmem:[%s252 + $0x13e0] sm:%s245]
                %573 = vst [vmem:[%s253 + $0x4f8] sm:%s245] %v572
                %v574 = vld [vmem:[%s252 + $0x1400] sm:%s245]
                %575 = vst [vmem:[%s253 + $0x500] sm:%s245] %v574
                %v576 = vld [vmem:[%s252 + $0x1420] sm:%s245]
                %577 = vst [vmem:[%s253 + $0x508] sm:%s245] %v576
                %v578 = vld [vmem:[%s252 + $0x1440] sm:%s245]
                %579 = vst [vmem:[%s253 + $0x510] sm:%s245] %v578
                %v580 = vld [vmem:[%s252 + $0x1460] sm:%s245]
                %581 = vst [vmem:[%s253 + $0x518] sm:%s245] %v580
                %v582 = vld [vmem:[%s252 + $0x1480] sm:%s245]
                %583 = vst [vmem:[%s253 + $0x520] sm:%s245] %v582
                %v584 = vld [vmem:[%s252 + $0x14a0] sm:%s245]
                %585 = vst [vmem:[%s253 + $0x528] sm:%s245] %v584
                %v586 = vld [vmem:[%s252 + $0x14c0] sm:%s245]
                %587 = vst [vmem:[%s253 + $0x530] sm:%s245] %v586
                %v588 = vld [vmem:[%s252 + $0x14e0] sm:%s245]
                %589 = vst [vmem:[%s253 + $0x538] sm:%s245] %v588
                %v590 = vld [vmem:[%s252 + $0x1500] sm:%s245]
                %591 = vst [vmem:[%s253 + $0x540] sm:%s245] %v590
                %v592 = vld [vmem:[%s252 + $0x1520] sm:%s245]
                %593 = vst [vmem:[%s253 + $0x548] sm:%s245] %v592
                %v594 = vld [vmem:[%s252 + $0x1540] sm:%s245]
                %595 = vst [vmem:[%s253 + $0x550] sm:%s245] %v594
                %v596 = vld [vmem:[%s252 + $0x1560] sm:%s245]
                %597 = vst [vmem:[%s253 + $0x558] sm:%s245] %v596
                %v598 = vld [vmem:[%s252 + $0x1580] sm:%s245]
                %599 = vst [vmem:[%s253 + $0x560] sm:%s245] %v598
                %v600 = vld [vmem:[%s252 + $0x15a0] sm:%s245]
                %601 = vst [vmem:[%s253 + $0x568] sm:%s245] %v600
                %v602 = vld [vmem:[%s252 + $0x15c0] sm:%s245]
                %603 = vst [vmem:[%s253 + $0x570] sm:%s245] %v602
                %v604 = vld [vmem:[%s252 + $0x15e0] sm:%s245]
                %605 = vst [vmem:[%s253 + $0x578] sm:%s245] %v604
                %v606 = vld [vmem:[%s252 + $0x1600] sm:%s245]
                %607 = vst [vmem:[%s253 + $0x580] sm:%s245] %v606
                %v608 = vld [vmem:[%s252 + $0x1620] sm:%s245]
                %609 = vst [vmem:[%s253 + $0x588] sm:%s245] %v608
                %v610 = vld [vmem:[%s252 + $0x1640] sm:%s245]
                %611 = vst [vmem:[%s253 + $0x590] sm:%s245] %v610
                %v612 = vld [vmem:[%s252 + $0x1660] sm:%s245]
                %613 = vst [vmem:[%s253 + $0x598] sm:%s245] %v612
                %v614 = vld [vmem:[%s252 + $0x1680] sm:%s245]
                %615 = vst [vmem:[%s253 + $0x5a0] sm:%s245] %v614
                %v616 = vld [vmem:[%s252 + $0x16a0] sm:%s245]
                %617 = vst [vmem:[%s253 + $0x5a8] sm:%s245] %v616
                %v618 = vld [vmem:[%s252 + $0x16c0] sm:%s245]
                %619 = vst [vmem:[%s253 + $0x5b0] sm:%s245] %v618
                %v620 = vld [vmem:[%s252 + $0x16e0] sm:%s245]
                %621 = vst [vmem:[%s253 + $0x5b8] sm:%s245] %v620
                %v622 = vld [vmem:[%s252 + $0x1700] sm:%s245]
                %623 = vst [vmem:[%s253 + $0x5c0] sm:%s245] %v622
                %v624 = vld [vmem:[%s252 + $0x1720] sm:%s245]
                %625 = vst [vmem:[%s253 + $0x5c8] sm:%s245] %v624
                %v626 = vld [vmem:[%s252 + $0x1740] sm:%s245]
                %627 = vst [vmem:[%s253 + $0x5d0] sm:%s245] %v626
                %v628 = vld [vmem:[%s252 + $0x1760] sm:%s245]
                %629 = vst [vmem:[%s253 + $0x5d8] sm:%s245] %v628
                %v630 = vld [vmem:[%s252 + $0x1780] sm:%s245]
                %631 = vst [vmem:[%s253 + $0x5e0] sm:%s245] %v630
                %v632 = vld [vmem:[%s252 + $0x17a0] sm:%s245]
                %633 = vst [vmem:[%s253 + $0x5e8] sm:%s245] %v632
                %v634 = vld [vmem:[%s252 + $0x17c0] sm:%s245]
                %635 = vst [vmem:[%s253 + $0x5f0] sm:%s245] %v634
                %v636 = vld [vmem:[%s252 + $0x17e0] sm:%s245]
                %637 = vst [vmem:[%s253 + $0x5f8] sm:%s245] %v636
                %v638 = vld [vmem:[%s252 + $0x1800] sm:%s245]
                %639 = vst [vmem:[%s253 + $0x600] sm:%s245] %v638
                %v640 = vld [vmem:[%s252 + $0x1820] sm:%s245]
                %641 = vst [vmem:[%s253 + $0x608] sm:%s245] %v640
                %v642 = vld [vmem:[%s252 + $0x1840] sm:%s245]
                %643 = vst [vmem:[%s253 + $0x610] sm:%s245] %v642
                %v644 = vld [vmem:[%s252 + $0x1860] sm:%s245]
                %645 = vst [vmem:[%s253 + $0x618] sm:%s245] %v644
                %v646 = vld [vmem:[%s252 + $0x1880] sm:%s245]
                %647 = vst [vmem:[%s253 + $0x620] sm:%s245] %v646
                %v648 = vld [vmem:[%s252 + $0x18a0] sm:%s245]
                %649 = vst [vmem:[%s253 + $0x628] sm:%s245] %v648
                %v650 = vld [vmem:[%s252 + $0x18c0] sm:%s245]
                %651 = vst [vmem:[%s253 + $0x630] sm:%s245] %v650
                %v652 = vld [vmem:[%s252 + $0x18e0] sm:%s245]
                %653 = vst [vmem:[%s253 + $0x638] sm:%s245] %v652
                %v654 = vld [vmem:[%s252 + $0x1900] sm:%s245]
                %655 = vst [vmem:[%s253 + $0x640] sm:%s245] %v654
                %v656 = vld [vmem:[%s252 + $0x1920] sm:%s245]
                %657 = vst [vmem:[%s253 + $0x648] sm:%s245] %v656
                %v658 = vld [vmem:[%s252 + $0x1940] sm:%s245]
                %659 = vst [vmem:[%s253 + $0x650] sm:%s245] %v658
                %v660 = vld [vmem:[%s252 + $0x1960] sm:%s245]
                %661 = vst [vmem:[%s253 + $0x658] sm:%s245] %v660
                %v662 = vld [vmem:[%s252 + $0x1980] sm:%s245]
                %663 = vst [vmem:[%s253 + $0x660] sm:%s245] %v662
                %v664 = vld [vmem:[%s252 + $0x19a0] sm:%s245]
                %665 = vst [vmem:[%s253 + $0x668] sm:%s245] %v664
                %v666 = vld [vmem:[%s252 + $0x19c0] sm:%s245]
                %667 = vst [vmem:[%s253 + $0x670] sm:%s245] %v666
                %v668 = vld [vmem:[%s252 + $0x19e0] sm:%s245]
                %669 = vst [vmem:[%s253 + $0x678] sm:%s245] %v668
                %v670 = vld [vmem:[%s252 + $0x1a00] sm:%s245]
                %671 = vst [vmem:[%s253 + $0x680] sm:%s245] %v670
                %v672 = vld [vmem:[%s252 + $0x1a20] sm:%s245]
                %673 = vst [vmem:[%s253 + $0x688] sm:%s245] %v672
                %v674 = vld [vmem:[%s252 + $0x1a40] sm:%s245]
                %675 = vst [vmem:[%s253 + $0x690] sm:%s245] %v674
                %v676 = vld [vmem:[%s252 + $0x1a60] sm:%s245]
                %677 = vst [vmem:[%s253 + $0x698] sm:%s245] %v676
                %v678 = vld [vmem:[%s252 + $0x1a80] sm:%s245]
                %679 = vst [vmem:[%s253 + $0x6a0] sm:%s245] %v678
                %v680 = vld [vmem:[%s252 + $0x1aa0] sm:%s245]
                %681 = vst [vmem:[%s253 + $0x6a8] sm:%s245] %v680
                %v682 = vld [vmem:[%s252 + $0x1ac0] sm:%s245]
                %683 = vst [vmem:[%s253 + $0x6b0] sm:%s245] %v682
                %v684 = vld [vmem:[%s252 + $0x1ae0] sm:%s245]
                %685 = vst [vmem:[%s253 + $0x6b8] sm:%s245] %v684
                %v686 = vld [vmem:[%s252 + $0x1b00] sm:%s245]
                %687 = vst [vmem:[%s253 + $0x6c0] sm:%s245] %v686
                %v688 = vld [vmem:[%s252 + $0x1b20] sm:%s245]
                %689 = vst [vmem:[%s253 + $0x6c8] sm:%s245] %v688
                %v690 = vld [vmem:[%s252 + $0x1b40] sm:%s245]
                %691 = vst [vmem:[%s253 + $0x6d0] sm:%s245] %v690
                %v692 = vld [vmem:[%s252 + $0x1b60] sm:%s245]
                %693 = vst [vmem:[%s253 + $0x6d8] sm:%s245] %v692
                %v694 = vld [vmem:[%s252 + $0x1b80] sm:%s245]
                %695 = vst [vmem:[%s253 + $0x6e0] sm:%s245] %v694
                %v696 = vld [vmem:[%s252 + $0x1ba0] sm:%s245]
                %697 = vst [vmem:[%s253 + $0x6e8] sm:%s245] %v696
                %v698 = vld [vmem:[%s252 + $0x1bc0] sm:%s245]
                %699 = vst [vmem:[%s253 + $0x6f0] sm:%s245] %v698
                %v700 = vld [vmem:[%s252 + $0x1be0] sm:%s245]
                %701 = vst [vmem:[%s253 + $0x6f8] sm:%s245] %v700
                %v702 = vld [vmem:[%s252 + $0x1c00] sm:%s245]
                %703 = vst [vmem:[%s253 + $0x700] sm:%s245] %v702
                %v704 = vld [vmem:[%s252 + $0x1c20] sm:%s245]
                %705 = vst [vmem:[%s253 + $0x708] sm:%s245] %v704
                %v706 = vld [vmem:[%s252 + $0x1c40] sm:%s245]
                %707 = vst [vmem:[%s253 + $0x710] sm:%s245] %v706
                %v708 = vld [vmem:[%s252 + $0x1c60] sm:%s245]
                %709 = vst [vmem:[%s253 + $0x718] sm:%s245] %v708
                %v710 = vld [vmem:[%s252 + $0x1c80] sm:%s245]
                %711 = vst [vmem:[%s253 + $0x720] sm:%s245] %v710
                %v712 = vld [vmem:[%s252 + $0x1ca0] sm:%s245]
                %713 = vst [vmem:[%s253 + $0x728] sm:%s245] %v712
                %v714 = vld [vmem:[%s252 + $0x1cc0] sm:%s245]
                %715 = vst [vmem:[%s253 + $0x730] sm:%s245] %v714
                %v716 = vld [vmem:[%s252 + $0x1ce0] sm:%s245]
                %717 = vst [vmem:[%s253 + $0x738] sm:%s245] %v716
                %v718 = vld [vmem:[%s252 + $0x1d00] sm:%s245]
                %719 = vst [vmem:[%s253 + $0x740] sm:%s245] %v718
                %v720 = vld [vmem:[%s252 + $0x1d20] sm:%s245]
                %721 = vst [vmem:[%s253 + $0x748] sm:%s245] %v720
                %v722 = vld [vmem:[%s252 + $0x1d40] sm:%s245]
                %723 = vst [vmem:[%s253 + $0x750] sm:%s245] %v722
                %v724 = vld [vmem:[%s252 + $0x1d60] sm:%s245]
                %725 = vst [vmem:[%s253 + $0x758] sm:%s245] %v724
                %v726 = vld [vmem:[%s252 + $0x1d80] sm:%s245]
                %727 = vst [vmem:[%s253 + $0x760] sm:%s245] %v726
                %v728 = vld [vmem:[%s252 + $0x1da0] sm:%s245]
                %729 = vst [vmem:[%s253 + $0x768] sm:%s245] %v728
                %v730 = vld [vmem:[%s252 + $0x1dc0] sm:%s245]
                %731 = vst [vmem:[%s253 + $0x770] sm:%s245] %v730
                %v732 = vld [vmem:[%s252 + $0x1de0] sm:%s245]
                %733 = vst [vmem:[%s253 + $0x778] sm:%s245] %v732
                %v734 = vld [vmem:[%s252 + $0x1e00] sm:%s245]
                %735 = vst [vmem:[%s253 + $0x780] sm:%s245] %v734
                %v736 = vld [vmem:[%s252 + $0x1e20] sm:%s245]
                %737 = vst [vmem:[%s253 + $0x788] sm:%s245] %v736
                %v738 = vld [vmem:[%s252 + $0x1e40] sm:%s245]
                %739 = vst [vmem:[%s253 + $0x790] sm:%s245] %v738
                %v740 = vld [vmem:[%s252 + $0x1e60] sm:%s245]
                %741 = vst [vmem:[%s253 + $0x798] sm:%s245] %v740
                %v742 = vld [vmem:[%s252 + $0x1e80] sm:%s245]
                %743 = vst [vmem:[%s253 + $0x7a0] sm:%s245] %v742
                %v744 = vld [vmem:[%s252 + $0x1ea0] sm:%s245]
                %745 = vst [vmem:[%s253 + $0x7a8] sm:%s245] %v744
                %v746 = vld [vmem:[%s252 + $0x1ec0] sm:%s245]
                %747 = vst [vmem:[%s253 + $0x7b0] sm:%s245] %v746
                %v748 = vld [vmem:[%s252 + $0x1ee0] sm:%s245]
                %749 = vst [vmem:[%s253 + $0x7b8] sm:%s245] %v748
                %v750 = vld [vmem:[%s252 + $0x1f00] sm:%s245]
                %751 = vst [vmem:[%s253 + $0x7c0] sm:%s245] %v750
                %v752 = vld [vmem:[%s252 + $0x1f20] sm:%s245]
                %753 = vst [vmem:[%s253 + $0x7c8] sm:%s245] %v752
                %v754 = vld [vmem:[%s252 + $0x1f40] sm:%s245]
                %755 = vst [vmem:[%s253 + $0x7d0] sm:%s245] %v754
                %v756 = vld [vmem:[%s252 + $0x1f60] sm:%s245]
                %757 = vst [vmem:[%s253 + $0x7d8] sm:%s245] %v756
                %v758 = vld [vmem:[%s252 + $0x1f80] sm:%s245]
                %759 = vst [vmem:[%s253 + $0x7e0] sm:%s245] %v758
                %v760 = vld [vmem:[%s252 + $0x1fa0] sm:%s245]
                %761 = vst [vmem:[%s253 + $0x7e8] sm:%s245] %v760
                %v762 = vld [vmem:[%s252 + $0x1fc0] sm:%s245]
                %763 = vst [vmem:[%s253 + $0x7f0] sm:%s245] %v762
                %v764 = vld [vmem:[%s252 + $0x1fe0] sm:%s245]
                %765 = vst [vmem:[%s253 + $0x7f8] sm:%s245] %v764
                %v766 = vld [vmem:[%s252 + $0x2000] sm:%s245]
                %767 = vst [vmem:[%s253 + $0x800] sm:%s245] %v766
                %v768 = vld [vmem:[%s252 + $0x2020] sm:%s245]
                %769 = vst [vmem:[%s253 + $0x808] sm:%s245] %v768
                %v770 = vld [vmem:[%s252 + $0x2040] sm:%s245]
                %771 = vst [vmem:[%s253 + $0x810] sm:%s245] %v770
                %v772 = vld [vmem:[%s252 + $0x2060] sm:%s245]
                %773 = vst [vmem:[%s253 + $0x818] sm:%s245] %v772
                %v774 = vld [vmem:[%s252 + $0x2080] sm:%s245]
                %775 = vst [vmem:[%s253 + $0x820] sm:%s245] %v774
                %v776 = vld [vmem:[%s252 + $0x20a0] sm:%s245]
                %777 = vst [vmem:[%s253 + $0x828] sm:%s245] %v776
                %v778 = vld [vmem:[%s252 + $0x20c0] sm:%s245]
                %779 = vst [vmem:[%s253 + $0x830] sm:%s245] %v778
                %v780 = vld [vmem:[%s252 + $0x20e0] sm:%s245]
                %781 = vst [vmem:[%s253 + $0x838] sm:%s245] %v780
                %v782 = vld [vmem:[%s252 + $0x2100] sm:%s245]
                %783 = vst [vmem:[%s253 + $0x840] sm:%s245] %v782
                %v784 = vld [vmem:[%s252 + $0x2120] sm:%s245]
                %785 = vst [vmem:[%s253 + $0x848] sm:%s245] %v784
                %v786 = vld [vmem:[%s252 + $0x2140] sm:%s245]
                %787 = vst [vmem:[%s253 + $0x850] sm:%s245] %v786
                %v788 = vld [vmem:[%s252 + $0x2160] sm:%s245]
                %789 = vst [vmem:[%s253 + $0x858] sm:%s245] %v788
                %v790 = vld [vmem:[%s252 + $0x2180] sm:%s245]
                %791 = vst [vmem:[%s253 + $0x860] sm:%s245] %v790
                %v792 = vld [vmem:[%s252 + $0x21a0] sm:%s245]
                %793 = vst [vmem:[%s253 + $0x868] sm:%s245] %v792
                %v794 = vld [vmem:[%s252 + $0x21c0] sm:%s245]
                %795 = vst [vmem:[%s253 + $0x870] sm:%s245] %v794
                %v796 = vld [vmem:[%s252 + $0x21e0] sm:%s245]
                %797 = vst [vmem:[%s253 + $0x878] sm:%s245] %v796
                %v798 = vld [vmem:[%s252 + $0x2200] sm:%s245]
                %799 = vst [vmem:[%s253 + $0x880] sm:%s245] %v798
                %v800 = vld [vmem:[%s252 + $0x2220] sm:%s245]
                %801 = vst [vmem:[%s253 + $0x888] sm:%s245] %v800
                %v802 = vld [vmem:[%s252 + $0x2240] sm:%s245]
                %803 = vst [vmem:[%s253 + $0x890] sm:%s245] %v802
                %v804 = vld [vmem:[%s252 + $0x2260] sm:%s245]
                %805 = vst [vmem:[%s253 + $0x898] sm:%s245] %v804
                %v806 = vld [vmem:[%s252 + $0x2280] sm:%s245]
                %807 = vst [vmem:[%s253 + $0x8a0] sm:%s245] %v806
                %v808 = vld [vmem:[%s252 + $0x22a0] sm:%s245]
                %809 = vst [vmem:[%s253 + $0x8a8] sm:%s245] %v808
                %v810 = vld [vmem:[%s252 + $0x22c0] sm:%s245]
                %811 = vst [vmem:[%s253 + $0x8b0] sm:%s245] %v810
                %v812 = vld [vmem:[%s252 + $0x22e0] sm:%s245]
                %813 = vst [vmem:[%s253 + $0x8b8] sm:%s245] %v812
                %v814 = vld [vmem:[%s252 + $0x2300] sm:%s245]
                %815 = vst [vmem:[%s253 + $0x8c0] sm:%s245] %v814
                %v816 = vld [vmem:[%s252 + $0x2320] sm:%s245]
                %817 = vst [vmem:[%s253 + $0x8c8] sm:%s245] %v816
                %v818 = vld [vmem:[%s252 + $0x2340] sm:%s245]
                %819 = vst [vmem:[%s253 + $0x8d0] sm:%s245] %v818
                %v820 = vld [vmem:[%s252 + $0x2360] sm:%s245]
                %821 = vst [vmem:[%s253 + $0x8d8] sm:%s245] %v820
                %v822 = vld [vmem:[%s252 + $0x2380] sm:%s245]
                %823 = vst [vmem:[%s253 + $0x8e0] sm:%s245] %v822
                %v824 = vld [vmem:[%s252 + $0x23a0] sm:%s245]
                %825 = vst [vmem:[%s253 + $0x8e8] sm:%s245] %v824
                %v826 = vld [vmem:[%s252 + $0x23c0] sm:%s245]
                %827 = vst [vmem:[%s253 + $0x8f0] sm:%s245] %v826
                %v828 = vld [vmem:[%s252 + $0x23e0] sm:%s245]
                %829 = vst [vmem:[%s253 + $0x8f8] sm:%s245] %v828
                %v830 = vld [vmem:[%s252 + $0x2400] sm:%s245]
                %831 = vst [vmem:[%s253 + $0x900] sm:%s245] %v830
                %v832 = vld [vmem:[%s252 + $0x2420] sm:%s245]
                %833 = vst [vmem:[%s253 + $0x908] sm:%s245] %v832
                %v834 = vld [vmem:[%s252 + $0x2440] sm:%s245]
                %835 = vst [vmem:[%s253 + $0x910] sm:%s245] %v834
                %v836 = vld [vmem:[%s252 + $0x2460] sm:%s245]
                %837 = vst [vmem:[%s253 + $0x918] sm:%s245] %v836
                %v838 = vld [vmem:[%s252 + $0x2480] sm:%s245]
                %839 = vst [vmem:[%s253 + $0x920] sm:%s245] %v838
                %v840 = vld [vmem:[%s252 + $0x24a0] sm:%s245]
                %841 = vst [vmem:[%s253 + $0x928] sm:%s245] %v840
                %v842 = vld [vmem:[%s252 + $0x24c0] sm:%s245]
                %843 = vst [vmem:[%s253 + $0x930] sm:%s245] %v842
                %v844 = vld [vmem:[%s252 + $0x24e0] sm:%s245]
                %845 = vst [vmem:[%s253 + $0x938] sm:%s245] %v844
                %v846 = vld [vmem:[%s252 + $0x2500] sm:%s245]
                %847 = vst [vmem:[%s253 + $0x940] sm:%s245] %v846
                %v848 = vld [vmem:[%s252 + $0x2520] sm:%s245]
                %849 = vst [vmem:[%s253 + $0x948] sm:%s245] %v848
                %v850 = vld [vmem:[%s252 + $0x2540] sm:%s245]
                %851 = vst [vmem:[%s253 + $0x950] sm:%s245] %v850
                %v852 = vld [vmem:[%s252 + $0x2560] sm:%s245]
                %853 = vst [vmem:[%s253 + $0x958] sm:%s245] %v852
                %v854 = vld [vmem:[%s252 + $0x2580] sm:%s245]
                %855 = vst [vmem:[%s253 + $0x960] sm:%s245] %v854
                %v856 = vld [vmem:[%s252 + $0x25a0] sm:%s245]
                %857 = vst [vmem:[%s253 + $0x968] sm:%s245] %v856
                %v858 = vld [vmem:[%s252 + $0x25c0] sm:%s245]
                %859 = vst [vmem:[%s253 + $0x970] sm:%s245] %v858
                %v860 = vld [vmem:[%s252 + $0x25e0] sm:%s245]
                %861 = vst [vmem:[%s253 + $0x978] sm:%s245] %v860
                %v862 = vld [vmem:[%s252 + $0x2600] sm:%s245]
                %863 = vst [vmem:[%s253 + $0x980] sm:%s245] %v862
                %v864 = vld [vmem:[%s252 + $0x2620] sm:%s245]
                %865 = vst [vmem:[%s253 + $0x988] sm:%s245] %v864
                %v866 = vld [vmem:[%s252 + $0x2640] sm:%s245]
                %867 = vst [vmem:[%s253 + $0x990] sm:%s245] %v866
              $region53: #{net_forward.5} parent=47 // loop_footer
                %s251 = sadd.s32 1, %s247
              $region54: #{net_forward.5} parent=47 // loop_footer_branch
                %246 = sbr.rel target = $region50
              $region55: #{net_forward.5} parent=47 // loop_exit
                _
            $region48: #{net_forward.5} parent=39 // pred_fallthru
              _
          $region40: #{net_forward.5} parent=35 // pred_fallthru
            _
          %2758 = vnop
        $region36: #{net_forward.5} parent=31 // pred_fallthru
          _
        // Predicated region
        $region85: #{net_forward.5} parent=31 // pred_check
          %p2759 = pneg %p81
        $region86: #{net_forward.5} parent=31 // pred_check_branch
          %2761 = sbr.rel (%p2759) target = $region88
        $region87: #{net_forward.5} parent=31 // pred_region
          %s2762 = smul.u32 2, %s14
          %p2763 = scmp.lt.s32.totalorder %s2762, 7
          %s2764 = scalar_select %p2763, %s2762, 7
          %s2765 = scalar_lea.vmem %s2, %s2764
          %s2766 = smul.u32 2, %s14
        $region88: #{net_forward.5} parent=31 // pred_fallthru
          _
        // Predicated region
        $region89: #{net_forward.5} parent=31 // pred_check
          %p2767 = pneg %p107
        $region90: #{net_forward.5} parent=31 // pred_check_branch
          %2769 = sbr.rel (%p2767) target = $region92
        $region91: #{net_forward.5} parent=31 // pred_region
          %s2770 = smul.u32 32, %s14
          %p2771 = scmp.lt.s32.totalorder %s2770, 127
          %s2772 = scalar_select %p2771, %s2770, 127
          %s2773 = smul.addr %s2772, 4
          %s2774 = scalar_lea.vmem %s3, %s2773
          %s2775 = smul.u32 32, %s14
        $region92: #{net_forward.5} parent=31 // pred_fallthru
          _
      $region32: #{net_forward.5} parent=5 // pred_fallthru
        _
      %p2776 = scmp.le.s32.totalorder 1, %s14
      %p2777 = scmp.lt.s32.totalorder %s14, 5
      %p2778 = pnand %p2776, %p2777
      %p2779 = pneg %p2778
      // Predicated region
      $region93: #{net_forward.5} parent=5 // pred_check
        _
      $region94: #{net_forward.5} parent=5 // pred_check_branch
        %2781 = sbr.rel (%p2778) target = $region96
      $region95: #{net_forward.5} parent=5 // pred_region
        %s2782 = ssub.s32 %s14, 1
        %s2783 = sand.u32 %s48, 1
        %s2784 = sand.u32 %s48, 1
        %s2785 = smul.addr %s2784, 2456
        %s2786 = scalar_lea.vmem [#allocation3], %s2785
        // Predicated region
        $region97: #{net_forward.5} parent=95 // pred_check
          %p2787 = pneg %p61
        $region98: #{net_forward.5} parent=95 // pred_check_branch
          %2789 = sbr.rel (%p2787) target = $region100
        $region99: #{net_forward.5} parent=95 // pred_region
          _
        $region100: #{net_forward.5} parent=95 // pred_fallthru
          _
        %p2790 = pneg %p35
        %p2791 = pneg %p32
        %s2792 = sand.u32 %s48, 1
        %s2793 = sand.u32 %s48, 1
        %s2794 = smul.addr %s2793, 2456
        %s2795 = scalar_lea.vmem [#allocation3], %s2794
        %p2796 = pneg %p61
        %p2797 = pneg %p58
        %s2798 = smul.u32 2, %s19
        %p2799 = scmp.lt.s32.totalorder %s2798, 7
        %s2800 = scalar_select %p2799, %s2798, 7
        %s2801 = scalar_lea.vmem %s2, %s2800
        %p2802 = pneg %p87
        %p2803 = pneg %p84
        %s2804 = smul.u32 32, %s19
        %p2805 = scmp.lt.s32.totalorder %s2804, 127
        %s2806 = scalar_select %p2805, %s2804, 127
        %s2807 = smul.addr %s2806, 4
        %s2808 = scalar_lea.vmem %s3, %s2807
        %p2809 = pneg %p113
        %p2810 = pneg %p110
        %p2811 = pneg %p134
        %p2812 = pneg %p131
        %p2813 = pneg %p155
        %p2814 = pneg %p152
        %p2815 = pneg %p176
        %p2816 = pneg %p173
        %p2817 = pneg %p197
        %p2818 = pneg %p194
        %s2819 = smul.u32 2, %s19
        %s2820 = smul.u32 2, %s19
        %p2821 = scmp.lt.s32.totalorder %s2820, 7
        %s2822 = scalar_select %p2821, %s2820, 7
        %s2823 = scalar_lea.vmem %s2, %s2822
        %s2824 = smul.u32 2, %s19
        %s2825 = smul.u32 32, %s19
        %p2826 = scmp.lt.s32.totalorder %s2825, 127
        %s2827 = scalar_select %p2826, %s2825, 127
        %s2828 = smul.addr %s2827, 4
        %s2829 = scalar_lea.vmem %s3, %s2828
        %s2830 = smul.u32 32, %s19
        %p2832 = scmp.eq.s32.totalorder %s19, 0
        // Predicated region
        $region101: #{net_forward.5} parent=95 // pred_check
          %p2833 = pneg %p2832
        $region102: #{net_forward.5} parent=95 // pred_check_branch
          %2835 = sbr.rel (%p2833) target = $region104
        $region103: #{net_forward.5} parent=95 // pred_region
          %2836 = vst [vmem:[#allocation2] sm:$0x3] 0.0
        $region104: #{net_forward.5} parent=95 // pred_fallthru
          _
        %v2837 = vld [vmem:[%s0] sm:$0xff]
        %v2838 = vld [vmem:[%s0 + $0x8] sm:$0xff]
        %v2839 = vld [vmem:[%s0 + $0x10] sm:$0xf]
        %v2840 = vld [vmem:[%s2786] sm:$0xff]
        %v2841 = vld [vmem:[%s2786 + $0x8] sm:$0xff]
        %v2842 = vld [vmem:[%s2786 + $0x10] sm:$0xff]
        %v2843 = vld [vmem:[%s2786 + $0x18] sm:$0xff]
        %v2844 = vld [vmem:[%s2786 + $0x20] sm:$0xff]
        %v2845 = vld [vmem:[%s2786 + $0x28] sm:$0xff]
        %v2846 = vld [vmem:[%s2786 + $0x30] sm:$0xff]
        %v2847 = vld [vmem:[%s2786 + $0x38] sm:$0xff]
        %v2848 = vld [vmem:[%s2786 + $0x40] sm:$0xff]
        %v2849 = vld [vmem:[%s2786 + $0x48] sm:$0xff]
        %v2850 = vld [vmem:[%s2786 + $0x50] sm:$0xff]
        %v2851 = vld [vmem:[%s2786 + $0x58] sm:$0xff]
        %v2852 = vld [vmem:[%s2786 + $0x60] sm:$0xff]
        %v2853 = vld [vmem:[%s2786 + $0x68] sm:$0xff]
        %v2854 = vld [vmem:[%s2786 + $0x70] sm:$0xff]
        %v2855 = vld [vmem:[%s2786 + $0x78] sm:$0xff]
        %v2856 = vld [vmem:[%s2786 + $0x80] sm:$0xff]
        %v2857 = vld [vmem:[%s2786 + $0x88] sm:$0xff]
        %v2858 = vld [vmem:[%s2786 + $0x90] sm:$0xff]
        %v2859 = vld [vmem:[%s2786 + $0x98] sm:$0xff]
        %v2860 = vld [vmem:[%s2786 + $0xa0] sm:$0xff]
        %v2861 = vld [vmem:[%s2786 + $0xa8] sm:$0xff]
        %v2862 = vld [vmem:[%s2786 + $0xb0] sm:$0xff]
        %v2863 = vld [vmem:[%s2786 + $0xb8] sm:$0xff]
        %v2864 = vld [vmem:[%s2786 + $0xc0] sm:$0xff]
        %v2865 = vld [vmem:[%s2786 + $0xc8] sm:$0xff]
        %v2866 = vld [vmem:[%s2786 + $0xd0] sm:$0xff]
        %v2867 = vld [vmem:[%s2786 + $0xd8] sm:$0xff]
        %v2868 = vld [vmem:[%s2786 + $0xe0] sm:$0xff]
        %v2869 = vld [vmem:[%s2786 + $0xe8] sm:$0xff]
        %v2870 = vld [vmem:[%s2786 + $0xf0] sm:$0xff]
        %v2871 = vld [vmem:[%s2786 + $0xf8] sm:$0xff]
        %v2872 = vld [vmem:[%s2786 + $0x100] sm:$0xff]
        %v2873 = vld [vmem:[%s2786 + $0x108] sm:$0xff]
        %v2874 = vld [vmem:[%s2786 + $0x110] sm:$0xff]
        %v2875 = vld [vmem:[%s2786 + $0x118] sm:$0xff]
        %v2876 = vld [vmem:[%s2786 + $0x120] sm:$0xff]
        %v2877 = vld [vmem:[%s2786 + $0x128] sm:$0xff]
        %v2878 = vld [vmem:[%s2786 + $0x130] sm:$0xff]
        %v2879 = vld [vmem:[%s2786 + $0x138] sm:$0xff]
        %v2880 = vld [vmem:[%s2786 + $0x140] sm:$0xff]
        %v2881 = vld [vmem:[%s2786 + $0x148] sm:$0xff]
        %v2882 = vld [vmem:[%s2786 + $0x150] sm:$0xff]
        %v2883 = vld [vmem:[%s2786 + $0x158] sm:$0xff]
        %v2884 = vld [vmem:[%s2786 + $0x160] sm:$0xff]
        %v2885 = vld [vmem:[%s2786 + $0x168] sm:$0xff]
        %v2886 = vld [vmem:[%s2786 + $0x170] sm:$0xff]
        %v2887 = vld [vmem:[%s2786 + $0x178] sm:$0xff]
        %v2888 = vld [vmem:[%s2786 + $0x180] sm:$0xff]
        %v2889 = vld [vmem:[%s2786 + $0x188] sm:$0xff]
        %v2890 = vld [vmem:[%s2786 + $0x190] sm:$0xff]
        %v2891 = vld [vmem:[%s2786 + $0x198] sm:$0xff]
        %v2892 = vld [vmem:[%s2786 + $0x1a0] sm:$0xff]
        %v2893 = vld [vmem:[%s2786 + $0x1a8] sm:$0xff]
        %v2894 = vld [vmem:[%s2786 + $0x1b0] sm:$0xff]
        %v2895 = vld [vmem:[%s2786 + $0x1b8] sm:$0xff]
        %v2896 = vld [vmem:[%s2786 + $0x1c0] sm:$0xff]
        %v2897 = vld [vmem:[%s2786 + $0x1c8] sm:$0xff]
        %v2898 = vld [vmem:[%s2786 + $0x1d0] sm:$0xff]
        %v2899 = vld [vmem:[%s2786 + $0x1d8] sm:$0xff]
        %v2900 = vld [vmem:[%s2786 + $0x1e0] sm:$0xff]
        %v2901 = vld [vmem:[%s2786 + $0x1e8] sm:$0xff]
        %v2902 = vld [vmem:[%s2786 + $0x1f0] sm:$0xff]
        %v2903 = vld [vmem:[%s2786 + $0x1f8] sm:$0xff]
        %v2904 = vld [vmem:[%s2786 + $0x200] sm:$0xff]
        %v2905 = vld [vmem:[%s2786 + $0x208] sm:$0xff]
        %v2906 = vld [vmem:[%s2786 + $0x210] sm:$0xff]
        %v2907 = vld [vmem:[%s2786 + $0x218] sm:$0xff]
        %v2908 = vld [vmem:[%s2786 + $0x220] sm:$0xff]
        %v2909 = vld [vmem:[%s2786 + $0x228] sm:$0xff]
        %v2910 = vld [vmem:[%s2786 + $0x230] sm:$0xff]
        %v2911 = vld [vmem:[%s2786 + $0x238] sm:$0xff]
        %v2912 = vld [vmem:[%s2786 + $0x240] sm:$0xff]
        %v2913 = vld [vmem:[%s2786 + $0x248] sm:$0xff]
        %v2914 = vld [vmem:[%s2786 + $0x250] sm:$0xff]
        %v2915 = vld [vmem:[%s2786 + $0x258] sm:$0xff]
        %v2916 = vld [vmem:[%s2786 + $0x260] sm:$0xff]
        %v2917 = vld [vmem:[%s2786 + $0x268] sm:$0xff]
        %v2918 = vld [vmem:[%s2786 + $0x270] sm:$0xff]
        %v2919 = vld [vmem:[%s2786 + $0x278] sm:$0xff]
        %v2920 = vld [vmem:[%s2786 + $0x280] sm:$0xff]
        %v2921 = vld [vmem:[%s2786 + $0x288] sm:$0xff]
        %v2922 = vld [vmem:[%s2786 + $0x290] sm:$0xff]
        %v2923 = vld [vmem:[%s2786 + $0x298] sm:$0xff]
        %v2924 = vld [vmem:[%s2786 + $0x2a0] sm:$0xff]
        %v2925 = vld [vmem:[%s2786 + $0x2a8] sm:$0xff]
        %v2926 = vld [vmem:[%s2786 + $0x2b0] sm:$0xff]
        %v2927 = vld [vmem:[%s2786 + $0x2b8] sm:$0xff]
        %v2928 = vld [vmem:[%s2786 + $0x2c0] sm:$0xff]
        %v2929 = vld [vmem:[%s2786 + $0x2c8] sm:$0xff]
        %v2930 = vld [vmem:[%s2786 + $0x2d0] sm:$0xff]
        %v2931 = vld [vmem:[%s2786 + $0x2d8] sm:$0xff]
        %v2932 = vld [vmem:[%s2786 + $0x2e0] sm:$0xff]
        %v2933 = vld [vmem:[%s2786 + $0x2e8] sm:$0xff]
        %v2934 = vld [vmem:[%s2786 + $0x2f0] sm:$0xff]
        %v2935 = vld [vmem:[%s2786 + $0x2f8] sm:$0xff]
        %v2936 = vld [vmem:[%s2786 + $0x300] sm:$0xff]
        %v2937 = vld [vmem:[%s2786 + $0x308] sm:$0xff]
        %v2938 = vld [vmem:[%s2786 + $0x310] sm:$0xff]
        %v2939 = vld [vmem:[%s2786 + $0x318] sm:$0xff]
        %v2940 = vld [vmem:[%s2786 + $0x320] sm:$0xff]
        %v2941 = vld [vmem:[%s2786 + $0x328] sm:$0xff]
        %v2942 = vld [vmem:[%s2786 + $0x330] sm:$0xff]
        %v2943 = vld [vmem:[%s2786 + $0x338] sm:$0xff]
        %v2944 = vld [vmem:[%s2786 + $0x340] sm:$0xff]
        %v2945 = vld [vmem:[%s2786 + $0x348] sm:$0xff]
        %v2946 = vld [vmem:[%s2786 + $0x350] sm:$0xff]
        %v2947 = vld [vmem:[%s2786 + $0x358] sm:$0xff]
        %v2948 = vld [vmem:[%s2786 + $0x360] sm:$0xff]
        %v2949 = vld [vmem:[%s2786 + $0x368] sm:$0xff]
        %v2950 = vld [vmem:[%s2786 + $0x370] sm:$0xff]
        %v2951 = vld [vmem:[%s2786 + $0x378] sm:$0xff]
        %v2952 = vld [vmem:[%s2786 + $0x380] sm:$0xff]
        %v2953 = vld [vmem:[%s2786 + $0x388] sm:$0xff]
        %v2954 = vld [vmem:[%s2786 + $0x390] sm:$0xff]
        %v2955 = vld [vmem:[%s2786 + $0x398] sm:$0xff]
        %v2956 = vld [vmem:[%s2786 + $0x3a0] sm:$0xff]
        %v2957 = vld [vmem:[%s2786 + $0x3a8] sm:$0xff]
        %v2958 = vld [vmem:[%s2786 + $0x3b0] sm:$0xff]
        %v2959 = vld [vmem:[%s2786 + $0x3b8] sm:$0xff]
        %v2960 = vld [vmem:[%s2786 + $0x3c0] sm:$0xff]
        %v2961 = vld [vmem:[%s2786 + $0x3c8] sm:$0xff]
        %v2962 = vld [vmem:[%s2786 + $0x3d0] sm:$0xff]
        %v2963 = vld [vmem:[%s2786 + $0x3d8] sm:$0xff]
        %v2964 = vld [vmem:[%s2786 + $0x3e0] sm:$0xff]
        %v2965 = vld [vmem:[%s2786 + $0x3e8] sm:$0xff]
        %v2966 = vld [vmem:[%s2786 + $0x3f0] sm:$0xff]
        %v2967 = vld [vmem:[%s2786 + $0x3f8] sm:$0xff]
        %v2968 = vld [vmem:[%s2786 + $0x400] sm:$0xff]
        %v2969 = vld [vmem:[%s2786 + $0x408] sm:$0xff]
        %v2970 = vld [vmem:[%s2786 + $0x410] sm:$0xff]
        %v2971 = vld [vmem:[%s2786 + $0x418] sm:$0xff]
        %v2972 = vld [vmem:[%s2786 + $0x420] sm:$0xff]
        %v2973 = vld [vmem:[%s2786 + $0x428] sm:$0xff]
        %v2974 = vld [vmem:[%s2786 + $0x430] sm:$0xff]
        %v2975 = vld [vmem:[%s2786 + $0x438] sm:$0xff]
        %v2976 = vld [vmem:[%s2786 + $0x440] sm:$0xff]
        %v2977 = vld [vmem:[%s2786 + $0x448] sm:$0xff]
        %v2978 = vld [vmem:[%s2786 + $0x450] sm:$0xff]
        %v2979 = vld [vmem:[%s2786 + $0x458] sm:$0xff]
        %v2980 = vld [vmem:[%s2786 + $0x460] sm:$0xff]
        %v2981 = vld [vmem:[%s2786 + $0x468] sm:$0xff]
        %v2982 = vld [vmem:[%s2786 + $0x470] sm:$0xff]
        %v2983 = vld [vmem:[%s2786 + $0x478] sm:$0xff]
        %v2984 = vld [vmem:[%s2786 + $0x480] sm:$0xff]
        %v2985 = vld [vmem:[%s2786 + $0x488] sm:$0xff]
        %v2986 = vld [vmem:[%s2786 + $0x490] sm:$0xff]
        %v2987 = vld [vmem:[%s2786 + $0x498] sm:$0xff]
        %v2988 = vld [vmem:[%s2786 + $0x4a0] sm:$0xff]
        %v2989 = vld [vmem:[%s2786 + $0x4a8] sm:$0xff]
        %v2990 = vld [vmem:[%s2786 + $0x4b0] sm:$0xff]
        %v2991 = vld [vmem:[%s2786 + $0x4b8] sm:$0xff]
        %v2992 = vld [vmem:[%s2786 + $0x4c0] sm:$0xff]
        %v2993 = vld [vmem:[%s2786 + $0x4c8] sm:$0xff]
        %v2994 = vld [vmem:[%s2786 + $0x4d0] sm:$0xff]
        %v2995 = vld [vmem:[%s2786 + $0x4d8] sm:$0xff]
        %v2996 = vld [vmem:[%s2786 + $0x4e0] sm:$0xff]
        %v2997 = vld [vmem:[%s2786 + $0x4e8] sm:$0xff]
        %v2998 = vld [vmem:[%s2786 + $0x4f0] sm:$0xff]
        %v2999 = vld [vmem:[%s2786 + $0x4f8] sm:$0xff]
        %v3000 = vld [vmem:[%s2786 + $0x500] sm:$0xff]
        %v3001 = vld [vmem:[%s2786 + $0x508] sm:$0xff]
        %v3002 = vld [vmem:[%s2786 + $0x510] sm:$0xff]
        %v3003 = vld [vmem:[%s2786 + $0x518] sm:$0xff]
        %v3004 = vld [vmem:[%s2786 + $0x520] sm:$0xff]
        %v3005 = vld [vmem:[%s2786 + $0x528] sm:$0xff]
        %v3006 = vld [vmem:[%s2786 + $0x530] sm:$0xff]
        %v3007 = vld [vmem:[%s2786 + $0x538] sm:$0xff]
        %v3008 = vld [vmem:[%s2786 + $0x540] sm:$0xff]
        %v3009 = vld [vmem:[%s2786 + $0x548] sm:$0xff]
        %v3010 = vld [vmem:[%s2786 + $0x550] sm:$0xff]
        %v3011 = vld [vmem:[%s2786 + $0x558] sm:$0xff]
        %v3012 = vld [vmem:[%s2786 + $0x560] sm:$0xff]
        %v3013 = vld [vmem:[%s2786 + $0x568] sm:$0xff]
        %v3014 = vld [vmem:[%s2786 + $0x570] sm:$0xff]
        %v3015 = vld [vmem:[%s2786 + $0x578] sm:$0xff]
        %v3016 = vld [vmem:[%s2786 + $0x580] sm:$0xff]
        %v3017 = vld [vmem:[%s2786 + $0x588] sm:$0xff]
        %v3018 = vld [vmem:[%s2786 + $0x590] sm:$0xff]
        %v3019 = vld [vmem:[%s2786 + $0x598] sm:$0xff]
        %v3020 = vld [vmem:[%s2786 + $0x5a0] sm:$0xff]
        %v3021 = vld [vmem:[%s2786 + $0x5a8] sm:$0xff]
        %v3022 = vld [vmem:[%s2786 + $0x5b0] sm:$0xff]
        %v3023 = vld [vmem:[%s2786 + $0x5b8] sm:$0xff]
        %v3024 = vld [vmem:[%s2786 + $0x5c0] sm:$0xff]
        %v3025 = vld [vmem:[%s2786 + $0x5c8] sm:$0xff]
        %v3026 = vld [vmem:[%s2786 + $0x5d0] sm:$0xff]
        %v3027 = vld [vmem:[%s2786 + $0x5d8] sm:$0xff]
        %v3028 = vld [vmem:[%s2786 + $0x5e0] sm:$0xff]
        %v3029 = vld [vmem:[%s2786 + $0x5e8] sm:$0xff]
        %v3030 = vld [vmem:[%s2786 + $0x5f0] sm:$0xff]
        %v3031 = vld [vmem:[%s2786 + $0x5f8] sm:$0xff]
        %v3032 = vld [vmem:[%s2786 + $0x600] sm:$0xff]
        %v3033 = vld [vmem:[%s2786 + $0x608] sm:$0xff]
        %v3034 = vld [vmem:[%s2786 + $0x610] sm:$0xff]
        %v3035 = vld [vmem:[%s2786 + $0x618] sm:$0xff]
        %v3036 = vld [vmem:[%s2786 + $0x620] sm:$0xff]
        %v3037 = vld [vmem:[%s2786 + $0x628] sm:$0xff]
        %v3038 = vld [vmem:[%s2786 + $0x630] sm:$0xff]
        %v3039 = vld [vmem:[%s2786 + $0x638] sm:$0xff]
        %v3040 = vld [vmem:[%s2786 + $0x640] sm:$0xff]
        %v3041 = vld [vmem:[%s2786 + $0x648] sm:$0xff]
        %v3042 = vld [vmem:[%s2786 + $0x650] sm:$0xff]
        %v3043 = vld [vmem:[%s2786 + $0x658] sm:$0xff]
        %v3044 = vld [vmem:[%s2786 + $0x660] sm:$0xff]
        %v3045 = vld [vmem:[%s2786 + $0x668] sm:$0xff]
        %v3046 = vld [vmem:[%s2786 + $0x670] sm:$0xff]
        %v3047 = vld [vmem:[%s2786 + $0x678] sm:$0xff]
        %v3048 = vld [vmem:[%s2786 + $0x680] sm:$0xff]
        %v3049 = vld [vmem:[%s2786 + $0x688] sm:$0xff]
        %v3050 = vld [vmem:[%s2786 + $0x690] sm:$0xff]
        %v3051 = vld [vmem:[%s2786 + $0x698] sm:$0xff]
        %v3052 = vld [vmem:[%s2786 + $0x6a0] sm:$0xff]
        %v3053 = vld [vmem:[%s2786 + $0x6a8] sm:$0xff]
        %v3054 = vld [vmem:[%s2786 + $0x6b0] sm:$0xff]
        %v3055 = vld [vmem:[%s2786 + $0x6b8] sm:$0xff]
        %v3056 = vld [vmem:[%s2786 + $0x6c0] sm:$0xff]
        %v3057 = vld [vmem:[%s2786 + $0x6c8] sm:$0xff]
        %v3058 = vld [vmem:[%s2786 + $0x6d0] sm:$0xff]
        %v3059 = vld [vmem:[%s2786 + $0x6d8] sm:$0xff]
        %v3060 = vld [vmem:[%s2786 + $0x6e0] sm:$0xff]
        %v3061 = vld [vmem:[%s2786 + $0x6e8] sm:$0xff]
        %v3062 = vld [vmem:[%s2786 + $0x6f0] sm:$0xff]
        %v3063 = vld [vmem:[%s2786 + $0x6f8] sm:$0xff]
        %v3064 = vld [vmem:[%s2786 + $0x700] sm:$0xff]
        %v3065 = vld [vmem:[%s2786 + $0x708] sm:$0xff]
        %v3066 = vld [vmem:[%s2786 + $0x710] sm:$0xff]
        %v3067 = vld [vmem:[%s2786 + $0x718] sm:$0xff]
        %v3068 = vld [vmem:[%s2786 + $0x720] sm:$0xff]
        %v3069 = vld [vmem:[%s2786 + $0x728] sm:$0xff]
        %v3070 = vld [vmem:[%s2786 + $0x730] sm:$0xff]
        %v3071 = vld [vmem:[%s2786 + $0x738] sm:$0xff]
        %v3072 = vld [vmem:[%s2786 + $0x740] sm:$0xff]
        %v3073 = vld [vmem:[%s2786 + $0x748] sm:$0xff]
        %v3074 = vld [vmem:[%s2786 + $0x750] sm:$0xff]
        %v3075 = vld [vmem:[%s2786 + $0x758] sm:$0xff]
        %v3076 = vld [vmem:[%s2786 + $0x760] sm:$0xff]
        %v3077 = vld [vmem:[%s2786 + $0x768] sm:$0xff]
        %v3078 = vld [vmem:[%s2786 + $0x770] sm:$0xff]
        %v3079 = vld [vmem:[%s2786 + $0x778] sm:$0xff]
        %v3080 = vld [vmem:[%s2786 + $0x780] sm:$0xff]
        %v3081 = vld [vmem:[%s2786 + $0x788] sm:$0xff]
        %v3082 = vld [vmem:[%s2786 + $0x790] sm:$0xff]
        %v3083 = vld [vmem:[%s2786 + $0x798] sm:$0xff]
        %v3084 = vld [vmem:[%s2786 + $0x7a0] sm:$0xff]
        %v3085 = vld [vmem:[%s2786 + $0x7a8] sm:$0xff]
        %v3086 = vld [vmem:[%s2786 + $0x7b0] sm:$0xff]
        %v3087 = vld [vmem:[%s2786 + $0x7b8] sm:$0xff]
        %v3088 = vld [vmem:[%s2786 + $0x7c0] sm:$0xff]
        %v3089 = vld [vmem:[%s2786 + $0x7c8] sm:$0xff]
        %v3090 = vld [vmem:[%s2786 + $0x7d0] sm:$0xff]
        %v3091 = vld [vmem:[%s2786 + $0x7d8] sm:$0xff]
        %v3092 = vld [vmem:[%s2786 + $0x7e0] sm:$0xff]
        %v3093 = vld [vmem:[%s2786 + $0x7e8] sm:$0xff]
        %v3094 = vld [vmem:[%s2786 + $0x7f0] sm:$0xff]
        %v3095 = vld [vmem:[%s2786 + $0x7f8] sm:$0xff]
        %v3096 = vld [vmem:[%s2786 + $0x800] sm:$0xff]
        %v3097 = vld [vmem:[%s2786 + $0x808] sm:$0xff]
        %v3098 = vld [vmem:[%s2786 + $0x810] sm:$0xff]
        %v3099 = vld [vmem:[%s2786 + $0x818] sm:$0xff]
        %v3100 = vld [vmem:[%s2786 + $0x820] sm:$0xff]
        %v3101 = vld [vmem:[%s2786 + $0x828] sm:$0xff]
        %v3102 = vld [vmem:[%s2786 + $0x830] sm:$0xff]
        %v3103 = vld [vmem:[%s2786 + $0x838] sm:$0xff]
        %v3104 = vld [vmem:[%s2786 + $0x840] sm:$0xff]
        %v3105 = vld [vmem:[%s2786 + $0x848] sm:$0xff]
        %v3106 = vld [vmem:[%s2786 + $0x850] sm:$0xff]
        %v3107 = vld [vmem:[%s2786 + $0x858] sm:$0xff]
        %v3108 = vld [vmem:[%s2786 + $0x860] sm:$0xff]
        %v3109 = vld [vmem:[%s2786 + $0x868] sm:$0xff]
        %v3110 = vld [vmem:[%s2786 + $0x870] sm:$0xff]
        %v3111 = vld [vmem:[%s2786 + $0x878] sm:$0xff]
        %v3112 = vld [vmem:[%s2786 + $0x880] sm:$0xff]
        %v3113 = vld [vmem:[%s2786 + $0x888] sm:$0xff]
        %v3114 = vld [vmem:[%s2786 + $0x890] sm:$0xff]
        %v3115 = vld [vmem:[%s2786 + $0x898] sm:$0xff]
        %v3116 = vld [vmem:[%s2786 + $0x8a0] sm:$0xff]
        %v3117 = vld [vmem:[%s2786 + $0x8a8] sm:$0xff]
        %v3118 = vld [vmem:[%s2786 + $0x8b0] sm:$0xff]
        %v3119 = vld [vmem:[%s2786 + $0x8b8] sm:$0xff]
        %v3120 = vld [vmem:[%s2786 + $0x8c0] sm:$0xff]
        %v3121 = vld [vmem:[%s2786 + $0x8c8] sm:$0xff]
        %v3122 = vld [vmem:[%s2786 + $0x8d0] sm:$0xff]
        %v3123 = vld [vmem:[%s2786 + $0x8d8] sm:$0xff]
        %v3124 = vld [vmem:[%s2786 + $0x8e0] sm:$0xff]
        %v3125 = vld [vmem:[%s2786 + $0x8e8] sm:$0xff]
        %v3126 = vld [vmem:[%s2786 + $0x8f0] sm:$0xff]
        %v3127 = vld [vmem:[%s2786 + $0x8f8] sm:$0xff]
        %v3128 = vld [vmem:[%s2786 + $0x900] sm:$0xff]
        %v3129 = vld [vmem:[%s2786 + $0x908] sm:$0xff]
        %v3130 = vld [vmem:[%s2786 + $0x910] sm:$0xff]
        %v3131 = vld [vmem:[%s2786 + $0x918] sm:$0xff]
        %v3132 = vld [vmem:[%s2786 + $0x920] sm:$0xff]
        %v3133 = vld [vmem:[%s2786 + $0x928] sm:$0xff]
        %v3134 = vld [vmem:[%s2786 + $0x930] sm:$0xff]
        %v3135 = vld [vmem:[%s2786 + $0x938] sm:$0xff]
        %v3136 = vld [vmem:[%s2786 + $0x940] sm:$0xff]
        %v3137 = vld [vmem:[%s2786 + $0x948] sm:$0xff]
        %v3138 = vld [vmem:[%s2786 + $0x950] sm:$0xff]
        %v3139 = vld [vmem:[%s2786 + $0x958] sm:$0xff]
        %v3140 = vld [vmem:[%s2786 + $0x960] sm:$0xff]
        %v3141 = vld [vmem:[%s2786 + $0x968] sm:$0xff]
        %v3142 = vld [vmem:[%s2786 + $0x970] sm:$0xff]
        %v3143 = vld [vmem:[%s2786 + $0x978] sm:$0xff]
        %v3144 = vld [vmem:[%s2786 + $0x980] sm:$0xff]
        %v3145 = vld [vmem:[%s2786 + $0x988] sm:$0xff]
        %v3146 = vld [vmem:[%s2786 + $0x990] sm:$0x11]
        %v3147 = vld [vmem:[%s2823] sm:$0x3]
        %v3149 = vperm.slane %v3147, 0
        %v3150 = vperm.slane %v3147, 1
        %3154 = vst [vmem:[#allocation1] ss:$9 sm:$0xff] %v2837
        %v3155 = vld [vmem:[#allocation1] sm:$0xff]
        %v3156 = vld [vmem:[#allocation1 + $0x9] sm:$0xff]
        %v3157 = vld [vmem:[#allocation1 + $0x12] sm:$0xff]
        %v3158 = vld [vmem:[#allocation1 + $0x1b] sm:$0xff]
        %v3159 = vld [vmem:[#allocation1 + $0x24] sm:$0xff]
        %v3160 = vld [vmem:[#allocation1 + $0x2d] sm:$0xff]
        %v3161 = vld [vmem:[#allocation1 + $0x36] sm:$0xff]
        %v3162 = vld [vmem:[#allocation1 + $0x3f] sm:$0xff]
        %3164 = vst [vmem:[#allocation1] ss:$9 sm:$0xff] %v2838
        %v3165 = vld [vmem:[#allocation1] sm:$0xff]
        %v3166 = vld [vmem:[#allocation1 + $0x9] sm:$0xff]
        %v3167 = vld [vmem:[#allocation1 + $0x12] sm:$0xff]
        %v3168 = vld [vmem:[#allocation1 + $0x1b] sm:$0xff]
        %v3169 = vld [vmem:[#allocation1 + $0x24] sm:$0xff]
        %v3170 = vld [vmem:[#allocation1 + $0x2d] sm:$0xff]
        %v3171 = vld [vmem:[#allocation1 + $0x36] sm:$0xff]
        %v3172 = vld [vmem:[#allocation1 + $0x3f] sm:$0xff]
        %3174 = vst [vmem:[#allocation1] ss:$9 sm:$0xff] %v2839
        %v3175 = vld [vmem:[#allocation1] sm:$0xff]
        %v3176 = vld [vmem:[#allocation1 + $0x9] sm:$0xff]
        %v3177 = vld [vmem:[#allocation1 + $0x12] sm:$0xff]
        %v3178 = vld [vmem:[#allocation1 + $0x1b] sm:$0xff]
        %v3505 = vunpack.c.l.b16 %v2840
        %v3506 = vunpack.c.h.b16 %v2840
        %v3507 = vunpack.c.l.b16 %v2841
        %v3508 = vunpack.c.h.b16 %v2841
        %v3509 = vunpack.c.l.b16 %v2842
        %v3510 = vunpack.c.h.b16 %v2842
        %v3511 = vunpack.c.l.b16 %v2843
        %v3512 = vunpack.c.h.b16 %v2843
        %v3513 = vunpack.c.l.b16 %v2844
        %v3514 = vunpack.c.h.b16 %v2844
        %v3515 = vunpack.c.l.b16 %v2845
        %v3516 = vunpack.c.h.b16 %v2845
        %v3517 = vunpack.c.l.b16 %v2846
        %v3518 = vunpack.c.h.b16 %v2846
        %v3519 = vunpack.c.l.b16 %v2847
        %v3520 = vunpack.c.h.b16 %v2847
        %v3521 = vunpack.c.l.b16 %v2848
        %v3522 = vunpack.c.h.b16 %v2848
        %v3523 = vunpack.c.l.b16 %v2849
        %v3524 = vunpack.c.h.b16 %v2849
        %v3525 = vunpack.c.l.b16 %v2850
        %v3526 = vunpack.c.h.b16 %v2850
        %v3527 = vunpack.c.l.b16 %v2851
        %v3528 = vunpack.c.h.b16 %v2851
        %v3529 = vunpack.c.l.b16 %v2852
        %v3530 = vunpack.c.h.b16 %v2852
        %v3531 = vunpack.c.l.b16 %v2853
        %v3532 = vunpack.c.h.b16 %v2853
        %v3533 = vunpack.c.l.b16 %v2854
        %v3534 = vunpack.c.h.b16 %v2854
        %v3535 = vunpack.c.l.b16 %v2855
        %v3536 = vunpack.c.h.b16 %v2855
        %v3537 = vunpack.c.l.b16 %v2856
        %v3538 = vunpack.c.h.b16 %v2856
        %v3539 = vunpack.c.l.b16 %v2857
        %v3540 = vunpack.c.h.b16 %v2857
        %v3541 = vunpack.c.l.b16 %v2858
        %v3542 = vunpack.c.h.b16 %v2858
        %v3543 = vunpack.c.l.b16 %v2859
        %v3544 = vunpack.c.h.b16 %v2859
        %v3545 = vunpack.c.l.b16 %v2860
        %v3546 = vunpack.c.h.b16 %v2860
        %v3547 = vunpack.c.l.b16 %v2861
        %v3548 = vunpack.c.h.b16 %v2861
        %v3549 = vunpack.c.l.b16 %v2862
        %v3550 = vunpack.c.h.b16 %v2862
        %v3551 = vunpack.c.l.b16 %v2863
        %v3552 = vunpack.c.h.b16 %v2863
        %v3553 = vunpack.c.l.b16 %v2864
        %v3554 = vunpack.c.h.b16 %v2864
        %v3555 = vunpack.c.l.b16 %v2865
        %v3556 = vunpack.c.h.b16 %v2865
        %v3557 = vunpack.c.l.b16 %v2866
        %v3558 = vunpack.c.h.b16 %v2866
        %v3559 = vunpack.c.l.b16 %v2867
        %v3560 = vunpack.c.h.b16 %v2867
        %v3561 = vunpack.c.l.b16 %v2868
        %v3562 = vunpack.c.h.b16 %v2868
        %v3563 = vunpack.c.l.b16 %v2869
        %v3564 = vunpack.c.h.b16 %v2869
        %v3565 = vunpack.c.l.b16 %v2870
        %v3566 = vunpack.c.h.b16 %v2870
        %v3567 = vunpack.c.l.b16 %v2871
        %v3568 = vunpack.c.h.b16 %v2871
        %v3569 = vunpack.c.l.b16 %v2872
        %v3570 = vunpack.c.h.b16 %v2872
        %v3571 = vunpack.c.l.b16 %v2873
        %v3572 = vunpack.c.h.b16 %v2873
        %v3573 = vunpack.c.l.b16 %v2874
        %v3574 = vunpack.c.h.b16 %v2874
        %v3575 = vunpack.c.l.b16 %v2875
        %v3576 = vunpack.c.h.b16 %v2875
        %v3577 = vunpack.c.l.b16 %v2876
        %v3578 = vunpack.c.h.b16 %v2876
        %v3579 = vunpack.c.l.b16 %v2877
        %v3580 = vunpack.c.h.b16 %v2877
        %v3581 = vunpack.c.l.b16 %v2878
        %v3582 = vunpack.c.h.b16 %v2878
        %v3583 = vunpack.c.l.b16 %v2879
        %v3584 = vunpack.c.h.b16 %v2879
        %v3585 = vunpack.c.l.b16 %v2880
        %v3586 = vunpack.c.h.b16 %v2880
        %v3587 = vunpack.c.l.b16 %v2881
        %v3588 = vunpack.c.h.b16 %v2881
        %v3589 = vunpack.c.l.b16 %v2882
        %v3590 = vunpack.c.h.b16 %v2882
        %v3591 = vunpack.c.l.b16 %v2883
        %v3592 = vunpack.c.h.b16 %v2883
        %v3593 = vunpack.c.l.b16 %v2884
        %v3594 = vunpack.c.h.b16 %v2884
        %v3595 = vunpack.c.l.b16 %v2885
        %v3596 = vunpack.c.h.b16 %v2885
        %v3597 = vunpack.c.l.b16 %v2886
        %v3598 = vunpack.c.h.b16 %v2886
        %v3599 = vunpack.c.l.b16 %v2887
        %v3600 = vunpack.c.h.b16 %v2887
        %v3601 = vunpack.c.l.b16 %v2888
        %v3602 = vunpack.c.h.b16 %v2888
        %v3603 = vunpack.c.l.b16 %v2889
        %v3604 = vunpack.c.h.b16 %v2889
        %v3605 = vunpack.c.l.b16 %v2890
        %v3606 = vunpack.c.h.b16 %v2890
        %v3607 = vunpack.c.l.b16 %v2891
        %v3608 = vunpack.c.h.b16 %v2891
        %v3609 = vunpack.c.l.b16 %v2892
        %v3610 = vunpack.c.h.b16 %v2892
        %v3611 = vunpack.c.l.b16 %v2893
        %v3612 = vunpack.c.h.b16 %v2893
        %v3613 = vunpack.c.l.b16 %v2894
        %v3614 = vunpack.c.h.b16 %v2894
        %v3615 = vunpack.c.l.b16 %v2895
        %v3616 = vunpack.c.h.b16 %v2895
        %v3617 = vunpack.c.l.b16 %v2896
        %v3618 = vunpack.c.h.b16 %v2896
        %v3619 = vunpack.c.l.b16 %v2897
        %v3620 = vunpack.c.h.b16 %v2897
        %v3621 = vunpack.c.l.b16 %v2898
        %v3622 = vunpack.c.h.b16 %v2898
        %v3623 = vunpack.c.l.b16 %v2899
        %v3624 = vunpack.c.h.b16 %v2899
        %v3625 = vunpack.c.l.b16 %v2900
        %v3626 = vunpack.c.h.b16 %v2900
        %v3627 = vunpack.c.l.b16 %v2901
        %v3628 = vunpack.c.h.b16 %v2901
        %v3629 = vunpack.c.l.b16 %v2902
        %v3630 = vunpack.c.h.b16 %v2902
        %v3631 = vunpack.c.l.b16 %v2903
        %v3632 = vunpack.c.h.b16 %v2903
        %v3633 = vunpack.c.l.b16 %v2904
        %v3634 = vunpack.c.h.b16 %v2904
        %v3635 = vunpack.c.l.b16 %v2905
        %v3636 = vunpack.c.h.b16 %v2905
        %v3637 = vunpack.c.l.b16 %v2906
        %v3638 = vunpack.c.h.b16 %v2906
        %v3639 = vunpack.c.l.b16 %v2907
        %v3640 = vunpack.c.h.b16 %v2907
        %v3641 = vunpack.c.l.b16 %v2908
        %v3642 = vunpack.c.h.b16 %v2908
        %v3643 = vunpack.c.l.b16 %v2909
        %v3644 = vunpack.c.h.b16 %v2909
        %v3645 = vunpack.c.l.b16 %v2910
        %v3646 = vunpack.c.h.b16 %v2910
        %v3647 = vunpack.c.l.b16 %v2911
        %v3648 = vunpack.c.h.b16 %v2911
        %v3649 = vunpack.c.l.b16 %v2912
        %v3650 = vunpack.c.h.b16 %v2912
        %v3651 = vunpack.c.l.b16 %v2913
        %v3652 = vunpack.c.h.b16 %v2913
        %v3653 = vunpack.c.l.b16 %v2914
        %v3654 = vunpack.c.h.b16 %v2914
        %v3655 = vunpack.c.l.b16 %v2915
        %v3656 = vunpack.c.h.b16 %v2915
        %v3657 = vunpack.c.l.b16 %v2916
        %v3658 = vunpack.c.h.b16 %v2916
        %v3659 = vunpack.c.l.b16 %v2917
        %v3660 = vunpack.c.h.b16 %v2917
        %v3661 = vunpack.c.l.b16 %v2918
        %v3662 = vunpack.c.h.b16 %v2918
        %v3663 = vunpack.c.l.b16 %v2919
        %v3664 = vunpack.c.h.b16 %v2919
        %v3665 = vunpack.c.l.b16 %v2920
        %v3666 = vunpack.c.h.b16 %v2920
        %v3667 = vunpack.c.l.b16 %v2921
        %v3668 = vunpack.c.h.b16 %v2921
        %v3669 = vunpack.c.l.b16 %v2922
        %v3670 = vunpack.c.h.b16 %v2922
        %v3671 = vunpack.c.l.b16 %v2923
        %v3672 = vunpack.c.h.b16 %v2923
        %v3673 = vunpack.c.l.b16 %v2924
        %v3674 = vunpack.c.h.b16 %v2924
        %v3675 = vunpack.c.l.b16 %v2925
        %v3676 = vunpack.c.h.b16 %v2925
        %v3677 = vunpack.c.l.b16 %v2926
        %v3678 = vunpack.c.h.b16 %v2926
        %v3679 = vunpack.c.l.b16 %v2927
        %v3680 = vunpack.c.h.b16 %v2927
        %v3681 = vunpack.c.l.b16 %v2928
        %v3682 = vunpack.c.h.b16 %v2928
        %v3683 = vunpack.c.l.b16 %v2929
        %v3684 = vunpack.c.h.b16 %v2929
        %v3685 = vunpack.c.l.b16 %v2930
        %v3686 = vunpack.c.h.b16 %v2930
        %v3687 = vunpack.c.l.b16 %v2931
        %v3688 = vunpack.c.h.b16 %v2931
        %v3689 = vunpack.c.l.b16 %v2932
        %v3690 = vunpack.c.h.b16 %v2932
        %v3691 = vunpack.c.l.b16 %v2933
        %v3692 = vunpack.c.h.b16 %v2933
        %v3693 = vunpack.c.l.b16 %v2934
        %v3694 = vunpack.c.h.b16 %v2934
        %v3695 = vunpack.c.l.b16 %v2935
        %v3696 = vunpack.c.h.b16 %v2935
        %v3697 = vunpack.c.l.b16 %v2936
        %v3698 = vunpack.c.h.b16 %v2936
        %v3699 = vunpack.c.l.b16 %v2937
        %v3700 = vunpack.c.h.b16 %v2937
        %v3701 = vunpack.c.l.b16 %v2938
        %v3702 = vunpack.c.h.b16 %v2938
        %v3703 = vunpack.c.l.b16 %v2939
        %v3704 = vunpack.c.h.b16 %v2939
        %v3705 = vunpack.c.l.b16 %v2940
        %v3706 = vunpack.c.h.b16 %v2940
        %v3707 = vunpack.c.l.b16 %v2941
        %v3708 = vunpack.c.h.b16 %v2941
        %v3709 = vunpack.c.l.b16 %v2942
        %v3710 = vunpack.c.h.b16 %v2942
        %v3711 = vunpack.c.l.b16 %v2943
        %v3712 = vunpack.c.h.b16 %v2943
        %v3713 = vunpack.c.l.b16 %v2944
        %v3714 = vunpack.c.h.b16 %v2944
        %v3715 = vunpack.c.l.b16 %v2945
        %v3716 = vunpack.c.h.b16 %v2945
        %v3717 = vunpack.c.l.b16 %v2946
        %v3718 = vunpack.c.h.b16 %v2946
        %v3719 = vunpack.c.l.b16 %v2947
        %v3720 = vunpack.c.h.b16 %v2947
        %v3721 = vunpack.c.l.b16 %v2948
        %v3722 = vunpack.c.h.b16 %v2948
        %v3723 = vunpack.c.l.b16 %v2949
        %v3724 = vunpack.c.h.b16 %v2949
        %v3725 = vunpack.c.l.b16 %v2950
        %v3726 = vunpack.c.h.b16 %v2950
        %v3727 = vunpack.c.l.b16 %v2951
        %v3728 = vunpack.c.h.b16 %v2951
        %v3729 = vunpack.c.l.b16 %v2952
        %v3730 = vunpack.c.h.b16 %v2952
        %v3731 = vunpack.c.l.b16 %v2953
        %v3732 = vunpack.c.h.b16 %v2953
        %v3733 = vunpack.c.l.b16 %v2954
        %v3734 = vunpack.c.h.b16 %v2954
        %v3735 = vunpack.c.l.b16 %v2955
        %v3736 = vunpack.c.h.b16 %v2955
        %v3737 = vunpack.c.l.b16 %v2956
        %v3738 = vunpack.c.h.b16 %v2956
        %v3739 = vunpack.c.l.b16 %v2957
        %v3740 = vunpack.c.h.b16 %v2957
        %v3741 = vunpack.c.l.b16 %v2958
        %v3742 = vunpack.c.h.b16 %v2958
        %v3743 = vunpack.c.l.b16 %v2959
        %v3744 = vunpack.c.h.b16 %v2959
        %v3745 = vunpack.c.l.b16 %v2960
        %v3746 = vunpack.c.h.b16 %v2960
        %v3747 = vunpack.c.l.b16 %v2961
        %v3748 = vunpack.c.h.b16 %v2961
        %v3749 = vunpack.c.l.b16 %v2962
        %v3750 = vunpack.c.h.b16 %v2962
        %v3751 = vunpack.c.l.b16 %v2963
        %v3752 = vunpack.c.h.b16 %v2963
        %v3753 = vunpack.c.l.b16 %v2964
        %v3754 = vunpack.c.h.b16 %v2964
        %v3755 = vunpack.c.l.b16 %v2965
        %v3756 = vunpack.c.h.b16 %v2965
        %v3757 = vunpack.c.l.b16 %v2966
        %v3758 = vunpack.c.h.b16 %v2966
        %v3759 = vunpack.c.l.b16 %v2967
        %v3760 = vunpack.c.h.b16 %v2967
        %v3761 = vunpack.c.l.b16 %v2968
        %v3762 = vunpack.c.h.b16 %v2968
        %v3763 = vunpack.c.l.b16 %v2969
        %v3764 = vunpack.c.h.b16 %v2969
        %v3765 = vunpack.c.l.b16 %v2970
        %v3766 = vunpack.c.h.b16 %v2970
        %v3767 = vunpack.c.l.b16 %v2971
        %v3768 = vunpack.c.h.b16 %v2971
        %v3769 = vunpack.c.l.b16 %v2972
        %v3770 = vunpack.c.h.b16 %v2972
        %v3771 = vunpack.c.l.b16 %v2973
        %v3772 = vunpack.c.h.b16 %v2973
        %v3773 = vunpack.c.l.b16 %v2974
        %v3774 = vunpack.c.h.b16 %v2974
        %v3775 = vunpack.c.l.b16 %v2975
        %v3776 = vunpack.c.h.b16 %v2975
        %v3777 = vunpack.c.l.b16 %v2976
        %v3778 = vunpack.c.h.b16 %v2976
        %v3779 = vunpack.c.l.b16 %v2977
        %v3780 = vunpack.c.h.b16 %v2977
        %v3781 = vunpack.c.l.b16 %v2978
        %v3782 = vunpack.c.h.b16 %v2978
        %v3783 = vunpack.c.l.b16 %v2979
        %v3784 = vunpack.c.h.b16 %v2979
        %v3785 = vunpack.c.l.b16 %v2980
        %v3786 = vunpack.c.h.b16 %v2980
        %v3787 = vunpack.c.l.b16 %v2981
        %v3788 = vunpack.c.h.b16 %v2981
        %v3789 = vunpack.c.l.b16 %v2982
        %v3790 = vunpack.c.h.b16 %v2982
        %v3791 = vunpack.c.l.b16 %v2983
        %v3792 = vunpack.c.h.b16 %v2983
        %v3793 = vunpack.c.l.b16 %v2984
        %v3794 = vunpack.c.h.b16 %v2984
        %v3795 = vunpack.c.l.b16 %v2985
        %v3796 = vunpack.c.h.b16 %v2985
        %v3797 = vunpack.c.l.b16 %v2986
        %v3798 = vunpack.c.h.b16 %v2986
        %v3799 = vunpack.c.l.b16 %v2987
        %v3800 = vunpack.c.h.b16 %v2987
        %v3801 = vunpack.c.l.b16 %v2988
        %v3802 = vunpack.c.h.b16 %v2988
        %v3803 = vunpack.c.l.b16 %v2989
        %v3804 = vunpack.c.h.b16 %v2989
        %v3805 = vunpack.c.l.b16 %v2990
        %v3806 = vunpack.c.h.b16 %v2990
        %v3807 = vunpack.c.l.b16 %v2991
        %v3808 = vunpack.c.h.b16 %v2991
        %v3809 = vunpack.c.l.b16 %v2992
        %v3810 = vunpack.c.h.b16 %v2992
        %v3811 = vunpack.c.l.b16 %v2993
        %v3812 = vunpack.c.h.b16 %v2993
        %v3813 = vunpack.c.l.b16 %v2994
        %v3814 = vunpack.c.h.b16 %v2994
        %v3815 = vunpack.c.l.b16 %v2995
        %v3816 = vunpack.c.h.b16 %v2995
        %v3817 = vunpack.c.l.b16 %v2996
        %v3818 = vunpack.c.h.b16 %v2996
        %v3819 = vunpack.c.l.b16 %v2997
        %v3820 = vunpack.c.h.b16 %v2997
        %v3821 = vunpack.c.l.b16 %v2998
        %v3822 = vunpack.c.h.b16 %v2998
        %v3823 = vunpack.c.l.b16 %v2999
        %v3824 = vunpack.c.h.b16 %v2999
        %v3825 = vunpack.c.l.b16 %v3000
        %v3826 = vunpack.c.h.b16 %v3000
        %v3827 = vunpack.c.l.b16 %v3001
        %v3828 = vunpack.c.h.b16 %v3001
        %v3829 = vunpack.c.l.b16 %v3002
        %v3830 = vunpack.c.h.b16 %v3002
        %v3831 = vunpack.c.l.b16 %v3003
        %v3832 = vunpack.c.h.b16 %v3003
        %v3833 = vunpack.c.l.b16 %v3004
        %v3834 = vunpack.c.h.b16 %v3004
        %v3835 = vunpack.c.l.b16 %v3005
        %v3836 = vunpack.c.h.b16 %v3005
        %v3837 = vunpack.c.l.b16 %v3006
        %v3838 = vunpack.c.h.b16 %v3006
        %v3839 = vunpack.c.l.b16 %v3007
        %v3840 = vunpack.c.h.b16 %v3007
        %v3841 = vunpack.c.l.b16 %v3008
        %v3842 = vunpack.c.h.b16 %v3008
        %v3843 = vunpack.c.l.b16 %v3009
        %v3844 = vunpack.c.h.b16 %v3009
        %v3845 = vunpack.c.l.b16 %v3010
        %v3846 = vunpack.c.h.b16 %v3010
        %v3847 = vunpack.c.l.b16 %v3011
        %v3848 = vunpack.c.h.b16 %v3011
        %v3849 = vunpack.c.l.b16 %v3012
        %v3850 = vunpack.c.h.b16 %v3012
        %v3851 = vunpack.c.l.b16 %v3013
        %v3852 = vunpack.c.h.b16 %v3013
        %v3853 = vunpack.c.l.b16 %v3014
        %v3854 = vunpack.c.h.b16 %v3014
        %v3855 = vunpack.c.l.b16 %v3015
        %v3856 = vunpack.c.h.b16 %v3015
        %v3857 = vunpack.c.l.b16 %v3016
        %v3858 = vunpack.c.h.b16 %v3016
        %v3859 = vunpack.c.l.b16 %v3017
        %v3860 = vunpack.c.h.b16 %v3017
        %v3861 = vunpack.c.l.b16 %v3018
        %v3862 = vunpack.c.h.b16 %v3018
        %v3863 = vunpack.c.l.b16 %v3019
        %v3864 = vunpack.c.h.b16 %v3019
        %v3865 = vunpack.c.l.b16 %v3020
        %v3866 = vunpack.c.h.b16 %v3020
        %v3867 = vunpack.c.l.b16 %v3021
        %v3868 = vunpack.c.h.b16 %v3021
        %v3869 = vunpack.c.l.b16 %v3022
        %v3870 = vunpack.c.h.b16 %v3022
        %v3871 = vunpack.c.l.b16 %v3023
        %v3872 = vunpack.c.h.b16 %v3023
        %v3873 = vunpack.c.l.b16 %v3024
        %v3874 = vunpack.c.h.b16 %v3024
        %v3875 = vunpack.c.l.b16 %v3025
        %v3876 = vunpack.c.h.b16 %v3025
        %v3877 = vunpack.c.l.b16 %v3026
        %v3878 = vunpack.c.h.b16 %v3026
        %v3879 = vunpack.c.l.b16 %v3027
        %v3880 = vunpack.c.h.b16 %v3027
        %v3881 = vunpack.c.l.b16 %v3028
        %v3882 = vunpack.c.h.b16 %v3028
        %v3883 = vunpack.c.l.b16 %v3029
        %v3884 = vunpack.c.h.b16 %v3029
        %v3885 = vunpack.c.l.b16 %v3030
        %v3886 = vunpack.c.h.b16 %v3030
        %v3887 = vunpack.c.l.b16 %v3031
        %v3888 = vunpack.c.h.b16 %v3031
        %v3889 = vunpack.c.l.b16 %v3032
        %v3890 = vunpack.c.h.b16 %v3032
        %v3891 = vunpack.c.l.b16 %v3033
        %v3892 = vunpack.c.h.b16 %v3033
        %v3893 = vunpack.c.l.b16 %v3034
        %v3894 = vunpack.c.h.b16 %v3034
        %v3895 = vunpack.c.l.b16 %v3035
        %v3896 = vunpack.c.h.b16 %v3035
        %v3897 = vunpack.c.l.b16 %v3036
        %v3898 = vunpack.c.h.b16 %v3036
        %v3899 = vunpack.c.l.b16 %v3037
        %v3900 = vunpack.c.h.b16 %v3037
        %v3901 = vunpack.c.l.b16 %v3038
        %v3902 = vunpack.c.h.b16 %v3038
        %v3903 = vunpack.c.l.b16 %v3039
        %v3904 = vunpack.c.h.b16 %v3039
        %v3905 = vunpack.c.l.b16 %v3040
        %v3906 = vunpack.c.h.b16 %v3040
        %v3907 = vunpack.c.l.b16 %v3041
        %v3908 = vunpack.c.h.b16 %v3041
        %v3909 = vunpack.c.l.b16 %v3042
        %v3910 = vunpack.c.h.b16 %v3042
        %v3911 = vunpack.c.l.b16 %v3043
        %v3912 = vunpack.c.h.b16 %v3043
        %v3913 = vunpack.c.l.b16 %v3044
        %v3914 = vunpack.c.h.b16 %v3044
        %v3915 = vunpack.c.l.b16 %v3045
        %v3916 = vunpack.c.h.b16 %v3045
        %v3917 = vunpack.c.l.b16 %v3046
        %v3918 = vunpack.c.h.b16 %v3046
        %v3919 = vunpack.c.l.b16 %v3047
        %v3920 = vunpack.c.h.b16 %v3047
        %v3921 = vunpack.c.l.b16 %v3048
        %v3922 = vunpack.c.h.b16 %v3048
        %v3923 = vunpack.c.l.b16 %v3049
        %v3924 = vunpack.c.h.b16 %v3049
        %v3925 = vunpack.c.l.b16 %v3050
        %v3926 = vunpack.c.h.b16 %v3050
        %v3927 = vunpack.c.l.b16 %v3051
        %v3928 = vunpack.c.h.b16 %v3051
        %v3929 = vunpack.c.l.b16 %v3052
        %v3930 = vunpack.c.h.b16 %v3052
        %v3931 = vunpack.c.l.b16 %v3053
        %v3932 = vunpack.c.h.b16 %v3053
        %v3933 = vunpack.c.l.b16 %v3054
        %v3934 = vunpack.c.h.b16 %v3054
        %v3935 = vunpack.c.l.b16 %v3055
        %v3936 = vunpack.c.h.b16 %v3055
        %v3937 = vunpack.c.l.b16 %v3056
        %v3938 = vunpack.c.h.b16 %v3056
        %v3939 = vunpack.c.l.b16 %v3057
        %v3940 = vunpack.c.h.b16 %v3057
        %v3941 = vunpack.c.l.b16 %v3058
        %v3942 = vunpack.c.h.b16 %v3058
        %v3943 = vunpack.c.l.b16 %v3059
        %v3944 = vunpack.c.h.b16 %v3059
        %v3945 = vunpack.c.l.b16 %v3060
        %v3946 = vunpack.c.h.b16 %v3060
        %v3947 = vunpack.c.l.b16 %v3061
        %v3948 = vunpack.c.h.b16 %v3061
        %v3949 = vunpack.c.l.b16 %v3062
        %v3950 = vunpack.c.h.b16 %v3062
        %v3951 = vunpack.c.l.b16 %v3063
        %v3952 = vunpack.c.h.b16 %v3063
        %v3953 = vunpack.c.l.b16 %v3064
        %v3954 = vunpack.c.h.b16 %v3064
        %v3955 = vunpack.c.l.b16 %v3065
        %v3956 = vunpack.c.h.b16 %v3065
        %v3957 = vunpack.c.l.b16 %v3066
        %v3958 = vunpack.c.h.b16 %v3066
        %v3959 = vunpack.c.l.b16 %v3067
        %v3960 = vunpack.c.h.b16 %v3067
        %v3961 = vunpack.c.l.b16 %v3068
        %v3962 = vunpack.c.h.b16 %v3068
        %v3963 = vunpack.c.l.b16 %v3069
        %v3964 = vunpack.c.h.b16 %v3069
        %v3965 = vunpack.c.l.b16 %v3070
        %v3966 = vunpack.c.h.b16 %v3070
        %v3967 = vunpack.c.l.b16 %v3071
        %v3968 = vunpack.c.h.b16 %v3071
        %v3969 = vunpack.c.l.b16 %v3072
        %v3970 = vunpack.c.h.b16 %v3072
        %v3971 = vunpack.c.l.b16 %v3073
        %v3972 = vunpack.c.h.b16 %v3073
        %v3973 = vunpack.c.l.b16 %v3074
        %v3974 = vunpack.c.h.b16 %v3074
        %v3975 = vunpack.c.l.b16 %v3075
        %v3976 = vunpack.c.h.b16 %v3075
        %v3977 = vunpack.c.l.b16 %v3076
        %v3978 = vunpack.c.h.b16 %v3076
        %v3979 = vunpack.c.l.b16 %v3077
        %v3980 = vunpack.c.h.b16 %v3077
        %v3981 = vunpack.c.l.b16 %v3078
        %v3982 = vunpack.c.h.b16 %v3078
        %v3983 = vunpack.c.l.b16 %v3079
        %v3984 = vunpack.c.h.b16 %v3079
        %v3985 = vunpack.c.l.b16 %v3080
        %v3986 = vunpack.c.h.b16 %v3080
        %v3987 = vunpack.c.l.b16 %v3081
        %v3988 = vunpack.c.h.b16 %v3081
        %v3989 = vunpack.c.l.b16 %v3082
        %v3990 = vunpack.c.h.b16 %v3082
        %v3991 = vunpack.c.l.b16 %v3083
        %v3992 = vunpack.c.h.b16 %v3083
        %v3993 = vunpack.c.l.b16 %v3084
        %v3994 = vunpack.c.h.b16 %v3084
        %v3995 = vunpack.c.l.b16 %v3085
        %v3996 = vunpack.c.h.b16 %v3085
        %v3997 = vunpack.c.l.b16 %v3086
        %v3998 = vunpack.c.h.b16 %v3086
        %v3999 = vunpack.c.l.b16 %v3087
        %v4000 = vunpack.c.h.b16 %v3087
        %v4001 = vunpack.c.l.b16 %v3088
        %v4002 = vunpack.c.h.b16 %v3088
        %v4003 = vunpack.c.l.b16 %v3089
        %v4004 = vunpack.c.h.b16 %v3089
        %v4005 = vunpack.c.l.b16 %v3090
        %v4006 = vunpack.c.h.b16 %v3090
        %v4007 = vunpack.c.l.b16 %v3091
        %v4008 = vunpack.c.h.b16 %v3091
        %v4009 = vunpack.c.l.b16 %v3092
        %v4010 = vunpack.c.h.b16 %v3092
        %v4011 = vunpack.c.l.b16 %v3093
        %v4012 = vunpack.c.h.b16 %v3093
        %v4013 = vunpack.c.l.b16 %v3094
        %v4014 = vunpack.c.h.b16 %v3094
        %v4015 = vunpack.c.l.b16 %v3095
        %v4016 = vunpack.c.h.b16 %v3095
        %v4017 = vunpack.c.l.b16 %v3096
        %v4018 = vunpack.c.h.b16 %v3096
        %v4019 = vunpack.c.l.b16 %v3097
        %v4020 = vunpack.c.h.b16 %v3097
        %v4021 = vunpack.c.l.b16 %v3098
        %v4022 = vunpack.c.h.b16 %v3098
        %v4023 = vunpack.c.l.b16 %v3099
        %v4024 = vunpack.c.h.b16 %v3099
        %v4025 = vunpack.c.l.b16 %v3100
        %v4026 = vunpack.c.h.b16 %v3100
        %v4027 = vunpack.c.l.b16 %v3101
        %v4028 = vunpack.c.h.b16 %v3101
        %v4029 = vunpack.c.l.b16 %v3102
        %v4030 = vunpack.c.h.b16 %v3102
        %v4031 = vunpack.c.l.b16 %v3103
        %v4032 = vunpack.c.h.b16 %v3103
        %v4033 = vunpack.c.l.b16 %v3104
        %v4034 = vunpack.c.h.b16 %v3104
        %v4035 = vunpack.c.l.b16 %v3105
        %v4036 = vunpack.c.h.b16 %v3105
        %v4037 = vunpack.c.l.b16 %v3106
        %v4038 = vunpack.c.h.b16 %v3106
        %v4039 = vunpack.c.l.b16 %v3107
        %v4040 = vunpack.c.h.b16 %v3107
        %v4041 = vunpack.c.l.b16 %v3108
        %v4042 = vunpack.c.h.b16 %v3108
        %v4043 = vunpack.c.l.b16 %v3109
        %v4044 = vunpack.c.h.b16 %v3109
        %v4045 = vunpack.c.l.b16 %v3110
        %v4046 = vunpack.c.h.b16 %v3110
        %v4047 = vunpack.c.l.b16 %v3111
        %v4048 = vunpack.c.h.b16 %v3111
        %v4049 = vunpack.c.l.b16 %v3112
        %v4050 = vunpack.c.h.b16 %v3112
        %v4051 = vunpack.c.l.b16 %v3113
        %v4052 = vunpack.c.h.b16 %v3113
        %v4053 = vunpack.c.l.b16 %v3114
        %v4054 = vunpack.c.h.b16 %v3114
        %v4055 = vunpack.c.l.b16 %v3115
        %v4056 = vunpack.c.h.b16 %v3115
        %v4057 = vunpack.c.l.b16 %v3116
        %v4058 = vunpack.c.h.b16 %v3116
        %v4059 = vunpack.c.l.b16 %v3117
        %v4060 = vunpack.c.h.b16 %v3117
        %v4061 = vunpack.c.l.b16 %v3118
        %v4062 = vunpack.c.h.b16 %v3118
        %v4063 = vunpack.c.l.b16 %v3119
        %v4064 = vunpack.c.h.b16 %v3119
        %v4065 = vunpack.c.l.b16 %v3120
        %v4066 = vunpack.c.h.b16 %v3120
        %v4067 = vunpack.c.l.b16 %v3121
        %v4068 = vunpack.c.h.b16 %v3121
        %v4069 = vunpack.c.l.b16 %v3122
        %v4070 = vunpack.c.h.b16 %v3122
        %v4071 = vunpack.c.l.b16 %v3123
        %v4072 = vunpack.c.h.b16 %v3123
        %v4073 = vunpack.c.l.b16 %v3124
        %v4074 = vunpack.c.h.b16 %v3124
        %v4075 = vunpack.c.l.b16 %v3125
        %v4076 = vunpack.c.h.b16 %v3125
        %v4077 = vunpack.c.l.b16 %v3126
        %v4078 = vunpack.c.h.b16 %v3126
        %v4079 = vunpack.c.l.b16 %v3127
        %v4080 = vunpack.c.h.b16 %v3127
        %v4081 = vunpack.c.l.b16 %v3128
        %v4082 = vunpack.c.h.b16 %v3128
        %v4083 = vunpack.c.l.b16 %v3129
        %v4084 = vunpack.c.h.b16 %v3129
        %v4085 = vunpack.c.l.b16 %v3130
        %v4086 = vunpack.c.h.b16 %v3130
        %v4087 = vunpack.c.l.b16 %v3131
        %v4088 = vunpack.c.h.b16 %v3131
        %v4089 = vunpack.c.l.b16 %v3132
        %v4090 = vunpack.c.h.b16 %v3132
        %v4091 = vunpack.c.l.b16 %v3133
        %v4092 = vunpack.c.h.b16 %v3133
        %v4093 = vunpack.c.l.b16 %v3134
        %v4094 = vunpack.c.h.b16 %v3134
        %v4095 = vunpack.c.l.b16 %v3135
        %v4096 = vunpack.c.h.b16 %v3135
        %v4097 = vunpack.c.l.b16 %v3136
        %v4098 = vunpack.c.h.b16 %v3136
        %v4099 = vunpack.c.l.b16 %v3137
        %v4100 = vunpack.c.h.b16 %v3137
        %v4101 = vunpack.c.l.b16 %v3138
        %v4102 = vunpack.c.h.b16 %v3138
        %v4103 = vunpack.c.l.b16 %v3139
        %v4104 = vunpack.c.h.b16 %v3139
        %v4105 = vunpack.c.l.b16 %v3140
        %v4106 = vunpack.c.h.b16 %v3140
        %v4107 = vunpack.c.l.b16 %v3141
        %v4108 = vunpack.c.h.b16 %v3141
        %v4109 = vunpack.c.l.b16 %v3142
        %v4110 = vunpack.c.h.b16 %v3142
        %v4111 = vunpack.c.l.b16 %v3143
        %v4112 = vunpack.c.h.b16 %v3143
        %v4113 = vunpack.c.l.b16 %v3144
        %v4114 = vunpack.c.h.b16 %v3144
        %v4115 = vunpack.c.l.b16 %v3145
        %v4116 = vunpack.c.h.b16 %v3145
        %v4117 = vunpack.c.l.b16 %v3146
        %v4118 = vunpack.c.h.b16 %v3146
        %v4119 = vpack.c.b16 %v3507, %v3505
        %v4120 = vpack.c.b16 %v3508, %v3506
        %v4121 = vpack.c.b16 %v3511, %v3509
        %v4122 = vpack.c.b16 %v3512, %v3510
        %v4123 = vpack.c.b16 %v3515, %v3513
        %v4124 = vpack.c.b16 %v3516, %v3514
        %v4125 = vpack.c.b16 %v3519, %v3517
        %v4126 = vpack.c.b16 %v3520, %v3518
        %v4127 = vpack.c.b16 %v3523, %v3521
        %v4128 = vpack.c.b16 %v3524, %v3522
        %v4129 = vpack.c.b16 %v3527, %v3525
        %v4130 = vpack.c.b16 %v3528, %v3526
        %v4131 = vpack.c.b16 %v3531, %v3529
        %v4132 = vpack.c.b16 %v3532, %v3530
        %v4133 = vpack.c.b16 %v3535, %v3533
        %v4134 = vpack.c.b16 %v3536, %v3534
        %v4135 = vpack.c.b16 %v3539, %v3537
        %v4136 = vpack.c.b16 %v3540, %v3538
        %v4137 = vpack.c.b16 %v3543, %v3541
        %v4138 = vpack.c.b16 %v3544, %v3542
        %v4139 = vpack.c.b16 %v3547, %v3545
        %v4140 = vpack.c.b16 %v3548, %v3546
        %v4141 = vpack.c.b16 %v3551, %v3549
        %v4142 = vpack.c.b16 %v3552, %v3550
        %v4143 = vpack.c.b16 %v3555, %v3553
        %v4144 = vpack.c.b16 %v3556, %v3554
        %v4145 = vpack.c.b16 %v3559, %v3557
        %v4146 = vpack.c.b16 %v3560, %v3558
        %v4147 = vpack.c.b16 %v3563, %v3561
        %v4148 = vpack.c.b16 %v3564, %v3562
        %v4149 = vpack.c.b16 %v3567, %v3565
        %v4150 = vpack.c.b16 %v3568, %v3566
        %v4151 = vpack.c.b16 %v3571, %v3569
        %v4152 = vpack.c.b16 %v3572, %v3570
        %v4153 = vpack.c.b16 %v3575, %v3573
        %v4154 = vpack.c.b16 %v3576, %v3574
        %v4155 = vpack.c.b16 %v3579, %v3577
        %v4156 = vpack.c.b16 %v3580, %v3578
        %v4157 = vpack.c.b16 %v3583, %v3581
        %v4158 = vpack.c.b16 %v3584, %v3582
        %v4159 = vpack.c.b16 %v3587, %v3585
        %v4160 = vpack.c.b16 %v3588, %v3586
        %v4161 = vpack.c.b16 %v3591, %v3589
        %v4162 = vpack.c.b16 %v3592, %v3590
        %v4163 = vpack.c.b16 %v3595, %v3593
        %v4164 = vpack.c.b16 %v3596, %v3594
        %v4165 = vpack.c.b16 %v3599, %v3597
        %v4166 = vpack.c.b16 %v3600, %v3598
        %v4167 = vpack.c.b16 %v3603, %v3601
        %v4168 = vpack.c.b16 %v3604, %v3602
        %v4169 = vpack.c.b16 %v3607, %v3605
        %v4170 = vpack.c.b16 %v3608, %v3606
        %v4171 = vpack.c.b16 %v3611, %v3609
        %v4172 = vpack.c.b16 %v3612, %v3610
        %v4173 = vpack.c.b16 %v3615, %v3613
        %v4174 = vpack.c.b16 %v3616, %v3614
        %v4175 = vpack.c.b16 %v3619, %v3617
        %v4176 = vpack.c.b16 %v3620, %v3618
        %v4177 = vpack.c.b16 %v3623, %v3621
        %v4178 = vpack.c.b16 %v3624, %v3622
        %v4179 = vpack.c.b16 %v3627, %v3625
        %v4180 = vpack.c.b16 %v3628, %v3626
        %v4181 = vpack.c.b16 %v3631, %v3629
        %v4182 = vpack.c.b16 %v3632, %v3630
        %v4183 = vpack.c.b16 %v3635, %v3633
        %v4184 = vpack.c.b16 %v3636, %v3634
        %v4185 = vpack.c.b16 %v3639, %v3637
        %v4186 = vpack.c.b16 %v3640, %v3638
        %v4187 = vpack.c.b16 %v3643, %v3641
        %v4188 = vpack.c.b16 %v3644, %v3642
        %v4189 = vpack.c.b16 %v3647, %v3645
        %v4190 = vpack.c.b16 %v3648, %v3646
        %v4191 = vpack.c.b16 %v3651, %v3649
        %v4192 = vpack.c.b16 %v3652, %v3650
        %v4193 = vpack.c.b16 %v3655, %v3653
        %v4194 = vpack.c.b16 %v3656, %v3654
        %v4195 = vpack.c.b16 %v3659, %v3657
        %v4196 = vpack.c.b16 %v3660, %v3658
        %v4197 = vpack.c.b16 %v3663, %v3661
        %v4198 = vpack.c.b16 %v3664, %v3662
        %v4199 = vpack.c.b16 %v3667, %v3665
        %v4200 = vpack.c.b16 %v3668, %v3666
        %v4201 = vpack.c.b16 %v3671, %v3669
        %v4202 = vpack.c.b16 %v3672, %v3670
        %v4203 = vpack.c.b16 %v3675, %v3673
        %v4204 = vpack.c.b16 %v3676, %v3674
        %v4205 = vpack.c.b16 %v3679, %v3677
        %v4206 = vpack.c.b16 %v3680, %v3678
        %v4207 = vpack.c.b16 %v3683, %v3681
        %v4208 = vpack.c.b16 %v3684, %v3682
        %v4209 = vpack.c.b16 %v3687, %v3685
        %v4210 = vpack.c.b16 %v3688, %v3686
        %v4211 = vpack.c.b16 %v3691, %v3689
        %v4212 = vpack.c.b16 %v3692, %v3690
        %v4213 = vpack.c.b16 %v3695, %v3693
        %v4214 = vpack.c.b16 %v3696, %v3694
        %v4215 = vpack.c.b16 %v3699, %v3697
        %v4216 = vpack.c.b16 %v3700, %v3698
        %v4217 = vpack.c.b16 %v3703, %v3701
        %v4218 = vpack.c.b16 %v3704, %v3702
        %v4219 = vpack.c.b16 %v3707, %v3705
        %v4220 = vpack.c.b16 %v3708, %v3706
        %v4221 = vpack.c.b16 %v3711, %v3709
        %v4222 = vpack.c.b16 %v3712, %v3710
        %v4223 = vpack.c.b16 %v3715, %v3713
        %v4224 = vpack.c.b16 %v3716, %v3714
        %v4225 = vpack.c.b16 %v3719, %v3717
        %v4226 = vpack.c.b16 %v3720, %v3718
        %v4227 = vpack.c.b16 %v3723, %v3721
        %v4228 = vpack.c.b16 %v3724, %v3722
        %v4229 = vpack.c.b16 %v3727, %v3725
        %v4230 = vpack.c.b16 %v3728, %v3726
        %v4231 = vpack.c.b16 %v3731, %v3729
        %v4232 = vpack.c.b16 %v3732, %v3730
        %v4233 = vpack.c.b16 %v3735, %v3733
        %v4234 = vpack.c.b16 %v3736, %v3734
        %v4235 = vpack.c.b16 %v3739, %v3737
        %v4236 = vpack.c.b16 %v3740, %v3738
        %v4237 = vpack.c.b16 %v3743, %v3741
        %v4238 = vpack.c.b16 %v3744, %v3742
        %v4239 = vpack.c.b16 %v3747, %v3745
        %v4240 = vpack.c.b16 %v3748, %v3746
        %v4241 = vpack.c.b16 %v3751, %v3749
        %v4242 = vpack.c.b16 %v3752, %v3750
        %v4243 = vpack.c.b16 %v3755, %v3753
        %v4244 = vpack.c.b16 %v3756, %v3754
        %v4245 = vpack.c.b16 %v3759, %v3757
        %v4246 = vpack.c.b16 %v3760, %v3758
        %v4247 = vpack.c.b16 %v3763, %v3761
        %v4248 = vpack.c.b16 %v3764, %v3762
        %v4249 = vpack.c.b16 %v3767, %v3765
        %v4250 = vpack.c.b16 %v3768, %v3766
        %v4251 = vpack.c.b16 %v3771, %v3769
        %v4252 = vpack.c.b16 %v3772, %v3770
        %v4253 = vpack.c.b16 %v3775, %v3773
        %v4254 = vpack.c.b16 %v3776, %v3774
        %v4255 = vpack.c.b16 %v3779, %v3777
        %v4256 = vpack.c.b16 %v3780, %v3778
        %v4257 = vpack.c.b16 %v3783, %v3781
        %v4258 = vpack.c.b16 %v3784, %v3782
        %v4259 = vpack.c.b16 %v3787, %v3785
        %v4260 = vpack.c.b16 %v3788, %v3786
        %v4261 = vpack.c.b16 %v3791, %v3789
        %v4262 = vpack.c.b16 %v3792, %v3790
        %v4263 = vpack.c.b16 %v3795, %v3793
        %v4264 = vpack.c.b16 %v3796, %v3794
        %v4265 = vpack.c.b16 %v3799, %v3797
        %v4266 = vpack.c.b16 %v3800, %v3798
        %v4267 = vpack.c.b16 %v3803, %v3801
        %v4268 = vpack.c.b16 %v3804, %v3802
        %v4269 = vpack.c.b16 %v3807, %v3805
        %v4270 = vpack.c.b16 %v3808, %v3806
        %v4271 = vpack.c.b16 %v3811, %v3809
        %v4272 = vpack.c.b16 %v3812, %v3810
        %v4273 = vpack.c.b16 %v3815, %v3813
        %v4274 = vpack.c.b16 %v3816, %v3814
        %v4275 = vpack.c.b16 %v3819, %v3817
        %v4276 = vpack.c.b16 %v3820, %v3818
        %v4277 = vpack.c.b16 %v3823, %v3821
        %v4278 = vpack.c.b16 %v3824, %v3822
        %v4279 = vpack.c.b16 %v3827, %v3825
        %v4280 = vpack.c.b16 %v3828, %v3826
        %v4281 = vpack.c.b16 %v3831, %v3829
        %v4282 = vpack.c.b16 %v3832, %v3830
        %v4283 = vpack.c.b16 %v3835, %v3833
        %v4284 = vpack.c.b16 %v3836, %v3834
        %v4285 = vpack.c.b16 %v3839, %v3837
        %v4286 = vpack.c.b16 %v3840, %v3838
        %v4287 = vpack.c.b16 %v3843, %v3841
        %v4288 = vpack.c.b16 %v3844, %v3842
        %v4289 = vpack.c.b16 %v3847, %v3845
        %v4290 = vpack.c.b16 %v3848, %v3846
        %v4291 = vpack.c.b16 %v3851, %v3849
        %v4292 = vpack.c.b16 %v3852, %v3850
        %v4293 = vpack.c.b16 %v3855, %v3853
        %v4294 = vpack.c.b16 %v3856, %v3854
        %v4295 = vpack.c.b16 %v3859, %v3857
        %v4296 = vpack.c.b16 %v3860, %v3858
        %v4297 = vpack.c.b16 %v3863, %v3861
        %v4298 = vpack.c.b16 %v3864, %v3862
        %v4299 = vpack.c.b16 %v3867, %v3865
        %v4300 = vpack.c.b16 %v3868, %v3866
        %v4301 = vpack.c.b16 %v3871, %v3869
        %v4302 = vpack.c.b16 %v3872, %v3870
        %v4303 = vpack.c.b16 %v3875, %v3873
        %v4304 = vpack.c.b16 %v3876, %v3874
        %v4305 = vpack.c.b16 %v3879, %v3877
        %v4306 = vpack.c.b16 %v3880, %v3878
        %v4307 = vpack.c.b16 %v3883, %v3881
        %v4308 = vpack.c.b16 %v3884, %v3882
        %v4309 = vpack.c.b16 %v3887, %v3885
        %v4310 = vpack.c.b16 %v3888, %v3886
        %v4311 = vpack.c.b16 %v3891, %v3889
        %v4312 = vpack.c.b16 %v3892, %v3890
        %v4313 = vpack.c.b16 %v3895, %v3893
        %v4314 = vpack.c.b16 %v3896, %v3894
        %v4315 = vpack.c.b16 %v3899, %v3897
        %v4316 = vpack.c.b16 %v3900, %v3898
        %v4317 = vpack.c.b16 %v3903, %v3901
        %v4318 = vpack.c.b16 %v3904, %v3902
        %v4319 = vpack.c.b16 %v3907, %v3905
        %v4320 = vpack.c.b16 %v3908, %v3906
        %v4321 = vpack.c.b16 %v3911, %v3909
        %v4322 = vpack.c.b16 %v3912, %v3910
        %v4323 = vpack.c.b16 %v3915, %v3913
        %v4324 = vpack.c.b16 %v3916, %v3914
        %v4325 = vpack.c.b16 %v3919, %v3917
        %v4326 = vpack.c.b16 %v3920, %v3918
        %v4327 = vpack.c.b16 %v3923, %v3921
        %v4328 = vpack.c.b16 %v3924, %v3922
        %v4329 = vpack.c.b16 %v3927, %v3925
        %v4330 = vpack.c.b16 %v3928, %v3926
        %v4331 = vpack.c.b16 %v3931, %v3929
        %v4332 = vpack.c.b16 %v3932, %v3930
        %v4333 = vpack.c.b16 %v3935, %v3933
        %v4334 = vpack.c.b16 %v3936, %v3934
        %v4335 = vpack.c.b16 %v3939, %v3937
        %v4336 = vpack.c.b16 %v3940, %v3938
        %v4337 = vpack.c.b16 %v3943, %v3941
        %v4338 = vpack.c.b16 %v3944, %v3942
        %v4339 = vpack.c.b16 %v3947, %v3945
        %v4340 = vpack.c.b16 %v3948, %v3946
        %v4341 = vpack.c.b16 %v3951, %v3949
        %v4342 = vpack.c.b16 %v3952, %v3950
        %v4343 = vpack.c.b16 %v3955, %v3953
        %v4344 = vpack.c.b16 %v3956, %v3954
        %v4345 = vpack.c.b16 %v3959, %v3957
        %v4346 = vpack.c.b16 %v3960, %v3958
        %v4347 = vpack.c.b16 %v3963, %v3961
        %v4348 = vpack.c.b16 %v3964, %v3962
        %v4349 = vpack.c.b16 %v3967, %v3965
        %v4350 = vpack.c.b16 %v3968, %v3966
        %v4351 = vpack.c.b16 %v3971, %v3969
        %v4352 = vpack.c.b16 %v3972, %v3970
        %v4353 = vpack.c.b16 %v3975, %v3973
        %v4354 = vpack.c.b16 %v3976, %v3974
        %v4355 = vpack.c.b16 %v3979, %v3977
        %v4356 = vpack.c.b16 %v3980, %v3978
        %v4357 = vpack.c.b16 %v3983, %v3981
        %v4358 = vpack.c.b16 %v3984, %v3982
        %v4359 = vpack.c.b16 %v3987, %v3985
        %v4360 = vpack.c.b16 %v3988, %v3986
        %v4361 = vpack.c.b16 %v3991, %v3989
        %v4362 = vpack.c.b16 %v3992, %v3990
        %v4363 = vpack.c.b16 %v3995, %v3993
        %v4364 = vpack.c.b16 %v3996, %v3994
        %v4365 = vpack.c.b16 %v3999, %v3997
        %v4366 = vpack.c.b16 %v4000, %v3998
        %v4367 = vpack.c.b16 %v4003, %v4001
        %v4368 = vpack.c.b16 %v4004, %v4002
        %v4369 = vpack.c.b16 %v4007, %v4005
        %v4370 = vpack.c.b16 %v4008, %v4006
        %v4371 = vpack.c.b16 %v4011, %v4009
        %v4372 = vpack.c.b16 %v4012, %v4010
        %v4373 = vpack.c.b16 %v4015, %v4013
        %v4374 = vpack.c.b16 %v4016, %v4014
        %v4375 = vpack.c.b16 %v4019, %v4017
        %v4376 = vpack.c.b16 %v4020, %v4018
        %v4377 = vpack.c.b16 %v4023, %v4021
        %v4378 = vpack.c.b16 %v4024, %v4022
        %v4379 = vpack.c.b16 %v4027, %v4025
        %v4380 = vpack.c.b16 %v4028, %v4026
        %v4381 = vpack.c.b16 %v4031, %v4029
        %v4382 = vpack.c.b16 %v4032, %v4030
        %v4383 = vpack.c.b16 %v4035, %v4033
        %v4384 = vpack.c.b16 %v4036, %v4034
        %v4385 = vpack.c.b16 %v4039, %v4037
        %v4386 = vpack.c.b16 %v4040, %v4038
        %v4387 = vpack.c.b16 %v4043, %v4041
        %v4388 = vpack.c.b16 %v4044, %v4042
        %v4389 = vpack.c.b16 %v4047, %v4045
        %v4390 = vpack.c.b16 %v4048, %v4046
        %v4391 = vpack.c.b16 %v4051, %v4049
        %v4392 = vpack.c.b16 %v4052, %v4050
        %v4393 = vpack.c.b16 %v4055, %v4053
        %v4394 = vpack.c.b16 %v4056, %v4054
        %v4395 = vpack.c.b16 %v4059, %v4057
        %v4396 = vpack.c.b16 %v4060, %v4058
        %v4397 = vpack.c.b16 %v4063, %v4061
        %v4398 = vpack.c.b16 %v4064, %v4062
        %v4399 = vpack.c.b16 %v4067, %v4065
        %v4400 = vpack.c.b16 %v4068, %v4066
        %v4401 = vpack.c.b16 %v4071, %v4069
        %v4402 = vpack.c.b16 %v4072, %v4070
        %v4403 = vpack.c.b16 %v4075, %v4073
        %v4404 = vpack.c.b16 %v4076, %v4074
        %v4405 = vpack.c.b16 %v4079, %v4077
        %v4406 = vpack.c.b16 %v4080, %v4078
        %v4407 = vpack.c.b16 %v4083, %v4081
        %v4408 = vpack.c.b16 %v4084, %v4082
        %v4409 = vpack.c.b16 %v4087, %v4085
        %v4410 = vpack.c.b16 %v4088, %v4086
        %v4411 = vpack.c.b16 %v4091, %v4089
        %v4412 = vpack.c.b16 %v4092, %v4090
        %v4413 = vpack.c.b16 %v4095, %v4093
        %v4414 = vpack.c.b16 %v4096, %v4094
        %v4415 = vpack.c.b16 %v4099, %v4097
        %v4416 = vpack.c.b16 %v4100, %v4098
        %v4417 = vpack.c.b16 %v4103, %v4101
        %v4418 = vpack.c.b16 %v4104, %v4102
        %v4419 = vpack.c.b16 %v4107, %v4105
        %v4420 = vpack.c.b16 %v4108, %v4106
        %v4421 = vpack.c.b16 %v4111, %v4109
        %v4422 = vpack.c.b16 %v4112, %v4110
        %v4423 = vpack.c.b16 %v4115, %v4113
        %v4424 = vpack.c.b16 %v4116, %v4114
        %v4425 = vpack.c.b16 %v4117, %v4117
        %v4426 = vpack.c.b16 %v4118, %v4118
        %vm4733 = vcmask 146432
        %v4734 = vsel %vm4733, %v3178, 0
        %vm4736 = vcmask 1040384
        %v4738 = vsel %vm4736, %v4425, 0
        %v4741 = vsel %vm4736, %v4426, 0
        %4743 = vmatpush.bf16.msra.mxu0 %v4133
        %4744 = vmatpush.bf16.msra.mxu0 %v4131
        %4745 = vmatpush.bf16.msra.mxu0 %v4129
        %4746 = vmatpush.bf16.msra.mxu0 %v4127
        %4747 = vmatpush.bf16.msra.mxu0 %v4125
        %4748 = vmatpush.bf16.msra.mxu0 %v4123
        %4749 = vmatpush.bf16.msra.mxu0 %v4121
        %4750 = vmatpush.bf16.msra.mxu0 %v4119
        %4751 = vmatmul.bf16.gmra.mxu0 %v3155
        %v4752 = vpop.f32.mrf.mxu0
        %v4753 = vadd.f32 %v3149, %v4752
        %v4754 = vpop.f32.mrf.mxu0
        %4755 = vdwg.mxu0
        %4756 = vmatpush.bf16.msra.mxu0 %v4149
        %4757 = vmatpush.bf16.msra.mxu0 %v4147
        %4758 = vmatpush.bf16.msra.mxu0 %v4145
        %4759 = vmatpush.bf16.msra.mxu0 %v4143
        %4760 = vmatpush.bf16.msra.mxu0 %v4141
        %4761 = vmatpush.bf16.msra.mxu0 %v4139
        %4762 = vmatpush.bf16.msra.mxu0 %v4137
        %4763 = vmatpush.bf16.msra.mxu0 %v4135
        %4764 = vmatmul.bf16.gmra.mxu0 %v3156
        %v4765 = vpop.f32.mrf.mxu0
        %v4766 = vadd.f32 %v4753, %v4765
        %v4767 = vpop.f32.mrf.mxu0
        %4768 = vdwg.mxu0
        %4769 = vmatpush.bf16.msra.mxu0 %v4165
        %4770 = vmatpush.bf16.msra.mxu0 %v4163
        %4771 = vmatpush.bf16.msra.mxu0 %v4161
        %4772 = vmatpush.bf16.msra.mxu0 %v4159
        %4773 = vmatpush.bf16.msra.mxu0 %v4157
        %4774 = vmatpush.bf16.msra.mxu0 %v4155
        %4775 = vmatpush.bf16.msra.mxu0 %v4153
        %4776 = vmatpush.bf16.msra.mxu0 %v4151
        %4777 = vmatmul.bf16.gmra.mxu0 %v3157
        %v4778 = vpop.f32.mrf.mxu0
        %v4779 = vadd.f32 %v4766, %v4778
        %v4780 = vpop.f32.mrf.mxu0
        %4781 = vdwg.mxu0
        %4782 = vmatpush.bf16.msra.mxu0 %v4181
        %4783 = vmatpush.bf16.msra.mxu0 %v4179
        %4784 = vmatpush.bf16.msra.mxu0 %v4177
        %4785 = vmatpush.bf16.msra.mxu0 %v4175
        %4786 = vmatpush.bf16.msra.mxu0 %v4173
        %4787 = vmatpush.bf16.msra.mxu0 %v4171
        %4788 = vmatpush.bf16.msra.mxu0 %v4169
        %4789 = vmatpush.bf16.msra.mxu0 %v4167
        %4790 = vmatmul.bf16.gmra.mxu0 %v3158
        %v4791 = vpop.f32.mrf.mxu0
        %v4792 = vadd.f32 %v4779, %v4791
        %v4793 = vpop.f32.mrf.mxu0
        %4794 = vdwg.mxu0
        %4795 = vmatpush.bf16.msra.mxu0 %v4197
        %4796 = vmatpush.bf16.msra.mxu0 %v4195
        %4797 = vmatpush.bf16.msra.mxu0 %v4193
        %4798 = vmatpush.bf16.msra.mxu0 %v4191
        %4799 = vmatpush.bf16.msra.mxu0 %v4189
        %4800 = vmatpush.bf16.msra.mxu0 %v4187
        %4801 = vmatpush.bf16.msra.mxu0 %v4185
        %4802 = vmatpush.bf16.msra.mxu0 %v4183
        %4803 = vmatmul.bf16.gmra.mxu0 %v3159
        %v4804 = vpop.f32.mrf.mxu0
        %v4805 = vadd.f32 %v4792, %v4804
        %v4806 = vpop.f32.mrf.mxu0
        %4807 = vdwg.mxu0
        %4808 = vmatpush.bf16.msra.mxu0 %v4213
        %4809 = vmatpush.bf16.msra.mxu0 %v4211
        %4810 = vmatpush.bf16.msra.mxu0 %v4209
        %4811 = vmatpush.bf16.msra.mxu0 %v4207
        %4812 = vmatpush.bf16.msra.mxu0 %v4205
        %4813 = vmatpush.bf16.msra.mxu0 %v4203
        %4814 = vmatpush.bf16.msra.mxu0 %v4201
        %4815 = vmatpush.bf16.msra.mxu0 %v4199
        %4816 = vmatmul.bf16.gmra.mxu0 %v3160
        %v4817 = vpop.f32.mrf.mxu0
        %v4818 = vadd.f32 %v4805, %v4817
        %v4819 = vpop.f32.mrf.mxu0
        %4820 = vdwg.mxu0
        %4821 = vmatpush.bf16.msra.mxu0 %v4229
        %4822 = vmatpush.bf16.msra.mxu0 %v4227
        %4823 = vmatpush.bf16.msra.mxu0 %v4225
        %4824 = vmatpush.bf16.msra.mxu0 %v4223
        %4825 = vmatpush.bf16.msra.mxu0 %v4221
        %4826 = vmatpush.bf16.msra.mxu0 %v4219
        %4827 = vmatpush.bf16.msra.mxu0 %v4217
        %4828 = vmatpush.bf16.msra.mxu0 %v4215
        %4829 = vmatmul.bf16.gmra.mxu0 %v3161
        %v4830 = vpop.f32.mrf.mxu0
        %v4831 = vadd.f32 %v4818, %v4830
        %v4832 = vpop.f32.mrf.mxu0
        %4833 = vdwg.mxu0
        %4834 = vmatpush.bf16.msra.mxu0 %v4245
        %4835 = vmatpush.bf16.msra.mxu0 %v4243
        %4836 = vmatpush.bf16.msra.mxu0 %v4241
        %4837 = vmatpush.bf16.msra.mxu0 %v4239
        %4838 = vmatpush.bf16.msra.mxu0 %v4237
        %4839 = vmatpush.bf16.msra.mxu0 %v4235
        %4840 = vmatpush.bf16.msra.mxu0 %v4233
        %4841 = vmatpush.bf16.msra.mxu0 %v4231
        %4842 = vmatmul.bf16.gmra.mxu0 %v3162
        %v4843 = vpop.f32.mrf.mxu0
        %v4844 = vadd.f32 %v4831, %v4843
        %v4845 = vpop.f32.mrf.mxu0
        %4846 = vdwg.mxu0
        %4847 = vmatpush.bf16.msra.mxu0 %v4261
        %4848 = vmatpush.bf16.msra.mxu0 %v4259
        %4849 = vmatpush.bf16.msra.mxu0 %v4257
        %4850 = vmatpush.bf16.msra.mxu0 %v4255
        %4851 = vmatpush.bf16.msra.mxu0 %v4253
        %4852 = vmatpush.bf16.msra.mxu0 %v4251
        %4853 = vmatpush.bf16.msra.mxu0 %v4249
        %4854 = vmatpush.bf16.msra.mxu0 %v4247
        %4855 = vmatmul.bf16.gmra.mxu0 %v3165
        %v4856 = vpop.f32.mrf.mxu0
        %v4857 = vadd.f32 %v4844, %v4856
        %v4858 = vpop.f32.mrf.mxu0
        %4859 = vdwg.mxu0
        %4860 = vmatpush.bf16.msra.mxu0 %v4277
        %4861 = vmatpush.bf16.msra.mxu0 %v4275
        %4862 = vmatpush.bf16.msra.mxu0 %v4273
        %4863 = vmatpush.bf16.msra.mxu0 %v4271
        %4864 = vmatpush.bf16.msra.mxu0 %v4269
        %4865 = vmatpush.bf16.msra.mxu0 %v4267
        %4866 = vmatpush.bf16.msra.mxu0 %v4265
        %4867 = vmatpush.bf16.msra.mxu0 %v4263
        %4868 = vmatmul.bf16.gmra.mxu0 %v3166
        %v4869 = vpop.f32.mrf.mxu0
        %v4870 = vadd.f32 %v4857, %v4869
        %v4871 = vpop.f32.mrf.mxu0
        %4872 = vdwg.mxu0
        %4873 = vmatpush.bf16.msra.mxu0 %v4293
        %4874 = vmatpush.bf16.msra.mxu0 %v4291
        %4875 = vmatpush.bf16.msra.mxu0 %v4289
        %4876 = vmatpush.bf16.msra.mxu0 %v4287
        %4877 = vmatpush.bf16.msra.mxu0 %v4285
        %4878 = vmatpush.bf16.msra.mxu0 %v4283
        %4879 = vmatpush.bf16.msra.mxu0 %v4281
        %4880 = vmatpush.bf16.msra.mxu0 %v4279
        %4881 = vmatmul.bf16.gmra.mxu0 %v3167
        %v4882 = vpop.f32.mrf.mxu0
        %v4883 = vadd.f32 %v4870, %v4882
        %v4884 = vpop.f32.mrf.mxu0
        %4885 = vdwg.mxu0
        %4886 = vmatpush.bf16.msra.mxu0 %v4309
        %4887 = vmatpush.bf16.msra.mxu0 %v4307
        %4888 = vmatpush.bf16.msra.mxu0 %v4305
        %4889 = vmatpush.bf16.msra.mxu0 %v4303
        %4890 = vmatpush.bf16.msra.mxu0 %v4301
        %4891 = vmatpush.bf16.msra.mxu0 %v4299
        %4892 = vmatpush.bf16.msra.mxu0 %v4297
        %4893 = vmatpush.bf16.msra.mxu0 %v4295
        %4894 = vmatmul.bf16.gmra.mxu0 %v3168
        %v4895 = vpop.f32.mrf.mxu0
        %v4896 = vadd.f32 %v4883, %v4895
        %v4897 = vpop.f32.mrf.mxu0
        %4898 = vdwg.mxu0
        %4899 = vmatpush.bf16.msra.mxu0 %v4325
        %4900 = vmatpush.bf16.msra.mxu0 %v4323
        %4901 = vmatpush.bf16.msra.mxu0 %v4321
        %4902 = vmatpush.bf16.msra.mxu0 %v4319
        %4903 = vmatpush.bf16.msra.mxu0 %v4317
        %4904 = vmatpush.bf16.msra.mxu0 %v4315
        %4905 = vmatpush.bf16.msra.mxu0 %v4313
        %4906 = vmatpush.bf16.msra.mxu0 %v4311
        %4907 = vmatmul.bf16.gmra.mxu0 %v3169
        %v4908 = vpop.f32.mrf.mxu0
        %v4909 = vadd.f32 %v4896, %v4908
        %v4910 = vpop.f32.mrf.mxu0
        %4911 = vdwg.mxu0
        %4912 = vmatpush.bf16.msra.mxu0 %v4341
        %4913 = vmatpush.bf16.msra.mxu0 %v4339
        %4914 = vmatpush.bf16.msra.mxu0 %v4337
        %4915 = vmatpush.bf16.msra.mxu0 %v4335
        %4916 = vmatpush.bf16.msra.mxu0 %v4333
        %4917 = vmatpush.bf16.msra.mxu0 %v4331
        %4918 = vmatpush.bf16.msra.mxu0 %v4329
        %4919 = vmatpush.bf16.msra.mxu0 %v4327
        %4920 = vmatmul.bf16.gmra.mxu0 %v3170
        %v4921 = vpop.f32.mrf.mxu0
        %v4922 = vadd.f32 %v4909, %v4921
        %v4923 = vpop.f32.mrf.mxu0
        %4924 = vdwg.mxu0
        %4925 = vmatpush.bf16.msra.mxu0 %v4357
        %4926 = vmatpush.bf16.msra.mxu0 %v4355
        %4927 = vmatpush.bf16.msra.mxu0 %v4353
        %4928 = vmatpush.bf16.msra.mxu0 %v4351
        %4929 = vmatpush.bf16.msra.mxu0 %v4349
        %4930 = vmatpush.bf16.msra.mxu0 %v4347
        %4931 = vmatpush.bf16.msra.mxu0 %v4345
        %4932 = vmatpush.bf16.msra.mxu0 %v4343
        %4933 = vmatmul.bf16.gmra.mxu0 %v3171
        %v4934 = vpop.f32.mrf.mxu0
        %v4935 = vadd.f32 %v4922, %v4934
        %v4936 = vpop.f32.mrf.mxu0
        %4937 = vdwg.mxu0
        %4938 = vmatpush.bf16.msra.mxu0 %v4373
        %4939 = vmatpush.bf16.msra.mxu0 %v4371
        %4940 = vmatpush.bf16.msra.mxu0 %v4369
        %4941 = vmatpush.bf16.msra.mxu0 %v4367
        %4942 = vmatpush.bf16.msra.mxu0 %v4365
        %4943 = vmatpush.bf16.msra.mxu0 %v4363
        %4944 = vmatpush.bf16.msra.mxu0 %v4361
        %4945 = vmatpush.bf16.msra.mxu0 %v4359
        %4946 = vmatmul.bf16.gmra.mxu0 %v3172
        %v4947 = vpop.f32.mrf.mxu0
        %v4948 = vadd.f32 %v4935, %v4947
        %v4949 = vpop.f32.mrf.mxu0
        %4950 = vdwg.mxu0
        %4951 = vmatpush.bf16.msra.mxu0 %v4389
        %4952 = vmatpush.bf16.msra.mxu0 %v4387
        %4953 = vmatpush.bf16.msra.mxu0 %v4385
        %4954 = vmatpush.bf16.msra.mxu0 %v4383
        %4955 = vmatpush.bf16.msra.mxu0 %v4381
        %4956 = vmatpush.bf16.msra.mxu0 %v4379
        %4957 = vmatpush.bf16.msra.mxu0 %v4377
        %4958 = vmatpush.bf16.msra.mxu0 %v4375
        %4959 = vmatmul.bf16.gmra.mxu0 %v3175
        %v4960 = vpop.f32.mrf.mxu0
        %v4961 = vadd.f32 %v4948, %v4960
        %v4962 = vpop.f32.mrf.mxu0
        %4963 = vdwg.mxu0
        %4964 = vmatpush.bf16.msra.mxu0 %v4405
        %4965 = vmatpush.bf16.msra.mxu0 %v4403
        %4966 = vmatpush.bf16.msra.mxu0 %v4401
        %4967 = vmatpush.bf16.msra.mxu0 %v4399
        %4968 = vmatpush.bf16.msra.mxu0 %v4397
        %4969 = vmatpush.bf16.msra.mxu0 %v4395
        %4970 = vmatpush.bf16.msra.mxu0 %v4393
        %4971 = vmatpush.bf16.msra.mxu0 %v4391
        %4972 = vmatmul.bf16.gmra.mxu0 %v3176
        %v4973 = vpop.f32.mrf.mxu0
        %v4974 = vadd.f32 %v4961, %v4973
        %v4975 = vpop.f32.mrf.mxu0
        %4976 = vdwg.mxu0
        %4977 = vmatpush.bf16.msra.mxu0 %v4421
        %4978 = vmatpush.bf16.msra.mxu0 %v4419
        %4979 = vmatpush.bf16.msra.mxu0 %v4417
        %4980 = vmatpush.bf16.msra.mxu0 %v4415
        %4981 = vmatpush.bf16.msra.mxu0 %v4413
        %4982 = vmatpush.bf16.msra.mxu0 %v4411
        %4983 = vmatpush.bf16.msra.mxu0 %v4409
        %4984 = vmatpush.bf16.msra.mxu0 %v4407
        %4985 = vmatmul.bf16.gmra.mxu0 %v3177
        %v4986 = vpop.f32.mrf.mxu0
        %v4987 = vadd.f32 %v4974, %v4986
        %v4988 = vpop.f32.mrf.mxu0
        %4989 = vdwg.mxu0
        %4990 = vmatpush.bf16.msra.mxu0 0
        %4991 = vmatpush.bf16.msra.mxu0 0
        %4992 = vmatpush.bf16.msra.mxu0 0
        %4993 = vmatpush.bf16.msra.mxu0 0
        %4994 = vmatpush.bf16.msra.mxu0 0
        %4995 = vmatpush.bf16.msra.mxu0 0
        %4996 = vmatpush.bf16.msra.mxu0 %v4738
        %4997 = vmatpush.bf16.msra.mxu0 %v4423
        %4998 = vmatmul.bf16.gmra.mxu0 %v4734
        %v4999 = vpop.f32.mrf.mxu0
        %v5000 = vadd.f32 %v4987, %v4999
        %v5001 = vpop.f32.mrf.mxu0
        %5002 = vdwg.mxu0
        %5003 = vmatpush.bf16.msra.mxu0 %v4134
        %5004 = vmatpush.bf16.msra.mxu0 %v4132
        %5005 = vmatpush.bf16.msra.mxu0 %v4130
        %5006 = vmatpush.bf16.msra.mxu0 %v4128
        %5007 = vmatpush.bf16.msra.mxu0 %v4126
        %5008 = vmatpush.bf16.msra.mxu0 %v4124
        %5009 = vmatpush.bf16.msra.mxu0 %v4122
        %5010 = vmatpush.bf16.msra.mxu0 %v4120
        %5011 = vmatmul.bf16.gmra.mxu0 %v3155
        %v5012 = vpop.f32.mrf.mxu0
        %v5013 = vadd.f32 %v3150, %v5012
        %v5014 = vpop.f32.mrf.mxu0
        %5015 = vdwg.mxu0
        %5016 = vmatpush.bf16.msra.mxu0 %v4150
        %5017 = vmatpush.bf16.msra.mxu0 %v4148
        %5018 = vmatpush.bf16.msra.mxu0 %v4146
        %5019 = vmatpush.bf16.msra.mxu0 %v4144
        %5020 = vmatpush.bf16.msra.mxu0 %v4142
        %5021 = vmatpush.bf16.msra.mxu0 %v4140
        %5022 = vmatpush.bf16.msra.mxu0 %v4138
        %5023 = vmatpush.bf16.msra.mxu0 %v4136
        %5024 = vmatmul.bf16.gmra.mxu0 %v3156
        %v5025 = vpop.f32.mrf.mxu0
        %v5026 = vadd.f32 %v5013, %v5025
        %v5027 = vpop.f32.mrf.mxu0
        %5028 = vdwg.mxu0
        %5029 = vmatpush.bf16.msra.mxu0 %v4166
        %5030 = vmatpush.bf16.msra.mxu0 %v4164
        %5031 = vmatpush.bf16.msra.mxu0 %v4162
        %5032 = vmatpush.bf16.msra.mxu0 %v4160
        %5033 = vmatpush.bf16.msra.mxu0 %v4158
        %5034 = vmatpush.bf16.msra.mxu0 %v4156
        %5035 = vmatpush.bf16.msra.mxu0 %v4154
        %5036 = vmatpush.bf16.msra.mxu0 %v4152
        %5037 = vmatmul.bf16.gmra.mxu0 %v3157
        %v5038 = vpop.f32.mrf.mxu0
        %v5039 = vadd.f32 %v5026, %v5038
        %v5040 = vpop.f32.mrf.mxu0
        %5041 = vdwg.mxu0
        %5042 = vmatpush.bf16.msra.mxu0 %v4182
        %5043 = vmatpush.bf16.msra.mxu0 %v4180
        %5044 = vmatpush.bf16.msra.mxu0 %v4178
        %5045 = vmatpush.bf16.msra.mxu0 %v4176
        %5046 = vmatpush.bf16.msra.mxu0 %v4174
        %5047 = vmatpush.bf16.msra.mxu0 %v4172
        %5048 = vmatpush.bf16.msra.mxu0 %v4170
        %5049 = vmatpush.bf16.msra.mxu0 %v4168
        %5050 = vmatmul.bf16.gmra.mxu0 %v3158
        %v5051 = vpop.f32.mrf.mxu0
        %v5052 = vadd.f32 %v5039, %v5051
        %v5053 = vpop.f32.mrf.mxu0
        %5054 = vdwg.mxu0
        %5055 = vmatpush.bf16.msra.mxu0 %v4198
        %5056 = vmatpush.bf16.msra.mxu0 %v4196
        %5057 = vmatpush.bf16.msra.mxu0 %v4194
        %5058 = vmatpush.bf16.msra.mxu0 %v4192
        %5059 = vmatpush.bf16.msra.mxu0 %v4190
        %5060 = vmatpush.bf16.msra.mxu0 %v4188
        %5061 = vmatpush.bf16.msra.mxu0 %v4186
        %5062 = vmatpush.bf16.msra.mxu0 %v4184
        %5063 = vmatmul.bf16.gmra.mxu0 %v3159
        %v5064 = vpop.f32.mrf.mxu0
        %v5065 = vadd.f32 %v5052, %v5064
        %v5066 = vpop.f32.mrf.mxu0
        %5067 = vdwg.mxu0
        %5068 = vmatpush.bf16.msra.mxu0 %v4214
        %5069 = vmatpush.bf16.msra.mxu0 %v4212
        %5070 = vmatpush.bf16.msra.mxu0 %v4210
        %5071 = vmatpush.bf16.msra.mxu0 %v4208
        %5072 = vmatpush.bf16.msra.mxu0 %v4206
        %5073 = vmatpush.bf16.msra.mxu0 %v4204
        %5074 = vmatpush.bf16.msra.mxu0 %v4202
        %5075 = vmatpush.bf16.msra.mxu0 %v4200
        %5076 = vmatmul.bf16.gmra.mxu0 %v3160
        %v5077 = vpop.f32.mrf.mxu0
        %v5078 = vadd.f32 %v5065, %v5077
        %v5079 = vpop.f32.mrf.mxu0
        %5080 = vdwg.mxu0
        %5081 = vmatpush.bf16.msra.mxu0 %v4230
        %5082 = vmatpush.bf16.msra.mxu0 %v4228
        %5083 = vmatpush.bf16.msra.mxu0 %v4226
        %5084 = vmatpush.bf16.msra.mxu0 %v4224
        %5085 = vmatpush.bf16.msra.mxu0 %v4222
        %5086 = vmatpush.bf16.msra.mxu0 %v4220
        %5087 = vmatpush.bf16.msra.mxu0 %v4218
        %5088 = vmatpush.bf16.msra.mxu0 %v4216
        %5089 = vmatmul.bf16.gmra.mxu0 %v3161
        %v5090 = vpop.f32.mrf.mxu0
        %v5091 = vadd.f32 %v5078, %v5090
        %v5092 = vpop.f32.mrf.mxu0
        %5093 = vdwg.mxu0
        %5094 = vmatpush.bf16.msra.mxu0 %v4246
        %5095 = vmatpush.bf16.msra.mxu0 %v4244
        %5096 = vmatpush.bf16.msra.mxu0 %v4242
        %5097 = vmatpush.bf16.msra.mxu0 %v4240
        %5098 = vmatpush.bf16.msra.mxu0 %v4238
        %5099 = vmatpush.bf16.msra.mxu0 %v4236
        %5100 = vmatpush.bf16.msra.mxu0 %v4234
        %5101 = vmatpush.bf16.msra.mxu0 %v4232
        %5102 = vmatmul.bf16.gmra.mxu0 %v3162
        %v5103 = vpop.f32.mrf.mxu0
        %v5104 = vadd.f32 %v5091, %v5103
        %v5105 = vpop.f32.mrf.mxu0
        %5106 = vdwg.mxu0
        %5107 = vmatpush.bf16.msra.mxu0 %v4262
        %5108 = vmatpush.bf16.msra.mxu0 %v4260
        %5109 = vmatpush.bf16.msra.mxu0 %v4258
        %5110 = vmatpush.bf16.msra.mxu0 %v4256
        %5111 = vmatpush.bf16.msra.mxu0 %v4254
        %5112 = vmatpush.bf16.msra.mxu0 %v4252
        %5113 = vmatpush.bf16.msra.mxu0 %v4250
        %5114 = vmatpush.bf16.msra.mxu0 %v4248
        %5115 = vmatmul.bf16.gmra.mxu0 %v3165
        %v5116 = vpop.f32.mrf.mxu0
        %v5117 = vadd.f32 %v5104, %v5116
        %v5118 = vpop.f32.mrf.mxu0
        %5119 = vdwg.mxu0
        %5120 = vmatpush.bf16.msra.mxu0 %v4278
        %5121 = vmatpush.bf16.msra.mxu0 %v4276
        %5122 = vmatpush.bf16.msra.mxu0 %v4274
        %5123 = vmatpush.bf16.msra.mxu0 %v4272
        %5124 = vmatpush.bf16.msra.mxu0 %v4270
        %5125 = vmatpush.bf16.msra.mxu0 %v4268
        %5126 = vmatpush.bf16.msra.mxu0 %v4266
        %5127 = vmatpush.bf16.msra.mxu0 %v4264
        %5128 = vmatmul.bf16.gmra.mxu0 %v3166
        %v5129 = vpop.f32.mrf.mxu0
        %v5130 = vadd.f32 %v5117, %v5129
        %v5131 = vpop.f32.mrf.mxu0
        %5132 = vdwg.mxu0
        %5133 = vmatpush.bf16.msra.mxu0 %v4294
        %5134 = vmatpush.bf16.msra.mxu0 %v4292
        %5135 = vmatpush.bf16.msra.mxu0 %v4290
        %5136 = vmatpush.bf16.msra.mxu0 %v4288
        %5137 = vmatpush.bf16.msra.mxu0 %v4286
        %5138 = vmatpush.bf16.msra.mxu0 %v4284
        %5139 = vmatpush.bf16.msra.mxu0 %v4282
        %5140 = vmatpush.bf16.msra.mxu0 %v4280
        %5141 = vmatmul.bf16.gmra.mxu0 %v3167
        %v5142 = vpop.f32.mrf.mxu0
        %v5143 = vadd.f32 %v5130, %v5142
        %v5144 = vpop.f32.mrf.mxu0
        %5145 = vdwg.mxu0
        %5146 = vmatpush.bf16.msra.mxu0 %v4310
        %5147 = vmatpush.bf16.msra.mxu0 %v4308
        %5148 = vmatpush.bf16.msra.mxu0 %v4306
        %5149 = vmatpush.bf16.msra.mxu0 %v4304
        %5150 = vmatpush.bf16.msra.mxu0 %v4302
        %5151 = vmatpush.bf16.msra.mxu0 %v4300
        %5152 = vmatpush.bf16.msra.mxu0 %v4298
        %5153 = vmatpush.bf16.msra.mxu0 %v4296
        %5154 = vmatmul.bf16.gmra.mxu0 %v3168
        %v5155 = vpop.f32.mrf.mxu0
        %v5156 = vadd.f32 %v5143, %v5155
        %v5157 = vpop.f32.mrf.mxu0
        %5158 = vdwg.mxu0
        %5159 = vmatpush.bf16.msra.mxu0 %v4326
        %5160 = vmatpush.bf16.msra.mxu0 %v4324
        %5161 = vmatpush.bf16.msra.mxu0 %v4322
        %5162 = vmatpush.bf16.msra.mxu0 %v4320
        %5163 = vmatpush.bf16.msra.mxu0 %v4318
        %5164 = vmatpush.bf16.msra.mxu0 %v4316
        %5165 = vmatpush.bf16.msra.mxu0 %v4314
        %5166 = vmatpush.bf16.msra.mxu0 %v4312
        %5167 = vmatmul.bf16.gmra.mxu0 %v3169
        %v5168 = vpop.f32.mrf.mxu0
        %v5169 = vadd.f32 %v5156, %v5168
        %v5170 = vpop.f32.mrf.mxu0
        %5171 = vdwg.mxu0
        %5172 = vmatpush.bf16.msra.mxu0 %v4342
        %5173 = vmatpush.bf16.msra.mxu0 %v4340
        %5174 = vmatpush.bf16.msra.mxu0 %v4338
        %5175 = vmatpush.bf16.msra.mxu0 %v4336
        %5176 = vmatpush.bf16.msra.mxu0 %v4334
        %5177 = vmatpush.bf16.msra.mxu0 %v4332
        %5178 = vmatpush.bf16.msra.mxu0 %v4330
        %5179 = vmatpush.bf16.msra.mxu0 %v4328
        %5180 = vmatmul.bf16.gmra.mxu0 %v3170
        %v5181 = vpop.f32.mrf.mxu0
        %v5182 = vadd.f32 %v5169, %v5181
        %v5183 = vpop.f32.mrf.mxu0
        %5184 = vdwg.mxu0
        %5185 = vmatpush.bf16.msra.mxu0 %v4358
        %5186 = vmatpush.bf16.msra.mxu0 %v4356
        %5187 = vmatpush.bf16.msra.mxu0 %v4354
        %5188 = vmatpush.bf16.msra.mxu0 %v4352
        %5189 = vmatpush.bf16.msra.mxu0 %v4350
        %5190 = vmatpush.bf16.msra.mxu0 %v4348
        %5191 = vmatpush.bf16.msra.mxu0 %v4346
        %5192 = vmatpush.bf16.msra.mxu0 %v4344
        %5193 = vmatmul.bf16.gmra.mxu0 %v3171
        %v5194 = vpop.f32.mrf.mxu0
        %v5195 = vadd.f32 %v5182, %v5194
        %v5196 = vpop.f32.mrf.mxu0
        %5197 = vdwg.mxu0
        %5198 = vmatpush.bf16.msra.mxu0 %v4374
        %5199 = vmatpush.bf16.msra.mxu0 %v4372
        %5200 = vmatpush.bf16.msra.mxu0 %v4370
        %5201 = vmatpush.bf16.msra.mxu0 %v4368
        %5202 = vmatpush.bf16.msra.mxu0 %v4366
        %5203 = vmatpush.bf16.msra.mxu0 %v4364
        %5204 = vmatpush.bf16.msra.mxu0 %v4362
        %5205 = vmatpush.bf16.msra.mxu0 %v4360
        %5206 = vmatmul.bf16.gmra.mxu0 %v3172
        %v5207 = vpop.f32.mrf.mxu0
        %v5208 = vadd.f32 %v5195, %v5207
        %v5209 = vpop.f32.mrf.mxu0
        %5210 = vdwg.mxu0
        %5211 = vmatpush.bf16.msra.mxu0 %v4390
        %5212 = vmatpush.bf16.msra.mxu0 %v4388
        %5213 = vmatpush.bf16.msra.mxu0 %v4386
        %5214 = vmatpush.bf16.msra.mxu0 %v4384
        %5215 = vmatpush.bf16.msra.mxu0 %v4382
        %5216 = vmatpush.bf16.msra.mxu0 %v4380
        %5217 = vmatpush.bf16.msra.mxu0 %v4378
        %5218 = vmatpush.bf16.msra.mxu0 %v4376
        %5219 = vmatmul.bf16.gmra.mxu0 %v3175
        %v5220 = vpop.f32.mrf.mxu0
        %v5221 = vadd.f32 %v5208, %v5220
        %v5222 = vpop.f32.mrf.mxu0
        %5223 = vdwg.mxu0
        %5224 = vmatpush.bf16.msra.mxu0 %v4406
        %5225 = vmatpush.bf16.msra.mxu0 %v4404
        %5226 = vmatpush.bf16.msra.mxu0 %v4402
        %5227 = vmatpush.bf16.msra.mxu0 %v4400
        %5228 = vmatpush.bf16.msra.mxu0 %v4398
        %5229 = vmatpush.bf16.msra.mxu0 %v4396
        %5230 = vmatpush.bf16.msra.mxu0 %v4394
        %5231 = vmatpush.bf16.msra.mxu0 %v4392
        %5232 = vmatmul.bf16.gmra.mxu0 %v3176
        %v5233 = vpop.f32.mrf.mxu0
        %v5234 = vadd.f32 %v5221, %v5233
        %v5235 = vpop.f32.mrf.mxu0
        %5236 = vdwg.mxu0
        %5237 = vmatpush.bf16.msra.mxu0 %v4422
        %5238 = vmatpush.bf16.msra.mxu0 %v4420
        %5239 = vmatpush.bf16.msra.mxu0 %v4418
        %5240 = vmatpush.bf16.msra.mxu0 %v4416
        %5241 = vmatpush.bf16.msra.mxu0 %v4414
        %5242 = vmatpush.bf16.msra.mxu0 %v4412
        %5243 = vmatpush.bf16.msra.mxu0 %v4410
        %5244 = vmatpush.bf16.msra.mxu0 %v4408
        %5245 = vmatmul.bf16.gmra.mxu0 %v3177
        %v5246 = vpop.f32.mrf.mxu0
        %v5247 = vadd.f32 %v5234, %v5246
        %v5248 = vpop.f32.mrf.mxu0
        %5249 = vdwg.mxu0
        %5250 = vmatpush.bf16.msra.mxu0 0
        %5251 = vmatpush.bf16.msra.mxu0 0
        %5252 = vmatpush.bf16.msra.mxu0 0
        %5253 = vmatpush.bf16.msra.mxu0 0
        %5254 = vmatpush.bf16.msra.mxu0 0
        %5255 = vmatpush.bf16.msra.mxu0 0
        %5256 = vmatpush.bf16.msra.mxu0 %v4741
        %5257 = vmatpush.bf16.msra.mxu0 %v4424
        %5258 = vmatmul.bf16.gmra.mxu0 %v4734
        %v5259 = vpop.f32.mrf.mxu0
        %v5260 = vadd.f32 %v5247, %v5259
        %v5261 = vpop.f32.mrf.mxu0
        %5262 = vdwg.mxu0
        %v5263 = vmax.f32 %v5000, 0.0
        %v5264 = vmax.f32 %v5260, 0.0
        %v5265 = vpack.c.bf16 %v5263, %v5263
        %v5266 = vpack.c.bf16 %v5264, %v5264
        %v5267 = vld [vmem:[#allocation2] sm:$0x3]
        %v5268 = vld [vmem:[%s2829] sm:$0xf]
        %v5269 = vld [vmem:[%s2829 + $0x4] sm:$0xf]
        %v5270 = vld [vmem:[%s2829 + $0x8] sm:$0xf]
        %v5271 = vld [vmem:[%s2829 + $0xc] sm:$0xf]
        %v5272 = vld [vmem:[%s2829 + $0x10] sm:$0xf]
        %v5273 = vld [vmem:[%s2829 + $0x14] sm:$0xf]
        %v5274 = vld [vmem:[%s2829 + $0x18] sm:$0xf]
        %v5275 = vld [vmem:[%s2829 + $0x1c] sm:$0xf]
        %v5276 = vld [vmem:[%s2829 + $0x20] sm:$0xf]
        %v5277 = vld [vmem:[%s2829 + $0x24] sm:$0xf]
        %v5278 = vld [vmem:[%s2829 + $0x28] sm:$0xf]
        %v5279 = vld [vmem:[%s2829 + $0x2c] sm:$0xf]
        %v5280 = vld [vmem:[%s2829 + $0x30] sm:$0xf]
        %v5281 = vld [vmem:[%s2829 + $0x34] sm:$0xf]
        %v5282 = vld [vmem:[%s2829 + $0x38] sm:$0xf]
        %v5283 = vld [vmem:[%s2829 + $0x3c] sm:$0xf]
        %v5284 = vld [vmem:[%s2829 + $0x40] sm:$0xf]
        %v5285 = vld [vmem:[%s2829 + $0x44] sm:$0xf]
        %v5286 = vld [vmem:[%s2829 + $0x48] sm:$0xf]
        %v5287 = vld [vmem:[%s2829 + $0x4c] sm:$0xf]
        %v5288 = vld [vmem:[%s2829 + $0x50] sm:$0xf]
        %v5289 = vld [vmem:[%s2829 + $0x54] sm:$0xf]
        %v5290 = vld [vmem:[%s2829 + $0x58] sm:$0xf]
        %v5291 = vld [vmem:[%s2829 + $0x5c] sm:$0xf]
        %v5292 = vld [vmem:[%s2829 + $0x60] sm:$0xf]
        %v5293 = vld [vmem:[%s2829 + $0x64] sm:$0xf]
        %v5294 = vld [vmem:[%s2829 + $0x68] sm:$0xf]
        %v5295 = vld [vmem:[%s2829 + $0x6c] sm:$0xf]
        %v5296 = vld [vmem:[%s2829 + $0x70] sm:$0xf]
        %v5297 = vld [vmem:[%s2829 + $0x74] sm:$0xf]
        %v5298 = vld [vmem:[%s2829 + $0x78] sm:$0xf]
        %v5299 = vld [vmem:[%s2829 + $0x7c] sm:$0xf]
        %v5332 = vunpack.c.l.b16 %v5268
        %v5333 = vunpack.c.l.b16 %v5269
        %v5334 = vunpack.c.l.b16 %v5270
        %v5335 = vunpack.c.l.b16 %v5271
        %v5336 = vunpack.c.l.b16 %v5272
        %v5337 = vunpack.c.l.b16 %v5273
        %v5338 = vunpack.c.l.b16 %v5274
        %v5339 = vunpack.c.l.b16 %v5275
        %v5340 = vunpack.c.l.b16 %v5276
        %v5341 = vunpack.c.l.b16 %v5277
        %v5342 = vunpack.c.l.b16 %v5278
        %v5343 = vunpack.c.l.b16 %v5279
        %v5344 = vunpack.c.l.b16 %v5280
        %v5345 = vunpack.c.l.b16 %v5281
        %v5346 = vunpack.c.l.b16 %v5282
        %v5347 = vunpack.c.l.b16 %v5283
        %v5348 = vunpack.c.l.b16 %v5284
        %v5349 = vunpack.c.l.b16 %v5285
        %v5350 = vunpack.c.l.b16 %v5286
        %v5351 = vunpack.c.l.b16 %v5287
        %v5352 = vunpack.c.l.b16 %v5288
        %v5353 = vunpack.c.l.b16 %v5289
        %v5354 = vunpack.c.l.b16 %v5290
        %v5355 = vunpack.c.l.b16 %v5291
        %v5356 = vunpack.c.l.b16 %v5292
        %v5357 = vunpack.c.l.b16 %v5293
        %v5358 = vunpack.c.l.b16 %v5294
        %v5359 = vunpack.c.l.b16 %v5295
        %v5360 = vunpack.c.l.b16 %v5296
        %v5361 = vunpack.c.l.b16 %v5297
        %v5362 = vunpack.c.l.b16 %v5298
        %v5363 = vunpack.c.l.b16 %v5299
        %v5364 = vpack.c.b16 %v5333, %v5332
        %v5365 = vpack.c.b16 %v5335, %v5334
        %v5366 = vpack.c.b16 %v5337, %v5336
        %v5367 = vpack.c.b16 %v5339, %v5338
        %v5368 = vpack.c.b16 %v5341, %v5340
        %v5369 = vpack.c.b16 %v5343, %v5342
        %v5370 = vpack.c.b16 %v5345, %v5344
        %v5371 = vpack.c.b16 %v5347, %v5346
        %v5372 = vpack.c.b16 %v5349, %v5348
        %v5373 = vpack.c.b16 %v5351, %v5350
        %v5374 = vpack.c.b16 %v5353, %v5352
        %v5375 = vpack.c.b16 %v5355, %v5354
        %v5376 = vpack.c.b16 %v5357, %v5356
        %v5377 = vpack.c.b16 %v5359, %v5358
        %v5378 = vpack.c.b16 %v5361, %v5360
        %v5379 = vpack.c.b16 %v5363, %v5362
        %5396 = vmatpush.bf16.msra.mxu0 %v5371
        %5397 = vmatpush.bf16.msra.mxu0 %v5370
        %5398 = vmatpush.bf16.msra.mxu0 %v5369
        %5399 = vmatpush.bf16.msra.mxu0 %v5368
        %5400 = vmatpush.bf16.msra.mxu0 %v5367
        %5401 = vmatpush.bf16.msra.mxu0 %v5366
        %5402 = vmatpush.bf16.msra.mxu0 %v5365
        %5403 = vmatpush.bf16.msra.mxu0 %v5364
        %5404 = vmatmul.bf16.gmra.mxu0 %v5265
        %v5405 = vpop.f32.mrf.mxu0
        %v5406 = vadd.f32 0.0, %v5405
        %v5407 = vpop.f32.mrf.mxu0
        %5408 = vdwg.mxu0
        %5409 = vmatpush.bf16.msra.mxu0 %v5379
        %5410 = vmatpush.bf16.msra.mxu0 %v5378
        %5411 = vmatpush.bf16.msra.mxu0 %v5377
        %5412 = vmatpush.bf16.msra.mxu0 %v5376
        %5413 = vmatpush.bf16.msra.mxu0 %v5375
        %5414 = vmatpush.bf16.msra.mxu0 %v5374
        %5415 = vmatpush.bf16.msra.mxu0 %v5373
        %5416 = vmatpush.bf16.msra.mxu0 %v5372
        %5417 = vmatmul.bf16.gmra.mxu0 %v5266
        %v5418 = vpop.f32.mrf.mxu0
        %v5419 = vadd.f32 %v5406, %v5418
        %v5420 = vpop.f32.mrf.mxu0
        %5421 = vdwg.mxu0
        %v5422 = vadd.f32 %v5267, %v5419
        %5423 = vst [vmem:[#allocation2] sm:$0x3] %v5422
        %p5424 = scmp.eq.s32.totalorder %s19, 3
        // Predicated region
        $region105: #{net_forward.5} parent=95 // pred_check
          %p5425 = pneg %p5424
        $region106: #{net_forward.5} parent=95 // pred_check_branch
          %5427 = sbr.rel (%p5425) target = $region108
        $region107: #{net_forward.5} parent=95 // pred_region
          %v5428 = vld [vmem:[#allocation2] sm:$0x3]
          %v5429 = vld [vmem:[%s4] sm:$0x1]
          %v5431 = vperm.slane %v5429, 0
          %v5433 = vadd.f32 %v5428, %v5431
          %v5434 = vmax.f32 %v5433, 0.0
          %v5435 = vpack.c.bf16 %v5434, %v5434
          %v5436 = vld [vmem:[%s5] sm:$0xf]
          %v5437 = vld [vmem:[%s5 + $0x4] sm:$0xf]
          %v5438 = vld [vmem:[%s5 + $0x8] sm:$0xf]
          %v5439 = vld [vmem:[%s5 + $0xc] sm:$0xf]
          %v5440 = vld [vmem:[%s5 + $0x10] sm:$0xf]
          %v5441 = vld [vmem:[%s5 + $0x14] sm:$0xf]
          %v5442 = vld [vmem:[%s5 + $0x18] sm:$0xf]
          %v5443 = vld [vmem:[%s5 + $0x1c] sm:$0xf]
          %v5444 = vld [vmem:[%s5 + $0x20] sm:$0xf]
          %v5445 = vld [vmem:[%s5 + $0x24] sm:$0xf]
          %v5446 = vld [vmem:[%s5 + $0x28] sm:$0xf]
          %v5447 = vld [vmem:[%s5 + $0x2c] sm:$0xf]
          %v5448 = vld [vmem:[%s5 + $0x30] sm:$0xf]
          %v5449 = vld [vmem:[%s5 + $0x34] sm:$0xf]
          %v5450 = vld [vmem:[%s5 + $0x38] sm:$0xf]
          %v5451 = vld [vmem:[%s5 + $0x3c] sm:$0xf]
          %v5452 = vld [vmem:[%s6] sm:$0x1]
          %v5454 = vperm.slane %v5452, 0
          %v5472 = vunpack.c.l.b16 %v5436
          %v5473 = vunpack.c.l.b16 %v5437
          %v5474 = vunpack.c.l.b16 %v5438
          %v5475 = vunpack.c.l.b16 %v5439
          %v5476 = vunpack.c.l.b16 %v5440
          %v5477 = vunpack.c.l.b16 %v5441
          %v5478 = vunpack.c.l.b16 %v5442
          %v5479 = vunpack.c.l.b16 %v5443
          %v5480 = vunpack.c.l.b16 %v5444
          %v5481 = vunpack.c.l.b16 %v5445
          %v5482 = vunpack.c.l.b16 %v5446
          %v5483 = vunpack.c.l.b16 %v5447
          %v5484 = vunpack.c.l.b16 %v5448
          %v5485 = vunpack.c.l.b16 %v5449
          %v5486 = vunpack.c.l.b16 %v5450
          %v5487 = vunpack.c.l.b16 %v5451
          %v5488 = vpack.c.b16 %v5473, %v5472
          %v5489 = vpack.c.b16 %v5475, %v5474
          %v5490 = vpack.c.b16 %v5477, %v5476
          %v5491 = vpack.c.b16 %v5479, %v5478
          %v5492 = vpack.c.b16 %v5481, %v5480
          %v5493 = vpack.c.b16 %v5483, %v5482
          %v5494 = vpack.c.b16 %v5485, %v5484
          %v5495 = vpack.c.b16 %v5487, %v5486
          %5504 = vmatpush.bf16.msra.mxu0 %v5495
          %5505 = vmatpush.bf16.msra.mxu0 %v5494
          %5506 = vmatpush.bf16.msra.mxu0 %v5493
          %5507 = vmatpush.bf16.msra.mxu0 %v5492
          %5508 = vmatpush.bf16.msra.mxu0 %v5491
          %5509 = vmatpush.bf16.msra.mxu0 %v5490
          %5510 = vmatpush.bf16.msra.mxu0 %v5489
          %5511 = vmatpush.bf16.msra.mxu0 %v5488
          %5512 = vmatmul.bf16.gmra.mxu0 %v5435
          %v5513 = vpop.f32.mrf.mxu0
          %v5514 = vadd.f32 %v5454, %v5513
          %v5515 = vpop.f32.mrf.mxu0
          %5516 = vdwg.mxu0
          %vm5517 = vcmask 74752
          %v5518 = vsel %vm5517, %v5514, -inf
          %v5519 = vrot.slane %v5518, 4
          %v5520 = vmax.f32 %v5518, %v5519
          %v5521 = vrot.slane %v5520, 2
          %v5522 = vmax.f32 %v5520, %v5521
          %v5523 = vrot.slane %v5522, 1
          %v5524 = vmax.f32 %v5522, %v5523
          %v5525 = vsub.f32 %v5514, %v5524
          %v5526 = vmul.f32 %v5525, 1.442695
          %v5527 = vpow.pop %v5526
          %v5528 = vsel %vm5517, %v5527, 0.0
          %v5529 = vrot.slane %v5528, 4
          %v5530 = vadd.f32 %v5528, %v5529
          %v5531 = vrot.slane %v5530, 2
          %v5532 = vadd.f32 %v5530, %v5531
          %v5533 = vrot.slane %v5532, 1
          %v5534 = vadd.f32 %v5532, %v5533
          %v5535 = vlog2.pop %v5534
          %v5536 = vmul.f32 %v5535, 0.6931472
          %v5537 = vadd.f32 %v5524, %v5536
          %v5538 = vsub.f32 %v5514, %v5537
          %5539 = vst.msk [vmem:[#allocation4] sm:$0x3] %vm5517, %v5538
        $region108: #{net_forward.5} parent=95 // pred_fallthru
          _
        // Predicated region
        $region109: #{net_forward.5} parent=95 // pred_check
          %p5540 = pneg %p194
        $region110: #{net_forward.5} parent=95 // pred_check_branch
          %5542 = sbr.rel (%p5540) target = $region112
        $region111: #{net_forward.5} parent=95 // pred_region
          %5544 = vsyncadd [#allocation5], 0
          %s5546 = sshll.u32 [#allocation4], 4
          %s5547 = int_to_ptr.vmem [resolvable:$true] %s5546
          %s5548 = sshll.u32 %s7, 4
          %s5549 = int_to_ptr.hbm [resolvable:$true] %s5548
          %5551 = dma.vmem_to_hbm [thread:$0]  %s5547, 32, %s5549, [#allocation5]
        $region112: #{net_forward.5} parent=95 // pred_fallthru
          _
        // Predicated region
        $region113: #{net_forward.5} parent=95 // pred_check
          %p5552 = pneg %p194
        $region114: #{net_forward.5} parent=95 // pred_check_branch
          %5554 = sbr.rel (%p5552) target = $region116
        $region115: #{net_forward.5} parent=95 // pred_region
          %5556 = dma.done [#allocation5], 32
        $region116: #{net_forward.5} parent=95 // pred_fallthru
          _
      $region96: #{net_forward.5} parent=5 // pred_fallthru
        _
      %p5557 = scmp.le.s32.totalorder 2, %s14
      // Predicated region
      $region117: #{net_forward.5} parent=5 // pred_check
        %p5558 = pneg %p5557
      $region118: #{net_forward.5} parent=5 // pred_check_branch
        %5560 = sbr.rel (%p5558) target = $region120
      $region119: #{net_forward.5} parent=5 // pred_region
        %s5561 = ssub.s32 %s14, 2
      $region120: #{net_forward.5} parent=5 // pred_fallthru
        _
    $region6: #{net_forward.5} parent=1 // loop_footer
      %s18 = sadd.s32 1, %s14
    $region7: #{net_forward.5} parent=1 // loop_footer_branch
      %13 = sbr.rel target = $region3
    $region8: #{net_forward.5} parent=1 // loop_exit
      _
    %5562 = vsyncpa [#allocation5], 1
    %s5563 = scalar_lea.sflag [#allocation5], 1
    %5564 = vsyncpa %s5563, 1

</llo_original>
